<compile_context>
chip_gen: v5e
topology: v5e:2x2
jax: 0.10.0
libtpu: 0.0.40
codegen_flags: <defaults>
</compile_context>

<pallas_src>
import functools

import jax
import jax.numpy as jnp
from jax.experimental import pallas as pl
from jax.experimental.pallas import tpu as pltpu

# Scoped-VMEM ceiling shared by all kernels: <= ~48 MB keeps headroom on v7x
# (64 MiB physical); v5e / v6e have 128 MiB.
_VMEM_LIMIT = 48 * 1024 * 1024


def _round_up(n, m):
    return ((n + m - 1) // m) * m


def _largest_divisor(n, cap):
    for c in range(min(cap, n), 0, -1):
        if n % c == 0:
            return c
    return 1


# --------------------- fused conv1 + ReLU + conv2 + ReLU ----------------------
def _conv_stack_kernel(x_ref, w1_ref, b1_ref, w2_ref, b2_ref, o_ref, h1p_sc):
    # x_ref : (1, T+2, Cin) f32      w1_ref: (3, Cin, Cout) f32   b1_ref: (1, Cout)
    # w2_ref: (3, Cout, Cout) bf16   b2_ref: (1, Cout) f32
    # o_ref : (1, T, Cout)  bf16     h1p_sc: (T+2, Cout) bf16 scratch (zero-padded h1)
    T = o_ref.shape[1]
    Cout = o_ref.shape[2]
    x = x_ref[0]
    # conv1 + ReLU  (K = Cin is tiny; three shifted f32 dots)
    h1 = jnp.dot(x[0:T], w1_ref[0], preferred_element_type=jnp.float32)
    h1 = h1 + jnp.dot(x[1:T + 1], w1_ref[1], preferred_element_type=jnp.float32)
    h1 = h1 + jnp.dot(x[2:T + 2], w1_ref[2], preferred_element_type=jnp.float32)
    h1 = jnp.maximum(h1 + b1_ref[...], 0.0)
    # conv2 + ReLU: zero-pad h1 in a bf16 VMEM buffer and accumulate three
    # (T, Cout) x (Cout, Cout) MXU dots over the shifted views (no lane-concat
    # copy; identical FLOPs, less VMEM traffic).
    h1p_sc[0:1, :] = jnp.zeros((1, Cout), jnp.bfloat16)
    h1p_sc[T + 1:T + 2, :] = jnp.zeros((1, Cout), jnp.bfloat16)
    h1p_sc[1:T + 1, :] = h1.astype(jnp.bfloat16)
    h2 = jnp.dot(h1p_sc[0:T, :], w2_ref[0], preferred_element_type=jnp.float32)
    h2 = h2 + jnp.dot(h1p_sc[1:T + 1, :], w2_ref[1], preferred_element_type=jnp.float32)
    h2 = h2 + jnp.dot(h1p_sc[2:T + 2, :], w2_ref[2], preferred_element_type=jnp.float32)
    h2 = h2 + b2_ref[...]
    o_ref[0] = jnp.maximum(h2, 0.0).astype(o_ref.dtype)


def conv_stack(x_tc, w1, b1, w2, b2):
    # x_tc: (B, T, Cin) time-major; w1: (Cout, Cin, 3), w2: (Cout, Cout, 3) torch layout
    B, T, Cin = x_tc.shape
    Cout = w1.shape[0]
    xp = jnp.pad(x_tc, ((0, 0), (1, 1), (0, 0)))                       # time pad=1
    w1_t = jnp.transpose(w1, (2, 1, 0))                                # (3, Cin, Cout)
    w2_t = jnp.transpose(w2, (2, 1, 0)).astype(jnp.bfloat16)           # (3, Cout, Cout)
    return pl.pallas_call(
        _conv_stack_kernel,
        out_shape=jax.ShapeDtypeStruct((B, T, Cout), jnp.bfloat16),
        grid=(B,),
        in_specs=[
            pl.BlockSpec((1, T + 2, Cin), lambda b: (b, 0, 0)),
            pl.BlockSpec((3, Cin, Cout), lambda b: (0, 0, 0)),
            pl.BlockSpec((1, Cout), lambda b: (0, 0)),
            pl.BlockSpec((3, Cout, Cout), lambda b: (0, 0, 0)),
            pl.BlockSpec((1, Cout), lambda b: (0, 0)),
        ],
        out_specs=pl.BlockSpec((1, T, Cout), lambda b: (b, 0, 0)),
        scratch_shapes=[pltpu.VMEM((T + 2, Cout), jnp.bfloat16)],
        compiler_params=pltpu.CompilerParams(
            dimension_semantics=("parallel",),
            vmem_limit_bytes=_VMEM_LIMIT),
    )(xp, w1_t, b1.reshape(1, Cout), w2_t, b2.reshape(1, Cout))


# ------------------- bidirectional LSTM layer (one pallas_call) ---------------
def _bilstm_kernel(x_ref, len_ref, wih_ref, whh_ref, b_ref, o_ref,
                   gx_sc, h_sc, c_sc):
    # One (direction, time-chunk) grid step of a bidirectional LSTM layer.
    #   x_ref  : (TC*B, I)  bf16   time-major-flat input chunk (row = t*B + b)
    #   len_ref: (B, 1)     int32  sequence lengths (pad batch rows have 0)
    #   wih_ref: (1, I, 4H) bf16   this direction's input projection
    #   whh_ref: (1, H, 4H) bf16   this direction's recurrent projection
    #   b_ref  : (1, 1, 4H) f32    b_ih + b_hh
    #   o_ref  : (TC*B, H)  bf16   this direction's half of the (Tp*B, 2H) output
    #   gx_sc  : (TC*B, 4H) bf16   hoisted input-projection (+bias) buffer
    #   h_sc   : (B, H)     bf16   recurrent h carried across time chunks
    #   c_sc   : (B, H)     f32    recurrent c carried across time chunks
    d = pl.program_id(0)                      # 0 = forward, 1 = backward
    c = pl.program_id(1)                      # time-chunk index
    nchunks = pl.num_programs(1)
    B, H = h_sc.shape
    TC = o_ref.shape[0] // B

    @pl.when(c == 0)
    def _():
        h_sc[...] = jnp.zeros_like(h_sc)
        c_sc[...] = jnp.zeros_like(c_sc)

    # Hoisted input projection (+bias): one fat MXU matmul per chunk, stored
    # bf16 to halve the dominant scratch.
    gx_sc[...] = (jnp.dot(x_ref[...], wih_ref[0],
                          preferred_element_type=jnp.float32)
                  + b_ref[0]).astype(jnp.bfloat16)

    # chunk -> global-time mapping (backward walks chunks and rows in reverse)
    t0 = (c + d * (nchunks - 1 - 2 * c)) * TC
    rel_lens = len_ref[...] - t0                          # (B, 1) int32, hoisted
    whh = whh_ref[0]                                      # (H, 4H) bf16

    def step(i, carry):
        r = i + d * (TC - 1 - 2 * i)                      # local row: i or TC-1-i
        off = pl.multiple_of(r * B, B)                    # sublane-aligned (B % 16 == 0)
        h_prev = h_sc[...]
        c_prev = c_sc[...]
        gates = gx_sc[pl.ds(off, B)] + jnp.dot(
            h_prev, whh, preferred_element_type=jnp.float32)
        i_g = jax.nn.sigmoid(gates[:, 0:H])               # torch gate order i,f,g,o
        f_g = jax.nn.sigmoid(gates[:, H:2 * H])
        g_g = jnp.tanh(gates[:, 2 * H:3 * H])
        o_g = jax.nn.sigmoid(gates[:, 3 * H:4 * H])
        c_new = f_g * c_prev + i_g * g_g
        h_new = (o_g * jnp.tanh(c_new)).astype(jnp.bfloat16)
        # pack_padded / pad_packed semantics: positions t >= length neither
        # update the state nor produce output.
        valid = r < rel_lens                              # (B, 1)
        h_sc[...] = jnp.where(valid, h_new, h_prev)
        c_sc[...] = jnp.where(valid, c_new, c_prev)
        o_ref[pl.ds(off, B), :] = jnp.where(valid, h_new, jnp.zeros_like(h_new))
        return carry

    jax.lax.fori_loop(0, TC, step, 0)


def bilstm_layer(x_2d, lengths_i, fwd, bwd, *, seq_len, batch, time_chunk):
    # x_2d: (Tp*Bp, I) bf16 (row = t*Bp + b).  fwd/bwd are PyTorch-layout params
    # (w_ih (4H, I), w_hh (4H, H), b_ih, b_hh).  Returns (Tp*Bp, 2H) bf16 with
    # [fwd | bwd] halves, zero at t >= length (pad_packed_sequence semantics).
    T, B = seq_len, batch                     # already padded: T % tc == 0, B % 16 == 0
    I = x_2d.shape[1]
    H = fwd[1].shape[1]
    tc = time_chunk
    nchunks = T // tc

    w_ih = jnp.stack([fwd[0].T, bwd[0].T]).astype(jnp.bfloat16)        # (2, I, 4H)
    w_hh = jnp.stack([fwd[1].T, bwd[1].T]).astype(jnp.bfloat16)        # (2, H, 4H)
    bias = jnp.stack([(fwd[2] + fwd[3]).reshape(1, 4 * H),
                      (bwd[2] + bwd[3]).reshape(1, 4 * H)])            # (2, 1, 4H)

    def x_map(d, c):
        return (c + d * (nchunks - 1 - 2 * c), 0)

    def o_map(d, c):
        return (c + d * (nchunks - 1 - 2 * c), d)

    return pl.pallas_call(
        _bilstm_kernel,
        out_shape=jax.ShapeDtypeStruct((T * B, 2 * H), jnp.bfloat16),
        grid=(2, nchunks),
        in_specs=[
            pl.BlockSpec((tc * B, I), x_map),
            pl.BlockSpec((B, 1), lambda d, c: (0, 0)),
            pl.BlockSpec((1, I, 4 * H), lambda d, c: (d, 0, 0)),
            pl.BlockSpec((1, H, 4 * H), lambda d, c: (d, 0, 0)),
            pl.BlockSpec((1, 1, 4 * H), lambda d, c: (d, 0, 0)),
        ],
        out_specs=pl.BlockSpec((tc * B, H), o_map),
        scratch_shapes=[pltpu.VMEM((tc * B, 4 * H), jnp.bfloat16),
                        pltpu.VMEM((B, H), jnp.bfloat16),
                        pltpu.VMEM((B, H), jnp.float32)],
        compiler_params=pltpu.CompilerParams(
            dimension_semantics=("parallel", "arbitrary"),
            vmem_limit_bytes=_VMEM_LIMIT),
    )(x_2d, lengths_i.reshape(B, 1), w_ih, w_hh, bias)


# --------------- chunked masked mean pool + fused mu/log_var heads ------------
def _pool_heads_kernel(seq_ref, len_ref, w_ref, b_ref, o_ref, acc_sc):
    # seq_ref: (TC, B, D) bf16   len_ref: (B, 1) f32 (>= 1)
    # w_ref  : (D, 2L)    bf16   b_ref  : (1, 2L) f32
    # o_ref  : (B, 2L)    f32    acc_sc : (B, D)  f32 running masked sum
    c = pl.program_id(0)
    TC, B, D = seq_ref.shape

    @pl.when(c == 0)
    def _():
        acc_sc[...] = jnp.zeros_like(acc_sc)

    t_idx = jax.lax.broadcasted_iota(jnp.int32, (TC, B, 1), 0) + c * TC
    mask = t_idx < len_ref[...].astype(jnp.int32)
    acc_sc[...] += jnp.sum(
        jnp.where(mask, seq_ref[...].astype(jnp.float32), 0.0), axis=0)

    @pl.when(c == pl.num_programs(0) - 1)
    def _():
        avg = acc_sc[...] / len_ref[...]                 # exact divide, off hot path
        o_ref[...] = jnp.dot(avg.astype(jnp.bfloat16), w_ref[...],
                             preferred_element_type=jnp.float32) + b_ref[...]


def pool_and_heads(seq_tm, lengths_f, w_mu, b_mu, w_lv, b_lv, *, time_chunk):
    T, B, D = seq_tm.shape
    L = w_mu.shape[0]
    # The pool is memory-bound and independent of the LSTM chunk: use a bigger
    # block (target 256) to approach the HBM roofline.
    tc = _largest_divisor(T, max(256, time_chunk))
    w_cat = jnp.concatenate([w_mu.T, w_lv.T], axis=1).astype(jnp.bfloat16)   # (D, 2L)
    b_cat = jnp.concatenate([b_mu, b_lv]).reshape(1, 2 * L)
    out = pl.pallas_call(
        _pool_heads_kernel,
        out_shape=jax.ShapeDtypeStruct((B, 2 * L), jnp.float32),
        grid=(T // tc,),
        in_specs=[
            pl.BlockSpec((tc, B, D), lambda c: (c, 0, 0)),
            pl.BlockSpec((B, 1), lambda c: (0, 0)),
            pl.BlockSpec((D, 2 * L), lambda c: (0, 0)),
            pl.BlockSpec((1, 2 * L), lambda c: (0, 0)),
        ],
        out_specs=pl.BlockSpec((B, 2 * L), lambda c: (0, 0)),
        scratch_shapes=[pltpu.VMEM((B, D), jnp.float32)],
        compiler_params=pltpu.CompilerParams(
            dimension_semantics=("arbitrary",),
            vmem_limit_bytes=_VMEM_LIMIT),
    )(seq_tm, lengths_f.reshape(B, 1), w_cat, b_cat)
    return out[:, :L], out[:, L:]


# ----------------------------------- glue -------------------------------------
def _lstm_params(params, layer, suffix):
    return (params[f'w_ih_l{layer}{suffix}'], params[f'w_hh_l{layer}{suffix}'],
            params[f'b_ih_l{layer}{suffix}'], params[f'b_hh_l{layer}{suffix}'])


def encoder_forward(params, padded_x, sorted_lengths, *, time_chunk=128):
    B, T, C = padded_x.shape
    lengths_i = sorted_lengths.astype(jnp.int32)

    # padded_x.view(-1, C, T): raw reshape (NOT a transpose), exactly like .view
    x_ct = padded_x.reshape(B, C, T)
    x_tc = jnp.transpose(x_ct, (0, 2, 1))                       # (B, T, Cin) for conv
    conv = conv_stack(x_tc, params['conv1_w'], params['conv1_b'],
                      params['conv2_w'], params['conv2_b'])     # (B, T, 512) bf16
    # torch conv output is (B, 512, T); .view(-1, T, 512) is again a raw reshape
    conv_ct = jnp.transpose(conv, (0, 2, 1))                    # (B, 512, T)
    D = conv_ct.shape[1]
    lstm_in_bt = conv_ct.reshape(B, T, D)                       # raw .view()
    x_tbd = jnp.transpose(lstm_in_bt, (1, 0, 2))                # (T, B, 512) time-major

    # Pad time to a multiple of the chunk (avoids the tc=1 cliff for odd T) and
    # batch to a multiple of 16 (sublane/bf16-aligned per-step stores).  Padded
    # rows get length 0, so the in-kernel (t < length) mask keeps them at zero.
    tc_eff = min(time_chunk, _round_up(T, 8))
    Tp = _round_up(T, tc_eff)
    Bp = _round_up(B, 16)
    x_tbd = jnp.pad(x_tbd, ((0, Tp - T), (0, Bp - B), (0, 0)))
    x2d = x_tbd.reshape(Tp * Bp, D)
    lens_lstm = jnp.pad(lengths_i, (0, Bp - B))                 # pad rows: length 0

    l0 = bilstm_layer(x2d, lens_lstm,
                      _lstm_params(params, 0, ''), _lstm_params(params, 0, 'r'),
                      seq_len=Tp, batch=Bp, time_chunk=tc_eff)
    l1 = bilstm_layer(l0, lens_lstm,
                      _lstm_params(params, 1, ''), _lstm_params(params, 1, 'r'),
                      seq_len=Tp, batch=Bp, time_chunk=tc_eff)

    # pad batch rows have all-zero LSTM output; clamp their divisor to 1.
    lens_pool = jnp.pad(sorted_lengths.astype(jnp.float32), (0, Bp - B),
                        constant_values=1.0)
    mu, log_var = pool_and_heads(l1.reshape(Tp, Bp, l1.shape[1]), lens_pool,
                                 params['mu_w'], params['mu_b'],
                                 params['lv_w'], params['lv_b'],
                                 time_chunk=tc_eff)
    return mu[:B], log_var[:B]


# ----------------------------- pure-JAX reference ------------------------------
def ref_encoder_forward(params, padded_x, sorted_lengths):
    B, T, C = padded_x.shape
    lens = sorted_lengths.astype(jnp.int32)

    def conv(x, w, b):
        Tn = x.shape[1]
        xp = jnp.pad(x, ((0, 0), (1, 1), (0, 0)))
        wt = jnp.transpose(w, (2, 1, 0))
        y = xp[:, 0:Tn] @ wt[0] + xp[:, 1:Tn + 1] @ wt[1] + xp[:, 2:Tn + 2] @ wt[2] + b
        return jnp.maximum(y, 0.0)

    x_tc = jnp.transpose(padded_x.reshape(B, C, T), (0, 2, 1))
    h = conv(conv(x_tc, params['conv1_w'], params['conv1_b']),
             params['conv2_w'], params['conv2_b'])                     # (B, T, 512)
    lstm_in = jnp.transpose(h, (0, 2, 1)).reshape(B, T, h.shape[2])    # raw .view()

    def lstm_dir(x_btd, w_ih, w_hh, b_ih, b_hh):
        H = w_hh.shape[1]

        def step(carry, x_t):
            h_, c_ = carry
            g = x_t @ w_ih.T + h_ @ w_hh.T + b_ih + b_hh
            i_g = jax.nn.sigmoid(g[:, :H])
            f_g = jax.nn.sigmoid(g[:, H:2 * H])
            g_g = jnp.tanh(g[:, 2 * H:3 * H])
            o_g = jax.nn.sigmoid(g[:, 3 * H:])
            c_ = f_g * c_ + i_g * g_g
            h_ = o_g * jnp.tanh(c_)
            return (h_, c_), h_

        init = (jnp.zeros((B, H), jnp.float32), jnp.zeros((B, H), jnp.float32))
        _, hs = jax.lax.scan(step, init, jnp.transpose(x_btd, (1, 0, 2)))
        return jnp.transpose(hs, (1, 0, 2))

    def reverse_by_length(x_btd):
        t = jnp.arange(T)[None, :]
        idx = jnp.where(t < lens[:, None], lens[:, None] - 1 - t, t)
        return jnp.take_along_axis(x_btd, idx[:, :, None], axis=1)

    time_mask = jnp.arange(T)[None, :, None] < lens[:, None, None]

    def bilayer(x_btd, fwd, bwd):
        hf = lstm_dir(x_btd, *fwd)
        hb = reverse_by_length(lstm_dir(reverse_by_length(x_btd), *bwd))
        return jnp.where(time_mask, jnp.concatenate([hf, hb], axis=-1), 0.0)

    l0 = bilayer(lstm_in, _lstm_params(params, 0, ''), _lstm_params(params, 0, 'r'))
    l1 = bilayer(l0, _lstm_params(params, 1, ''), _lstm_params(params, 1, 'r'))
    avg = jnp.sum(l1, axis=1) / sorted_lengths[:, None]
    mu = avg @ params['mu_w'].T + params['mu_b']
    log_var = avg @ params['lv_w'].T + params['lv_b']
    return mu, log_var


# ------------------------------ parameter init --------------------------------
def init_params(key, in_channels, latent_size, hidden=256, conv_ch=512):
    keys = jax.random.split(key, 32)
    kit = iter(keys)

    def u(shape, bound):
        return jax.random.uniform(next(kit), shape, jnp.float32, -bound, bound)

    p = {}
    b1 = 1.0 / (in_channels * 3) ** 0.5
    p['conv1_w'] = u((conv_ch, in_channels, 3), b1)
    p['conv1_b'] = u((conv_ch,), b1)
    b2 = 1.0 / (conv_ch * 3) ** 0.5
    p['conv2_w'] = u((conv_ch, conv_ch, 3), b2)
    p['conv2_b'] = u((conv_ch,), b2)
    bl = 1.0 / hidden ** 0.5
    for layer, insz in ((0, conv_ch), (1, 2 * hidden)):
        for sfx in ('', 'r'):
            p[f'w_ih_l{layer}{sfx}'] = u((4 * hidden, insz), bl)
            p[f'w_hh_l{layer}{sfx}'] = u((4 * hidden, hidden), bl)
            p[f'b_ih_l{layer}{sfx}'] = u((4 * hidden,), bl)
            p[f'b_hh_l{layer}{sfx}'] = u((4 * hidden,), bl)
    bh = 1.0 / (2 * hidden) ** 0.5
    p['mu_w'] = u((latent_size, 2 * hidden), bh)
    p['mu_b'] = u((latent_size,), bh)
    p['lv_w'] = u((latent_size, 2 * hidden), bh)
    p['lv_b'] = u((latent_size,), bh)
    return p


if __name__ == "__main__":
    B, T, C, LATENT = 2, 16, 4, 16
    key = jax.random.PRNGKey(0)
    kx, kp = jax.random.split(key)
    padded_x = jax.random.normal(kx, (B, T, C), jnp.float32)
    sorted_lengths = jnp.array([16.0, 9.0], jnp.float32)   # descending, max == T
    params = init_params(kp, C, LATENT)

    # time_chunk=8 -> 2 time chunks: exercises the cross-chunk (h, c) carry,
    # the batch/time padding path, and the chunked pooling accumulator.
    pallas_fwd = jax.jit(functools.partial(encoder_forward, time_chunk=8))
    mu, log_var = pallas_fwd(params, padded_x, sorted_lengths)
    jax.block_until_ready((mu, log_var))

    mu_ref, lv_ref = jax.jit(ref_encoder_forward)(params, padded_x, sorted_lengths)
    jax.block_until_ready((mu_ref, lv_ref))

    assert mu.shape == (B, LATENT) and log_var.shape == (B, LATENT)
    # bf16 MXU operands (f32 accumulation) vs f32 reference
    assert jnp.allclose(mu, mu_ref, rtol=5e-2, atol=5e-2)
    assert jnp.allclose(log_var, lv_ref, rtol=5e-2, atol=5e-2)
    print("KERNEL_OK")
</pallas_src>

<mosaic_0001>
module attributes {stable_mosaic.version = 11 : i64} {
  func.func @_conv_stack_kernel(%arg0: i32, %arg1: memref<1x18x4xf32, #tpu.memory_space<vmem>>, %arg2: memref<3x4x512xf32, #tpu.memory_space<vmem>>, %arg3: memref<1x512xf32, #tpu.memory_space<vmem>>, %arg4: memref<3x512x512xbf16, #tpu.memory_space<vmem>>, %arg5: memref<1x512xf32, #tpu.memory_space<vmem>>, %arg6: memref<1x16x512xbf16, #tpu.memory_space<vmem>>, %arg7: memref<18x512xbf16, #tpu.memory_space<vmem>>) attributes {dimension_semantics = [#tpu.dimension_semantics<parallel>], iteration_bounds = array<i64: 2>, scalar_prefetch = 0 : i64, scratch_operands = 1 : i64, tpu.core_type = #tpu.core_type<tc>, window_params = [{transform_indices = @transform_0, window_bounds = array<i64: 1, 18, 4>}, {pipeline_mode = #tpu.pipeline_mode<synchronous>, transform_indices = @transform_1, window_bounds = array<i64: 3, 4, 512>}, {pipeline_mode = #tpu.pipeline_mode<synchronous>, transform_indices = @transform_2, window_bounds = array<i64: 1, 512>}, {pipeline_mode = #tpu.pipeline_mode<synchronous>, transform_indices = @transform_3, window_bounds = array<i64: 3, 512, 512>}, {pipeline_mode = #tpu.pipeline_mode<synchronous>, transform_indices = @transform_4, window_bounds = array<i64: 1, 512>}, {transform_indices = @transform_5, window_bounds = array<i64: 1, 16, 512>}]} {
    %c0 = arith.constant 0 : index
    %c0_0 = arith.constant 0 : index
    %c0_1 = arith.constant 0 : index
    %0 = vector.load %arg1[%c0, %c0_0, %c0_1] : memref<1x18x4xf32, #tpu.memory_space<vmem>>, vector<1x18x4xf32>
    %1 = vector.shape_cast %0 : vector<1x18x4xf32> to vector<18x4xf32>
    %2 = vector.extract_strided_slice %1 {offsets = [0, 0], sizes = [16, 4], strides = [1, 1]} : vector<18x4xf32> to vector<16x4xf32>
    %c0_2 = arith.constant 0 : index
    %c0_3 = arith.constant 0 : index
    %c0_4 = arith.constant 0 : index
    %3 = vector.load %arg2[%c0_2, %c0_3, %c0_4] : memref<3x4x512xf32, #tpu.memory_space<vmem>>, vector<1x4x512xf32>
    %4 = vector.shape_cast %3 : vector<1x4x512xf32> to vector<4x512xf32>
    %cst = arith.constant dense<0.000000e+00> : vector<16x512xf32>
    %5 = tpu.matmul %2, %4, %cst {dimension_numbers = #tpu.dot_dimension_numbers<[1], [0], [0], [1], [0, 0, 1, 1], [], []>} : vector<16x4xf32>, vector<4x512xf32>, vector<16x512xf32> -> vector<16x512xf32>
    %6 = vector.extract_strided_slice %1 {offsets = [1, 0], sizes = [16, 4], strides = [1, 1]} : vector<18x4xf32> to vector<16x4xf32>
    %c1 = arith.constant 1 : index
    %c0_5 = arith.constant 0 : index
    %c0_6 = arith.constant 0 : index
    %7 = vector.load %arg2[%c1, %c0_5, %c0_6] : memref<3x4x512xf32, #tpu.memory_space<vmem>>, vector<1x4x512xf32>
    %8 = vector.shape_cast %7 : vector<1x4x512xf32> to vector<4x512xf32>
    %cst_7 = arith.constant dense<0.000000e+00> : vector<16x512xf32>
    %9 = tpu.matmul %6, %8, %cst_7 {dimension_numbers = #tpu.dot_dimension_numbers<[1], [0], [0], [1], [0, 0, 1, 1], [], []>} : vector<16x4xf32>, vector<4x512xf32>, vector<16x512xf32> -> vector<16x512xf32>
    %10 = arith.addf %5, %9 : vector<16x512xf32>
    %11 = vector.extract_strided_slice %1 {offsets = [2, 0], sizes = [16, 4], strides = [1, 1]} : vector<18x4xf32> to vector<16x4xf32>
    %c2 = arith.constant 2 : index
    %c0_8 = arith.constant 0 : index
    %c0_9 = arith.constant 0 : index
    %12 = vector.load %arg2[%c2, %c0_8, %c0_9] : memref<3x4x512xf32, #tpu.memory_space<vmem>>, vector<1x4x512xf32>
    %13 = vector.shape_cast %12 : vector<1x4x512xf32> to vector<4x512xf32>
    %cst_10 = arith.constant dense<0.000000e+00> : vector<16x512xf32>
    %14 = tpu.matmul %11, %13, %cst_10 {dimension_numbers = #tpu.dot_dimension_numbers<[1], [0], [0], [1], [0, 0, 1, 1], [], []>} : vector<16x4xf32>, vector<4x512xf32>, vector<16x512xf32> -> vector<16x512xf32>
    %15 = arith.addf %10, %14 : vector<16x512xf32>
    %c0_11 = arith.constant 0 : index
    %c0_12 = arith.constant 0 : index
    %16 = vector.load %arg3[%c0_11, %c0_12] : memref<1x512xf32, #tpu.memory_space<vmem>>, vector<1x512xf32>
    %17 = vector.broadcast %16 : vector<1x512xf32> to vector<16x512xf32>
    %18 = arith.addf %15, %17 : vector<16x512xf32>
    %cst_13 = arith.constant 0.000000e+00 : f32
    %19 = vector.broadcast %cst_13 : f32 to vector<16x512xf32>
    %20 = arith.maximumf %18, %19 : vector<16x512xf32>
    %cst_14 = arith.constant 0.000000e+00 : bf16
    %21 = vector.broadcast %cst_14 : bf16 to vector<1x512xbf16>
    %c0_15 = arith.constant 0 : index
    %c0_16 = arith.constant 0 : index
    %22 = vector.load %arg7[%c0_15, %c0_16] : memref<18x512xbf16, #tpu.memory_space<vmem>>, vector<1x512xbf16>
    tpu.vector_store %arg7[%c0_15, %c0_16], %21 {strides = array<i32>} : memref<18x512xbf16, #tpu.memory_space<vmem>>, vector<1x512xbf16>,
    %cst_17 = arith.constant 0.000000e+00 : bf16
    %23 = vector.broadcast %cst_17 : bf16 to vector<1x512xbf16>
    %c17 = arith.constant 17 : index
    %c0_18 = arith.constant 0 : index
    %24 = vector.load %arg7[%c17, %c0_18] : memref<18x512xbf16, #tpu.memory_space<vmem>>, vector<1x512xbf16>
    tpu.vector_store %arg7[%c17, %c0_18], %23 {strides = array<i32>} : memref<18x512xbf16, #tpu.memory_space<vmem>>, vector<1x512xbf16>,
    %25 = arith.truncf %20 : vector<16x512xf32> to vector<16x512xbf16>
    %c1_19 = arith.constant 1 : index
    %c0_20 = arith.constant 0 : index
    %26 = vector.load %arg7[%c1_19, %c0_20] : memref<18x512xbf16, #tpu.memory_space<vmem>>, vector<16x512xbf16>
    tpu.vector_store %arg7[%c1_19, %c0_20], %25 {strides = array<i32>} : memref<18x512xbf16, #tpu.memory_space<vmem>>, vector<16x512xbf16>,
    %c0_21 = arith.constant 0 : index
    %c0_22 = arith.constant 0 : index
    %27 = vector.load %arg7[%c0_21, %c0_22] : memref<18x512xbf16, #tpu.memory_space<vmem>>, vector<16x512xbf16>
    %c0_23 = arith.constant 0 : index
    %c0_24 = arith.constant 0 : index
    %c0_25 = arith.constant 0 : index
    %28 = vector.load %arg4[%c0_23, %c0_24, %c0_25] : memref<3x512x512xbf16, #tpu.memory_space<vmem>>, vector<1x512x512xbf16>
    %29 = vector.shape_cast %28 : vector<1x512x512xbf16> to vector<512x512xbf16>
    %cst_26 = arith.constant dense<0.000000e+00> : vector<16x512xf32>
    %30 = tpu.matmul %27, %29, %cst_26 {dimension_numbers = #tpu.dot_dimension_numbers<[1], [0], [0], [1], [0, 0, 1, 1], [], []>} : vector<16x512xbf16>, vector<512x512xbf16>, vector<16x512xf32> -> vector<16x512xf32>
    %c1_27 = arith.constant 1 : index
    %c0_28 = arith.constant 0 : index
    %31 = vector.load %arg7[%c1_27, %c0_28] : memref<18x512xbf16, #tpu.memory_space<vmem>>, vector<16x512xbf16>
    %c1_29 = arith.constant 1 : index
    %c0_30 = arith.constant 0 : index
    %c0_31 = arith.constant 0 : index
    %32 = vector.load %arg4[%c1_29, %c0_30, %c0_31] : memref<3x512x512xbf16, #tpu.memory_space<vmem>>, vector<1x512x512xbf16>
    %33 = vector.shape_cast %32 : vector<1x512x512xbf16> to vector<512x512xbf16>
    %cst_32 = arith.constant dense<0.000000e+00> : vector<16x512xf32>
    %34 = tpu.matmul %31, %33, %cst_32 {dimension_numbers = #tpu.dot_dimension_numbers<[1], [0], [0], [1], [0, 0, 1, 1], [], []>} : vector<16x512xbf16>, vector<512x512xbf16>, vector<16x512xf32> -> vector<16x512xf32>
    %35 = arith.addf %30, %34 : vector<16x512xf32>
    %c2_33 = arith.constant 2 : index
    %c0_34 = arith.constant 0 : index
    %36 = vector.load %arg7[%c2_33, %c0_34] : memref<18x512xbf16, #tpu.memory_space<vmem>>, vector<16x512xbf16>
    %c2_35 = arith.constant 2 : index
    %c0_36 = arith.constant 0 : index
    %c0_37 = arith.constant 0 : index
    %37 = vector.load %arg4[%c2_35, %c0_36, %c0_37] : memref<3x512x512xbf16, #tpu.memory_space<vmem>>, vector<1x512x512xbf16>
    %38 = vector.shape_cast %37 : vector<1x512x512xbf16> to vector<512x512xbf16>
    %cst_38 = arith.constant dense<0.000000e+00> : vector<16x512xf32>
    %39 = tpu.matmul %36, %38, %cst_38 {dimension_numbers = #tpu.dot_dimension_numbers<[1], [0], [0], [1], [0, 0, 1, 1], [], []>} : vector<16x512xbf16>, vector<512x512xbf16>, vector<16x512xf32> -> vector<16x512xf32>
    %40 = arith.addf %35, %39 : vector<16x512xf32>
    %c0_39 = arith.constant 0 : index
    %c0_40 = arith.constant 0 : index
    %41 = vector.load %arg5[%c0_39, %c0_40] : memref<1x512xf32, #tpu.memory_space<vmem>>, vector<1x512xf32>
    %42 = vector.broadcast %41 : vector<1x512xf32> to vector<16x512xf32>
    %43 = arith.addf %40, %42 : vector<16x512xf32>
    %cst_41 = arith.constant 0.000000e+00 : f32
    %44 = vector.broadcast %cst_41 : f32 to vector<16x512xf32>
    %45 = arith.maximumf %43, %44 : vector<16x512xf32>
    %46 = arith.truncf %45 : vector<16x512xf32> to vector<16x512xbf16>
    %c0_42 = arith.constant 0 : index
    %c0_43 = arith.constant 0 : index
    %c0_44 = arith.constant 0 : index
    %47 = vector.load %arg6[%c0_42, %c0_43, %c0_44] : memref<1x16x512xbf16, #tpu.memory_space<vmem>>, vector<1x16x512xbf16>
    %48 = vector.shape_cast %47 : vector<1x16x512xbf16> to vector<16x512xbf16>
    %49 = vector.shape_cast %46 : vector<16x512xbf16> to vector<1x16x512xbf16>
    tpu.vector_store %arg6[%c0_42, %c0_43, %c0_44], %49 {strides = array<i32>} : memref<1x16x512xbf16, #tpu.memory_space<vmem>>, vector<1x16x512xbf16>,
    return
  }
  func.func @transform_0(%arg0: i32) -> (i32, i32, i32) {
    %c0_i32 = arith.constant 0 : i32
    %c0_i32_0 = arith.constant 0 : i32
    %c0_i32_1 = arith.constant 0 : i32
    return %arg0, %c0_i32, %c0_i32_0 : i32, i32, i32
  }
  func.func @transform_1(%arg0: i32) -> (i32, i32, i32) {
    %c0_i32 = arith.constant 0 : i32
    %c0_i32_0 = arith.constant 0 : i32
    %c0_i32_1 = arith.constant 0 : i32
    %c0_i32_2 = arith.constant 0 : i32
    return %c0_i32, %c0_i32_0, %c0_i32_1 : i32, i32, i32
  }
  func.func @transform_2(%arg0: i32) -> (i32, i32) {
    %c0_i32 = arith.constant 0 : i32
    %c0_i32_0 = arith.constant 0 : i32
    %c0_i32_1 = arith.constant 0 : i32
    return %c0_i32, %c0_i32_0 : i32, i32
  }
  func.func @transform_3(%arg0: i32) -> (i32, i32, i32) {
    %c0_i32 = arith.constant 0 : i32
    %c0_i32_0 = arith.constant 0 : i32
    %c0_i32_1 = arith.constant 0 : i32
    %c0_i32_2 = arith.constant 0 : i32
    return %c0_i32, %c0_i32_0, %c0_i32_1 : i32, i32, i32
  }
  func.func @transform_4(%arg0: i32) -> (i32, i32) {
    %c0_i32 = arith.constant 0 : i32
    %c0_i32_0 = arith.constant 0 : i32
    %c0_i32_1 = arith.constant 0 : i32
    return %c0_i32, %c0_i32_0 : i32, i32
  }
  func.func @transform_5(%arg0: i32) -> (i32, i32, i32) {
    %c0_i32 = arith.constant 0 : i32
    %c0_i32_0 = arith.constant 0 : i32
    %c0_i32_1 = arith.constant 0 : i32
    return %arg0, %c0_i32, %c0_i32_0 : i32, i32, i32
  }
}

module attributes {stable_mosaic.version = 11 : i64} {
  func.func @_bilstm_kernel(%arg0: i32, %arg1: i32, %arg2: memref<128x512xbf16, #tpu.memory_space<vmem>>, %arg3: memref<16x1xi32, #tpu.memory_space<vmem>>, %arg4: memref<1x512x1024xbf16, #tpu.memory_space<vmem>>, %arg5: memref<1x256x1024xbf16, #tpu.memory_space<vmem>>, %arg6: memref<1x1x1024xf32, #tpu.memory_space<vmem>>, %arg7: memref<128x256xbf16, #tpu.memory_space<vmem>>, %arg8: memref<128x1024xbf16, #tpu.memory_space<vmem>>, %arg9: memref<16x256xbf16, #tpu.memory_space<vmem>>, %arg10: memref<16x256xf32, #tpu.memory_space<vmem>>) attributes {dimension_semantics = [#tpu.dimension_semantics<parallel>, #tpu.dimension_semantics<arbitrary>], iteration_bounds = array<i64: 2, 2>, scalar_prefetch = 0 : i64, scratch_operands = 3 : i64, tpu.core_type = #tpu.core_type<tc>, window_params = [{transform_indices = @transform_0, window_bounds = array<i64: 128, 512>}, {pipeline_mode = #tpu.pipeline_mode<synchronous>, transform_indices = @transform_1, window_bounds = array<i64: 16, 1>}, {transform_indices = @transform_2, window_bounds = array<i64: 1, 512, 1024>}, {transform_indices = @transform_3, window_bounds = array<i64: 1, 256, 1024>}, {transform_indices = @transform_4, window_bounds = array<i64: 1, 1, 1024>}, {transform_indices = @transform_5, window_bounds = array<i64: 128, 256>}]} {
    %c0_i32 = arith.constant 0 : i32
    %0 = arith.cmpi eq, %arg1, %c0_i32 : i32
    %1 = arith.extui %0 : i1 to i32
    %c0_i32_0 = arith.constant 0 : i32
    %2 = arith.cmpi ne, %1, %c0_i32_0 : i32
    scf.if %2 {
      %cst_19 = arith.constant 0.000000e+00 : bf16
      %24 = vector.broadcast %cst_19 : bf16 to vector<16x256xbf16>
      %c0_20 = arith.constant 0 : index
      %c0_21 = arith.constant 0 : index
      %25 = vector.load %arg9[%c0_20, %c0_21] : memref<16x256xbf16, #tpu.memory_space<vmem>>, vector<16x256xbf16>
      tpu.vector_store %arg9[%c0_20, %c0_21], %24 {strides = array<i32>} : memref<16x256xbf16, #tpu.memory_space<vmem>>, vector<16x256xbf16>,
      %cst_22 = arith.constant 0.000000e+00 : f32
      %26 = vector.broadcast %cst_22 : f32 to vector<16x256xf32>
      %c0_23 = arith.constant 0 : index
      %c0_24 = arith.constant 0 : index
      %27 = vector.load %arg10[%c0_23, %c0_24] : memref<16x256xf32, #tpu.memory_space<vmem>>, vector<16x256xf32>
      tpu.vector_store %arg10[%c0_23, %c0_24], %26 {strides = array<i32>} : memref<16x256xf32, #tpu.memory_space<vmem>>, vector<16x256xf32>,
    } else {
    }
    %c0 = arith.constant 0 : index
    %c0_1 = arith.constant 0 : index
    %3 = vector.load %arg2[%c0, %c0_1] : memref<128x512xbf16, #tpu.memory_space<vmem>>, vector<128x512xbf16>
    %c0_2 = arith.constant 0 : index
    %c0_3 = arith.constant 0 : index
    %c0_4 = arith.constant 0 : index
    %4 = vector.load %arg4[%c0_2, %c0_3, %c0_4] : memref<1x512x1024xbf16, #tpu.memory_space<vmem>>, vector<1x512x1024xbf16>
    %5 = vector.shape_cast %4 : vector<1x512x1024xbf16> to vector<512x1024xbf16>
    %cst = arith.constant dense<0.000000e+00> : vector<128x1024xf32>
    %6 = tpu.matmul %3, %5, %cst {dimension_numbers = #tpu.dot_dimension_numbers<[1], [0], [0], [1], [0, 0, 1, 1], [], []>} : vector<128x512xbf16>, vector<512x1024xbf16>, vector<128x1024xf32> -> vector<128x1024xf32>
    %c0_5 = arith.constant 0 : index
    %c0_6 = arith.constant 0 : index
    %c0_7 = arith.constant 0 : index
    %7 = vector.load %arg6[%c0_5, %c0_6, %c0_7] : memref<1x1x1024xf32, #tpu.memory_space<vmem>>, vector<1x1x1024xf32>
    %8 = vector.shape_cast %7 : vector<1x1x1024xf32> to vector<1x1024xf32>
    %9 = vector.broadcast %8 : vector<1x1024xf32> to vector<128x1024xf32>
    %10 = arith.addf %6, %9 : vector<128x1024xf32>
    %11 = arith.truncf %10 : vector<128x1024xf32> to vector<128x1024xbf16>
    %c0_8 = arith.constant 0 : index
    %c0_9 = arith.constant 0 : index
    %12 = vector.load %arg8[%c0_8, %c0_9] : memref<128x1024xbf16, #tpu.memory_space<vmem>>, vector<128x1024xbf16>
    tpu.vector_store %arg8[%c0_8, %c0_9], %11 {strides = array<i32>} : memref<128x1024xbf16, #tpu.memory_space<vmem>>, vector<128x1024xbf16>,
    %c2_i32 = arith.constant 2 : i32
    %13 = arith.muli %c2_i32, %arg1 : i32
    %c1_i32 = arith.constant 1 : i32
    %14 = arith.subi %c1_i32, %13 : i32
    %15 = arith.muli %arg0, %14 : i32
    %16 = arith.addi %arg1, %15 : i32
    %c8_i32 = arith.constant 8 : i32
    %17 = arith.muli %16, %c8_i32 : i32
    %c0_10 = arith.constant 0 : index
    %c0_11 = arith.constant 0 : index
    %18 = vector.load %arg3[%c0_10, %c0_11] : memref<16x1xi32, #tpu.memory_space<vmem>>, vector<16x1xi32>
    %19 = vector.broadcast %17 : i32 to vector<16x1xi32>
    %20 = arith.subi %18, %19 : vector<16x1xi32>
    %c0_12 = arith.constant 0 : index
    %c0_13 = arith.constant 0 : index
    %c0_14 = arith.constant 0 : index
    %21 = vector.load %arg5[%c0_12, %c0_13, %c0_14] : memref<1x256x1024xbf16, #tpu.memory_space<vmem>>, vector<1x256x1024xbf16>
    %22 = vector.shape_cast %21 : vector<1x256x1024xbf16> to vector<256x1024xbf16>
    %c0_i32_15 = arith.constant 0 : i32
    %c8_i32_16 = arith.constant 8 : i32
    %23 = arith.addi %c0_i32_15, %c8_i32_16 : i32
    %c1_i32_17 = arith.constant 1 : i32
    scf.for %arg11 = %c0_i32_15 to %23 step %c1_i32_17  : i32 {
      %c2_i32_19 = arith.constant 2 : i32
      %24 = arith.muli %c2_i32_19, %arg11 : i32
      %c7_i32 = arith.constant 7 : i32
      %25 = arith.subi %c7_i32, %24 : i32
      %26 = arith.muli %arg0, %25 : i32
      %27 = arith.addi %arg11, %26 : i32
      %c16_i32 = arith.constant 16 : i32
      %28 = arith.muli %27, %c16_i32 : i32
      %29 = tpu.assume_multiple %28, 16 : i32
      %c0_20 = arith.constant 0 : index
      %c0_21 = arith.constant 0 : index
      %30 = vector.load %arg9[%c0_20, %c0_21] : memref<16x256xbf16, #tpu.memory_space<vmem>>, vector<16x256xbf16>
      %c0_22 = arith.constant 0 : index
      %c0_23 = arith.constant 0 : index
      %31 = vector.load %arg10[%c0_22, %c0_23] : memref<16x256xf32, #tpu.memory_space<vmem>>, vector<16x256xf32>
      %32 = arith.index_cast %29 : i32 to index
      %c0_24 = arith.constant 0 : index
      %33 = vector.load %arg8[%32, %c0_24] : memref<128x1024xbf16, #tpu.memory_space<vmem>>, vector<16x1024xbf16>
      %cst_25 = arith.constant dense<0.000000e+00> : vector<16x1024xf32>
      %34 = tpu.matmul %30, %22, %cst_25 {dimension_numbers = #tpu.dot_dimension_numbers<[1], [0], [0], [1], [0, 0, 1, 1], [], []>} : vector<16x256xbf16>, vector<256x1024xbf16>, vector<16x1024xf32> -> vector<16x1024xf32>
      %35 = arith.extf %33 : vector<16x1024xbf16> to vector<16x1024xf32>
      %36 = arith.addf %35, %34 : vector<16x1024xf32>
      %37 = vector.extract_strided_slice %36 {offsets = [0, 0], sizes = [16, 256], strides = [1, 1]} : vector<16x1024xf32> to vector<16x256xf32>
      %38 = arith.negf %37 : vector<16x256xf32>
      %39 = math.exp %38 : vector<16x256xf32>
      %cst_26 = arith.constant 1.000000e+00 : f32
      %40 = vector.broadcast %cst_26 : f32 to vector<16x256xf32>
      %41 = arith.addf %40, %39 : vector<16x256xf32>
      %42 = arith.divf %40, %41 : vector<16x256xf32>
      %43 = vector.extract_strided_slice %36 {offsets = [0, 256], sizes = [16, 256], strides = [1, 1]} : vector<16x1024xf32> to vector<16x256xf32>
      %44 = arith.negf %43 : vector<16x256xf32>
      %45 = math.exp %44 : vector<16x256xf32>
      %cst_27 = arith.constant 1.000000e+00 : f32
      %46 = vector.broadcast %cst_27 : f32 to vector<16x256xf32>
      %47 = arith.addf %46, %45 : vector<16x256xf32>
      %48 = arith.divf %46, %47 : vector<16x256xf32>
      %49 = vector.extract_strided_slice %36 {offsets = [0, 512], sizes = [16, 256], strides = [1, 1]} : vector<16x1024xf32> to vector<16x256xf32>
      %50 = math.tanh %49 : vector<16x256xf32>
      %51 = vector.extract_strided_slice %36 {offsets = [0, 768], sizes = [16, 256], strides = [1, 1]} : vector<16x1024xf32> to vector<16x256xf32>
      %52 = arith.negf %51 : vector<16x256xf32>
      %53 = math.exp %52 : vector<16x256xf32>
      %cst_28 = arith.constant 1.000000e+00 : f32
      %54 = vector.broadcast %cst_28 : f32 to vector<16x256xf32>
      %55 = arith.addf %54, %53 : vector<16x256xf32>
      %56 = arith.divf %54, %55 : vector<16x256xf32>
      %57 = arith.mulf %48, %31 : vector<16x256xf32>
      %58 = arith.mulf %42, %50 : vector<16x256xf32>
      %59 = arith.addf %57, %58 : vector<16x256xf32>
      %60 = math.tanh %59 : vector<16x256xf32>
      %61 = arith.mulf %56, %60 : vector<16x256xf32>
      %62 = arith.truncf %61 : vector<16x256xf32> to vector<16x256xbf16>
      %63 = vector.broadcast %27 : i32 to vector<16x1xi32>
      %64 = arith.cmpi slt, %63, %20 : vector<16x1xi32>
      %65 = vector.shape_cast %64 : vector<16x1xi1> to vector<16x1xi1>
      %66 = vector.broadcast %65 : vector<16x1xi1> to vector<16x256xi1>
      %67 = arith.select %66, %62, %30 : vector<16x256xi1>, vector<16x256xbf16>
      %c0_29 = arith.constant 0 : index
      %c0_30 = arith.constant 0 : index
      %68 = vector.load %arg9[%c0_29, %c0_30] : memref<16x256xbf16, #tpu.memory_space<vmem>>, vector<16x256xbf16>
      tpu.vector_store %arg9[%c0_29, %c0_30], %67 {strides = array<i32>} : memref<16x256xbf16, #tpu.memory_space<vmem>>, vector<16x256xbf16>,
      %69 = vector.shape_cast %64 : vector<16x1xi1> to vector<16x1xi1>
      %70 = vector.broadcast %69 : vector<16x1xi1> to vector<16x256xi1>
      %71 = arith.select %70, %59, %31 : vector<16x256xi1>, vector<16x256xf32>
      %c0_31 = arith.constant 0 : index
      %c0_32 = arith.constant 0 : index
      %72 = vector.load %arg10[%c0_31, %c0_32] : memref<16x256xf32, #tpu.memory_space<vmem>>, vector<16x256xf32>
      tpu.vector_store %arg10[%c0_31, %c0_32], %71 {strides = array<i32>} : memref<16x256xf32, #tpu.memory_space<vmem>>, vector<16x256xf32>,
      %cst_33 = arith.constant 0.000000e+00 : bf16
      %73 = vector.broadcast %cst_33 : bf16 to vector<16x256xbf16>
      %74 = vector.shape_cast %64 : vector<16x1xi1> to vector<16x1xi1>
      %75 = vector.broadcast %74 : vector<16x1xi1> to vector<16x256xi1>
      %76 = arith.select %75, %62, %73 : vector<16x256xi1>, vector<16x256xbf16>
      %77 = arith.index_cast %29 : i32 to index
      %c0_34 = arith.constant 0 : index
      %78 = vector.load %arg7[%77, %c0_34] : memref<128x256xbf16, #tpu.memory_space<vmem>>, vector<16x256xbf16>
      tpu.vector_store %arg7[%77, %c0_34], %76 {strides = array<i32>} : memref<128x256xbf16, #tpu.memory_space<vmem>>, vector<16x256xbf16>,
    }
    %c8_i32_18 = arith.constant 8 : i32
    return
  }
  func.func @transform_0(%arg0: i32, %arg1: i32) -> (i32, i32) {
    %c2_i32 = arith.constant 2 : i32
    %0 = arith.muli %c2_i32, %arg1 : i32
    %c1_i32 = arith.constant 1 : i32
    %1 = arith.subi %c1_i32, %0 : i32
    %2 = arith.muli %arg0, %1 : i32
    %3 = arith.addi %arg1, %2 : i32
    %c0_i32 = arith.constant 0 : i32
    %c0_i32_0 = arith.constant 0 : i32
    return %3, %c0_i32 : i32, i32
  }
  func.func @transform_1(%arg0: i32, %arg1: i32) -> (i32, i32) {
    %c0_i32 = arith.constant 0 : i32
    %c0_i32_0 = arith.constant 0 : i32
    %c0_i32_1 = arith.constant 0 : i32
    return %c0_i32, %c0_i32_0 : i32, i32
  }
  func.func @transform_2(%arg0: i32, %arg1: i32) -> (i32, i32, i32) {
    %c0_i32 = arith.constant 0 : i32
    %c0_i32_0 = arith.constant 0 : i32
    %c0_i32_1 = arith.constant 0 : i32
    return %arg0, %c0_i32, %c0_i32_0 : i32, i32, i32
  }
  func.func @transform_3(%arg0: i32, %arg1: i32) -> (i32, i32, i32) {
    %c0_i32 = arith.constant 0 : i32
    %c0_i32_0 = arith.constant 0 : i32
    %c0_i32_1 = arith.constant 0 : i32
    return %arg0, %c0_i32, %c0_i32_0 : i32, i32, i32
  }
  func.func @transform_4(%arg0: i32, %arg1: i32) -> (i32, i32, i32) {
    %c0_i32 = arith.constant 0 : i32
    %c0_i32_0 = arith.constant 0 : i32
    %c0_i32_1 = arith.constant 0 : i32
    return %arg0, %c0_i32, %c0_i32_0 : i32, i32, i32
  }
  func.func @transform_5(%arg0: i32, %arg1: i32) -> (i32, i32) {
    %c2_i32 = arith.constant 2 : i32
    %0 = arith.muli %c2_i32, %arg1 : i32
    %c1_i32 = arith.constant 1 : i32
    %1 = arith.subi %c1_i32, %0 : i32
    %2 = arith.muli %arg0, %1 : i32
    %3 = arith.addi %arg1, %2 : i32
    %c0_i32 = arith.constant 0 : i32
    return %3, %arg0 : i32, i32
  }
}

module attributes {stable_mosaic.version = 11 : i64} {
  func.func @_pool_heads_kernel(%arg0: i32, %arg1: memref<16x16x512xbf16, #tpu.memory_space<vmem>>, %arg2: memref<16x1xf32, #tpu.memory_space<vmem>>, %arg3: memref<512x32xbf16, #tpu.memory_space<vmem>>, %arg4: memref<1x32xf32, #tpu.memory_space<vmem>>, %arg5: memref<16x32xf32, #tpu.memory_space<vmem>>, %arg6: memref<16x512xf32, #tpu.memory_space<vmem>>) attributes {dimension_semantics = [#tpu.dimension_semantics<arbitrary>], iteration_bounds = array<i64: 1>, scalar_prefetch = 0 : i64, scratch_operands = 1 : i64, tpu.core_type = #tpu.core_type<tc>, window_params = [{transform_indices = @transform_0, window_bounds = array<i64: 16, 16, 512>}, {pipeline_mode = #tpu.pipeline_mode<synchronous>, transform_indices = @transform_1, window_bounds = array<i64: 16, 1>}, {pipeline_mode = #tpu.pipeline_mode<synchronous>, transform_indices = @transform_2, window_bounds = array<i64: 512, 32>}, {pipeline_mode = #tpu.pipeline_mode<synchronous>, transform_indices = @transform_3, window_bounds = array<i64: 1, 32>}, {pipeline_mode = #tpu.pipeline_mode<synchronous>, transform_indices = @transform_4, window_bounds = array<i64: 16, 32>}]} {
    %c0_i32 = arith.constant 0 : i32
    %0 = arith.cmpi eq, %arg0, %c0_i32 : i32
    %1 = arith.extui %0 : i1 to i32
    %c0_i32_0 = arith.constant 0 : i32
    %2 = arith.cmpi ne, %1, %c0_i32_0 : i32
    scf.if %2 {
      %cst_12 = arith.constant 0.000000e+00 : f32
      %25 = vector.broadcast %cst_12 : f32 to vector<16x512xf32>
      %c0_13 = arith.constant 0 : index
      %c0_14 = arith.constant 0 : index
      %26 = vector.load %arg6[%c0_13, %c0_14] : memref<16x512xf32, #tpu.memory_space<vmem>>, vector<16x512xf32>
      tpu.vector_store %arg6[%c0_13, %c0_14], %25 {strides = array<i32>} : memref<16x512xf32, #tpu.memory_space<vmem>>, vector<16x512xf32>,
    } else {
    }
    %3 = tpu.iota {dimensions = array<i32: 0>} : vector<16x16x1xi32>
    %c16_i32 = arith.constant 16 : i32
    %4 = arith.muli %arg0, %c16_i32 : i32
    %5 = vector.broadcast %4 : i32 to vector<16x16x1xi32>
    %6 = arith.addi %3, %5 : vector<16x16x1xi32>
    %c0 = arith.constant 0 : index
    %c0_1 = arith.constant 0 : index
    %7 = vector.load %arg2[%c0, %c0_1] : memref<16x1xf32, #tpu.memory_space<vmem>>, vector<16x1xf32>
    %8 = arith.fptosi %7 : vector<16x1xf32> to vector<16x1xi32>
    %9 = vector.shape_cast %8 : vector<16x1xi32> to vector<1x16x1xi32>
    %10 = vector.broadcast %9 : vector<1x16x1xi32> to vector<16x16x1xi32>
    %11 = arith.cmpi slt, %6, %10 : vector<16x16x1xi32>
    %c0_2 = arith.constant 0 : index
    %c0_3 = arith.constant 0 : index
    %12 = vector.load %arg6[%c0_2, %c0_3] : memref<16x512xf32, #tpu.memory_space<vmem>>, vector<16x512xf32>
    %c0_4 = arith.constant 0 : index
    %c0_5 = arith.constant 0 : index
    %c0_6 = arith.constant 0 : index
    %13 = vector.load %arg1[%c0_4, %c0_5, %c0_6] : memref<16x16x512xbf16, #tpu.memory_space<vmem>>, vector<16x16x512xbf16>
    %14 = arith.extf %13 : vector<16x16x512xbf16> to vector<16x16x512xf32>
    %cst = arith.constant 0.000000e+00 : f32
    %15 = vector.shape_cast %11 : vector<16x16x1xi1> to vector<16x16x1xi1>
    %16 = vector.broadcast %15 : vector<16x16x1xi1> to vector<16x16x512xi1>
    %17 = vector.broadcast %cst : f32 to vector<16x16x512xf32>
    %18 = arith.select %16, %14, %17 : vector<16x16x512xi1>, vector<16x16x512xf32>
    %cst_7 = arith.constant dense<0.000000e+00> : vector<16x512xf32>
    %19 = vector.multi_reduction <add>, %18, %cst_7 [0] : vector<16x16x512xf32> to vector<16x512xf32>
    %20 = arith.addf %12, %19 : vector<16x512xf32>
    %c0_8 = arith.constant 0 : index
    %c0_9 = arith.constant 0 : index
    %21 = vector.load %arg6[%c0_8, %c0_9] : memref<16x512xf32, #tpu.memory_space<vmem>>, vector<16x512xf32>
    tpu.vector_store %arg6[%c0_8, %c0_9], %20 {strides = array<i32>} : memref<16x512xf32, #tpu.memory_space<vmem>>, vector<16x512xf32>,
    %c0_i32_10 = arith.constant 0 : i32
    %22 = arith.cmpi eq, %arg0, %c0_i32_10 : i32
    %23 = arith.extui %22 : i1 to i32
    %c0_i32_11 = arith.constant 0 : i32
    %24 = arith.cmpi ne, %23, %c0_i32_11 : i32
    scf.if %24 {
      %c0_12 = arith.constant 0 : index
      %c0_13 = arith.constant 0 : index
      %25 = vector.load %arg6[%c0_12, %c0_13] : memref<16x512xf32, #tpu.memory_space<vmem>>, vector<16x512xf32>
      %c0_14 = arith.constant 0 : index
      %c0_15 = arith.constant 0 : index
      %26 = vector.load %arg2[%c0_14, %c0_15] : memref<16x1xf32, #tpu.memory_space<vmem>>, vector<16x1xf32>
      %27 = vector.broadcast %26 : vector<16x1xf32> to vector<16x512xf32>
      %28 = arith.divf %25, %27 : vector<16x512xf32>
      %29 = arith.truncf %28 : vector<16x512xf32> to vector<16x512xbf16>
      %c0_16 = arith.constant 0 : index
      %c0_17 = arith.constant 0 : index
      %30 = vector.load %arg3[%c0_16, %c0_17] : memref<512x32xbf16, #tpu.memory_space<vmem>>, vector<512x32xbf16>
      %cst_18 = arith.constant dense<0.000000e+00> : vector<16x32xf32>
      %31 = tpu.matmul %29, %30, %cst_18 {dimension_numbers = #tpu.dot_dimension_numbers<[1], [0], [0], [1], [0, 0, 1, 1], [], []>} : vector<16x512xbf16>, vector<512x32xbf16>, vector<16x32xf32> -> vector<16x32xf32>
      %c0_19 = arith.constant 0 : index
      %c0_20 = arith.constant 0 : index
      %32 = vector.load %arg4[%c0_19, %c0_20] : memref<1x32xf32, #tpu.memory_space<vmem>>, vector<1x32xf32>
      %33 = vector.broadcast %32 : vector<1x32xf32> to vector<16x32xf32>
      %34 = arith.addf %31, %33 : vector<16x32xf32>
      %c0_21 = arith.constant 0 : index
      %c0_22 = arith.constant 0 : index
      %35 = vector.load %arg5[%c0_21, %c0_22] : memref<16x32xf32, #tpu.memory_space<vmem>>, vector<16x32xf32>
      tpu.vector_store %arg5[%c0_21, %c0_22], %34 {strides = array<i32>} : memref<16x32xf32, #tpu.memory_space<vmem>>, vector<16x32xf32>,
    } else {
    }
    return
  }
  func.func @transform_0(%arg0: i32) -> (i32, i32, i32) {
    %c0_i32 = arith.constant 0 : i32
    %c0_i32_0 = arith.constant 0 : i32
    %c0_i32_1 = arith.constant 0 : i32
    return %arg0, %c0_i32, %c0_i32_0 : i32, i32, i32
  }
  func.func @transform_1(%arg0: i32) -> (i32, i32) {
    %c0_i32 = arith.constant 0 : i32
    %c0_i32_0 = arith.constant 0 : i32
    %c0_i32_1 = arith.constant 0 : i32
    return %c0_i32, %c0_i32_0 : i32, i32
  }
  func.func @transform_2(%arg0: i32) -> (i32, i32) {
    %c0_i32 = arith.constant 0 : i32
    %c0_i32_0 = arith.constant 0 : i32
    %c0_i32_1 = arith.constant 0 : i32
    return %c0_i32, %c0_i32_0 : i32, i32
  }
  func.func @transform_3(%arg0: i32) -> (i32, i32) {
    %c0_i32 = arith.constant 0 : i32
    %c0_i32_0 = arith.constant 0 : i32
    %c0_i32_1 = arith.constant 0 : i32
    return %c0_i32, %c0_i32_0 : i32, i32
  }
  func.func @transform_4(%arg0: i32) -> (i32, i32) {
    %c0_i32 = arith.constant 0 : i32
    %c0_i32_0 = arith.constant 0 : i32
    %c0_i32_1 = arith.constant 0 : i32
    return %c0_i32, %c0_i32_0 : i32, i32
  }
}

</mosaic_0001>

<llo_original>
// kernel: encoder_forward.4
$region0: #{encoder_forward.4}
  #allocation0 [shape = 'u32[]', space=smem, size = 0x4, offset = 0x4, fixed_abs, tag = 'smem constant byte address 0x4 - core index']
  #allocation1 [shape = 'u32[72,128]{1,0:T(1,128)}', space=vmem, size = 0x9000, scoped, tag = 'internal scratch']
  #allocation2 [shape = 'bf16[18,512]{1,0:T(8,128)(2,1)}', space=vmem, size = 0x6000, scoped, tag = 'scratch operand']
  %s0 = inlined_call_operand.vmem [shape: f32[2,18,4], index: 0, kind: input, shape index: {}]
  %s1 = inlined_call_operand.vmem [shape: f32[3,4,512], index: 1, kind: input, shape index: {}]
  %s2 = inlined_call_operand.vmem [shape: f32[1,512], index: 2, kind: input, shape index: {}]
  %s3 = inlined_call_operand.vmem [shape: bf16[3,512,512], index: 3, kind: input, shape index: {}]
  %s4 = inlined_call_operand.vmem [shape: f32[1,512], index: 4, kind: input, shape index: {}]
  %s5 = inlined_call_operand.vmem [shape: bf16[2,16,512], index: 5, kind: output, shape index: {}]
  %s6 = sld [smem:[#allocation0]]
  $region53: #{encoder_forward.4} parent=0
    _
  %s8 = ssub.s32 1, %s6
  %s9 = scalar_select 0, %s8, %s6
  loop: start=0, step=1, limit=4
  $region2: #{encoder_forward.4} parent=0 // loop_pre_header
    _
  $region3: #{encoder_forward.4} parent=0 // loop_header
    %s11 = sphi 0, %s15
    %p12 = scmp.ge.s32.totalorder %s11, 4
    %s21 = sphi 0, %s23
    %s24 = sphi 0, %s21
    %s25 = sphi 0, %s24
    %s41 = sphi 0, %s25
    %s45 = sphi 0, %s45
    %s47 = sphi 0, %s45
    %s48 = sphi 0, %s47
    %s62 = sphi 0, %s48
    %s66 = sphi 0, %s66
    %s68 = sphi 0, %s66
    %s69 = sphi 0, %s68
    %s83 = sphi 0, %s69
    %s87 = sphi 0, %s87
    %s89 = sphi 0, %s87
    %s90 = sphi 0, %s89
    %s104 = sphi 0, %s90
    %s108 = sphi 0, %s108
    %s110 = sphi 0, %s108
    %s111 = sphi 0, %s110
    %s125 = sphi 0, %s111
    %s131 = sphi 0, %s133
    %s134 = sphi 0, %s131
    %s135 = sphi 0, %s134
    %s151 = sphi 0, %s135
  $region4: #{encoder_forward.4} parent=0 // loop_header_branch
    %14 = sbr.rel (%p12) target = $region8
  $region5: #{encoder_forward.4} parent=0 // loop_body
    %s16 = ssub.s32 %s11, 1
    %s17 = ssub.s32 %s11, 2
    %s18 = sadd.s32 %s11, 1
    %s19 = ssub.s32 %s11, %s18
    %p20 = scmp.eq.s32.totalorder %s19, 0
    %s22 = sadd.s32 %s21, 1
    %s23 = scalar_select %p20, %s21, %s22
    %p26 = pneg %p20
    %p27 = scmp.eq.s32.totalorder %s11, 1
    %p28 = por %p26, %p27
    %p29 = scmp.ne.s32.totalorder %s21, %s24
    %p30 = scmp.eq.s32.totalorder %s11, 0
    %p31 = por %p29, %p30
    %p32 = scmp.ne.s32.totalorder %s21, %s24
    %p33 = scmp.eq.s32.totalorder %s16, 1
    %p34 = por %p32, %p33
    %p35 = scmp.ne.s32.totalorder %s24, %s25
    %p36 = scmp.eq.s32.totalorder %s16, 0
    %p37 = por %p35, %p36
    %p38 = scmp.ne.s32.totalorder %s24, %s25
    %p39 = scmp.eq.s32.totalorder %s17, 1
    %p40 = por %p38, %p39
    %p42 = scmp.ne.s32.totalorder %s25, %s41
    %p43 = scmp.eq.s32.totalorder %s17, 0
    %p44 = por %p42, %p43
    %s46 = sadd.s32 %s45, 1
    %p49 = scmp.eq.s32.totalorder %s11, 1
    %p50 = scmp.ne.s32.totalorder %s45, %s47
    %p51 = scmp.eq.s32.totalorder %s11, 0
    %p52 = por %p50, %p51
    %p53 = scmp.ne.s32.totalorder %s45, %s47
    %p54 = scmp.eq.s32.totalorder %s16, 1
    %p55 = por %p53, %p54
    %p56 = scmp.ne.s32.totalorder %s47, %s48
    %p57 = scmp.eq.s32.totalorder %s16, 0
    %p58 = por %p56, %p57
    %p59 = scmp.ne.s32.totalorder %s47, %s48
    %p60 = scmp.eq.s32.totalorder %s17, 1
    %p61 = por %p59, %p60
    %p63 = scmp.ne.s32.totalorder %s48, %s62
    %p64 = scmp.eq.s32.totalorder %s17, 0
    %p65 = por %p63, %p64
    %s67 = sadd.s32 %s66, 1
    %p70 = scmp.eq.s32.totalorder %s11, 1
    %p71 = scmp.ne.s32.totalorder %s66, %s68
    %p72 = scmp.eq.s32.totalorder %s11, 0
    %p73 = por %p71, %p72
    %p74 = scmp.ne.s32.totalorder %s66, %s68
    %p75 = scmp.eq.s32.totalorder %s16, 1
    %p76 = por %p74, %p75
    %p77 = scmp.ne.s32.totalorder %s68, %s69
    %p78 = scmp.eq.s32.totalorder %s16, 0
    %p79 = por %p77, %p78
    %p80 = scmp.ne.s32.totalorder %s68, %s69
    %p81 = scmp.eq.s32.totalorder %s17, 1
    %p82 = por %p80, %p81
    %p84 = scmp.ne.s32.totalorder %s69, %s83
    %p85 = scmp.eq.s32.totalorder %s17, 0
    %p86 = por %p84, %p85
    %s88 = sadd.s32 %s87, 1
    %p91 = scmp.eq.s32.totalorder %s11, 1
    %p92 = scmp.ne.s32.totalorder %s87, %s89
    %p93 = scmp.eq.s32.totalorder %s11, 0
    %p94 = por %p92, %p93
    %p95 = scmp.ne.s32.totalorder %s87, %s89
    %p96 = scmp.eq.s32.totalorder %s16, 1
    %p97 = por %p95, %p96
    %p98 = scmp.ne.s32.totalorder %s89, %s90
    %p99 = scmp.eq.s32.totalorder %s16, 0
    %p100 = por %p98, %p99
    %p101 = scmp.ne.s32.totalorder %s89, %s90
    %p102 = scmp.eq.s32.totalorder %s17, 1
    %p103 = por %p101, %p102
    %p105 = scmp.ne.s32.totalorder %s90, %s104
    %p106 = scmp.eq.s32.totalorder %s17, 0
    %p107 = por %p105, %p106
    %s109 = sadd.s32 %s108, 1
    %p112 = scmp.eq.s32.totalorder %s11, 1
    %p113 = scmp.ne.s32.totalorder %s108, %s110
    %p114 = scmp.eq.s32.totalorder %s11, 0
    %p115 = por %p113, %p114
    %p116 = scmp.ne.s32.totalorder %s108, %s110
    %p117 = scmp.eq.s32.totalorder %s16, 1
    %p118 = por %p116, %p117
    %p119 = scmp.ne.s32.totalorder %s110, %s111
    %p120 = scmp.eq.s32.totalorder %s16, 0
    %p121 = por %p119, %p120
    %p122 = scmp.ne.s32.totalorder %s110, %s111
    %p123 = scmp.eq.s32.totalorder %s17, 1
    %p124 = por %p122, %p123
    %p126 = scmp.ne.s32.totalorder %s111, %s125
    %p127 = scmp.eq.s32.totalorder %s17, 0
    %p128 = por %p126, %p127
    %s129 = ssub.s32 %s11, %s18
    %p130 = scmp.eq.s32.totalorder %s129, 0
    %s132 = sadd.s32 %s131, 1
    %s133 = scalar_select %p130, %s131, %s132
    %p136 = pneg %p130
    %p137 = scmp.eq.s32.totalorder %s11, 1
    %p138 = por %p136, %p137
    %p139 = scmp.ne.s32.totalorder %s131, %s134
    %p140 = scmp.eq.s32.totalorder %s11, 0
    %p141 = por %p139, %p140
    %p142 = scmp.ne.s32.totalorder %s131, %s134
    %p143 = scmp.eq.s32.totalorder %s16, 1
    %p144 = por %p142, %p143
    %p145 = scmp.ne.s32.totalorder %s134, %s135
    %p146 = scmp.eq.s32.totalorder %s16, 0
    %p147 = por %p145, %p146
    %p148 = scmp.ne.s32.totalorder %s134, %s135
    %p149 = scmp.eq.s32.totalorder %s17, 1
    %p150 = por %p148, %p149
    %p152 = scmp.ne.s32.totalorder %s135, %s151
    %p153 = scmp.eq.s32.totalorder %s17, 0
    %p154 = por %p152, %p153
    %p155 = scmp.le.s32.totalorder 1, %s11
    %p156 = scmp.lt.s32.totalorder %s11, 3
    %p157 = pnand %p155, %p156
    %p158 = pneg %p157
    // Predicated region
    $region9: #{encoder_forward.4} parent=5 // pred_check
      _
    $region10: #{encoder_forward.4} parent=5 // pred_check_branch
      %160 = sbr.rel (%p157) target = $region12
    $region11: #{encoder_forward.4} parent=5 // pred_region
      %s161 = ssub.s32 %s11, 1
      // Predicated region
      $region13: #{encoder_forward.4} parent=11 // pred_check
        %p162 = pneg %p58
      $region14: #{encoder_forward.4} parent=11 // pred_check_branch
        %164 = sbr.rel (%p162) target = $region16
      $region15: #{encoder_forward.4} parent=11 // pred_region
        _
      $region16: #{encoder_forward.4} parent=11 // pred_fallthru
        _
      // Predicated region
      $region17: #{encoder_forward.4} parent=11 // pred_check
        %p165 = pneg %p79
      $region18: #{encoder_forward.4} parent=11 // pred_check_branch
        %167 = sbr.rel (%p165) target = $region20
      $region19: #{encoder_forward.4} parent=11 // pred_region
        _
      $region20: #{encoder_forward.4} parent=11 // pred_fallthru
        _
      // Predicated region
      $region21: #{encoder_forward.4} parent=11 // pred_check
        %p168 = pneg %p100
      $region22: #{encoder_forward.4} parent=11 // pred_check_branch
        %170 = sbr.rel (%p168) target = $region24
      $region23: #{encoder_forward.4} parent=11 // pred_region
        _
      $region24: #{encoder_forward.4} parent=11 // pred_fallthru
        _
      // Predicated region
      $region25: #{encoder_forward.4} parent=11 // pred_check
        %p171 = pneg %p121
      $region26: #{encoder_forward.4} parent=11 // pred_check_branch
        %173 = sbr.rel (%p171) target = $region28
      $region27: #{encoder_forward.4} parent=11 // pred_region
        _
      $region28: #{encoder_forward.4} parent=11 // pred_fallthru
        _
    $region12: #{encoder_forward.4} parent=5 // pred_fallthru
      _
    %p174 = scmp.lt.s32.totalorder %s11, 2
    // Predicated region
    $region29: #{encoder_forward.4} parent=5 // pred_check
      %p175 = pneg %p174
    $region30: #{encoder_forward.4} parent=5 // pred_check_branch
      %177 = sbr.rel (%p175) target = $region32
    $region31: #{encoder_forward.4} parent=5 // pred_region
      // Predicated region
      $region33: #{encoder_forward.4} parent=31 // pred_check
        %p178 = pneg %p31
      $region34: #{encoder_forward.4} parent=31 // pred_check_branch
        %180 = sbr.rel (%p178) target = $region36
      $region35: #{encoder_forward.4} parent=31 // pred_region
        %p181 = scmp.lt.s32.totalorder %s11, 1
        %s182 = scalar_select %p181, %s11, 1
        %s183 = smul.addr %s182, 3
        %s184 = smul.addr %s183, 8
        %s185 = scalar_lea.vmem %s0, %s184
      $region36: #{encoder_forward.4} parent=31 // pred_fallthru
        _
    $region32: #{encoder_forward.4} parent=5 // pred_fallthru
      _
    %p186 = scmp.le.s32.totalorder 1, %s11
    %p187 = scmp.lt.s32.totalorder %s11, 3
    %p188 = pnand %p186, %p187
    %p189 = pneg %p188
    // Predicated region
    $region37: #{encoder_forward.4} parent=5 // pred_check
      _
    $region38: #{encoder_forward.4} parent=5 // pred_check_branch
      %191 = sbr.rel (%p188) target = $region40
    $region39: #{encoder_forward.4} parent=5 // pred_region
      %s192 = ssub.s32 %s11, 1
      %p193 = scmp.lt.s32.totalorder %s16, 1
      %s194 = scalar_select %p193, %s16, 1
      %s195 = smul.addr %s194, 3
      %s196 = smul.addr %s195, 8
      %s197 = scalar_lea.vmem %s0, %s196
      %p198 = pneg %p37
      %p199 = pneg %p34
      %p200 = pneg %p58
      %p201 = pneg %p55
      %p202 = pneg %p79
      %p203 = pneg %p76
      %p204 = pneg %p100
      %p205 = pneg %p97
      %p206 = pneg %p121
      %p207 = pneg %p118
      %p208 = pneg %p147
      %p209 = pneg %p144
      %p210 = scmp.lt.s32.totalorder %s16, 1
      %s211 = scalar_select %p210, %s16, 1
      %s212 = smul.addr %s211, 8
      %s213 = smul.addr %s212, 4
      %s214 = scalar_lea.vmem %s5, %s213
      %p215 = scmp.lt.s32.totalorder %s16, 1
      %s216 = scalar_select %p215, %s16, 1
      %s217 = smul.addr %s216, 3
      %s218 = smul.addr %s217, 8
      %s219 = scalar_lea.vmem %s0, %s218
      %p220 = scmp.lt.s32.totalorder %s16, 1
      %s221 = scalar_select %p220, %s16, 1
      %s222 = smul.addr %s221, 8
      %s223 = smul.addr %s222, 4
      %s224 = scalar_lea.vmem %s5, %s223
      %v226 = vld [vmem:[%s219] sm:$0xff]
      %v227 = vld [vmem:[%s219 + $0x8] sm:$0xff]
      %v228 = vld [vmem:[%s219 + $0x10] sm:$0x3]
      %v229 = vld [vmem:[%s1] sm:$0xff]
      %v230 = vld [vmem:[%s1 + $0x8] sm:$0xff]
      %s231 = scalar_lea.vmem %s1, 16
      %v232 = vld [vmem:[%s231] sm:$0xff]
      %v233 = vld [vmem:[%s231 + $0x8] sm:$0xff]
      %vm237 = vcmask 1046528
      %v238 = vrot.slane %v226, 1
      %v239 = vrot.slane %v227, 1
      %v240 = vsel %vm237, %v238, %v239
      %v241 = vrot.slane %v228, 1
      %v242 = vsel %vm237, %v239, %v241
      %245 = vst [vmem:[#allocation1] ss:$2 sm:$0xff] %v232
      %s246 = scalar_lea.vmem [#allocation1], 16
      %247 = vst [vmem:[%s246] ss:$2 sm:$0xff] %v233
      %v248 = vld.sshfl [vmem:[#allocation1] sm:$0xff pattern:$0x75316420]
      %v249 = vld.sshfl [vmem:[#allocation1 + $0x8] sm:$0xff pattern:$0x75316420]
      %v250 = vld.sshfl [vmem:[#allocation1 + $0x10] sm:$0xff pattern:$0x75316420]
      %v251 = vld.sshfl [vmem:[#allocation1 + $0x18] sm:$0xff pattern:$0x75316420]
      %vm252 = vcmask 31744
      %v253 = vsel %vm252, %v240, 0
      %v255 = vsel %vm252, %v242, 0
      %vm257 = vcmask 1043456
      %v258 = vsel %vm257, %v248, 0
      %v260 = vsel %vm257, %v249, 0
      %v262 = vsel %vm257, %v250, 0
      %v264 = vsel %vm257, %v251, 0
      %266 = vmatpush.msra.mxu0 0.0
      %267 = vmatpush.msra.mxu0 0.0
      %268 = vmatpush.msra.mxu0 0.0
      %269 = vmatpush.msra.mxu0 0.0
      %270 = vmatpush.msra.mxu0 0.0
      %271 = vmatpush.msra.mxu0 0.0
      %272 = vmatpush.msra.mxu0 0.0
      %273 = vmatpush.msra.mxu0 0.0
      %274 = vmatpush.msra.mxu0 0.0
      %275 = vmatpush.msra.mxu0 0.0
      %276 = vmatpush.msra.mxu0 0.0
      %277 = vmatpush.msra.mxu0 0.0
      %278 = vmatpush.msra.mxu0 0.0
      %279 = vmatpush.msra.mxu0 0.0
      %280 = vmatpush.msra.mxu0 0.0
      %281 = vmatpush.msra.mxu0 %v258
      %282 = vmatmul.f32.gmra.mxu0 %v253
      %v283 = vpop.f32.mrf.mxu0
      %v284 = vadd.f32 0.0, %v283
      %285 = vmatmul.f32.gmra.mxu0 %v255
      %v286 = vpop.f32.mrf.mxu0
      %v287 = vadd.f32 0.0, %v286
      %288 = vdwg.mxu0
      %289 = vmatpush.msra.mxu0 0.0
      %290 = vmatpush.msra.mxu0 0.0
      %291 = vmatpush.msra.mxu0 0.0
      %292 = vmatpush.msra.mxu0 0.0
      %293 = vmatpush.msra.mxu0 0.0
      %294 = vmatpush.msra.mxu0 0.0
      %295 = vmatpush.msra.mxu0 0.0
      %296 = vmatpush.msra.mxu0 0.0
      %297 = vmatpush.msra.mxu0 0.0
      %298 = vmatpush.msra.mxu0 0.0
      %299 = vmatpush.msra.mxu0 0.0
      %300 = vmatpush.msra.mxu0 0.0
      %301 = vmatpush.msra.mxu0 0.0
      %302 = vmatpush.msra.mxu0 0.0
      %303 = vmatpush.msra.mxu0 0.0
      %304 = vmatpush.msra.mxu0 %v260
      %305 = vmatmul.f32.gmra.mxu0 %v253
      %v306 = vpop.f32.mrf.mxu0
      %v307 = vadd.f32 0.0, %v306
      %308 = vmatmul.f32.gmra.mxu0 %v255
      %v309 = vpop.f32.mrf.mxu0
      %v310 = vadd.f32 0.0, %v309
      %311 = vdwg.mxu0
      %312 = vmatpush.msra.mxu0 0.0
      %313 = vmatpush.msra.mxu0 0.0
      %314 = vmatpush.msra.mxu0 0.0
      %315 = vmatpush.msra.mxu0 0.0
      %316 = vmatpush.msra.mxu0 0.0
      %317 = vmatpush.msra.mxu0 0.0
      %318 = vmatpush.msra.mxu0 0.0
      %319 = vmatpush.msra.mxu0 0.0
      %320 = vmatpush.msra.mxu0 0.0
      %321 = vmatpush.msra.mxu0 0.0
      %322 = vmatpush.msra.mxu0 0.0
      %323 = vmatpush.msra.mxu0 0.0
      %324 = vmatpush.msra.mxu0 0.0
      %325 = vmatpush.msra.mxu0 0.0
      %326 = vmatpush.msra.mxu0 0.0
      %327 = vmatpush.msra.mxu0 %v262
      %328 = vmatmul.f32.gmra.mxu0 %v253
      %v329 = vpop.f32.mrf.mxu0
      %v330 = vadd.f32 0.0, %v329
      %331 = vmatmul.f32.gmra.mxu0 %v255
      %v332 = vpop.f32.mrf.mxu0
      %v333 = vadd.f32 0.0, %v332
      %334 = vdwg.mxu0
      %335 = vmatpush.msra.mxu0 0.0
      %336 = vmatpush.msra.mxu0 0.0
      %337 = vmatpush.msra.mxu0 0.0
      %338 = vmatpush.msra.mxu0 0.0
      %339 = vmatpush.msra.mxu0 0.0
      %340 = vmatpush.msra.mxu0 0.0
      %341 = vmatpush.msra.mxu0 0.0
      %342 = vmatpush.msra.mxu0 0.0
      %343 = vmatpush.msra.mxu0 0.0
      %344 = vmatpush.msra.mxu0 0.0
      %345 = vmatpush.msra.mxu0 0.0
      %346 = vmatpush.msra.mxu0 0.0
      %347 = vmatpush.msra.mxu0 0.0
      %348 = vmatpush.msra.mxu0 0.0
      %349 = vmatpush.msra.mxu0 0.0
      %350 = vmatpush.msra.mxu0 %v264
      %351 = vmatmul.f32.gmra.mxu0 %v253
      %v352 = vpop.f32.mrf.mxu0
      %v353 = vadd.f32 0.0, %v352
      %354 = vmatmul.f32.gmra.mxu0 %v255
      %v355 = vpop.f32.mrf.mxu0
      %v356 = vadd.f32 0.0, %v355
      %357 = vdwg.mxu0
      %360 = vst [vmem:[#allocation1] ss:$2 sm:$0xff] %v229
      %s361 = scalar_lea.vmem [#allocation1], 16
      %362 = vst [vmem:[%s361] ss:$2 sm:$0xff] %v230
      %v363 = vld.sshfl [vmem:[#allocation1] sm:$0xff pattern:$0x75316420]
      %v364 = vld.sshfl [vmem:[#allocation1 + $0x8] sm:$0xff pattern:$0x75316420]
      %v365 = vld.sshfl [vmem:[#allocation1 + $0x10] sm:$0xff pattern:$0x75316420]
      %v366 = vld.sshfl [vmem:[#allocation1 + $0x18] sm:$0xff pattern:$0x75316420]
      %v367 = vsel %vm252, %v226, 0
      %v369 = vsel %vm252, %v227, 0
      %v371 = vsel %vm257, %v363, 0
      %v373 = vsel %vm257, %v364, 0
      %v375 = vsel %vm257, %v365, 0
      %v377 = vsel %vm257, %v366, 0
      %379 = vmatpush.msra.mxu0 0.0
      %380 = vmatpush.msra.mxu0 0.0
      %381 = vmatpush.msra.mxu0 0.0
      %382 = vmatpush.msra.mxu0 0.0
      %383 = vmatpush.msra.mxu0 0.0
      %384 = vmatpush.msra.mxu0 0.0
      %385 = vmatpush.msra.mxu0 0.0
      %386 = vmatpush.msra.mxu0 0.0
      %387 = vmatpush.msra.mxu0 0.0
      %388 = vmatpush.msra.mxu0 0.0
      %389 = vmatpush.msra.mxu0 0.0
      %390 = vmatpush.msra.mxu0 0.0
      %391 = vmatpush.msra.mxu0 0.0
      %392 = vmatpush.msra.mxu0 0.0
      %393 = vmatpush.msra.mxu0 0.0
      %394 = vmatpush.msra.mxu0 %v371
      %395 = vmatmul.f32.gmra.mxu0 %v367
      %v396 = vpop.f32.mrf.mxu0
      %v397 = vadd.f32 %v284, %v396
      %398 = vmatmul.f32.gmra.mxu0 %v369
      %v399 = vpop.f32.mrf.mxu0
      %v400 = vadd.f32 %v287, %v399
      %401 = vdwg.mxu0
      %402 = vmatpush.msra.mxu0 0.0
      %403 = vmatpush.msra.mxu0 0.0
      %404 = vmatpush.msra.mxu0 0.0
      %405 = vmatpush.msra.mxu0 0.0
      %406 = vmatpush.msra.mxu0 0.0
      %407 = vmatpush.msra.mxu0 0.0
      %408 = vmatpush.msra.mxu0 0.0
      %409 = vmatpush.msra.mxu0 0.0
      %410 = vmatpush.msra.mxu0 0.0
      %411 = vmatpush.msra.mxu0 0.0
      %412 = vmatpush.msra.mxu0 0.0
      %413 = vmatpush.msra.mxu0 0.0
      %414 = vmatpush.msra.mxu0 0.0
      %415 = vmatpush.msra.mxu0 0.0
      %416 = vmatpush.msra.mxu0 0.0
      %417 = vmatpush.msra.mxu0 %v373
      %418 = vmatmul.f32.gmra.mxu0 %v367
      %v419 = vpop.f32.mrf.mxu0
      %v420 = vadd.f32 %v307, %v419
      %421 = vmatmul.f32.gmra.mxu0 %v369
      %v422 = vpop.f32.mrf.mxu0
      %v423 = vadd.f32 %v310, %v422
      %424 = vdwg.mxu0
      %425 = vmatpush.msra.mxu0 0.0
      %426 = vmatpush.msra.mxu0 0.0
      %427 = vmatpush.msra.mxu0 0.0
      %428 = vmatpush.msra.mxu0 0.0
      %429 = vmatpush.msra.mxu0 0.0
      %430 = vmatpush.msra.mxu0 0.0
      %431 = vmatpush.msra.mxu0 0.0
      %432 = vmatpush.msra.mxu0 0.0
      %433 = vmatpush.msra.mxu0 0.0
      %434 = vmatpush.msra.mxu0 0.0
      %435 = vmatpush.msra.mxu0 0.0
      %436 = vmatpush.msra.mxu0 0.0
      %437 = vmatpush.msra.mxu0 0.0
      %438 = vmatpush.msra.mxu0 0.0
      %439 = vmatpush.msra.mxu0 0.0
      %440 = vmatpush.msra.mxu0 %v375
      %441 = vmatmul.f32.gmra.mxu0 %v367
      %v442 = vpop.f32.mrf.mxu0
      %v443 = vadd.f32 %v330, %v442
      %444 = vmatmul.f32.gmra.mxu0 %v369
      %v445 = vpop.f32.mrf.mxu0
      %v446 = vadd.f32 %v333, %v445
      %447 = vdwg.mxu0
      %448 = vmatpush.msra.mxu0 0.0
      %449 = vmatpush.msra.mxu0 0.0
      %450 = vmatpush.msra.mxu0 0.0
      %451 = vmatpush.msra.mxu0 0.0
      %452 = vmatpush.msra.mxu0 0.0
      %453 = vmatpush.msra.mxu0 0.0
      %454 = vmatpush.msra.mxu0 0.0
      %455 = vmatpush.msra.mxu0 0.0
      %456 = vmatpush.msra.mxu0 0.0
      %457 = vmatpush.msra.mxu0 0.0
      %458 = vmatpush.msra.mxu0 0.0
      %459 = vmatpush.msra.mxu0 0.0
      %460 = vmatpush.msra.mxu0 0.0
      %461 = vmatpush.msra.mxu0 0.0
      %462 = vmatpush.msra.mxu0 0.0
      %463 = vmatpush.msra.mxu0 %v377
      %464 = vmatmul.f32.gmra.mxu0 %v367
      %v465 = vpop.f32.mrf.mxu0
      %v466 = vadd.f32 %v353, %v465
      %467 = vmatmul.f32.gmra.mxu0 %v369
      %v468 = vpop.f32.mrf.mxu0
      %v469 = vadd.f32 %v356, %v468
      %470 = vdwg.mxu0
      %s471 = scalar_lea.vmem %s1, 32
      %v472 = vld [vmem:[%s471] sm:$0xff]
      %v473 = vld [vmem:[%s471 + $0x8] sm:$0xff]
      %vm474 = vcmask 1045504
      %v475 = vrot.slane %v226, 2
      %v476 = vrot.slane %v227, 2
      %v477 = vsel %vm474, %v475, %v476
      %v478 = vrot.slane %v228, 2
      %v479 = vsel %vm474, %v476, %v478
      %482 = vst [vmem:[#allocation1] ss:$2 sm:$0xff] %v472
      %s483 = scalar_lea.vmem [#allocation1], 16
      %484 = vst [vmem:[%s483] ss:$2 sm:$0xff] %v473
      %v485 = vld.sshfl [vmem:[#allocation1] sm:$0xff pattern:$0x75316420]
      %v486 = vld.sshfl [vmem:[#allocation1 + $0x8] sm:$0xff pattern:$0x75316420]
      %v487 = vld.sshfl [vmem:[#allocation1 + $0x10] sm:$0xff pattern:$0x75316420]
      %v488 = vld.sshfl [vmem:[#allocation1 + $0x18] sm:$0xff pattern:$0x75316420]
      %v489 = vsel %vm252, %v477, 0
      %v491 = vsel %vm252, %v479, 0
      %v493 = vsel %vm257, %v485, 0
      %v495 = vsel %vm257, %v486, 0
      %v497 = vsel %vm257, %v487, 0
      %v499 = vsel %vm257, %v488, 0
      %501 = vmatpush.msra.mxu0 0.0
      %502 = vmatpush.msra.mxu0 0.0
      %503 = vmatpush.msra.mxu0 0.0
      %504 = vmatpush.msra.mxu0 0.0
      %505 = vmatpush.msra.mxu0 0.0
      %506 = vmatpush.msra.mxu0 0.0
      %507 = vmatpush.msra.mxu0 0.0
      %508 = vmatpush.msra.mxu0 0.0
      %509 = vmatpush.msra.mxu0 0.0
      %510 = vmatpush.msra.mxu0 0.0
      %511 = vmatpush.msra.mxu0 0.0
      %512 = vmatpush.msra.mxu0 0.0
      %513 = vmatpush.msra.mxu0 0.0
      %514 = vmatpush.msra.mxu0 0.0
      %515 = vmatpush.msra.mxu0 0.0
      %516 = vmatpush.msra.mxu0 %v493
      %517 = vmatmul.f32.gmra.mxu0 %v489
      %v518 = vpop.f32.mrf.mxu0
      %v519 = vadd.f32 0.0, %v518
      %520 = vmatmul.f32.gmra.mxu0 %v491
      %v521 = vpop.f32.mrf.mxu0
      %v522 = vadd.f32 0.0, %v521
      %523 = vdwg.mxu0
      %524 = vmatpush.msra.mxu0 0.0
      %525 = vmatpush.msra.mxu0 0.0
      %526 = vmatpush.msra.mxu0 0.0
      %527 = vmatpush.msra.mxu0 0.0
      %528 = vmatpush.msra.mxu0 0.0
      %529 = vmatpush.msra.mxu0 0.0
      %530 = vmatpush.msra.mxu0 0.0
      %531 = vmatpush.msra.mxu0 0.0
      %532 = vmatpush.msra.mxu0 0.0
      %533 = vmatpush.msra.mxu0 0.0
      %534 = vmatpush.msra.mxu0 0.0
      %535 = vmatpush.msra.mxu0 0.0
      %536 = vmatpush.msra.mxu0 0.0
      %537 = vmatpush.msra.mxu0 0.0
      %538 = vmatpush.msra.mxu0 0.0
      %539 = vmatpush.msra.mxu0 %v495
      %540 = vmatmul.f32.gmra.mxu0 %v489
      %v541 = vpop.f32.mrf.mxu0
      %v542 = vadd.f32 0.0, %v541
      %543 = vmatmul.f32.gmra.mxu0 %v491
      %v544 = vpop.f32.mrf.mxu0
      %v545 = vadd.f32 0.0, %v544
      %546 = vdwg.mxu0
      %547 = vmatpush.msra.mxu0 0.0
      %548 = vmatpush.msra.mxu0 0.0
      %549 = vmatpush.msra.mxu0 0.0
      %550 = vmatpush.msra.mxu0 0.0
      %551 = vmatpush.msra.mxu0 0.0
      %552 = vmatpush.msra.mxu0 0.0
      %553 = vmatpush.msra.mxu0 0.0
      %554 = vmatpush.msra.mxu0 0.0
      %555 = vmatpush.msra.mxu0 0.0
      %556 = vmatpush.msra.mxu0 0.0
      %557 = vmatpush.msra.mxu0 0.0
      %558 = vmatpush.msra.mxu0 0.0
      %559 = vmatpush.msra.mxu0 0.0
      %560 = vmatpush.msra.mxu0 0.0
      %561 = vmatpush.msra.mxu0 0.0
      %562 = vmatpush.msra.mxu0 %v497
      %563 = vmatmul.f32.gmra.mxu0 %v489
      %v564 = vpop.f32.mrf.mxu0
      %v565 = vadd.f32 0.0, %v564
      %566 = vmatmul.f32.gmra.mxu0 %v491
      %v567 = vpop.f32.mrf.mxu0
      %v568 = vadd.f32 0.0, %v567
      %569 = vdwg.mxu0
      %570 = vmatpush.msra.mxu0 0.0
      %571 = vmatpush.msra.mxu0 0.0
      %572 = vmatpush.msra.mxu0 0.0
      %573 = vmatpush.msra.mxu0 0.0
      %574 = vmatpush.msra.mxu0 0.0
      %575 = vmatpush.msra.mxu0 0.0
      %576 = vmatpush.msra.mxu0 0.0
      %577 = vmatpush.msra.mxu0 0.0
      %578 = vmatpush.msra.mxu0 0.0
      %579 = vmatpush.msra.mxu0 0.0
      %580 = vmatpush.msra.mxu0 0.0
      %581 = vmatpush.msra.mxu0 0.0
      %582 = vmatpush.msra.mxu0 0.0
      %583 = vmatpush.msra.mxu0 0.0
      %584 = vmatpush.msra.mxu0 0.0
      %585 = vmatpush.msra.mxu0 %v499
      %586 = vmatmul.f32.gmra.mxu0 %v489
      %v587 = vpop.f32.mrf.mxu0
      %v588 = vadd.f32 0.0, %v587
      %589 = vmatmul.f32.gmra.mxu0 %v491
      %v590 = vpop.f32.mrf.mxu0
      %v591 = vadd.f32 0.0, %v590
      %592 = vdwg.mxu0
      %v593 = vadd.f32 %v397, %v519
      %v594 = vadd.f32 %v420, %v542
      %v595 = vadd.f32 %v443, %v565
      %v596 = vadd.f32 %v466, %v588
      %v597 = vadd.f32 %v400, %v522
      %v598 = vadd.f32 %v423, %v545
      %v599 = vadd.f32 %v446, %v568
      %v600 = vadd.f32 %v469, %v591
      %v601 = vld [vmem:[%s2] sm:$0xf]
      %v603 = vperm.slane %v601, 0
      %v604 = vperm.slane %v601, 1
      %v605 = vperm.slane %v601, 2
      %v606 = vperm.slane %v601, 3
      %v611 = vadd.f32 %v593, %v603
      %v612 = vadd.f32 %v594, %v604
      %v613 = vadd.f32 %v595, %v605
      %v614 = vadd.f32 %v596, %v606
      %v615 = vadd.f32 %v597, %v603
      %v616 = vadd.f32 %v598, %v604
      %v617 = vadd.f32 %v599, %v605
      %v618 = vadd.f32 %v600, %v606
      %v619 = vmax.f32 %v611, 0.0
      %v620 = vmax.f32 %v612, 0.0
      %v621 = vmax.f32 %v613, 0.0
      %v622 = vmax.f32 %v614, 0.0
      %v623 = vmax.f32 %v615, 0.0
      %v624 = vmax.f32 %v616, 0.0
      %v625 = vmax.f32 %v617, 0.0
      %v626 = vmax.f32 %v618, 0.0
      %vm627 = vcmask 1040384
      %vm628 = vsmask.f32 256
      %vm629 = vmand %vm627, %vm628
      %vm630 = vcmask 1044484
      %vm631 = vsmask.f32 4352
      %vm632 = vmand %vm630, %vm631
      %vm633 = vmor %vm632, %vm629
      %v634 = vld [vmem:[#allocation2] sm:$0x11]
      %v635 = vsel %vm633, 0, %v634
      %636 = vst [vmem:[#allocation2] sm:$0x11] %v635
      %v637 = vld [vmem:[#allocation2 + $0x8] sm:$0x11]
      %v638 = vsel %vm633, 0, %v637
      %639 = vst [vmem:[#allocation2 + $0x8] sm:$0x11] %v638
      %vm640 = vsmask.f32 7938
      %vm641 = vmand %vm627, %vm640
      %vm642 = vsmask.f32 7954
      %vm643 = vmand %vm630, %vm642
      %vm644 = vmor %vm643, %vm641
      %v645 = vld [vmem:[#allocation2 + $0x20] sm:$0x11]
      %v646 = vsel %vm644, 0, %v645
      %647 = vst [vmem:[#allocation2 + $0x20] sm:$0x11] %v646
      %v648 = vld [vmem:[#allocation2 + $0x28] sm:$0x11]
      %v649 = vsel %vm644, 0, %v648
      %650 = vst [vmem:[#allocation2 + $0x28] sm:$0x11] %v649
      %v651 = vpack.c.bf16 %v620, %v619
      %v652 = vpack.c.bf16 %v622, %v621
      %v653 = vpack.c.bf16 %v624, %v623
      %v654 = vpack.c.bf16 %v626, %v625
      %vm655 = vsmask.f32 4368
      %vm656 = vmor %vm628, %vm655
      %v658 = vshrl.u32 %v651, 16
      %v660 = vrot.slane %v658, 7
      %v661 = vshll.u32 %v651, 16
      %v663 = vor.u32 %v660, %v661
      %v665 = vshrl.u32 %v652, 16
      %v667 = vrot.slane %v665, 7
      %v668 = vshll.u32 %v652, 16
      %v670 = vor.u32 %v667, %v668
      %v671 = vrot.slane %v660, 4
      %v673 = vshrl.u32 %v653, 16
      %v675 = vrot.slane %v673, 7
      %v676 = vshll.u32 %v653, 16
      %v678 = vor.u32 %v675, %v676
      %v679 = vsel %vm656, %v671, %v678
      %v680 = vrot.slane %v667, 4
      %v682 = vshrl.u32 %v654, 16
      %v684 = vrot.slane %v682, 7
      %v685 = vshll.u32 %v654, 16
      %v687 = vor.u32 %v684, %v685
      %v688 = vsel %vm656, %v680, %v687
      %v689 = vrot.slane %v675, 4
      %v690 = vrot.slane %v684, 4
      %vm697 = vcmask 1043456
      %vm698 = vmand %vm697, %vm640
      %vm699 = vcmask 1047556
      %vm700 = vmand %vm699, %vm642
      %vm701 = vmor %vm700, %vm698
      %v702 = vld [vmem:[#allocation2] sm:$0xff]
      %v703 = vsel %vm701, %v663, %v702
      %704 = vst [vmem:[#allocation2] sm:$0xff] %v703
      %v705 = vld [vmem:[#allocation2 + $0x8] sm:$0xff]
      %v706 = vsel %vm701, %v670, %v705
      %707 = vst [vmem:[#allocation2 + $0x8] sm:$0xff] %v706
      %708 = vst [vmem:[#allocation2 + $0x10] sm:$0xff] %v679
      %709 = vst [vmem:[#allocation2 + $0x18] sm:$0xff] %v688
      %v710 = vld [vmem:[#allocation2 + $0x20] sm:$0x11]
      %v711 = vsel %vm633, %v689, %v710
      %712 = vst [vmem:[#allocation2 + $0x20] sm:$0x11] %v711
      %v713 = vld [vmem:[#allocation2 + $0x28] sm:$0x11]
      %v714 = vsel %vm633, %v690, %v713
      %715 = vst [vmem:[#allocation2 + $0x28] sm:$0x11] %v714
      %v716 = vld [vmem:[#allocation2] sm:$0xff]
      %v717 = vld [vmem:[#allocation2 + $0x8] sm:$0xff]
      %v718 = vld [vmem:[#allocation2 + $0x10] sm:$0xff]
      %v719 = vld [vmem:[#allocation2 + $0x18] sm:$0xff]
      %v720 = vld [vmem:[%s3] sm:$0xff]
      %v721 = vld [vmem:[%s3 + $0x8] sm:$0xff]
      %v722 = vld [vmem:[%s3 + $0x10] sm:$0xff]
      %v723 = vld [vmem:[%s3 + $0x18] sm:$0xff]
      %v724 = vld [vmem:[%s3 + $0x20] sm:$0xff]
      %v725 = vld [vmem:[%s3 + $0x28] sm:$0xff]
      %v726 = vld [vmem:[%s3 + $0x30] sm:$0xff]
      %v727 = vld [vmem:[%s3 + $0x38] sm:$0xff]
      %v728 = vld [vmem:[%s3 + $0x40] sm:$0xff]
      %v729 = vld [vmem:[%s3 + $0x48] sm:$0xff]
      %v730 = vld [vmem:[%s3 + $0x50] sm:$0xff]
      %v731 = vld [vmem:[%s3 + $0x58] sm:$0xff]
      %v732 = vld [vmem:[%s3 + $0x60] sm:$0xff]
      %v733 = vld [vmem:[%s3 + $0x68] sm:$0xff]
      %v734 = vld [vmem:[%s3 + $0x70] sm:$0xff]
      %v735 = vld [vmem:[%s3 + $0x78] sm:$0xff]
      %v736 = vld [vmem:[%s3 + $0x80] sm:$0xff]
      %v737 = vld [vmem:[%s3 + $0x88] sm:$0xff]
      %v738 = vld [vmem:[%s3 + $0x90] sm:$0xff]
      %v739 = vld [vmem:[%s3 + $0x98] sm:$0xff]
      %v740 = vld [vmem:[%s3 + $0xa0] sm:$0xff]
      %v741 = vld [vmem:[%s3 + $0xa8] sm:$0xff]
      %v742 = vld [vmem:[%s3 + $0xb0] sm:$0xff]
      %v743 = vld [vmem:[%s3 + $0xb8] sm:$0xff]
      %v744 = vld [vmem:[%s3 + $0xc0] sm:$0xff]
      %v745 = vld [vmem:[%s3 + $0xc8] sm:$0xff]
      %v746 = vld [vmem:[%s3 + $0xd0] sm:$0xff]
      %v747 = vld [vmem:[%s3 + $0xd8] sm:$0xff]
      %v748 = vld [vmem:[%s3 + $0xe0] sm:$0xff]
      %v749 = vld [vmem:[%s3 + $0xe8] sm:$0xff]
      %v750 = vld [vmem:[%s3 + $0xf0] sm:$0xff]
      %v751 = vld [vmem:[%s3 + $0xf8] sm:$0xff]
      %v752 = vld [vmem:[%s3 + $0x100] sm:$0xff]
      %v753 = vld [vmem:[%s3 + $0x108] sm:$0xff]
      %v754 = vld [vmem:[%s3 + $0x110] sm:$0xff]
      %v755 = vld [vmem:[%s3 + $0x118] sm:$0xff]
      %v756 = vld [vmem:[%s3 + $0x120] sm:$0xff]
      %v757 = vld [vmem:[%s3 + $0x128] sm:$0xff]
      %v758 = vld [vmem:[%s3 + $0x130] sm:$0xff]
      %v759 = vld [vmem:[%s3 + $0x138] sm:$0xff]
      %v760 = vld [vmem:[%s3 + $0x140] sm:$0xff]
      %v761 = vld [vmem:[%s3 + $0x148] sm:$0xff]
      %v762 = vld [vmem:[%s3 + $0x150] sm:$0xff]
      %v763 = vld [vmem:[%s3 + $0x158] sm:$0xff]
      %v764 = vld [vmem:[%s3 + $0x160] sm:$0xff]
      %v765 = vld [vmem:[%s3 + $0x168] sm:$0xff]
      %v766 = vld [vmem:[%s3 + $0x170] sm:$0xff]
      %v767 = vld [vmem:[%s3 + $0x178] sm:$0xff]
      %v768 = vld [vmem:[%s3 + $0x180] sm:$0xff]
      %v769 = vld [vmem:[%s3 + $0x188] sm:$0xff]
      %v770 = vld [vmem:[%s3 + $0x190] sm:$0xff]
      %v771 = vld [vmem:[%s3 + $0x198] sm:$0xff]
      %v772 = vld [vmem:[%s3 + $0x1a0] sm:$0xff]
      %v773 = vld [vmem:[%s3 + $0x1a8] sm:$0xff]
      %v774 = vld [vmem:[%s3 + $0x1b0] sm:$0xff]
      %v775 = vld [vmem:[%s3 + $0x1b8] sm:$0xff]
      %v776 = vld [vmem:[%s3 + $0x1c0] sm:$0xff]
      %v777 = vld [vmem:[%s3 + $0x1c8] sm:$0xff]
      %v778 = vld [vmem:[%s3 + $0x1d0] sm:$0xff]
      %v779 = vld [vmem:[%s3 + $0x1d8] sm:$0xff]
      %v780 = vld [vmem:[%s3 + $0x1e0] sm:$0xff]
      %v781 = vld [vmem:[%s3 + $0x1e8] sm:$0xff]
      %v782 = vld [vmem:[%s3 + $0x1f0] sm:$0xff]
      %v783 = vld [vmem:[%s3 + $0x1f8] sm:$0xff]
      %v784 = vld [vmem:[%s3 + $0x200] sm:$0xff]
      %v785 = vld [vmem:[%s3 + $0x208] sm:$0xff]
      %v786 = vld [vmem:[%s3 + $0x210] sm:$0xff]
      %v787 = vld [vmem:[%s3 + $0x218] sm:$0xff]
      %v788 = vld [vmem:[%s3 + $0x220] sm:$0xff]
      %v789 = vld [vmem:[%s3 + $0x228] sm:$0xff]
      %v790 = vld [vmem:[%s3 + $0x230] sm:$0xff]
      %v791 = vld [vmem:[%s3 + $0x238] sm:$0xff]
      %v792 = vld [vmem:[%s3 + $0x240] sm:$0xff]
      %v793 = vld [vmem:[%s3 + $0x248] sm:$0xff]
      %v794 = vld [vmem:[%s3 + $0x250] sm:$0xff]
      %v795 = vld [vmem:[%s3 + $0x258] sm:$0xff]
      %v796 = vld [vmem:[%s3 + $0x260] sm:$0xff]
      %v797 = vld [vmem:[%s3 + $0x268] sm:$0xff]
      %v798 = vld [vmem:[%s3 + $0x270] sm:$0xff]
      %v799 = vld [vmem:[%s3 + $0x278] sm:$0xff]
      %v800 = vld [vmem:[%s3 + $0x280] sm:$0xff]
      %v801 = vld [vmem:[%s3 + $0x288] sm:$0xff]
      %v802 = vld [vmem:[%s3 + $0x290] sm:$0xff]
      %v803 = vld [vmem:[%s3 + $0x298] sm:$0xff]
      %v804 = vld [vmem:[%s3 + $0x2a0] sm:$0xff]
      %v805 = vld [vmem:[%s3 + $0x2a8] sm:$0xff]
      %v806 = vld [vmem:[%s3 + $0x2b0] sm:$0xff]
      %v807 = vld [vmem:[%s3 + $0x2b8] sm:$0xff]
      %v808 = vld [vmem:[%s3 + $0x2c0] sm:$0xff]
      %v809 = vld [vmem:[%s3 + $0x2c8] sm:$0xff]
      %v810 = vld [vmem:[%s3 + $0x2d0] sm:$0xff]
      %v811 = vld [vmem:[%s3 + $0x2d8] sm:$0xff]
      %v812 = vld [vmem:[%s3 + $0x2e0] sm:$0xff]
      %v813 = vld [vmem:[%s3 + $0x2e8] sm:$0xff]
      %v814 = vld [vmem:[%s3 + $0x2f0] sm:$0xff]
      %v815 = vld [vmem:[%s3 + $0x2f8] sm:$0xff]
      %v816 = vld [vmem:[%s3 + $0x300] sm:$0xff]
      %v817 = vld [vmem:[%s3 + $0x308] sm:$0xff]
      %v818 = vld [vmem:[%s3 + $0x310] sm:$0xff]
      %v819 = vld [vmem:[%s3 + $0x318] sm:$0xff]
      %v820 = vld [vmem:[%s3 + $0x320] sm:$0xff]
      %v821 = vld [vmem:[%s3 + $0x328] sm:$0xff]
      %v822 = vld [vmem:[%s3 + $0x330] sm:$0xff]
      %v823 = vld [vmem:[%s3 + $0x338] sm:$0xff]
      %v824 = vld [vmem:[%s3 + $0x340] sm:$0xff]
      %v825 = vld [vmem:[%s3 + $0x348] sm:$0xff]
      %v826 = vld [vmem:[%s3 + $0x350] sm:$0xff]
      %v827 = vld [vmem:[%s3 + $0x358] sm:$0xff]
      %v828 = vld [vmem:[%s3 + $0x360] sm:$0xff]
      %v829 = vld [vmem:[%s3 + $0x368] sm:$0xff]
      %v830 = vld [vmem:[%s3 + $0x370] sm:$0xff]
      %v831 = vld [vmem:[%s3 + $0x378] sm:$0xff]
      %v832 = vld [vmem:[%s3 + $0x380] sm:$0xff]
      %v833 = vld [vmem:[%s3 + $0x388] sm:$0xff]
      %v834 = vld [vmem:[%s3 + $0x390] sm:$0xff]
      %v835 = vld [vmem:[%s3 + $0x398] sm:$0xff]
      %v836 = vld [vmem:[%s3 + $0x3a0] sm:$0xff]
      %v837 = vld [vmem:[%s3 + $0x3a8] sm:$0xff]
      %v838 = vld [vmem:[%s3 + $0x3b0] sm:$0xff]
      %v839 = vld [vmem:[%s3 + $0x3b8] sm:$0xff]
      %v840 = vld [vmem:[%s3 + $0x3c0] sm:$0xff]
      %v841 = vld [vmem:[%s3 + $0x3c8] sm:$0xff]
      %v842 = vld [vmem:[%s3 + $0x3d0] sm:$0xff]
      %v843 = vld [vmem:[%s3 + $0x3d8] sm:$0xff]
      %v844 = vld [vmem:[%s3 + $0x3e0] sm:$0xff]
      %v845 = vld [vmem:[%s3 + $0x3e8] sm:$0xff]
      %v846 = vld [vmem:[%s3 + $0x3f0] sm:$0xff]
      %v847 = vld [vmem:[%s3 + $0x3f8] sm:$0xff]
      %v848 = vld [vmem:[#allocation2 + $0x20] sm:$0x11]
      %v849 = vld [vmem:[#allocation2 + $0x28] sm:$0x11]
      %s850 = scalar_lea.vmem %s3, 1024
      %v851 = vld [vmem:[%s850] sm:$0xff]
      %v852 = vld [vmem:[%s850 + $0x8] sm:$0xff]
      %v853 = vld [vmem:[%s850 + $0x10] sm:$0xff]
      %v854 = vld [vmem:[%s850 + $0x18] sm:$0xff]
      %v855 = vld [vmem:[%s850 + $0x20] sm:$0xff]
      %v856 = vld [vmem:[%s850 + $0x28] sm:$0xff]
      %v857 = vld [vmem:[%s850 + $0x30] sm:$0xff]
      %v858 = vld [vmem:[%s850 + $0x38] sm:$0xff]
      %v859 = vld [vmem:[%s850 + $0x40] sm:$0xff]
      %v860 = vld [vmem:[%s850 + $0x48] sm:$0xff]
      %v861 = vld [vmem:[%s850 + $0x50] sm:$0xff]
      %v862 = vld [vmem:[%s850 + $0x58] sm:$0xff]
      %v863 = vld [vmem:[%s850 + $0x60] sm:$0xff]
      %v864 = vld [vmem:[%s850 + $0x68] sm:$0xff]
      %v865 = vld [vmem:[%s850 + $0x70] sm:$0xff]
      %v866 = vld [vmem:[%s850 + $0x78] sm:$0xff]
      %v867 = vld [vmem:[%s850 + $0x80] sm:$0xff]
      %v868 = vld [vmem:[%s850 + $0x88] sm:$0xff]
      %v869 = vld [vmem:[%s850 + $0x90] sm:$0xff]
      %v870 = vld [vmem:[%s850 + $0x98] sm:$0xff]
      %v871 = vld [vmem:[%s850 + $0xa0] sm:$0xff]
      %v872 = vld [vmem:[%s850 + $0xa8] sm:$0xff]
      %v873 = vld [vmem:[%s850 + $0xb0] sm:$0xff]
      %v874 = vld [vmem:[%s850 + $0xb8] sm:$0xff]
      %v875 = vld [vmem:[%s850 + $0xc0] sm:$0xff]
      %v876 = vld [vmem:[%s850 + $0xc8] sm:$0xff]
      %v877 = vld [vmem:[%s850 + $0xd0] sm:$0xff]
      %v878 = vld [vmem:[%s850 + $0xd8] sm:$0xff]
      %v879 = vld [vmem:[%s850 + $0xe0] sm:$0xff]
      %v880 = vld [vmem:[%s850 + $0xe8] sm:$0xff]
      %v881 = vld [vmem:[%s850 + $0xf0] sm:$0xff]
      %v882 = vld [vmem:[%s850 + $0xf8] sm:$0xff]
      %v883 = vld [vmem:[%s850 + $0x100] sm:$0xff]
      %v884 = vld [vmem:[%s850 + $0x108] sm:$0xff]
      %v885 = vld [vmem:[%s850 + $0x110] sm:$0xff]
      %v886 = vld [vmem:[%s850 + $0x118] sm:$0xff]
      %v887 = vld [vmem:[%s850 + $0x120] sm:$0xff]
      %v888 = vld [vmem:[%s850 + $0x128] sm:$0xff]
      %v889 = vld [vmem:[%s850 + $0x130] sm:$0xff]
      %v890 = vld [vmem:[%s850 + $0x138] sm:$0xff]
      %v891 = vld [vmem:[%s850 + $0x140] sm:$0xff]
      %v892 = vld [vmem:[%s850 + $0x148] sm:$0xff]
      %v893 = vld [vmem:[%s850 + $0x150] sm:$0xff]
      %v894 = vld [vmem:[%s850 + $0x158] sm:$0xff]
      %v895 = vld [vmem:[%s850 + $0x160] sm:$0xff]
      %v896 = vld [vmem:[%s850 + $0x168] sm:$0xff]
      %v897 = vld [vmem:[%s850 + $0x170] sm:$0xff]
      %v898 = vld [vmem:[%s850 + $0x178] sm:$0xff]
      %v899 = vld [vmem:[%s850 + $0x180] sm:$0xff]
      %v900 = vld [vmem:[%s850 + $0x188] sm:$0xff]
      %v901 = vld [vmem:[%s850 + $0x190] sm:$0xff]
      %v902 = vld [vmem:[%s850 + $0x198] sm:$0xff]
      %v903 = vld [vmem:[%s850 + $0x1a0] sm:$0xff]
      %v904 = vld [vmem:[%s850 + $0x1a8] sm:$0xff]
      %v905 = vld [vmem:[%s850 + $0x1b0] sm:$0xff]
      %v906 = vld [vmem:[%s850 + $0x1b8] sm:$0xff]
      %v907 = vld [vmem:[%s850 + $0x1c0] sm:$0xff]
      %v908 = vld [vmem:[%s850 + $0x1c8] sm:$0xff]
      %v909 = vld [vmem:[%s850 + $0x1d0] sm:$0xff]
      %v910 = vld [vmem:[%s850 + $0x1d8] sm:$0xff]
      %v911 = vld [vmem:[%s850 + $0x1e0] sm:$0xff]
      %v912 = vld [vmem:[%s850 + $0x1e8] sm:$0xff]
      %v913 = vld [vmem:[%s850 + $0x1f0] sm:$0xff]
      %v914 = vld [vmem:[%s850 + $0x1f8] sm:$0xff]
      %v915 = vld [vmem:[%s850 + $0x200] sm:$0xff]
      %v916 = vld [vmem:[%s850 + $0x208] sm:$0xff]
      %v917 = vld [vmem:[%s850 + $0x210] sm:$0xff]
      %v918 = vld [vmem:[%s850 + $0x218] sm:$0xff]
      %v919 = vld [vmem:[%s850 + $0x220] sm:$0xff]
      %v920 = vld [vmem:[%s850 + $0x228] sm:$0xff]
      %v921 = vld [vmem:[%s850 + $0x230] sm:$0xff]
      %v922 = vld [vmem:[%s850 + $0x238] sm:$0xff]
      %v923 = vld [vmem:[%s850 + $0x240] sm:$0xff]
      %v924 = vld [vmem:[%s850 + $0x248] sm:$0xff]
      %v925 = vld [vmem:[%s850 + $0x250] sm:$0xff]
      %v926 = vld [vmem:[%s850 + $0x258] sm:$0xff]
      %v927 = vld [vmem:[%s850 + $0x260] sm:$0xff]
      %v928 = vld [vmem:[%s850 + $0x268] sm:$0xff]
      %v929 = vld [vmem:[%s850 + $0x270] sm:$0xff]
      %v930 = vld [vmem:[%s850 + $0x278] sm:$0xff]
      %v931 = vld [vmem:[%s850 + $0x280] sm:$0xff]
      %v932 = vld [vmem:[%s850 + $0x288] sm:$0xff]
      %v933 = vld [vmem:[%s850 + $0x290] sm:$0xff]
      %v934 = vld [vmem:[%s850 + $0x298] sm:$0xff]
      %v935 = vld [vmem:[%s850 + $0x2a0] sm:$0xff]
      %v936 = vld [vmem:[%s850 + $0x2a8] sm:$0xff]
      %v937 = vld [vmem:[%s850 + $0x2b0] sm:$0xff]
      %v938 = vld [vmem:[%s850 + $0x2b8] sm:$0xff]
      %v939 = vld [vmem:[%s850 + $0x2c0] sm:$0xff]
      %v940 = vld [vmem:[%s850 + $0x2c8] sm:$0xff]
      %v941 = vld [vmem:[%s850 + $0x2d0] sm:$0xff]
      %v942 = vld [vmem:[%s850 + $0x2d8] sm:$0xff]
      %v943 = vld [vmem:[%s850 + $0x2e0] sm:$0xff]
      %v944 = vld [vmem:[%s850 + $0x2e8] sm:$0xff]
      %v945 = vld [vmem:[%s850 + $0x2f0] sm:$0xff]
      %v946 = vld [vmem:[%s850 + $0x2f8] sm:$0xff]
      %v947 = vld [vmem:[%s850 + $0x300] sm:$0xff]
      %v948 = vld [vmem:[%s850 + $0x308] sm:$0xff]
      %v949 = vld [vmem:[%s850 + $0x310] sm:$0xff]
      %v950 = vld [vmem:[%s850 + $0x318] sm:$0xff]
      %v951 = vld [vmem:[%s850 + $0x320] sm:$0xff]
      %v952 = vld [vmem:[%s850 + $0x328] sm:$0xff]
      %v953 = vld [vmem:[%s850 + $0x330] sm:$0xff]
      %v954 = vld [vmem:[%s850 + $0x338] sm:$0xff]
      %v955 = vld [vmem:[%s850 + $0x340] sm:$0xff]
      %v956 = vld [vmem:[%s850 + $0x348] sm:$0xff]
      %v957 = vld [vmem:[%s850 + $0x350] sm:$0xff]
      %v958 = vld [vmem:[%s850 + $0x358] sm:$0xff]
      %v959 = vld [vmem:[%s850 + $0x360] sm:$0xff]
      %v960 = vld [vmem:[%s850 + $0x368] sm:$0xff]
      %v961 = vld [vmem:[%s850 + $0x370] sm:$0xff]
      %v962 = vld [vmem:[%s850 + $0x378] sm:$0xff]
      %v963 = vld [vmem:[%s850 + $0x380] sm:$0xff]
      %v964 = vld [vmem:[%s850 + $0x388] sm:$0xff]
      %v965 = vld [vmem:[%s850 + $0x390] sm:$0xff]
      %v966 = vld [vmem:[%s850 + $0x398] sm:$0xff]
      %v967 = vld [vmem:[%s850 + $0x3a0] sm:$0xff]
      %v968 = vld [vmem:[%s850 + $0x3a8] sm:$0xff]
      %v969 = vld [vmem:[%s850 + $0x3b0] sm:$0xff]
      %v970 = vld [vmem:[%s850 + $0x3b8] sm:$0xff]
      %v971 = vld [vmem:[%s850 + $0x3c0] sm:$0xff]
      %v972 = vld [vmem:[%s850 + $0x3c8] sm:$0xff]
      %v973 = vld [vmem:[%s850 + $0x3d0] sm:$0xff]
      %v974 = vld [vmem:[%s850 + $0x3d8] sm:$0xff]
      %v975 = vld [vmem:[%s850 + $0x3e0] sm:$0xff]
      %v976 = vld [vmem:[%s850 + $0x3e8] sm:$0xff]
      %v977 = vld [vmem:[%s850 + $0x3f0] sm:$0xff]
      %v978 = vld [vmem:[%s850 + $0x3f8] sm:$0xff]
      %v985 = vunpack.c.l.b16 %v716
      %v986 = vunpack.c.h.b16 %v716
      %v987 = vunpack.c.l.b16 %v717
      %v988 = vunpack.c.h.b16 %v717
      %v989 = vunpack.c.l.b16 %v718
      %v990 = vunpack.c.h.b16 %v718
      %v991 = vunpack.c.l.b16 %v719
      %v992 = vunpack.c.h.b16 %v719
      %v993 = vunpack.c.l.b16 %v848
      %v994 = vunpack.c.h.b16 %v848
      %v995 = vunpack.c.l.b16 %v849
      %v996 = vunpack.c.h.b16 %v849
      %v997 = vpack.c.b16 %v989, %v985
      %v998 = vpack.c.b16 %v990, %v986
      %v999 = vpack.c.b16 %v991, %v987
      %v1000 = vpack.c.b16 %v992, %v988
      %v1001 = vpack.c.b16 %v993, %v993
      %v1002 = vpack.c.b16 %v994, %v994
      %v1003 = vpack.c.b16 %v995, %v995
      %v1004 = vpack.c.b16 %v996, %v996
      %vm1005 = vsmask.f32 7424
      %v1007 = vshrl.u32 %v997, 16
      %v1009 = vshll.u32 %v997, 16
      %v1011 = vrot.slane %v1009, 1
      %v1012 = vor.u32 %v1007, %v1011
      %v1014 = vshll.u32 %v1001, 16
      %v1016 = vrot.slane %v1014, 1
      %v1017 = vsel %vm1005, %v1012, %v1016
      %v1019 = vshrl.u32 %v998, 16
      %v1021 = vshll.u32 %v998, 16
      %v1023 = vrot.slane %v1021, 1
      %v1024 = vor.u32 %v1019, %v1023
      %v1026 = vshll.u32 %v1002, 16
      %v1028 = vrot.slane %v1026, 1
      %v1029 = vsel %vm1005, %v1024, %v1028
      %v1031 = vshrl.u32 %v999, 16
      %v1033 = vshll.u32 %v999, 16
      %v1035 = vrot.slane %v1033, 1
      %v1036 = vor.u32 %v1031, %v1035
      %v1038 = vshll.u32 %v1003, 16
      %v1040 = vrot.slane %v1038, 1
      %v1041 = vsel %vm1005, %v1036, %v1040
      %v1043 = vshrl.u32 %v1000, 16
      %v1045 = vshll.u32 %v1000, 16
      %v1047 = vrot.slane %v1045, 1
      %v1048 = vor.u32 %v1043, %v1047
      %v1050 = vshll.u32 %v1004, 16
      %v1052 = vrot.slane %v1050, 1
      %v1053 = vsel %vm1005, %v1048, %v1052
      %v1186 = vunpack.c.l.b16 %v851
      %v1187 = vunpack.c.h.b16 %v851
      %v1188 = vunpack.c.l.b16 %v852
      %v1189 = vunpack.c.h.b16 %v852
      %v1190 = vunpack.c.l.b16 %v853
      %v1191 = vunpack.c.h.b16 %v853
      %v1192 = vunpack.c.l.b16 %v854
      %v1193 = vunpack.c.h.b16 %v854
      %v1194 = vunpack.c.l.b16 %v855
      %v1195 = vunpack.c.h.b16 %v855
      %v1196 = vunpack.c.l.b16 %v856
      %v1197 = vunpack.c.h.b16 %v856
      %v1198 = vunpack.c.l.b16 %v857
      %v1199 = vunpack.c.h.b16 %v857
      %v1200 = vunpack.c.l.b16 %v858
      %v1201 = vunpack.c.h.b16 %v858
      %v1202 = vunpack.c.l.b16 %v859
      %v1203 = vunpack.c.h.b16 %v859
      %v1204 = vunpack.c.l.b16 %v860
      %v1205 = vunpack.c.h.b16 %v860
      %v1206 = vunpack.c.l.b16 %v861
      %v1207 = vunpack.c.h.b16 %v861
      %v1208 = vunpack.c.l.b16 %v862
      %v1209 = vunpack.c.h.b16 %v862
      %v1210 = vunpack.c.l.b16 %v863
      %v1211 = vunpack.c.h.b16 %v863
      %v1212 = vunpack.c.l.b16 %v864
      %v1213 = vunpack.c.h.b16 %v864
      %v1214 = vunpack.c.l.b16 %v865
      %v1215 = vunpack.c.h.b16 %v865
      %v1216 = vunpack.c.l.b16 %v866
      %v1217 = vunpack.c.h.b16 %v866
      %v1218 = vunpack.c.l.b16 %v867
      %v1219 = vunpack.c.h.b16 %v867
      %v1220 = vunpack.c.l.b16 %v868
      %v1221 = vunpack.c.h.b16 %v868
      %v1222 = vunpack.c.l.b16 %v869
      %v1223 = vunpack.c.h.b16 %v869
      %v1224 = vunpack.c.l.b16 %v870
      %v1225 = vunpack.c.h.b16 %v870
      %v1226 = vunpack.c.l.b16 %v871
      %v1227 = vunpack.c.h.b16 %v871
      %v1228 = vunpack.c.l.b16 %v872
      %v1229 = vunpack.c.h.b16 %v872
      %v1230 = vunpack.c.l.b16 %v873
      %v1231 = vunpack.c.h.b16 %v873
      %v1232 = vunpack.c.l.b16 %v874
      %v1233 = vunpack.c.h.b16 %v874
      %v1234 = vunpack.c.l.b16 %v875
      %v1235 = vunpack.c.h.b16 %v875
      %v1236 = vunpack.c.l.b16 %v876
      %v1237 = vunpack.c.h.b16 %v876
      %v1238 = vunpack.c.l.b16 %v877
      %v1239 = vunpack.c.h.b16 %v877
      %v1240 = vunpack.c.l.b16 %v878
      %v1241 = vunpack.c.h.b16 %v878
      %v1242 = vunpack.c.l.b16 %v879
      %v1243 = vunpack.c.h.b16 %v879
      %v1244 = vunpack.c.l.b16 %v880
      %v1245 = vunpack.c.h.b16 %v880
      %v1246 = vunpack.c.l.b16 %v881
      %v1247 = vunpack.c.h.b16 %v881
      %v1248 = vunpack.c.l.b16 %v882
      %v1249 = vunpack.c.h.b16 %v882
      %v1250 = vunpack.c.l.b16 %v883
      %v1251 = vunpack.c.h.b16 %v883
      %v1252 = vunpack.c.l.b16 %v884
      %v1253 = vunpack.c.h.b16 %v884
      %v1254 = vunpack.c.l.b16 %v885
      %v1255 = vunpack.c.h.b16 %v885
      %v1256 = vunpack.c.l.b16 %v886
      %v1257 = vunpack.c.h.b16 %v886
      %v1258 = vunpack.c.l.b16 %v887
      %v1259 = vunpack.c.h.b16 %v887
      %v1260 = vunpack.c.l.b16 %v888
      %v1261 = vunpack.c.h.b16 %v888
      %v1262 = vunpack.c.l.b16 %v889
      %v1263 = vunpack.c.h.b16 %v889
      %v1264 = vunpack.c.l.b16 %v890
      %v1265 = vunpack.c.h.b16 %v890
      %v1266 = vunpack.c.l.b16 %v891
      %v1267 = vunpack.c.h.b16 %v891
      %v1268 = vunpack.c.l.b16 %v892
      %v1269 = vunpack.c.h.b16 %v892
      %v1270 = vunpack.c.l.b16 %v893
      %v1271 = vunpack.c.h.b16 %v893
      %v1272 = vunpack.c.l.b16 %v894
      %v1273 = vunpack.c.h.b16 %v894
      %v1274 = vunpack.c.l.b16 %v895
      %v1275 = vunpack.c.h.b16 %v895
      %v1276 = vunpack.c.l.b16 %v896
      %v1277 = vunpack.c.h.b16 %v896
      %v1278 = vunpack.c.l.b16 %v897
      %v1279 = vunpack.c.h.b16 %v897
      %v1280 = vunpack.c.l.b16 %v898
      %v1281 = vunpack.c.h.b16 %v898
      %v1282 = vunpack.c.l.b16 %v899
      %v1283 = vunpack.c.h.b16 %v899
      %v1284 = vunpack.c.l.b16 %v900
      %v1285 = vunpack.c.h.b16 %v900
      %v1286 = vunpack.c.l.b16 %v901
      %v1287 = vunpack.c.h.b16 %v901
      %v1288 = vunpack.c.l.b16 %v902
      %v1289 = vunpack.c.h.b16 %v902
      %v1290 = vunpack.c.l.b16 %v903
      %v1291 = vunpack.c.h.b16 %v903
      %v1292 = vunpack.c.l.b16 %v904
      %v1293 = vunpack.c.h.b16 %v904
      %v1294 = vunpack.c.l.b16 %v905
      %v1295 = vunpack.c.h.b16 %v905
      %v1296 = vunpack.c.l.b16 %v906
      %v1297 = vunpack.c.h.b16 %v906
      %v1298 = vunpack.c.l.b16 %v907
      %v1299 = vunpack.c.h.b16 %v907
      %v1300 = vunpack.c.l.b16 %v908
      %v1301 = vunpack.c.h.b16 %v908
      %v1302 = vunpack.c.l.b16 %v909
      %v1303 = vunpack.c.h.b16 %v909
      %v1304 = vunpack.c.l.b16 %v910
      %v1305 = vunpack.c.h.b16 %v910
      %v1306 = vunpack.c.l.b16 %v911
      %v1307 = vunpack.c.h.b16 %v911
      %v1308 = vunpack.c.l.b16 %v912
      %v1309 = vunpack.c.h.b16 %v912
      %v1310 = vunpack.c.l.b16 %v913
      %v1311 = vunpack.c.h.b16 %v913
      %v1312 = vunpack.c.l.b16 %v914
      %v1313 = vunpack.c.h.b16 %v914
      %v1314 = vunpack.c.l.b16 %v915
      %v1315 = vunpack.c.h.b16 %v915
      %v1316 = vunpack.c.l.b16 %v916
      %v1317 = vunpack.c.h.b16 %v916
      %v1318 = vunpack.c.l.b16 %v917
      %v1319 = vunpack.c.h.b16 %v917
      %v1320 = vunpack.c.l.b16 %v918
      %v1321 = vunpack.c.h.b16 %v918
      %v1322 = vunpack.c.l.b16 %v919
      %v1323 = vunpack.c.h.b16 %v919
      %v1324 = vunpack.c.l.b16 %v920
      %v1325 = vunpack.c.h.b16 %v920
      %v1326 = vunpack.c.l.b16 %v921
      %v1327 = vunpack.c.h.b16 %v921
      %v1328 = vunpack.c.l.b16 %v922
      %v1329 = vunpack.c.h.b16 %v922
      %v1330 = vunpack.c.l.b16 %v923
      %v1331 = vunpack.c.h.b16 %v923
      %v1332 = vunpack.c.l.b16 %v924
      %v1333 = vunpack.c.h.b16 %v924
      %v1334 = vunpack.c.l.b16 %v925
      %v1335 = vunpack.c.h.b16 %v925
      %v1336 = vunpack.c.l.b16 %v926
      %v1337 = vunpack.c.h.b16 %v926
      %v1338 = vunpack.c.l.b16 %v927
      %v1339 = vunpack.c.h.b16 %v927
      %v1340 = vunpack.c.l.b16 %v928
      %v1341 = vunpack.c.h.b16 %v928
      %v1342 = vunpack.c.l.b16 %v929
      %v1343 = vunpack.c.h.b16 %v929
      %v1344 = vunpack.c.l.b16 %v930
      %v1345 = vunpack.c.h.b16 %v930
      %v1346 = vunpack.c.l.b16 %v931
      %v1347 = vunpack.c.h.b16 %v931
      %v1348 = vunpack.c.l.b16 %v932
      %v1349 = vunpack.c.h.b16 %v932
      %v1350 = vunpack.c.l.b16 %v933
      %v1351 = vunpack.c.h.b16 %v933
      %v1352 = vunpack.c.l.b16 %v934
      %v1353 = vunpack.c.h.b16 %v934
      %v1354 = vunpack.c.l.b16 %v935
      %v1355 = vunpack.c.h.b16 %v935
      %v1356 = vunpack.c.l.b16 %v936
      %v1357 = vunpack.c.h.b16 %v936
      %v1358 = vunpack.c.l.b16 %v937
      %v1359 = vunpack.c.h.b16 %v937
      %v1360 = vunpack.c.l.b16 %v938
      %v1361 = vunpack.c.h.b16 %v938
      %v1362 = vunpack.c.l.b16 %v939
      %v1363 = vunpack.c.h.b16 %v939
      %v1364 = vunpack.c.l.b16 %v940
      %v1365 = vunpack.c.h.b16 %v940
      %v1366 = vunpack.c.l.b16 %v941
      %v1367 = vunpack.c.h.b16 %v941
      %v1368 = vunpack.c.l.b16 %v942
      %v1369 = vunpack.c.h.b16 %v942
      %v1370 = vunpack.c.l.b16 %v943
      %v1371 = vunpack.c.h.b16 %v943
      %v1372 = vunpack.c.l.b16 %v944
      %v1373 = vunpack.c.h.b16 %v944
      %v1374 = vunpack.c.l.b16 %v945
      %v1375 = vunpack.c.h.b16 %v945
      %v1376 = vunpack.c.l.b16 %v946
      %v1377 = vunpack.c.h.b16 %v946
      %v1378 = vunpack.c.l.b16 %v947
      %v1379 = vunpack.c.h.b16 %v947
      %v1380 = vunpack.c.l.b16 %v948
      %v1381 = vunpack.c.h.b16 %v948
      %v1382 = vunpack.c.l.b16 %v949
      %v1383 = vunpack.c.h.b16 %v949
      %v1384 = vunpack.c.l.b16 %v950
      %v1385 = vunpack.c.h.b16 %v950
      %v1386 = vunpack.c.l.b16 %v951
      %v1387 = vunpack.c.h.b16 %v951
      %v1388 = vunpack.c.l.b16 %v952
      %v1389 = vunpack.c.h.b16 %v952
      %v1390 = vunpack.c.l.b16 %v953
      %v1391 = vunpack.c.h.b16 %v953
      %v1392 = vunpack.c.l.b16 %v954
      %v1393 = vunpack.c.h.b16 %v954
      %v1394 = vunpack.c.l.b16 %v955
      %v1395 = vunpack.c.h.b16 %v955
      %v1396 = vunpack.c.l.b16 %v956
      %v1397 = vunpack.c.h.b16 %v956
      %v1398 = vunpack.c.l.b16 %v957
      %v1399 = vunpack.c.h.b16 %v957
      %v1400 = vunpack.c.l.b16 %v958
      %v1401 = vunpack.c.h.b16 %v958
      %v1402 = vunpack.c.l.b16 %v959
      %v1403 = vunpack.c.h.b16 %v959
      %v1404 = vunpack.c.l.b16 %v960
      %v1405 = vunpack.c.h.b16 %v960
      %v1406 = vunpack.c.l.b16 %v961
      %v1407 = vunpack.c.h.b16 %v961
      %v1408 = vunpack.c.l.b16 %v962
      %v1409 = vunpack.c.h.b16 %v962
      %v1410 = vunpack.c.l.b16 %v963
      %v1411 = vunpack.c.h.b16 %v963
      %v1412 = vunpack.c.l.b16 %v964
      %v1413 = vunpack.c.h.b16 %v964
      %v1414 = vunpack.c.l.b16 %v965
      %v1415 = vunpack.c.h.b16 %v965
      %v1416 = vunpack.c.l.b16 %v966
      %v1417 = vunpack.c.h.b16 %v966
      %v1418 = vunpack.c.l.b16 %v967
      %v1419 = vunpack.c.h.b16 %v967
      %v1420 = vunpack.c.l.b16 %v968
      %v1421 = vunpack.c.h.b16 %v968
      %v1422 = vunpack.c.l.b16 %v969
      %v1423 = vunpack.c.h.b16 %v969
      %v1424 = vunpack.c.l.b16 %v970
      %v1425 = vunpack.c.h.b16 %v970
      %v1426 = vunpack.c.l.b16 %v971
      %v1427 = vunpack.c.h.b16 %v971
      %v1428 = vunpack.c.l.b16 %v972
      %v1429 = vunpack.c.h.b16 %v972
      %v1430 = vunpack.c.l.b16 %v973
      %v1431 = vunpack.c.h.b16 %v973
      %v1432 = vunpack.c.l.b16 %v974
      %v1433 = vunpack.c.h.b16 %v974
      %v1434 = vunpack.c.l.b16 %v975
      %v1435 = vunpack.c.h.b16 %v975
      %v1436 = vunpack.c.l.b16 %v976
      %v1437 = vunpack.c.h.b16 %v976
      %v1438 = vunpack.c.l.b16 %v977
      %v1439 = vunpack.c.h.b16 %v977
      %v1440 = vunpack.c.l.b16 %v978
      %v1441 = vunpack.c.h.b16 %v978
      %v1442 = vpack.c.b16 %v1190, %v1186
      %v1443 = vpack.c.b16 %v1191, %v1187
      %v1444 = vpack.c.b16 %v1192, %v1188
      %v1445 = vpack.c.b16 %v1193, %v1189
      %v1446 = vpack.c.b16 %v1198, %v1194
      %v1447 = vpack.c.b16 %v1199, %v1195
      %v1448 = vpack.c.b16 %v1200, %v1196
      %v1449 = vpack.c.b16 %v1201, %v1197
      %v1450 = vpack.c.b16 %v1206, %v1202
      %v1451 = vpack.c.b16 %v1207, %v1203
      %v1452 = vpack.c.b16 %v1208, %v1204
      %v1453 = vpack.c.b16 %v1209, %v1205
      %v1454 = vpack.c.b16 %v1214, %v1210
      %v1455 = vpack.c.b16 %v1215, %v1211
      %v1456 = vpack.c.b16 %v1216, %v1212
      %v1457 = vpack.c.b16 %v1217, %v1213
      %v1458 = vpack.c.b16 %v1222, %v1218
      %v1459 = vpack.c.b16 %v1223, %v1219
      %v1460 = vpack.c.b16 %v1224, %v1220
      %v1461 = vpack.c.b16 %v1225, %v1221
      %v1462 = vpack.c.b16 %v1230, %v1226
      %v1463 = vpack.c.b16 %v1231, %v1227
      %v1464 = vpack.c.b16 %v1232, %v1228
      %v1465 = vpack.c.b16 %v1233, %v1229
      %v1466 = vpack.c.b16 %v1238, %v1234
      %v1467 = vpack.c.b16 %v1239, %v1235
      %v1468 = vpack.c.b16 %v1240, %v1236
      %v1469 = vpack.c.b16 %v1241, %v1237
      %v1470 = vpack.c.b16 %v1246, %v1242
      %v1471 = vpack.c.b16 %v1247, %v1243
      %v1472 = vpack.c.b16 %v1248, %v1244
      %v1473 = vpack.c.b16 %v1249, %v1245
      %v1474 = vpack.c.b16 %v1254, %v1250
      %v1475 = vpack.c.b16 %v1255, %v1251
      %v1476 = vpack.c.b16 %v1256, %v1252
      %v1477 = vpack.c.b16 %v1257, %v1253
      %v1478 = vpack.c.b16 %v1262, %v1258
      %v1479 = vpack.c.b16 %v1263, %v1259
      %v1480 = vpack.c.b16 %v1264, %v1260
      %v1481 = vpack.c.b16 %v1265, %v1261
      %v1482 = vpack.c.b16 %v1270, %v1266
      %v1483 = vpack.c.b16 %v1271, %v1267
      %v1484 = vpack.c.b16 %v1272, %v1268
      %v1485 = vpack.c.b16 %v1273, %v1269
      %v1486 = vpack.c.b16 %v1278, %v1274
      %v1487 = vpack.c.b16 %v1279, %v1275
      %v1488 = vpack.c.b16 %v1280, %v1276
      %v1489 = vpack.c.b16 %v1281, %v1277
      %v1490 = vpack.c.b16 %v1286, %v1282
      %v1491 = vpack.c.b16 %v1287, %v1283
      %v1492 = vpack.c.b16 %v1288, %v1284
      %v1493 = vpack.c.b16 %v1289, %v1285
      %v1494 = vpack.c.b16 %v1294, %v1290
      %v1495 = vpack.c.b16 %v1295, %v1291
      %v1496 = vpack.c.b16 %v1296, %v1292
      %v1497 = vpack.c.b16 %v1297, %v1293
      %v1498 = vpack.c.b16 %v1302, %v1298
      %v1499 = vpack.c.b16 %v1303, %v1299
      %v1500 = vpack.c.b16 %v1304, %v1300
      %v1501 = vpack.c.b16 %v1305, %v1301
      %v1502 = vpack.c.b16 %v1310, %v1306
      %v1503 = vpack.c.b16 %v1311, %v1307
      %v1504 = vpack.c.b16 %v1312, %v1308
      %v1505 = vpack.c.b16 %v1313, %v1309
      %v1506 = vpack.c.b16 %v1318, %v1314
      %v1507 = vpack.c.b16 %v1319, %v1315
      %v1508 = vpack.c.b16 %v1320, %v1316
      %v1509 = vpack.c.b16 %v1321, %v1317
      %v1510 = vpack.c.b16 %v1326, %v1322
      %v1511 = vpack.c.b16 %v1327, %v1323
      %v1512 = vpack.c.b16 %v1328, %v1324
      %v1513 = vpack.c.b16 %v1329, %v1325
      %v1514 = vpack.c.b16 %v1334, %v1330
      %v1515 = vpack.c.b16 %v1335, %v1331
      %v1516 = vpack.c.b16 %v1336, %v1332
      %v1517 = vpack.c.b16 %v1337, %v1333
      %v1518 = vpack.c.b16 %v1342, %v1338
      %v1519 = vpack.c.b16 %v1343, %v1339
      %v1520 = vpack.c.b16 %v1344, %v1340
      %v1521 = vpack.c.b16 %v1345, %v1341
      %v1522 = vpack.c.b16 %v1350, %v1346
      %v1523 = vpack.c.b16 %v1351, %v1347
      %v1524 = vpack.c.b16 %v1352, %v1348
      %v1525 = vpack.c.b16 %v1353, %v1349
      %v1526 = vpack.c.b16 %v1358, %v1354
      %v1527 = vpack.c.b16 %v1359, %v1355
      %v1528 = vpack.c.b16 %v1360, %v1356
      %v1529 = vpack.c.b16 %v1361, %v1357
      %v1530 = vpack.c.b16 %v1366, %v1362
      %v1531 = vpack.c.b16 %v1367, %v1363
      %v1532 = vpack.c.b16 %v1368, %v1364
      %v1533 = vpack.c.b16 %v1369, %v1365
      %v1534 = vpack.c.b16 %v1374, %v1370
      %v1535 = vpack.c.b16 %v1375, %v1371
      %v1536 = vpack.c.b16 %v1376, %v1372
      %v1537 = vpack.c.b16 %v1377, %v1373
      %v1538 = vpack.c.b16 %v1382, %v1378
      %v1539 = vpack.c.b16 %v1383, %v1379
      %v1540 = vpack.c.b16 %v1384, %v1380
      %v1541 = vpack.c.b16 %v1385, %v1381
      %v1542 = vpack.c.b16 %v1390, %v1386
      %v1543 = vpack.c.b16 %v1391, %v1387
      %v1544 = vpack.c.b16 %v1392, %v1388
      %v1545 = vpack.c.b16 %v1393, %v1389
      %v1546 = vpack.c.b16 %v1398, %v1394
      %v1547 = vpack.c.b16 %v1399, %v1395
      %v1548 = vpack.c.b16 %v1400, %v1396
      %v1549 = vpack.c.b16 %v1401, %v1397
      %v1550 = vpack.c.b16 %v1406, %v1402
      %v1551 = vpack.c.b16 %v1407, %v1403
      %v1552 = vpack.c.b16 %v1408, %v1404
      %v1553 = vpack.c.b16 %v1409, %v1405
      %v1554 = vpack.c.b16 %v1414, %v1410
      %v1555 = vpack.c.b16 %v1415, %v1411
      %v1556 = vpack.c.b16 %v1416, %v1412
      %v1557 = vpack.c.b16 %v1417, %v1413
      %v1558 = vpack.c.b16 %v1422, %v1418
      %v1559 = vpack.c.b16 %v1423, %v1419
      %v1560 = vpack.c.b16 %v1424, %v1420
      %v1561 = vpack.c.b16 %v1425, %v1421
      %v1562 = vpack.c.b16 %v1430, %v1426
      %v1563 = vpack.c.b16 %v1431, %v1427
      %v1564 = vpack.c.b16 %v1432, %v1428
      %v1565 = vpack.c.b16 %v1433, %v1429
      %v1566 = vpack.c.b16 %v1438, %v1434
      %v1567 = vpack.c.b16 %v1439, %v1435
      %v1568 = vpack.c.b16 %v1440, %v1436
      %v1569 = vpack.c.b16 %v1441, %v1437
      %1698 = vmatpush.bf16.msra.mxu0 %v1470
      %1699 = vmatpush.bf16.msra.mxu0 %v1466
      %1700 = vmatpush.bf16.msra.mxu0 %v1462
      %1701 = vmatpush.bf16.msra.mxu0 %v1458
      %1702 = vmatpush.bf16.msra.mxu0 %v1454
      %1703 = vmatpush.bf16.msra.mxu0 %v1450
      %1704 = vmatpush.bf16.msra.mxu0 %v1446
      %1705 = vmatpush.bf16.msra.mxu0 %v1442
      %1706 = vmatmul.bf16.gmra.mxu0 %v1017
      %v1707 = vpop.f32.mrf.mxu0
      %v1708 = vadd.f32 0.0, %v1707
      %v1709 = vpop.f32.mrf.mxu0
      %v1710 = vadd.f32 0.0, %v1709
      %1711 = vdwg.mxu0
      %1712 = vmatpush.bf16.msra.mxu0 %v1502
      %1713 = vmatpush.bf16.msra.mxu0 %v1498
      %1714 = vmatpush.bf16.msra.mxu0 %v1494
      %1715 = vmatpush.bf16.msra.mxu0 %v1490
      %1716 = vmatpush.bf16.msra.mxu0 %v1486
      %1717 = vmatpush.bf16.msra.mxu0 %v1482
      %1718 = vmatpush.bf16.msra.mxu0 %v1478
      %1719 = vmatpush.bf16.msra.mxu0 %v1474
      %1720 = vmatmul.bf16.gmra.mxu0 %v1029
      %v1721 = vpop.f32.mrf.mxu0
      %v1722 = vadd.f32 %v1708, %v1721
      %v1723 = vpop.f32.mrf.mxu0
      %v1724 = vadd.f32 %v1710, %v1723
      %1725 = vdwg.mxu0
      %1726 = vmatpush.bf16.msra.mxu0 %v1534
      %1727 = vmatpush.bf16.msra.mxu0 %v1530
      %1728 = vmatpush.bf16.msra.mxu0 %v1526
      %1729 = vmatpush.bf16.msra.mxu0 %v1522
      %1730 = vmatpush.bf16.msra.mxu0 %v1518
      %1731 = vmatpush.bf16.msra.mxu0 %v1514
      %1732 = vmatpush.bf16.msra.mxu0 %v1510
      %1733 = vmatpush.bf16.msra.mxu0 %v1506
      %1734 = vmatmul.bf16.gmra.mxu0 %v1041
      %v1735 = vpop.f32.mrf.mxu0
      %v1736 = vadd.f32 %v1722, %v1735
      %v1737 = vpop.f32.mrf.mxu0
      %v1738 = vadd.f32 %v1724, %v1737
      %1739 = vdwg.mxu0
      %1740 = vmatpush.bf16.msra.mxu0 %v1566
      %1741 = vmatpush.bf16.msra.mxu0 %v1562
      %1742 = vmatpush.bf16.msra.mxu0 %v1558
      %1743 = vmatpush.bf16.msra.mxu0 %v1554
      %1744 = vmatpush.bf16.msra.mxu0 %v1550
      %1745 = vmatpush.bf16.msra.mxu0 %v1546
      %1746 = vmatpush.bf16.msra.mxu0 %v1542
      %1747 = vmatpush.bf16.msra.mxu0 %v1538
      %1748 = vmatmul.bf16.gmra.mxu0 %v1053
      %v1749 = vpop.f32.mrf.mxu0
      %v1750 = vadd.f32 %v1736, %v1749
      %v1751 = vpop.f32.mrf.mxu0
      %v1752 = vadd.f32 %v1738, %v1751
      %1753 = vdwg.mxu0
      %1754 = vmatpush.bf16.msra.mxu0 %v1471
      %1755 = vmatpush.bf16.msra.mxu0 %v1467
      %1756 = vmatpush.bf16.msra.mxu0 %v1463
      %1757 = vmatpush.bf16.msra.mxu0 %v1459
      %1758 = vmatpush.bf16.msra.mxu0 %v1455
      %1759 = vmatpush.bf16.msra.mxu0 %v1451
      %1760 = vmatpush.bf16.msra.mxu0 %v1447
      %1761 = vmatpush.bf16.msra.mxu0 %v1443
      %1762 = vmatmul.bf16.gmra.mxu0 %v1017
      %v1763 = vpop.f32.mrf.mxu0
      %v1764 = vadd.f32 0.0, %v1763
      %v1765 = vpop.f32.mrf.mxu0
      %v1766 = vadd.f32 0.0, %v1765
      %1767 = vdwg.mxu0
      %1768 = vmatpush.bf16.msra.mxu0 %v1503
      %1769 = vmatpush.bf16.msra.mxu0 %v1499
      %1770 = vmatpush.bf16.msra.mxu0 %v1495
      %1771 = vmatpush.bf16.msra.mxu0 %v1491
      %1772 = vmatpush.bf16.msra.mxu0 %v1487
      %1773 = vmatpush.bf16.msra.mxu0 %v1483
      %1774 = vmatpush.bf16.msra.mxu0 %v1479
      %1775 = vmatpush.bf16.msra.mxu0 %v1475
      %1776 = vmatmul.bf16.gmra.mxu0 %v1029
      %v1777 = vpop.f32.mrf.mxu0
      %v1778 = vadd.f32 %v1764, %v1777
      %v1779 = vpop.f32.mrf.mxu0
      %v1780 = vadd.f32 %v1766, %v1779
      %1781 = vdwg.mxu0
      %1782 = vmatpush.bf16.msra.mxu0 %v1535
      %1783 = vmatpush.bf16.msra.mxu0 %v1531
      %1784 = vmatpush.bf16.msra.mxu0 %v1527
      %1785 = vmatpush.bf16.msra.mxu0 %v1523
      %1786 = vmatpush.bf16.msra.mxu0 %v1519
      %1787 = vmatpush.bf16.msra.mxu0 %v1515
      %1788 = vmatpush.bf16.msra.mxu0 %v1511
      %1789 = vmatpush.bf16.msra.mxu0 %v1507
      %1790 = vmatmul.bf16.gmra.mxu0 %v1041
      %v1791 = vpop.f32.mrf.mxu0
      %v1792 = vadd.f32 %v1778, %v1791
      %v1793 = vpop.f32.mrf.mxu0
      %v1794 = vadd.f32 %v1780, %v1793
      %1795 = vdwg.mxu0
      %1796 = vmatpush.bf16.msra.mxu0 %v1567
      %1797 = vmatpush.bf16.msra.mxu0 %v1563
      %1798 = vmatpush.bf16.msra.mxu0 %v1559
      %1799 = vmatpush.bf16.msra.mxu0 %v1555
      %1800 = vmatpush.bf16.msra.mxu0 %v1551
      %1801 = vmatpush.bf16.msra.mxu0 %v1547
      %1802 = vmatpush.bf16.msra.mxu0 %v1543
      %1803 = vmatpush.bf16.msra.mxu0 %v1539
      %1804 = vmatmul.bf16.gmra.mxu0 %v1053
      %v1805 = vpop.f32.mrf.mxu0
      %v1806 = vadd.f32 %v1792, %v1805
      %v1807 = vpop.f32.mrf.mxu0
      %v1808 = vadd.f32 %v1794, %v1807
      %1809 = vdwg.mxu0
      %1810 = vmatpush.bf16.msra.mxu0 %v1472
      %1811 = vmatpush.bf16.msra.mxu0 %v1468
      %1812 = vmatpush.bf16.msra.mxu0 %v1464
      %1813 = vmatpush.bf16.msra.mxu0 %v1460
      %1814 = vmatpush.bf16.msra.mxu0 %v1456
      %1815 = vmatpush.bf16.msra.mxu0 %v1452
      %1816 = vmatpush.bf16.msra.mxu0 %v1448
      %1817 = vmatpush.bf16.msra.mxu0 %v1444
      %1818 = vmatmul.bf16.gmra.mxu0 %v1017
      %v1819 = vpop.f32.mrf.mxu0
      %v1820 = vadd.f32 0.0, %v1819
      %v1821 = vpop.f32.mrf.mxu0
      %v1822 = vadd.f32 0.0, %v1821
      %1823 = vdwg.mxu0
      %1824 = vmatpush.bf16.msra.mxu0 %v1504
      %1825 = vmatpush.bf16.msra.mxu0 %v1500
      %1826 = vmatpush.bf16.msra.mxu0 %v1496
      %1827 = vmatpush.bf16.msra.mxu0 %v1492
      %1828 = vmatpush.bf16.msra.mxu0 %v1488
      %1829 = vmatpush.bf16.msra.mxu0 %v1484
      %1830 = vmatpush.bf16.msra.mxu0 %v1480
      %1831 = vmatpush.bf16.msra.mxu0 %v1476
      %1832 = vmatmul.bf16.gmra.mxu0 %v1029
      %v1833 = vpop.f32.mrf.mxu0
      %v1834 = vadd.f32 %v1820, %v1833
      %v1835 = vpop.f32.mrf.mxu0
      %v1836 = vadd.f32 %v1822, %v1835
      %1837 = vdwg.mxu0
      %1838 = vmatpush.bf16.msra.mxu0 %v1536
      %1839 = vmatpush.bf16.msra.mxu0 %v1532
      %1840 = vmatpush.bf16.msra.mxu0 %v1528
      %1841 = vmatpush.bf16.msra.mxu0 %v1524
      %1842 = vmatpush.bf16.msra.mxu0 %v1520
      %1843 = vmatpush.bf16.msra.mxu0 %v1516
      %1844 = vmatpush.bf16.msra.mxu0 %v1512
      %1845 = vmatpush.bf16.msra.mxu0 %v1508
      %1846 = vmatmul.bf16.gmra.mxu0 %v1041
      %v1847 = vpop.f32.mrf.mxu0
      %v1848 = vadd.f32 %v1834, %v1847
      %v1849 = vpop.f32.mrf.mxu0
      %v1850 = vadd.f32 %v1836, %v1849
      %1851 = vdwg.mxu0
      %1852 = vmatpush.bf16.msra.mxu0 %v1568
      %1853 = vmatpush.bf16.msra.mxu0 %v1564
      %1854 = vmatpush.bf16.msra.mxu0 %v1560
      %1855 = vmatpush.bf16.msra.mxu0 %v1556
      %1856 = vmatpush.bf16.msra.mxu0 %v1552
      %1857 = vmatpush.bf16.msra.mxu0 %v1548
      %1858 = vmatpush.bf16.msra.mxu0 %v1544
      %1859 = vmatpush.bf16.msra.mxu0 %v1540
      %1860 = vmatmul.bf16.gmra.mxu0 %v1053
      %v1861 = vpop.f32.mrf.mxu0
      %v1862 = vadd.f32 %v1848, %v1861
      %v1863 = vpop.f32.mrf.mxu0
      %v1864 = vadd.f32 %v1850, %v1863
      %1865 = vdwg.mxu0
      %1866 = vmatpush.bf16.msra.mxu0 %v1473
      %1867 = vmatpush.bf16.msra.mxu0 %v1469
      %1868 = vmatpush.bf16.msra.mxu0 %v1465
      %1869 = vmatpush.bf16.msra.mxu0 %v1461
      %1870 = vmatpush.bf16.msra.mxu0 %v1457
      %1871 = vmatpush.bf16.msra.mxu0 %v1453
      %1872 = vmatpush.bf16.msra.mxu0 %v1449
      %1873 = vmatpush.bf16.msra.mxu0 %v1445
      %1874 = vmatmul.bf16.gmra.mxu0 %v1017
      %v1875 = vpop.f32.mrf.mxu0
      %v1876 = vadd.f32 0.0, %v1875
      %v1877 = vpop.f32.mrf.mxu0
      %v1878 = vadd.f32 0.0, %v1877
      %1879 = vdwg.mxu0
      %1880 = vmatpush.bf16.msra.mxu0 %v1505
      %1881 = vmatpush.bf16.msra.mxu0 %v1501
      %1882 = vmatpush.bf16.msra.mxu0 %v1497
      %1883 = vmatpush.bf16.msra.mxu0 %v1493
      %1884 = vmatpush.bf16.msra.mxu0 %v1489
      %1885 = vmatpush.bf16.msra.mxu0 %v1485
      %1886 = vmatpush.bf16.msra.mxu0 %v1481
      %1887 = vmatpush.bf16.msra.mxu0 %v1477
      %1888 = vmatmul.bf16.gmra.mxu0 %v1029
      %v1889 = vpop.f32.mrf.mxu0
      %v1890 = vadd.f32 %v1876, %v1889
      %v1891 = vpop.f32.mrf.mxu0
      %v1892 = vadd.f32 %v1878, %v1891
      %1893 = vdwg.mxu0
      %1894 = vmatpush.bf16.msra.mxu0 %v1537
      %1895 = vmatpush.bf16.msra.mxu0 %v1533
      %1896 = vmatpush.bf16.msra.mxu0 %v1529
      %1897 = vmatpush.bf16.msra.mxu0 %v1525
      %1898 = vmatpush.bf16.msra.mxu0 %v1521
      %1899 = vmatpush.bf16.msra.mxu0 %v1517
      %1900 = vmatpush.bf16.msra.mxu0 %v1513
      %1901 = vmatpush.bf16.msra.mxu0 %v1509
      %1902 = vmatmul.bf16.gmra.mxu0 %v1041
      %v1903 = vpop.f32.mrf.mxu0
      %v1904 = vadd.f32 %v1890, %v1903
      %v1905 = vpop.f32.mrf.mxu0
      %v1906 = vadd.f32 %v1892, %v1905
      %1907 = vdwg.mxu0
      %1908 = vmatpush.bf16.msra.mxu0 %v1569
      %1909 = vmatpush.bf16.msra.mxu0 %v1565
      %1910 = vmatpush.bf16.msra.mxu0 %v1561
      %1911 = vmatpush.bf16.msra.mxu0 %v1557
      %1912 = vmatpush.bf16.msra.mxu0 %v1553
      %1913 = vmatpush.bf16.msra.mxu0 %v1549
      %1914 = vmatpush.bf16.msra.mxu0 %v1545
      %1915 = vmatpush.bf16.msra.mxu0 %v1541
      %1916 = vmatmul.bf16.gmra.mxu0 %v1053
      %v1917 = vpop.f32.mrf.mxu0
      %v1918 = vadd.f32 %v1904, %v1917
      %v1919 = vpop.f32.mrf.mxu0
      %v1920 = vadd.f32 %v1906, %v1919
      %1921 = vdwg.mxu0
      %v2054 = vunpack.c.l.b16 %v720
      %v2055 = vunpack.c.h.b16 %v720
      %v2056 = vunpack.c.l.b16 %v721
      %v2057 = vunpack.c.h.b16 %v721
      %v2058 = vunpack.c.l.b16 %v722
      %v2059 = vunpack.c.h.b16 %v722
      %v2060 = vunpack.c.l.b16 %v723
      %v2061 = vunpack.c.h.b16 %v723
      %v2062 = vunpack.c.l.b16 %v724
      %v2063 = vunpack.c.h.b16 %v724
      %v2064 = vunpack.c.l.b16 %v725
      %v2065 = vunpack.c.h.b16 %v725
      %v2066 = vunpack.c.l.b16 %v726
      %v2067 = vunpack.c.h.b16 %v726
      %v2068 = vunpack.c.l.b16 %v727
      %v2069 = vunpack.c.h.b16 %v727
      %v2070 = vunpack.c.l.b16 %v728
      %v2071 = vunpack.c.h.b16 %v728
      %v2072 = vunpack.c.l.b16 %v729
      %v2073 = vunpack.c.h.b16 %v729
      %v2074 = vunpack.c.l.b16 %v730
      %v2075 = vunpack.c.h.b16 %v730
      %v2076 = vunpack.c.l.b16 %v731
      %v2077 = vunpack.c.h.b16 %v731
      %v2078 = vunpack.c.l.b16 %v732
      %v2079 = vunpack.c.h.b16 %v732
      %v2080 = vunpack.c.l.b16 %v733
      %v2081 = vunpack.c.h.b16 %v733
      %v2082 = vunpack.c.l.b16 %v734
      %v2083 = vunpack.c.h.b16 %v734
      %v2084 = vunpack.c.l.b16 %v735
      %v2085 = vunpack.c.h.b16 %v735
      %v2086 = vunpack.c.l.b16 %v736
      %v2087 = vunpack.c.h.b16 %v736
      %v2088 = vunpack.c.l.b16 %v737
      %v2089 = vunpack.c.h.b16 %v737
      %v2090 = vunpack.c.l.b16 %v738
      %v2091 = vunpack.c.h.b16 %v738
      %v2092 = vunpack.c.l.b16 %v739
      %v2093 = vunpack.c.h.b16 %v739
      %v2094 = vunpack.c.l.b16 %v740
      %v2095 = vunpack.c.h.b16 %v740
      %v2096 = vunpack.c.l.b16 %v741
      %v2097 = vunpack.c.h.b16 %v741
      %v2098 = vunpack.c.l.b16 %v742
      %v2099 = vunpack.c.h.b16 %v742
      %v2100 = vunpack.c.l.b16 %v743
      %v2101 = vunpack.c.h.b16 %v743
      %v2102 = vunpack.c.l.b16 %v744
      %v2103 = vunpack.c.h.b16 %v744
      %v2104 = vunpack.c.l.b16 %v745
      %v2105 = vunpack.c.h.b16 %v745
      %v2106 = vunpack.c.l.b16 %v746
      %v2107 = vunpack.c.h.b16 %v746
      %v2108 = vunpack.c.l.b16 %v747
      %v2109 = vunpack.c.h.b16 %v747
      %v2110 = vunpack.c.l.b16 %v748
      %v2111 = vunpack.c.h.b16 %v748
      %v2112 = vunpack.c.l.b16 %v749
      %v2113 = vunpack.c.h.b16 %v749
      %v2114 = vunpack.c.l.b16 %v750
      %v2115 = vunpack.c.h.b16 %v750
      %v2116 = vunpack.c.l.b16 %v751
      %v2117 = vunpack.c.h.b16 %v751
      %v2118 = vunpack.c.l.b16 %v752
      %v2119 = vunpack.c.h.b16 %v752
      %v2120 = vunpack.c.l.b16 %v753
      %v2121 = vunpack.c.h.b16 %v753
      %v2122 = vunpack.c.l.b16 %v754
      %v2123 = vunpack.c.h.b16 %v754
      %v2124 = vunpack.c.l.b16 %v755
      %v2125 = vunpack.c.h.b16 %v755
      %v2126 = vunpack.c.l.b16 %v756
      %v2127 = vunpack.c.h.b16 %v756
      %v2128 = vunpack.c.l.b16 %v757
      %v2129 = vunpack.c.h.b16 %v757
      %v2130 = vunpack.c.l.b16 %v758
      %v2131 = vunpack.c.h.b16 %v758
      %v2132 = vunpack.c.l.b16 %v759
      %v2133 = vunpack.c.h.b16 %v759
      %v2134 = vunpack.c.l.b16 %v760
      %v2135 = vunpack.c.h.b16 %v760
      %v2136 = vunpack.c.l.b16 %v761
      %v2137 = vunpack.c.h.b16 %v761
      %v2138 = vunpack.c.l.b16 %v762
      %v2139 = vunpack.c.h.b16 %v762
      %v2140 = vunpack.c.l.b16 %v763
      %v2141 = vunpack.c.h.b16 %v763
      %v2142 = vunpack.c.l.b16 %v764
      %v2143 = vunpack.c.h.b16 %v764
      %v2144 = vunpack.c.l.b16 %v765
      %v2145 = vunpack.c.h.b16 %v765
      %v2146 = vunpack.c.l.b16 %v766
      %v2147 = vunpack.c.h.b16 %v766
      %v2148 = vunpack.c.l.b16 %v767
      %v2149 = vunpack.c.h.b16 %v767
      %v2150 = vunpack.c.l.b16 %v768
      %v2151 = vunpack.c.h.b16 %v768
      %v2152 = vunpack.c.l.b16 %v769
      %v2153 = vunpack.c.h.b16 %v769
      %v2154 = vunpack.c.l.b16 %v770
      %v2155 = vunpack.c.h.b16 %v770
      %v2156 = vunpack.c.l.b16 %v771
      %v2157 = vunpack.c.h.b16 %v771
      %v2158 = vunpack.c.l.b16 %v772
      %v2159 = vunpack.c.h.b16 %v772
      %v2160 = vunpack.c.l.b16 %v773
      %v2161 = vunpack.c.h.b16 %v773
      %v2162 = vunpack.c.l.b16 %v774
      %v2163 = vunpack.c.h.b16 %v774
      %v2164 = vunpack.c.l.b16 %v775
      %v2165 = vunpack.c.h.b16 %v775
      %v2166 = vunpack.c.l.b16 %v776
      %v2167 = vunpack.c.h.b16 %v776
      %v2168 = vunpack.c.l.b16 %v777
      %v2169 = vunpack.c.h.b16 %v777
      %v2170 = vunpack.c.l.b16 %v778
      %v2171 = vunpack.c.h.b16 %v778
      %v2172 = vunpack.c.l.b16 %v779
      %v2173 = vunpack.c.h.b16 %v779
      %v2174 = vunpack.c.l.b16 %v780
      %v2175 = vunpack.c.h.b16 %v780
      %v2176 = vunpack.c.l.b16 %v781
      %v2177 = vunpack.c.h.b16 %v781
      %v2178 = vunpack.c.l.b16 %v782
      %v2179 = vunpack.c.h.b16 %v782
      %v2180 = vunpack.c.l.b16 %v783
      %v2181 = vunpack.c.h.b16 %v783
      %v2182 = vunpack.c.l.b16 %v784
      %v2183 = vunpack.c.h.b16 %v784
      %v2184 = vunpack.c.l.b16 %v785
      %v2185 = vunpack.c.h.b16 %v785
      %v2186 = vunpack.c.l.b16 %v786
      %v2187 = vunpack.c.h.b16 %v786
      %v2188 = vunpack.c.l.b16 %v787
      %v2189 = vunpack.c.h.b16 %v787
      %v2190 = vunpack.c.l.b16 %v788
      %v2191 = vunpack.c.h.b16 %v788
      %v2192 = vunpack.c.l.b16 %v789
      %v2193 = vunpack.c.h.b16 %v789
      %v2194 = vunpack.c.l.b16 %v790
      %v2195 = vunpack.c.h.b16 %v790
      %v2196 = vunpack.c.l.b16 %v791
      %v2197 = vunpack.c.h.b16 %v791
      %v2198 = vunpack.c.l.b16 %v792
      %v2199 = vunpack.c.h.b16 %v792
      %v2200 = vunpack.c.l.b16 %v793
      %v2201 = vunpack.c.h.b16 %v793
      %v2202 = vunpack.c.l.b16 %v794
      %v2203 = vunpack.c.h.b16 %v794
      %v2204 = vunpack.c.l.b16 %v795
      %v2205 = vunpack.c.h.b16 %v795
      %v2206 = vunpack.c.l.b16 %v796
      %v2207 = vunpack.c.h.b16 %v796
      %v2208 = vunpack.c.l.b16 %v797
      %v2209 = vunpack.c.h.b16 %v797
      %v2210 = vunpack.c.l.b16 %v798
      %v2211 = vunpack.c.h.b16 %v798
      %v2212 = vunpack.c.l.b16 %v799
      %v2213 = vunpack.c.h.b16 %v799
      %v2214 = vunpack.c.l.b16 %v800
      %v2215 = vunpack.c.h.b16 %v800
      %v2216 = vunpack.c.l.b16 %v801
      %v2217 = vunpack.c.h.b16 %v801
      %v2218 = vunpack.c.l.b16 %v802
      %v2219 = vunpack.c.h.b16 %v802
      %v2220 = vunpack.c.l.b16 %v803
      %v2221 = vunpack.c.h.b16 %v803
      %v2222 = vunpack.c.l.b16 %v804
      %v2223 = vunpack.c.h.b16 %v804
      %v2224 = vunpack.c.l.b16 %v805
      %v2225 = vunpack.c.h.b16 %v805
      %v2226 = vunpack.c.l.b16 %v806
      %v2227 = vunpack.c.h.b16 %v806
      %v2228 = vunpack.c.l.b16 %v807
      %v2229 = vunpack.c.h.b16 %v807
      %v2230 = vunpack.c.l.b16 %v808
      %v2231 = vunpack.c.h.b16 %v808
      %v2232 = vunpack.c.l.b16 %v809
      %v2233 = vunpack.c.h.b16 %v809
      %v2234 = vunpack.c.l.b16 %v810
      %v2235 = vunpack.c.h.b16 %v810
      %v2236 = vunpack.c.l.b16 %v811
      %v2237 = vunpack.c.h.b16 %v811
      %v2238 = vunpack.c.l.b16 %v812
      %v2239 = vunpack.c.h.b16 %v812
      %v2240 = vunpack.c.l.b16 %v813
      %v2241 = vunpack.c.h.b16 %v813
      %v2242 = vunpack.c.l.b16 %v814
      %v2243 = vunpack.c.h.b16 %v814
      %v2244 = vunpack.c.l.b16 %v815
      %v2245 = vunpack.c.h.b16 %v815
      %v2246 = vunpack.c.l.b16 %v816
      %v2247 = vunpack.c.h.b16 %v816
      %v2248 = vunpack.c.l.b16 %v817
      %v2249 = vunpack.c.h.b16 %v817
      %v2250 = vunpack.c.l.b16 %v818
      %v2251 = vunpack.c.h.b16 %v818
      %v2252 = vunpack.c.l.b16 %v819
      %v2253 = vunpack.c.h.b16 %v819
      %v2254 = vunpack.c.l.b16 %v820
      %v2255 = vunpack.c.h.b16 %v820
      %v2256 = vunpack.c.l.b16 %v821
      %v2257 = vunpack.c.h.b16 %v821
      %v2258 = vunpack.c.l.b16 %v822
      %v2259 = vunpack.c.h.b16 %v822
      %v2260 = vunpack.c.l.b16 %v823
      %v2261 = vunpack.c.h.b16 %v823
      %v2262 = vunpack.c.l.b16 %v824
      %v2263 = vunpack.c.h.b16 %v824
      %v2264 = vunpack.c.l.b16 %v825
      %v2265 = vunpack.c.h.b16 %v825
      %v2266 = vunpack.c.l.b16 %v826
      %v2267 = vunpack.c.h.b16 %v826
      %v2268 = vunpack.c.l.b16 %v827
      %v2269 = vunpack.c.h.b16 %v827
      %v2270 = vunpack.c.l.b16 %v828
      %v2271 = vunpack.c.h.b16 %v828
      %v2272 = vunpack.c.l.b16 %v829
      %v2273 = vunpack.c.h.b16 %v829
      %v2274 = vunpack.c.l.b16 %v830
      %v2275 = vunpack.c.h.b16 %v830
      %v2276 = vunpack.c.l.b16 %v831
      %v2277 = vunpack.c.h.b16 %v831
      %v2278 = vunpack.c.l.b16 %v832
      %v2279 = vunpack.c.h.b16 %v832
      %v2280 = vunpack.c.l.b16 %v833
      %v2281 = vunpack.c.h.b16 %v833
      %v2282 = vunpack.c.l.b16 %v834
      %v2283 = vunpack.c.h.b16 %v834
      %v2284 = vunpack.c.l.b16 %v835
      %v2285 = vunpack.c.h.b16 %v835
      %v2286 = vunpack.c.l.b16 %v836
      %v2287 = vunpack.c.h.b16 %v836
      %v2288 = vunpack.c.l.b16 %v837
      %v2289 = vunpack.c.h.b16 %v837
      %v2290 = vunpack.c.l.b16 %v838
      %v2291 = vunpack.c.h.b16 %v838
      %v2292 = vunpack.c.l.b16 %v839
      %v2293 = vunpack.c.h.b16 %v839
      %v2294 = vunpack.c.l.b16 %v840
      %v2295 = vunpack.c.h.b16 %v840
      %v2296 = vunpack.c.l.b16 %v841
      %v2297 = vunpack.c.h.b16 %v841
      %v2298 = vunpack.c.l.b16 %v842
      %v2299 = vunpack.c.h.b16 %v842
      %v2300 = vunpack.c.l.b16 %v843
      %v2301 = vunpack.c.h.b16 %v843
      %v2302 = vunpack.c.l.b16 %v844
      %v2303 = vunpack.c.h.b16 %v844
      %v2304 = vunpack.c.l.b16 %v845
      %v2305 = vunpack.c.h.b16 %v845
      %v2306 = vunpack.c.l.b16 %v846
      %v2307 = vunpack.c.h.b16 %v846
      %v2308 = vunpack.c.l.b16 %v847
      %v2309 = vunpack.c.h.b16 %v847
      %v2310 = vpack.c.b16 %v2058, %v2054
      %v2311 = vpack.c.b16 %v2059, %v2055
      %v2312 = vpack.c.b16 %v2060, %v2056
      %v2313 = vpack.c.b16 %v2061, %v2057
      %v2314 = vpack.c.b16 %v2066, %v2062
      %v2315 = vpack.c.b16 %v2067, %v2063
      %v2316 = vpack.c.b16 %v2068, %v2064
      %v2317 = vpack.c.b16 %v2069, %v2065
      %v2318 = vpack.c.b16 %v2074, %v2070
      %v2319 = vpack.c.b16 %v2075, %v2071
      %v2320 = vpack.c.b16 %v2076, %v2072
      %v2321 = vpack.c.b16 %v2077, %v2073
      %v2322 = vpack.c.b16 %v2082, %v2078
      %v2323 = vpack.c.b16 %v2083, %v2079
      %v2324 = vpack.c.b16 %v2084, %v2080
      %v2325 = vpack.c.b16 %v2085, %v2081
      %v2326 = vpack.c.b16 %v2090, %v2086
      %v2327 = vpack.c.b16 %v2091, %v2087
      %v2328 = vpack.c.b16 %v2092, %v2088
      %v2329 = vpack.c.b16 %v2093, %v2089
      %v2330 = vpack.c.b16 %v2098, %v2094
      %v2331 = vpack.c.b16 %v2099, %v2095
      %v2332 = vpack.c.b16 %v2100, %v2096
      %v2333 = vpack.c.b16 %v2101, %v2097
      %v2334 = vpack.c.b16 %v2106, %v2102
      %v2335 = vpack.c.b16 %v2107, %v2103
      %v2336 = vpack.c.b16 %v2108, %v2104
      %v2337 = vpack.c.b16 %v2109, %v2105
      %v2338 = vpack.c.b16 %v2114, %v2110
      %v2339 = vpack.c.b16 %v2115, %v2111
      %v2340 = vpack.c.b16 %v2116, %v2112
      %v2341 = vpack.c.b16 %v2117, %v2113
      %v2342 = vpack.c.b16 %v2122, %v2118
      %v2343 = vpack.c.b16 %v2123, %v2119
      %v2344 = vpack.c.b16 %v2124, %v2120
      %v2345 = vpack.c.b16 %v2125, %v2121
      %v2346 = vpack.c.b16 %v2130, %v2126
      %v2347 = vpack.c.b16 %v2131, %v2127
      %v2348 = vpack.c.b16 %v2132, %v2128
      %v2349 = vpack.c.b16 %v2133, %v2129
      %v2350 = vpack.c.b16 %v2138, %v2134
      %v2351 = vpack.c.b16 %v2139, %v2135
      %v2352 = vpack.c.b16 %v2140, %v2136
      %v2353 = vpack.c.b16 %v2141, %v2137
      %v2354 = vpack.c.b16 %v2146, %v2142
      %v2355 = vpack.c.b16 %v2147, %v2143
      %v2356 = vpack.c.b16 %v2148, %v2144
      %v2357 = vpack.c.b16 %v2149, %v2145
      %v2358 = vpack.c.b16 %v2154, %v2150
      %v2359 = vpack.c.b16 %v2155, %v2151
      %v2360 = vpack.c.b16 %v2156, %v2152
      %v2361 = vpack.c.b16 %v2157, %v2153
      %v2362 = vpack.c.b16 %v2162, %v2158
      %v2363 = vpack.c.b16 %v2163, %v2159
      %v2364 = vpack.c.b16 %v2164, %v2160
      %v2365 = vpack.c.b16 %v2165, %v2161
      %v2366 = vpack.c.b16 %v2170, %v2166
      %v2367 = vpack.c.b16 %v2171, %v2167
      %v2368 = vpack.c.b16 %v2172, %v2168
      %v2369 = vpack.c.b16 %v2173, %v2169
      %v2370 = vpack.c.b16 %v2178, %v2174
      %v2371 = vpack.c.b16 %v2179, %v2175
      %v2372 = vpack.c.b16 %v2180, %v2176
      %v2373 = vpack.c.b16 %v2181, %v2177
      %v2374 = vpack.c.b16 %v2186, %v2182
      %v2375 = vpack.c.b16 %v2187, %v2183
      %v2376 = vpack.c.b16 %v2188, %v2184
      %v2377 = vpack.c.b16 %v2189, %v2185
      %v2378 = vpack.c.b16 %v2194, %v2190
      %v2379 = vpack.c.b16 %v2195, %v2191
      %v2380 = vpack.c.b16 %v2196, %v2192
      %v2381 = vpack.c.b16 %v2197, %v2193
      %v2382 = vpack.c.b16 %v2202, %v2198
      %v2383 = vpack.c.b16 %v2203, %v2199
      %v2384 = vpack.c.b16 %v2204, %v2200
      %v2385 = vpack.c.b16 %v2205, %v2201
      %v2386 = vpack.c.b16 %v2210, %v2206
      %v2387 = vpack.c.b16 %v2211, %v2207
      %v2388 = vpack.c.b16 %v2212, %v2208
      %v2389 = vpack.c.b16 %v2213, %v2209
      %v2390 = vpack.c.b16 %v2218, %v2214
      %v2391 = vpack.c.b16 %v2219, %v2215
      %v2392 = vpack.c.b16 %v2220, %v2216
      %v2393 = vpack.c.b16 %v2221, %v2217
      %v2394 = vpack.c.b16 %v2226, %v2222
      %v2395 = vpack.c.b16 %v2227, %v2223
      %v2396 = vpack.c.b16 %v2228, %v2224
      %v2397 = vpack.c.b16 %v2229, %v2225
      %v2398 = vpack.c.b16 %v2234, %v2230
      %v2399 = vpack.c.b16 %v2235, %v2231
      %v2400 = vpack.c.b16 %v2236, %v2232
      %v2401 = vpack.c.b16 %v2237, %v2233
      %v2402 = vpack.c.b16 %v2242, %v2238
      %v2403 = vpack.c.b16 %v2243, %v2239
      %v2404 = vpack.c.b16 %v2244, %v2240
      %v2405 = vpack.c.b16 %v2245, %v2241
      %v2406 = vpack.c.b16 %v2250, %v2246
      %v2407 = vpack.c.b16 %v2251, %v2247
      %v2408 = vpack.c.b16 %v2252, %v2248
      %v2409 = vpack.c.b16 %v2253, %v2249
      %v2410 = vpack.c.b16 %v2258, %v2254
      %v2411 = vpack.c.b16 %v2259, %v2255
      %v2412 = vpack.c.b16 %v2260, %v2256
      %v2413 = vpack.c.b16 %v2261, %v2257
      %v2414 = vpack.c.b16 %v2266, %v2262
      %v2415 = vpack.c.b16 %v2267, %v2263
      %v2416 = vpack.c.b16 %v2268, %v2264
      %v2417 = vpack.c.b16 %v2269, %v2265
      %v2418 = vpack.c.b16 %v2274, %v2270
      %v2419 = vpack.c.b16 %v2275, %v2271
      %v2420 = vpack.c.b16 %v2276, %v2272
      %v2421 = vpack.c.b16 %v2277, %v2273
      %v2422 = vpack.c.b16 %v2282, %v2278
      %v2423 = vpack.c.b16 %v2283, %v2279
      %v2424 = vpack.c.b16 %v2284, %v2280
      %v2425 = vpack.c.b16 %v2285, %v2281
      %v2426 = vpack.c.b16 %v2290, %v2286
      %v2427 = vpack.c.b16 %v2291, %v2287
      %v2428 = vpack.c.b16 %v2292, %v2288
      %v2429 = vpack.c.b16 %v2293, %v2289
      %v2430 = vpack.c.b16 %v2298, %v2294
      %v2431 = vpack.c.b16 %v2299, %v2295
      %v2432 = vpack.c.b16 %v2300, %v2296
      %v2433 = vpack.c.b16 %v2301, %v2297
      %v2434 = vpack.c.b16 %v2306, %v2302
      %v2435 = vpack.c.b16 %v2307, %v2303
      %v2436 = vpack.c.b16 %v2308, %v2304
      %v2437 = vpack.c.b16 %v2309, %v2305
      %2566 = vmatpush.bf16.msra.mxu0 %v2338
      %2567 = vmatpush.bf16.msra.mxu0 %v2334
      %2568 = vmatpush.bf16.msra.mxu0 %v2330
      %2569 = vmatpush.bf16.msra.mxu0 %v2326
      %2570 = vmatpush.bf16.msra.mxu0 %v2322
      %2571 = vmatpush.bf16.msra.mxu0 %v2318
      %2572 = vmatpush.bf16.msra.mxu0 %v2314
      %2573 = vmatpush.bf16.msra.mxu0 %v2310
      %2574 = vmatmul.bf16.gmra.mxu0 %v997
      %v2575 = vpop.f32.mrf.mxu0
      %v2576 = vadd.f32 %v1750, %v2575
      %v2577 = vpop.f32.mrf.mxu0
      %v2578 = vadd.f32 %v1752, %v2577
      %2579 = vdwg.mxu0
      %2580 = vmatpush.bf16.msra.mxu0 %v2370
      %2581 = vmatpush.bf16.msra.mxu0 %v2366
      %2582 = vmatpush.bf16.msra.mxu0 %v2362
      %2583 = vmatpush.bf16.msra.mxu0 %v2358
      %2584 = vmatpush.bf16.msra.mxu0 %v2354
      %2585 = vmatpush.bf16.msra.mxu0 %v2350
      %2586 = vmatpush.bf16.msra.mxu0 %v2346
      %2587 = vmatpush.bf16.msra.mxu0 %v2342
      %2588 = vmatmul.bf16.gmra.mxu0 %v998
      %v2589 = vpop.f32.mrf.mxu0
      %v2590 = vadd.f32 %v2576, %v2589
      %v2591 = vpop.f32.mrf.mxu0
      %v2592 = vadd.f32 %v2578, %v2591
      %2593 = vdwg.mxu0
      %2594 = vmatpush.bf16.msra.mxu0 %v2402
      %2595 = vmatpush.bf16.msra.mxu0 %v2398
      %2596 = vmatpush.bf16.msra.mxu0 %v2394
      %2597 = vmatpush.bf16.msra.mxu0 %v2390
      %2598 = vmatpush.bf16.msra.mxu0 %v2386
      %2599 = vmatpush.bf16.msra.mxu0 %v2382
      %2600 = vmatpush.bf16.msra.mxu0 %v2378
      %2601 = vmatpush.bf16.msra.mxu0 %v2374
      %2602 = vmatmul.bf16.gmra.mxu0 %v999
      %v2603 = vpop.f32.mrf.mxu0
      %v2604 = vadd.f32 %v2590, %v2603
      %v2605 = vpop.f32.mrf.mxu0
      %v2606 = vadd.f32 %v2592, %v2605
      %2607 = vdwg.mxu0
      %2608 = vmatpush.bf16.msra.mxu0 %v2434
      %2609 = vmatpush.bf16.msra.mxu0 %v2430
      %2610 = vmatpush.bf16.msra.mxu0 %v2426
      %2611 = vmatpush.bf16.msra.mxu0 %v2422
      %2612 = vmatpush.bf16.msra.mxu0 %v2418
      %2613 = vmatpush.bf16.msra.mxu0 %v2414
      %2614 = vmatpush.bf16.msra.mxu0 %v2410
      %2615 = vmatpush.bf16.msra.mxu0 %v2406
      %2616 = vmatmul.bf16.gmra.mxu0 %v1000
      %v2617 = vpop.f32.mrf.mxu0
      %v2618 = vadd.f32 %v2604, %v2617
      %v2619 = vpop.f32.mrf.mxu0
      %v2620 = vadd.f32 %v2606, %v2619
      %2621 = vdwg.mxu0
      %2622 = vmatpush.bf16.msra.mxu0 %v2339
      %2623 = vmatpush.bf16.msra.mxu0 %v2335
      %2624 = vmatpush.bf16.msra.mxu0 %v2331
      %2625 = vmatpush.bf16.msra.mxu0 %v2327
      %2626 = vmatpush.bf16.msra.mxu0 %v2323
      %2627 = vmatpush.bf16.msra.mxu0 %v2319
      %2628 = vmatpush.bf16.msra.mxu0 %v2315
      %2629 = vmatpush.bf16.msra.mxu0 %v2311
      %2630 = vmatmul.bf16.gmra.mxu0 %v997
      %v2631 = vpop.f32.mrf.mxu0
      %v2632 = vadd.f32 %v1806, %v2631
      %v2633 = vpop.f32.mrf.mxu0
      %v2634 = vadd.f32 %v1808, %v2633
      %2635 = vdwg.mxu0
      %2636 = vmatpush.bf16.msra.mxu0 %v2371
      %2637 = vmatpush.bf16.msra.mxu0 %v2367
      %2638 = vmatpush.bf16.msra.mxu0 %v2363
      %2639 = vmatpush.bf16.msra.mxu0 %v2359
      %2640 = vmatpush.bf16.msra.mxu0 %v2355
      %2641 = vmatpush.bf16.msra.mxu0 %v2351
      %2642 = vmatpush.bf16.msra.mxu0 %v2347
      %2643 = vmatpush.bf16.msra.mxu0 %v2343
      %2644 = vmatmul.bf16.gmra.mxu0 %v998
      %v2645 = vpop.f32.mrf.mxu0
      %v2646 = vadd.f32 %v2632, %v2645
      %v2647 = vpop.f32.mrf.mxu0
      %v2648 = vadd.f32 %v2634, %v2647
      %2649 = vdwg.mxu0
      %2650 = vmatpush.bf16.msra.mxu0 %v2403
      %2651 = vmatpush.bf16.msra.mxu0 %v2399
      %2652 = vmatpush.bf16.msra.mxu0 %v2395
      %2653 = vmatpush.bf16.msra.mxu0 %v2391
      %2654 = vmatpush.bf16.msra.mxu0 %v2387
      %2655 = vmatpush.bf16.msra.mxu0 %v2383
      %2656 = vmatpush.bf16.msra.mxu0 %v2379
      %2657 = vmatpush.bf16.msra.mxu0 %v2375
      %2658 = vmatmul.bf16.gmra.mxu0 %v999
      %v2659 = vpop.f32.mrf.mxu0
      %v2660 = vadd.f32 %v2646, %v2659
      %v2661 = vpop.f32.mrf.mxu0
      %v2662 = vadd.f32 %v2648, %v2661
      %2663 = vdwg.mxu0
      %2664 = vmatpush.bf16.msra.mxu0 %v2435
      %2665 = vmatpush.bf16.msra.mxu0 %v2431
      %2666 = vmatpush.bf16.msra.mxu0 %v2427
      %2667 = vmatpush.bf16.msra.mxu0 %v2423
      %2668 = vmatpush.bf16.msra.mxu0 %v2419
      %2669 = vmatpush.bf16.msra.mxu0 %v2415
      %2670 = vmatpush.bf16.msra.mxu0 %v2411
      %2671 = vmatpush.bf16.msra.mxu0 %v2407
      %2672 = vmatmul.bf16.gmra.mxu0 %v1000
      %v2673 = vpop.f32.mrf.mxu0
      %v2674 = vadd.f32 %v2660, %v2673
      %v2675 = vpop.f32.mrf.mxu0
      %v2676 = vadd.f32 %v2662, %v2675
      %2677 = vdwg.mxu0
      %2678 = vmatpush.bf16.msra.mxu0 %v2340
      %2679 = vmatpush.bf16.msra.mxu0 %v2336
      %2680 = vmatpush.bf16.msra.mxu0 %v2332
      %2681 = vmatpush.bf16.msra.mxu0 %v2328
      %2682 = vmatpush.bf16.msra.mxu0 %v2324
      %2683 = vmatpush.bf16.msra.mxu0 %v2320
      %2684 = vmatpush.bf16.msra.mxu0 %v2316
      %2685 = vmatpush.bf16.msra.mxu0 %v2312
      %2686 = vmatmul.bf16.gmra.mxu0 %v997
      %v2687 = vpop.f32.mrf.mxu0
      %v2688 = vadd.f32 %v1862, %v2687
      %v2689 = vpop.f32.mrf.mxu0
      %v2690 = vadd.f32 %v1864, %v2689
      %2691 = vdwg.mxu0
      %2692 = vmatpush.bf16.msra.mxu0 %v2372
      %2693 = vmatpush.bf16.msra.mxu0 %v2368
      %2694 = vmatpush.bf16.msra.mxu0 %v2364
      %2695 = vmatpush.bf16.msra.mxu0 %v2360
      %2696 = vmatpush.bf16.msra.mxu0 %v2356
      %2697 = vmatpush.bf16.msra.mxu0 %v2352
      %2698 = vmatpush.bf16.msra.mxu0 %v2348
      %2699 = vmatpush.bf16.msra.mxu0 %v2344
      %2700 = vmatmul.bf16.gmra.mxu0 %v998
      %v2701 = vpop.f32.mrf.mxu0
      %v2702 = vadd.f32 %v2688, %v2701
      %v2703 = vpop.f32.mrf.mxu0
      %v2704 = vadd.f32 %v2690, %v2703
      %2705 = vdwg.mxu0
      %2706 = vmatpush.bf16.msra.mxu0 %v2404
      %2707 = vmatpush.bf16.msra.mxu0 %v2400
      %2708 = vmatpush.bf16.msra.mxu0 %v2396
      %2709 = vmatpush.bf16.msra.mxu0 %v2392
      %2710 = vmatpush.bf16.msra.mxu0 %v2388
      %2711 = vmatpush.bf16.msra.mxu0 %v2384
      %2712 = vmatpush.bf16.msra.mxu0 %v2380
      %2713 = vmatpush.bf16.msra.mxu0 %v2376
      %2714 = vmatmul.bf16.gmra.mxu0 %v999
      %v2715 = vpop.f32.mrf.mxu0
      %v2716 = vadd.f32 %v2702, %v2715
      %v2717 = vpop.f32.mrf.mxu0
      %v2718 = vadd.f32 %v2704, %v2717
      %2719 = vdwg.mxu0
      %2720 = vmatpush.bf16.msra.mxu0 %v2436
      %2721 = vmatpush.bf16.msra.mxu0 %v2432
      %2722 = vmatpush.bf16.msra.mxu0 %v2428
      %2723 = vmatpush.bf16.msra.mxu0 %v2424
      %2724 = vmatpush.bf16.msra.mxu0 %v2420
      %2725 = vmatpush.bf16.msra.mxu0 %v2416
      %2726 = vmatpush.bf16.msra.mxu0 %v2412
      %2727 = vmatpush.bf16.msra.mxu0 %v2408
      %2728 = vmatmul.bf16.gmra.mxu0 %v1000
      %v2729 = vpop.f32.mrf.mxu0
      %v2730 = vadd.f32 %v2716, %v2729
      %v2731 = vpop.f32.mrf.mxu0
      %v2732 = vadd.f32 %v2718, %v2731
      %2733 = vdwg.mxu0
      %2734 = vmatpush.bf16.msra.mxu0 %v2341
      %2735 = vmatpush.bf16.msra.mxu0 %v2337
      %2736 = vmatpush.bf16.msra.mxu0 %v2333
      %2737 = vmatpush.bf16.msra.mxu0 %v2329
      %2738 = vmatpush.bf16.msra.mxu0 %v2325
      %2739 = vmatpush.bf16.msra.mxu0 %v2321
      %2740 = vmatpush.bf16.msra.mxu0 %v2317
      %2741 = vmatpush.bf16.msra.mxu0 %v2313
      %2742 = vmatmul.bf16.gmra.mxu0 %v997
      %v2743 = vpop.f32.mrf.mxu0
      %v2744 = vadd.f32 %v1918, %v2743
      %v2745 = vpop.f32.mrf.mxu0
      %v2746 = vadd.f32 %v1920, %v2745
      %2747 = vdwg.mxu0
      %2748 = vmatpush.bf16.msra.mxu0 %v2373
      %2749 = vmatpush.bf16.msra.mxu0 %v2369
      %2750 = vmatpush.bf16.msra.mxu0 %v2365
      %2751 = vmatpush.bf16.msra.mxu0 %v2361
      %2752 = vmatpush.bf16.msra.mxu0 %v2357
      %2753 = vmatpush.bf16.msra.mxu0 %v2353
      %2754 = vmatpush.bf16.msra.mxu0 %v2349
      %2755 = vmatpush.bf16.msra.mxu0 %v2345
      %2756 = vmatmul.bf16.gmra.mxu0 %v998
      %v2757 = vpop.f32.mrf.mxu0
      %v2758 = vadd.f32 %v2744, %v2757
      %v2759 = vpop.f32.mrf.mxu0
      %v2760 = vadd.f32 %v2746, %v2759
      %2761 = vdwg.mxu0
      %2762 = vmatpush.bf16.msra.mxu0 %v2405
      %2763 = vmatpush.bf16.msra.mxu0 %v2401
      %2764 = vmatpush.bf16.msra.mxu0 %v2397
      %2765 = vmatpush.bf16.msra.mxu0 %v2393
      %2766 = vmatpush.bf16.msra.mxu0 %v2389
      %2767 = vmatpush.bf16.msra.mxu0 %v2385
      %2768 = vmatpush.bf16.msra.mxu0 %v2381
      %2769 = vmatpush.bf16.msra.mxu0 %v2377
      %2770 = vmatmul.bf16.gmra.mxu0 %v999
      %v2771 = vpop.f32.mrf.mxu0
      %v2772 = vadd.f32 %v2758, %v2771
      %v2773 = vpop.f32.mrf.mxu0
      %v2774 = vadd.f32 %v2760, %v2773
      %2775 = vdwg.mxu0
      %2776 = vmatpush.bf16.msra.mxu0 %v2437
      %2777 = vmatpush.bf16.msra.mxu0 %v2433
      %2778 = vmatpush.bf16.msra.mxu0 %v2429
      %2779 = vmatpush.bf16.msra.mxu0 %v2425
      %2780 = vmatpush.bf16.msra.mxu0 %v2421
      %2781 = vmatpush.bf16.msra.mxu0 %v2417
      %2782 = vmatpush.bf16.msra.mxu0 %v2413
      %2783 = vmatpush.bf16.msra.mxu0 %v2409
      %2784 = vmatmul.bf16.gmra.mxu0 %v1000
      %v2785 = vpop.f32.mrf.mxu0
      %v2786 = vadd.f32 %v2772, %v2785
      %v2787 = vpop.f32.mrf.mxu0
      %v2788 = vadd.f32 %v2774, %v2787
      %2789 = vdwg.mxu0
      %v2790 = vld [vmem:[#allocation2] sm:$0xee]
      %v2791 = vld [vmem:[#allocation2 + $0x8] sm:$0xee]
      %s2792 = scalar_lea.vmem %s3, 2048
      %v2793 = vld [vmem:[%s2792] sm:$0xff]
      %v2794 = vld [vmem:[%s2792 + $0x8] sm:$0xff]
      %v2795 = vld [vmem:[%s2792 + $0x10] sm:$0xff]
      %v2796 = vld [vmem:[%s2792 + $0x18] sm:$0xff]
      %v2797 = vld [vmem:[%s2792 + $0x20] sm:$0xff]
      %v2798 = vld [vmem:[%s2792 + $0x28] sm:$0xff]
      %v2799 = vld [vmem:[%s2792 + $0x30] sm:$0xff]
      %v2800 = vld [vmem:[%s2792 + $0x38] sm:$0xff]
      %v2801 = vld [vmem:[%s2792 + $0x40] sm:$0xff]
      %v2802 = vld [vmem:[%s2792 + $0x48] sm:$0xff]
      %v2803 = vld [vmem:[%s2792 + $0x50] sm:$0xff]
      %v2804 = vld [vmem:[%s2792 + $0x58] sm:$0xff]
      %v2805 = vld [vmem:[%s2792 + $0x60] sm:$0xff]
      %v2806 = vld [vmem:[%s2792 + $0x68] sm:$0xff]
      %v2807 = vld [vmem:[%s2792 + $0x70] sm:$0xff]
      %v2808 = vld [vmem:[%s2792 + $0x78] sm:$0xff]
      %v2809 = vld [vmem:[%s2792 + $0x80] sm:$0xff]
      %v2810 = vld [vmem:[%s2792 + $0x88] sm:$0xff]
      %v2811 = vld [vmem:[%s2792 + $0x90] sm:$0xff]
      %v2812 = vld [vmem:[%s2792 + $0x98] sm:$0xff]
      %v2813 = vld [vmem:[%s2792 + $0xa0] sm:$0xff]
      %v2814 = vld [vmem:[%s2792 + $0xa8] sm:$0xff]
      %v2815 = vld [vmem:[%s2792 + $0xb0] sm:$0xff]
      %v2816 = vld [vmem:[%s2792 + $0xb8] sm:$0xff]
      %v2817 = vld [vmem:[%s2792 + $0xc0] sm:$0xff]
      %v2818 = vld [vmem:[%s2792 + $0xc8] sm:$0xff]
      %v2819 = vld [vmem:[%s2792 + $0xd0] sm:$0xff]
      %v2820 = vld [vmem:[%s2792 + $0xd8] sm:$0xff]
      %v2821 = vld [vmem:[%s2792 + $0xe0] sm:$0xff]
      %v2822 = vld [vmem:[%s2792 + $0xe8] sm:$0xff]
      %v2823 = vld [vmem:[%s2792 + $0xf0] sm:$0xff]
      %v2824 = vld [vmem:[%s2792 + $0xf8] sm:$0xff]
      %v2825 = vld [vmem:[%s2792 + $0x100] sm:$0xff]
      %v2826 = vld [vmem:[%s2792 + $0x108] sm:$0xff]
      %v2827 = vld [vmem:[%s2792 + $0x110] sm:$0xff]
      %v2828 = vld [vmem:[%s2792 + $0x118] sm:$0xff]
      %v2829 = vld [vmem:[%s2792 + $0x120] sm:$0xff]
      %v2830 = vld [vmem:[%s2792 + $0x128] sm:$0xff]
      %v2831 = vld [vmem:[%s2792 + $0x130] sm:$0xff]
      %v2832 = vld [vmem:[%s2792 + $0x138] sm:$0xff]
      %v2833 = vld [vmem:[%s2792 + $0x140] sm:$0xff]
      %v2834 = vld [vmem:[%s2792 + $0x148] sm:$0xff]
      %v2835 = vld [vmem:[%s2792 + $0x150] sm:$0xff]
      %v2836 = vld [vmem:[%s2792 + $0x158] sm:$0xff]
      %v2837 = vld [vmem:[%s2792 + $0x160] sm:$0xff]
      %v2838 = vld [vmem:[%s2792 + $0x168] sm:$0xff]
      %v2839 = vld [vmem:[%s2792 + $0x170] sm:$0xff]
      %v2840 = vld [vmem:[%s2792 + $0x178] sm:$0xff]
      %v2841 = vld [vmem:[%s2792 + $0x180] sm:$0xff]
      %v2842 = vld [vmem:[%s2792 + $0x188] sm:$0xff]
      %v2843 = vld [vmem:[%s2792 + $0x190] sm:$0xff]
      %v2844 = vld [vmem:[%s2792 + $0x198] sm:$0xff]
      %v2845 = vld [vmem:[%s2792 + $0x1a0] sm:$0xff]
      %v2846 = vld [vmem:[%s2792 + $0x1a8] sm:$0xff]
      %v2847 = vld [vmem:[%s2792 + $0x1b0] sm:$0xff]
      %v2848 = vld [vmem:[%s2792 + $0x1b8] sm:$0xff]
      %v2849 = vld [vmem:[%s2792 + $0x1c0] sm:$0xff]
      %v2850 = vld [vmem:[%s2792 + $0x1c8] sm:$0xff]
      %v2851 = vld [vmem:[%s2792 + $0x1d0] sm:$0xff]
      %v2852 = vld [vmem:[%s2792 + $0x1d8] sm:$0xff]
      %v2853 = vld [vmem:[%s2792 + $0x1e0] sm:$0xff]
      %v2854 = vld [vmem:[%s2792 + $0x1e8] sm:$0xff]
      %v2855 = vld [vmem:[%s2792 + $0x1f0] sm:$0xff]
      %v2856 = vld [vmem:[%s2792 + $0x1f8] sm:$0xff]
      %v2857 = vld [vmem:[%s2792 + $0x200] sm:$0xff]
      %v2858 = vld [vmem:[%s2792 + $0x208] sm:$0xff]
      %v2859 = vld [vmem:[%s2792 + $0x210] sm:$0xff]
      %v2860 = vld [vmem:[%s2792 + $0x218] sm:$0xff]
      %v2861 = vld [vmem:[%s2792 + $0x220] sm:$0xff]
      %v2862 = vld [vmem:[%s2792 + $0x228] sm:$0xff]
      %v2863 = vld [vmem:[%s2792 + $0x230] sm:$0xff]
      %v2864 = vld [vmem:[%s2792 + $0x238] sm:$0xff]
      %v2865 = vld [vmem:[%s2792 + $0x240] sm:$0xff]
      %v2866 = vld [vmem:[%s2792 + $0x248] sm:$0xff]
      %v2867 = vld [vmem:[%s2792 + $0x250] sm:$0xff]
      %v2868 = vld [vmem:[%s2792 + $0x258] sm:$0xff]
      %v2869 = vld [vmem:[%s2792 + $0x260] sm:$0xff]
      %v2870 = vld [vmem:[%s2792 + $0x268] sm:$0xff]
      %v2871 = vld [vmem:[%s2792 + $0x270] sm:$0xff]
      %v2872 = vld [vmem:[%s2792 + $0x278] sm:$0xff]
      %v2873 = vld [vmem:[%s2792 + $0x280] sm:$0xff]
      %v2874 = vld [vmem:[%s2792 + $0x288] sm:$0xff]
      %v2875 = vld [vmem:[%s2792 + $0x290] sm:$0xff]
      %v2876 = vld [vmem:[%s2792 + $0x298] sm:$0xff]
      %v2877 = vld [vmem:[%s2792 + $0x2a0] sm:$0xff]
      %v2878 = vld [vmem:[%s2792 + $0x2a8] sm:$0xff]
      %v2879 = vld [vmem:[%s2792 + $0x2b0] sm:$0xff]
      %v2880 = vld [vmem:[%s2792 + $0x2b8] sm:$0xff]
      %v2881 = vld [vmem:[%s2792 + $0x2c0] sm:$0xff]
      %v2882 = vld [vmem:[%s2792 + $0x2c8] sm:$0xff]
      %v2883 = vld [vmem:[%s2792 + $0x2d0] sm:$0xff]
      %v2884 = vld [vmem:[%s2792 + $0x2d8] sm:$0xff]
      %v2885 = vld [vmem:[%s2792 + $0x2e0] sm:$0xff]
      %v2886 = vld [vmem:[%s2792 + $0x2e8] sm:$0xff]
      %v2887 = vld [vmem:[%s2792 + $0x2f0] sm:$0xff]
      %v2888 = vld [vmem:[%s2792 + $0x2f8] sm:$0xff]
      %v2889 = vld [vmem:[%s2792 + $0x300] sm:$0xff]
      %v2890 = vld [vmem:[%s2792 + $0x308] sm:$0xff]
      %v2891 = vld [vmem:[%s2792 + $0x310] sm:$0xff]
      %v2892 = vld [vmem:[%s2792 + $0x318] sm:$0xff]
      %v2893 = vld [vmem:[%s2792 + $0x320] sm:$0xff]
      %v2894 = vld [vmem:[%s2792 + $0x328] sm:$0xff]
      %v2895 = vld [vmem:[%s2792 + $0x330] sm:$0xff]
      %v2896 = vld [vmem:[%s2792 + $0x338] sm:$0xff]
      %v2897 = vld [vmem:[%s2792 + $0x340] sm:$0xff]
      %v2898 = vld [vmem:[%s2792 + $0x348] sm:$0xff]
      %v2899 = vld [vmem:[%s2792 + $0x350] sm:$0xff]
      %v2900 = vld [vmem:[%s2792 + $0x358] sm:$0xff]
      %v2901 = vld [vmem:[%s2792 + $0x360] sm:$0xff]
      %v2902 = vld [vmem:[%s2792 + $0x368] sm:$0xff]
      %v2903 = vld [vmem:[%s2792 + $0x370] sm:$0xff]
      %v2904 = vld [vmem:[%s2792 + $0x378] sm:$0xff]
      %v2905 = vld [vmem:[%s2792 + $0x380] sm:$0xff]
      %v2906 = vld [vmem:[%s2792 + $0x388] sm:$0xff]
      %v2907 = vld [vmem:[%s2792 + $0x390] sm:$0xff]
      %v2908 = vld [vmem:[%s2792 + $0x398] sm:$0xff]
      %v2909 = vld [vmem:[%s2792 + $0x3a0] sm:$0xff]
      %v2910 = vld [vmem:[%s2792 + $0x3a8] sm:$0xff]
      %v2911 = vld [vmem:[%s2792 + $0x3b0] sm:$0xff]
      %v2912 = vld [vmem:[%s2792 + $0x3b8] sm:$0xff]
      %v2913 = vld [vmem:[%s2792 + $0x3c0] sm:$0xff]
      %v2914 = vld [vmem:[%s2792 + $0x3c8] sm:$0xff]
      %v2915 = vld [vmem:[%s2792 + $0x3d0] sm:$0xff]
      %v2916 = vld [vmem:[%s2792 + $0x3d8] sm:$0xff]
      %v2917 = vld [vmem:[%s2792 + $0x3e0] sm:$0xff]
      %v2918 = vld [vmem:[%s2792 + $0x3e8] sm:$0xff]
      %v2919 = vld [vmem:[%s2792 + $0x3f0] sm:$0xff]
      %v2920 = vld [vmem:[%s2792 + $0x3f8] sm:$0xff]
      %v2923 = vunpack.c.l.b16 %v2790
      %v2924 = vunpack.c.h.b16 %v2790
      %v2925 = vunpack.c.l.b16 %v2791
      %v2926 = vunpack.c.h.b16 %v2791
      %v2927 = vpack.c.b16 %v989, %v2923
      %v2928 = vpack.c.b16 %v990, %v2924
      %v2929 = vpack.c.b16 %v991, %v2925
      %v2930 = vpack.c.b16 %v992, %v2926
      %vm2931 = vcmask 1046528
      %v2932 = vrot.slane %v2927, 1
      %v2933 = vrot.slane %v1001, 1
      %v2934 = vsel %vm2931, %v2932, %v2933
      %v2935 = vrot.slane %v2928, 1
      %v2936 = vrot.slane %v1002, 1
      %v2937 = vsel %vm2931, %v2935, %v2936
      %v2938 = vrot.slane %v2929, 1
      %v2939 = vrot.slane %v1003, 1
      %v2940 = vsel %vm2931, %v2938, %v2939
      %v2941 = vrot.slane %v2930, 1
      %v2942 = vrot.slane %v1004, 1
      %v2943 = vsel %vm2931, %v2941, %v2942
      %v3076 = vunpack.c.l.b16 %v2793
      %v3077 = vunpack.c.h.b16 %v2793
      %v3078 = vunpack.c.l.b16 %v2794
      %v3079 = vunpack.c.h.b16 %v2794
      %v3080 = vunpack.c.l.b16 %v2795
      %v3081 = vunpack.c.h.b16 %v2795
      %v3082 = vunpack.c.l.b16 %v2796
      %v3083 = vunpack.c.h.b16 %v2796
      %v3084 = vunpack.c.l.b16 %v2797
      %v3085 = vunpack.c.h.b16 %v2797
      %v3086 = vunpack.c.l.b16 %v2798
      %v3087 = vunpack.c.h.b16 %v2798
      %v3088 = vunpack.c.l.b16 %v2799
      %v3089 = vunpack.c.h.b16 %v2799
      %v3090 = vunpack.c.l.b16 %v2800
      %v3091 = vunpack.c.h.b16 %v2800
      %v3092 = vunpack.c.l.b16 %v2801
      %v3093 = vunpack.c.h.b16 %v2801
      %v3094 = vunpack.c.l.b16 %v2802
      %v3095 = vunpack.c.h.b16 %v2802
      %v3096 = vunpack.c.l.b16 %v2803
      %v3097 = vunpack.c.h.b16 %v2803
      %v3098 = vunpack.c.l.b16 %v2804
      %v3099 = vunpack.c.h.b16 %v2804
      %v3100 = vunpack.c.l.b16 %v2805
      %v3101 = vunpack.c.h.b16 %v2805
      %v3102 = vunpack.c.l.b16 %v2806
      %v3103 = vunpack.c.h.b16 %v2806
      %v3104 = vunpack.c.l.b16 %v2807
      %v3105 = vunpack.c.h.b16 %v2807
      %v3106 = vunpack.c.l.b16 %v2808
      %v3107 = vunpack.c.h.b16 %v2808
      %v3108 = vunpack.c.l.b16 %v2809
      %v3109 = vunpack.c.h.b16 %v2809
      %v3110 = vunpack.c.l.b16 %v2810
      %v3111 = vunpack.c.h.b16 %v2810
      %v3112 = vunpack.c.l.b16 %v2811
      %v3113 = vunpack.c.h.b16 %v2811
      %v3114 = vunpack.c.l.b16 %v2812
      %v3115 = vunpack.c.h.b16 %v2812
      %v3116 = vunpack.c.l.b16 %v2813
      %v3117 = vunpack.c.h.b16 %v2813
      %v3118 = vunpack.c.l.b16 %v2814
      %v3119 = vunpack.c.h.b16 %v2814
      %v3120 = vunpack.c.l.b16 %v2815
      %v3121 = vunpack.c.h.b16 %v2815
      %v3122 = vunpack.c.l.b16 %v2816
      %v3123 = vunpack.c.h.b16 %v2816
      %v3124 = vunpack.c.l.b16 %v2817
      %v3125 = vunpack.c.h.b16 %v2817
      %v3126 = vunpack.c.l.b16 %v2818
      %v3127 = vunpack.c.h.b16 %v2818
      %v3128 = vunpack.c.l.b16 %v2819
      %v3129 = vunpack.c.h.b16 %v2819
      %v3130 = vunpack.c.l.b16 %v2820
      %v3131 = vunpack.c.h.b16 %v2820
      %v3132 = vunpack.c.l.b16 %v2821
      %v3133 = vunpack.c.h.b16 %v2821
      %v3134 = vunpack.c.l.b16 %v2822
      %v3135 = vunpack.c.h.b16 %v2822
      %v3136 = vunpack.c.l.b16 %v2823
      %v3137 = vunpack.c.h.b16 %v2823
      %v3138 = vunpack.c.l.b16 %v2824
      %v3139 = vunpack.c.h.b16 %v2824
      %v3140 = vunpack.c.l.b16 %v2825
      %v3141 = vunpack.c.h.b16 %v2825
      %v3142 = vunpack.c.l.b16 %v2826
      %v3143 = vunpack.c.h.b16 %v2826
      %v3144 = vunpack.c.l.b16 %v2827
      %v3145 = vunpack.c.h.b16 %v2827
      %v3146 = vunpack.c.l.b16 %v2828
      %v3147 = vunpack.c.h.b16 %v2828
      %v3148 = vunpack.c.l.b16 %v2829
      %v3149 = vunpack.c.h.b16 %v2829
      %v3150 = vunpack.c.l.b16 %v2830
      %v3151 = vunpack.c.h.b16 %v2830
      %v3152 = vunpack.c.l.b16 %v2831
      %v3153 = vunpack.c.h.b16 %v2831
      %v3154 = vunpack.c.l.b16 %v2832
      %v3155 = vunpack.c.h.b16 %v2832
      %v3156 = vunpack.c.l.b16 %v2833
      %v3157 = vunpack.c.h.b16 %v2833
      %v3158 = vunpack.c.l.b16 %v2834
      %v3159 = vunpack.c.h.b16 %v2834
      %v3160 = vunpack.c.l.b16 %v2835
      %v3161 = vunpack.c.h.b16 %v2835
      %v3162 = vunpack.c.l.b16 %v2836
      %v3163 = vunpack.c.h.b16 %v2836
      %v3164 = vunpack.c.l.b16 %v2837
      %v3165 = vunpack.c.h.b16 %v2837
      %v3166 = vunpack.c.l.b16 %v2838
      %v3167 = vunpack.c.h.b16 %v2838
      %v3168 = vunpack.c.l.b16 %v2839
      %v3169 = vunpack.c.h.b16 %v2839
      %v3170 = vunpack.c.l.b16 %v2840
      %v3171 = vunpack.c.h.b16 %v2840
      %v3172 = vunpack.c.l.b16 %v2841
      %v3173 = vunpack.c.h.b16 %v2841
      %v3174 = vunpack.c.l.b16 %v2842
      %v3175 = vunpack.c.h.b16 %v2842
      %v3176 = vunpack.c.l.b16 %v2843
      %v3177 = vunpack.c.h.b16 %v2843
      %v3178 = vunpack.c.l.b16 %v2844
      %v3179 = vunpack.c.h.b16 %v2844
      %v3180 = vunpack.c.l.b16 %v2845
      %v3181 = vunpack.c.h.b16 %v2845
      %v3182 = vunpack.c.l.b16 %v2846
      %v3183 = vunpack.c.h.b16 %v2846
      %v3184 = vunpack.c.l.b16 %v2847
      %v3185 = vunpack.c.h.b16 %v2847
      %v3186 = vunpack.c.l.b16 %v2848
      %v3187 = vunpack.c.h.b16 %v2848
      %v3188 = vunpack.c.l.b16 %v2849
      %v3189 = vunpack.c.h.b16 %v2849
      %v3190 = vunpack.c.l.b16 %v2850
      %v3191 = vunpack.c.h.b16 %v2850
      %v3192 = vunpack.c.l.b16 %v2851
      %v3193 = vunpack.c.h.b16 %v2851
      %v3194 = vunpack.c.l.b16 %v2852
      %v3195 = vunpack.c.h.b16 %v2852
      %v3196 = vunpack.c.l.b16 %v2853
      %v3197 = vunpack.c.h.b16 %v2853
      %v3198 = vunpack.c.l.b16 %v2854
      %v3199 = vunpack.c.h.b16 %v2854
      %v3200 = vunpack.c.l.b16 %v2855
      %v3201 = vunpack.c.h.b16 %v2855
      %v3202 = vunpack.c.l.b16 %v2856
      %v3203 = vunpack.c.h.b16 %v2856
      %v3204 = vunpack.c.l.b16 %v2857
      %v3205 = vunpack.c.h.b16 %v2857
      %v3206 = vunpack.c.l.b16 %v2858
      %v3207 = vunpack.c.h.b16 %v2858
      %v3208 = vunpack.c.l.b16 %v2859
      %v3209 = vunpack.c.h.b16 %v2859
      %v3210 = vunpack.c.l.b16 %v2860
      %v3211 = vunpack.c.h.b16 %v2860
      %v3212 = vunpack.c.l.b16 %v2861
      %v3213 = vunpack.c.h.b16 %v2861
      %v3214 = vunpack.c.l.b16 %v2862
      %v3215 = vunpack.c.h.b16 %v2862
      %v3216 = vunpack.c.l.b16 %v2863
      %v3217 = vunpack.c.h.b16 %v2863
      %v3218 = vunpack.c.l.b16 %v2864
      %v3219 = vunpack.c.h.b16 %v2864
      %v3220 = vunpack.c.l.b16 %v2865
      %v3221 = vunpack.c.h.b16 %v2865
      %v3222 = vunpack.c.l.b16 %v2866
      %v3223 = vunpack.c.h.b16 %v2866
      %v3224 = vunpack.c.l.b16 %v2867
      %v3225 = vunpack.c.h.b16 %v2867
      %v3226 = vunpack.c.l.b16 %v2868
      %v3227 = vunpack.c.h.b16 %v2868
      %v3228 = vunpack.c.l.b16 %v2869
      %v3229 = vunpack.c.h.b16 %v2869
      %v3230 = vunpack.c.l.b16 %v2870
      %v3231 = vunpack.c.h.b16 %v2870
      %v3232 = vunpack.c.l.b16 %v2871
      %v3233 = vunpack.c.h.b16 %v2871
      %v3234 = vunpack.c.l.b16 %v2872
      %v3235 = vunpack.c.h.b16 %v2872
      %v3236 = vunpack.c.l.b16 %v2873
      %v3237 = vunpack.c.h.b16 %v2873
      %v3238 = vunpack.c.l.b16 %v2874
      %v3239 = vunpack.c.h.b16 %v2874
      %v3240 = vunpack.c.l.b16 %v2875
      %v3241 = vunpack.c.h.b16 %v2875
      %v3242 = vunpack.c.l.b16 %v2876
      %v3243 = vunpack.c.h.b16 %v2876
      %v3244 = vunpack.c.l.b16 %v2877
      %v3245 = vunpack.c.h.b16 %v2877
      %v3246 = vunpack.c.l.b16 %v2878
      %v3247 = vunpack.c.h.b16 %v2878
      %v3248 = vunpack.c.l.b16 %v2879
      %v3249 = vunpack.c.h.b16 %v2879
      %v3250 = vunpack.c.l.b16 %v2880
      %v3251 = vunpack.c.h.b16 %v2880
      %v3252 = vunpack.c.l.b16 %v2881
      %v3253 = vunpack.c.h.b16 %v2881
      %v3254 = vunpack.c.l.b16 %v2882
      %v3255 = vunpack.c.h.b16 %v2882
      %v3256 = vunpack.c.l.b16 %v2883
      %v3257 = vunpack.c.h.b16 %v2883
      %v3258 = vunpack.c.l.b16 %v2884
      %v3259 = vunpack.c.h.b16 %v2884
      %v3260 = vunpack.c.l.b16 %v2885
      %v3261 = vunpack.c.h.b16 %v2885
      %v3262 = vunpack.c.l.b16 %v2886
      %v3263 = vunpack.c.h.b16 %v2886
      %v3264 = vunpack.c.l.b16 %v2887
      %v3265 = vunpack.c.h.b16 %v2887
      %v3266 = vunpack.c.l.b16 %v2888
      %v3267 = vunpack.c.h.b16 %v2888
      %v3268 = vunpack.c.l.b16 %v2889
      %v3269 = vunpack.c.h.b16 %v2889
      %v3270 = vunpack.c.l.b16 %v2890
      %v3271 = vunpack.c.h.b16 %v2890
      %v3272 = vunpack.c.l.b16 %v2891
      %v3273 = vunpack.c.h.b16 %v2891
      %v3274 = vunpack.c.l.b16 %v2892
      %v3275 = vunpack.c.h.b16 %v2892
      %v3276 = vunpack.c.l.b16 %v2893
      %v3277 = vunpack.c.h.b16 %v2893
      %v3278 = vunpack.c.l.b16 %v2894
      %v3279 = vunpack.c.h.b16 %v2894
      %v3280 = vunpack.c.l.b16 %v2895
      %v3281 = vunpack.c.h.b16 %v2895
      %v3282 = vunpack.c.l.b16 %v2896
      %v3283 = vunpack.c.h.b16 %v2896
      %v3284 = vunpack.c.l.b16 %v2897
      %v3285 = vunpack.c.h.b16 %v2897
      %v3286 = vunpack.c.l.b16 %v2898
      %v3287 = vunpack.c.h.b16 %v2898
      %v3288 = vunpack.c.l.b16 %v2899
      %v3289 = vunpack.c.h.b16 %v2899
      %v3290 = vunpack.c.l.b16 %v2900
      %v3291 = vunpack.c.h.b16 %v2900
      %v3292 = vunpack.c.l.b16 %v2901
      %v3293 = vunpack.c.h.b16 %v2901
      %v3294 = vunpack.c.l.b16 %v2902
      %v3295 = vunpack.c.h.b16 %v2902
      %v3296 = vunpack.c.l.b16 %v2903
      %v3297 = vunpack.c.h.b16 %v2903
      %v3298 = vunpack.c.l.b16 %v2904
      %v3299 = vunpack.c.h.b16 %v2904
      %v3300 = vunpack.c.l.b16 %v2905
      %v3301 = vunpack.c.h.b16 %v2905
      %v3302 = vunpack.c.l.b16 %v2906
      %v3303 = vunpack.c.h.b16 %v2906
      %v3304 = vunpack.c.l.b16 %v2907
      %v3305 = vunpack.c.h.b16 %v2907
      %v3306 = vunpack.c.l.b16 %v2908
      %v3307 = vunpack.c.h.b16 %v2908
      %v3308 = vunpack.c.l.b16 %v2909
      %v3309 = vunpack.c.h.b16 %v2909
      %v3310 = vunpack.c.l.b16 %v2910
      %v3311 = vunpack.c.h.b16 %v2910
      %v3312 = vunpack.c.l.b16 %v2911
      %v3313 = vunpack.c.h.b16 %v2911
      %v3314 = vunpack.c.l.b16 %v2912
      %v3315 = vunpack.c.h.b16 %v2912
      %v3316 = vunpack.c.l.b16 %v2913
      %v3317 = vunpack.c.h.b16 %v2913
      %v3318 = vunpack.c.l.b16 %v2914
      %v3319 = vunpack.c.h.b16 %v2914
      %v3320 = vunpack.c.l.b16 %v2915
      %v3321 = vunpack.c.h.b16 %v2915
      %v3322 = vunpack.c.l.b16 %v2916
      %v3323 = vunpack.c.h.b16 %v2916
      %v3324 = vunpack.c.l.b16 %v2917
      %v3325 = vunpack.c.h.b16 %v2917
      %v3326 = vunpack.c.l.b16 %v2918
      %v3327 = vunpack.c.h.b16 %v2918
      %v3328 = vunpack.c.l.b16 %v2919
      %v3329 = vunpack.c.h.b16 %v2919
      %v3330 = vunpack.c.l.b16 %v2920
      %v3331 = vunpack.c.h.b16 %v2920
      %v3332 = vpack.c.b16 %v3080, %v3076
      %v3333 = vpack.c.b16 %v3081, %v3077
      %v3334 = vpack.c.b16 %v3082, %v3078
      %v3335 = vpack.c.b16 %v3083, %v3079
      %v3336 = vpack.c.b16 %v3088, %v3084
      %v3337 = vpack.c.b16 %v3089, %v3085
      %v3338 = vpack.c.b16 %v3090, %v3086
      %v3339 = vpack.c.b16 %v3091, %v3087
      %v3340 = vpack.c.b16 %v3096, %v3092
      %v3341 = vpack.c.b16 %v3097, %v3093
      %v3342 = vpack.c.b16 %v3098, %v3094
      %v3343 = vpack.c.b16 %v3099, %v3095
      %v3344 = vpack.c.b16 %v3104, %v3100
      %v3345 = vpack.c.b16 %v3105, %v3101
      %v3346 = vpack.c.b16 %v3106, %v3102
      %v3347 = vpack.c.b16 %v3107, %v3103
      %v3348 = vpack.c.b16 %v3112, %v3108
      %v3349 = vpack.c.b16 %v3113, %v3109
      %v3350 = vpack.c.b16 %v3114, %v3110
      %v3351 = vpack.c.b16 %v3115, %v3111
      %v3352 = vpack.c.b16 %v3120, %v3116
      %v3353 = vpack.c.b16 %v3121, %v3117
      %v3354 = vpack.c.b16 %v3122, %v3118
      %v3355 = vpack.c.b16 %v3123, %v3119
      %v3356 = vpack.c.b16 %v3128, %v3124
      %v3357 = vpack.c.b16 %v3129, %v3125
      %v3358 = vpack.c.b16 %v3130, %v3126
      %v3359 = vpack.c.b16 %v3131, %v3127
      %v3360 = vpack.c.b16 %v3136, %v3132
      %v3361 = vpack.c.b16 %v3137, %v3133
      %v3362 = vpack.c.b16 %v3138, %v3134
      %v3363 = vpack.c.b16 %v3139, %v3135
      %v3364 = vpack.c.b16 %v3144, %v3140
      %v3365 = vpack.c.b16 %v3145, %v3141
      %v3366 = vpack.c.b16 %v3146, %v3142
      %v3367 = vpack.c.b16 %v3147, %v3143
      %v3368 = vpack.c.b16 %v3152, %v3148
      %v3369 = vpack.c.b16 %v3153, %v3149
      %v3370 = vpack.c.b16 %v3154, %v3150
      %v3371 = vpack.c.b16 %v3155, %v3151
      %v3372 = vpack.c.b16 %v3160, %v3156
      %v3373 = vpack.c.b16 %v3161, %v3157
      %v3374 = vpack.c.b16 %v3162, %v3158
      %v3375 = vpack.c.b16 %v3163, %v3159
      %v3376 = vpack.c.b16 %v3168, %v3164
      %v3377 = vpack.c.b16 %v3169, %v3165
      %v3378 = vpack.c.b16 %v3170, %v3166
      %v3379 = vpack.c.b16 %v3171, %v3167
      %v3380 = vpack.c.b16 %v3176, %v3172
      %v3381 = vpack.c.b16 %v3177, %v3173
      %v3382 = vpack.c.b16 %v3178, %v3174
      %v3383 = vpack.c.b16 %v3179, %v3175
      %v3384 = vpack.c.b16 %v3184, %v3180
      %v3385 = vpack.c.b16 %v3185, %v3181
      %v3386 = vpack.c.b16 %v3186, %v3182
      %v3387 = vpack.c.b16 %v3187, %v3183
      %v3388 = vpack.c.b16 %v3192, %v3188
      %v3389 = vpack.c.b16 %v3193, %v3189
      %v3390 = vpack.c.b16 %v3194, %v3190
      %v3391 = vpack.c.b16 %v3195, %v3191
      %v3392 = vpack.c.b16 %v3200, %v3196
      %v3393 = vpack.c.b16 %v3201, %v3197
      %v3394 = vpack.c.b16 %v3202, %v3198
      %v3395 = vpack.c.b16 %v3203, %v3199
      %v3396 = vpack.c.b16 %v3208, %v3204
      %v3397 = vpack.c.b16 %v3209, %v3205
      %v3398 = vpack.c.b16 %v3210, %v3206
      %v3399 = vpack.c.b16 %v3211, %v3207
      %v3400 = vpack.c.b16 %v3216, %v3212
      %v3401 = vpack.c.b16 %v3217, %v3213
      %v3402 = vpack.c.b16 %v3218, %v3214
      %v3403 = vpack.c.b16 %v3219, %v3215
      %v3404 = vpack.c.b16 %v3224, %v3220
      %v3405 = vpack.c.b16 %v3225, %v3221
      %v3406 = vpack.c.b16 %v3226, %v3222
      %v3407 = vpack.c.b16 %v3227, %v3223
      %v3408 = vpack.c.b16 %v3232, %v3228
      %v3409 = vpack.c.b16 %v3233, %v3229
      %v3410 = vpack.c.b16 %v3234, %v3230
      %v3411 = vpack.c.b16 %v3235, %v3231
      %v3412 = vpack.c.b16 %v3240, %v3236
      %v3413 = vpack.c.b16 %v3241, %v3237
      %v3414 = vpack.c.b16 %v3242, %v3238
      %v3415 = vpack.c.b16 %v3243, %v3239
      %v3416 = vpack.c.b16 %v3248, %v3244
      %v3417 = vpack.c.b16 %v3249, %v3245
      %v3418 = vpack.c.b16 %v3250, %v3246
      %v3419 = vpack.c.b16 %v3251, %v3247
      %v3420 = vpack.c.b16 %v3256, %v3252
      %v3421 = vpack.c.b16 %v3257, %v3253
      %v3422 = vpack.c.b16 %v3258, %v3254
      %v3423 = vpack.c.b16 %v3259, %v3255
      %v3424 = vpack.c.b16 %v3264, %v3260
      %v3425 = vpack.c.b16 %v3265, %v3261
      %v3426 = vpack.c.b16 %v3266, %v3262
      %v3427 = vpack.c.b16 %v3267, %v3263
      %v3428 = vpack.c.b16 %v3272, %v3268
      %v3429 = vpack.c.b16 %v3273, %v3269
      %v3430 = vpack.c.b16 %v3274, %v3270
      %v3431 = vpack.c.b16 %v3275, %v3271
      %v3432 = vpack.c.b16 %v3280, %v3276
      %v3433 = vpack.c.b16 %v3281, %v3277
      %v3434 = vpack.c.b16 %v3282, %v3278
      %v3435 = vpack.c.b16 %v3283, %v3279
      %v3436 = vpack.c.b16 %v3288, %v3284
      %v3437 = vpack.c.b16 %v3289, %v3285
      %v3438 = vpack.c.b16 %v3290, %v3286
      %v3439 = vpack.c.b16 %v3291, %v3287
      %v3440 = vpack.c.b16 %v3296, %v3292
      %v3441 = vpack.c.b16 %v3297, %v3293
      %v3442 = vpack.c.b16 %v3298, %v3294
      %v3443 = vpack.c.b16 %v3299, %v3295
      %v3444 = vpack.c.b16 %v3304, %v3300
      %v3445 = vpack.c.b16 %v3305, %v3301
      %v3446 = vpack.c.b16 %v3306, %v3302
      %v3447 = vpack.c.b16 %v3307, %v3303
      %v3448 = vpack.c.b16 %v3312, %v3308
      %v3449 = vpack.c.b16 %v3313, %v3309
      %v3450 = vpack.c.b16 %v3314, %v3310
      %v3451 = vpack.c.b16 %v3315, %v3311
      %v3452 = vpack.c.b16 %v3320, %v3316
      %v3453 = vpack.c.b16 %v3321, %v3317
      %v3454 = vpack.c.b16 %v3322, %v3318
      %v3455 = vpack.c.b16 %v3323, %v3319
      %v3456 = vpack.c.b16 %v3328, %v3324
      %v3457 = vpack.c.b16 %v3329, %v3325
      %v3458 = vpack.c.b16 %v3330, %v3326
      %v3459 = vpack.c.b16 %v3331, %v3327
      %3588 = vmatpush.bf16.msra.mxu0 %v3360
      %3589 = vmatpush.bf16.msra.mxu0 %v3356
      %3590 = vmatpush.bf16.msra.mxu0 %v3352
      %3591 = vmatpush.bf16.msra.mxu0 %v3348
      %3592 = vmatpush.bf16.msra.mxu0 %v3344
      %3593 = vmatpush.bf16.msra.mxu0 %v3340
      %3594 = vmatpush.bf16.msra.mxu0 %v3336
      %3595 = vmatpush.bf16.msra.mxu0 %v3332
      %3596 = vmatmul.bf16.gmra.mxu0 %v2934
      %v3597 = vpop.f32.mrf.mxu0
      %v3598 = vadd.f32 0.0, %v3597
      %v3599 = vpop.f32.mrf.mxu0
      %v3600 = vadd.f32 0.0, %v3599
      %3601 = vdwg.mxu0
      %3602 = vmatpush.bf16.msra.mxu0 %v3392
      %3603 = vmatpush.bf16.msra.mxu0 %v3388
      %3604 = vmatpush.bf16.msra.mxu0 %v3384
      %3605 = vmatpush.bf16.msra.mxu0 %v3380
      %3606 = vmatpush.bf16.msra.mxu0 %v3376
      %3607 = vmatpush.bf16.msra.mxu0 %v3372
      %3608 = vmatpush.bf16.msra.mxu0 %v3368
      %3609 = vmatpush.bf16.msra.mxu0 %v3364
      %3610 = vmatmul.bf16.gmra.mxu0 %v2937
      %v3611 = vpop.f32.mrf.mxu0
      %v3612 = vadd.f32 %v3598, %v3611
      %v3613 = vpop.f32.mrf.mxu0
      %v3614 = vadd.f32 %v3600, %v3613
      %3615 = vdwg.mxu0
      %3616 = vmatpush.bf16.msra.mxu0 %v3424
      %3617 = vmatpush.bf16.msra.mxu0 %v3420
      %3618 = vmatpush.bf16.msra.mxu0 %v3416
      %3619 = vmatpush.bf16.msra.mxu0 %v3412
      %3620 = vmatpush.bf16.msra.mxu0 %v3408
      %3621 = vmatpush.bf16.msra.mxu0 %v3404
      %3622 = vmatpush.bf16.msra.mxu0 %v3400
      %3623 = vmatpush.bf16.msra.mxu0 %v3396
      %3624 = vmatmul.bf16.gmra.mxu0 %v2940
      %v3625 = vpop.f32.mrf.mxu0
      %v3626 = vadd.f32 %v3612, %v3625
      %v3627 = vpop.f32.mrf.mxu0
      %v3628 = vadd.f32 %v3614, %v3627
      %3629 = vdwg.mxu0
      %3630 = vmatpush.bf16.msra.mxu0 %v3456
      %3631 = vmatpush.bf16.msra.mxu0 %v3452
      %3632 = vmatpush.bf16.msra.mxu0 %v3448
      %3633 = vmatpush.bf16.msra.mxu0 %v3444
      %3634 = vmatpush.bf16.msra.mxu0 %v3440
      %3635 = vmatpush.bf16.msra.mxu0 %v3436
      %3636 = vmatpush.bf16.msra.mxu0 %v3432
      %3637 = vmatpush.bf16.msra.mxu0 %v3428
      %3638 = vmatmul.bf16.gmra.mxu0 %v2943
      %v3639 = vpop.f32.mrf.mxu0
      %v3640 = vadd.f32 %v3626, %v3639
      %v3641 = vpop.f32.mrf.mxu0
      %v3642 = vadd.f32 %v3628, %v3641
      %3643 = vdwg.mxu0
      %3644 = vmatpush.bf16.msra.mxu0 %v3361
      %3645 = vmatpush.bf16.msra.mxu0 %v3357
      %3646 = vmatpush.bf16.msra.mxu0 %v3353
      %3647 = vmatpush.bf16.msra.mxu0 %v3349
      %3648 = vmatpush.bf16.msra.mxu0 %v3345
      %3649 = vmatpush.bf16.msra.mxu0 %v3341
      %3650 = vmatpush.bf16.msra.mxu0 %v3337
      %3651 = vmatpush.bf16.msra.mxu0 %v3333
      %3652 = vmatmul.bf16.gmra.mxu0 %v2934
      %v3653 = vpop.f32.mrf.mxu0
      %v3654 = vadd.f32 0.0, %v3653
      %v3655 = vpop.f32.mrf.mxu0
      %v3656 = vadd.f32 0.0, %v3655
      %3657 = vdwg.mxu0
      %3658 = vmatpush.bf16.msra.mxu0 %v3393
      %3659 = vmatpush.bf16.msra.mxu0 %v3389
      %3660 = vmatpush.bf16.msra.mxu0 %v3385
      %3661 = vmatpush.bf16.msra.mxu0 %v3381
      %3662 = vmatpush.bf16.msra.mxu0 %v3377
      %3663 = vmatpush.bf16.msra.mxu0 %v3373
      %3664 = vmatpush.bf16.msra.mxu0 %v3369
      %3665 = vmatpush.bf16.msra.mxu0 %v3365
      %3666 = vmatmul.bf16.gmra.mxu0 %v2937
      %v3667 = vpop.f32.mrf.mxu0
      %v3668 = vadd.f32 %v3654, %v3667
      %v3669 = vpop.f32.mrf.mxu0
      %v3670 = vadd.f32 %v3656, %v3669
      %3671 = vdwg.mxu0
      %3672 = vmatpush.bf16.msra.mxu0 %v3425
      %3673 = vmatpush.bf16.msra.mxu0 %v3421
      %3674 = vmatpush.bf16.msra.mxu0 %v3417
      %3675 = vmatpush.bf16.msra.mxu0 %v3413
      %3676 = vmatpush.bf16.msra.mxu0 %v3409
      %3677 = vmatpush.bf16.msra.mxu0 %v3405
      %3678 = vmatpush.bf16.msra.mxu0 %v3401
      %3679 = vmatpush.bf16.msra.mxu0 %v3397
      %3680 = vmatmul.bf16.gmra.mxu0 %v2940
      %v3681 = vpop.f32.mrf.mxu0
      %v3682 = vadd.f32 %v3668, %v3681
      %v3683 = vpop.f32.mrf.mxu0
      %v3684 = vadd.f32 %v3670, %v3683
      %3685 = vdwg.mxu0
      %3686 = vmatpush.bf16.msra.mxu0 %v3457
      %3687 = vmatpush.bf16.msra.mxu0 %v3453
      %3688 = vmatpush.bf16.msra.mxu0 %v3449
      %3689 = vmatpush.bf16.msra.mxu0 %v3445
      %3690 = vmatpush.bf16.msra.mxu0 %v3441
      %3691 = vmatpush.bf16.msra.mxu0 %v3437
      %3692 = vmatpush.bf16.msra.mxu0 %v3433
      %3693 = vmatpush.bf16.msra.mxu0 %v3429
      %3694 = vmatmul.bf16.gmra.mxu0 %v2943
      %v3695 = vpop.f32.mrf.mxu0
      %v3696 = vadd.f32 %v3682, %v3695
      %v3697 = vpop.f32.mrf.mxu0
      %v3698 = vadd.f32 %v3684, %v3697
      %3699 = vdwg.mxu0
      %3700 = vmatpush.bf16.msra.mxu0 %v3362
      %3701 = vmatpush.bf16.msra.mxu0 %v3358
      %3702 = vmatpush.bf16.msra.mxu0 %v3354
      %3703 = vmatpush.bf16.msra.mxu0 %v3350
      %3704 = vmatpush.bf16.msra.mxu0 %v3346
      %3705 = vmatpush.bf16.msra.mxu0 %v3342
      %3706 = vmatpush.bf16.msra.mxu0 %v3338
      %3707 = vmatpush.bf16.msra.mxu0 %v3334
      %3708 = vmatmul.bf16.gmra.mxu0 %v2934
      %v3709 = vpop.f32.mrf.mxu0
      %v3710 = vadd.f32 0.0, %v3709
      %v3711 = vpop.f32.mrf.mxu0
      %v3712 = vadd.f32 0.0, %v3711
      %3713 = vdwg.mxu0
      %3714 = vmatpush.bf16.msra.mxu0 %v3394
      %3715 = vmatpush.bf16.msra.mxu0 %v3390
      %3716 = vmatpush.bf16.msra.mxu0 %v3386
      %3717 = vmatpush.bf16.msra.mxu0 %v3382
      %3718 = vmatpush.bf16.msra.mxu0 %v3378
      %3719 = vmatpush.bf16.msra.mxu0 %v3374
      %3720 = vmatpush.bf16.msra.mxu0 %v3370
      %3721 = vmatpush.bf16.msra.mxu0 %v3366
      %3722 = vmatmul.bf16.gmra.mxu0 %v2937
      %v3723 = vpop.f32.mrf.mxu0
      %v3724 = vadd.f32 %v3710, %v3723
      %v3725 = vpop.f32.mrf.mxu0
      %v3726 = vadd.f32 %v3712, %v3725
      %3727 = vdwg.mxu0
      %3728 = vmatpush.bf16.msra.mxu0 %v3426
      %3729 = vmatpush.bf16.msra.mxu0 %v3422
      %3730 = vmatpush.bf16.msra.mxu0 %v3418
      %3731 = vmatpush.bf16.msra.mxu0 %v3414
      %3732 = vmatpush.bf16.msra.mxu0 %v3410
      %3733 = vmatpush.bf16.msra.mxu0 %v3406
      %3734 = vmatpush.bf16.msra.mxu0 %v3402
      %3735 = vmatpush.bf16.msra.mxu0 %v3398
      %3736 = vmatmul.bf16.gmra.mxu0 %v2940
      %v3737 = vpop.f32.mrf.mxu0
      %v3738 = vadd.f32 %v3724, %v3737
      %v3739 = vpop.f32.mrf.mxu0
      %v3740 = vadd.f32 %v3726, %v3739
      %3741 = vdwg.mxu0
      %3742 = vmatpush.bf16.msra.mxu0 %v3458
      %3743 = vmatpush.bf16.msra.mxu0 %v3454
      %3744 = vmatpush.bf16.msra.mxu0 %v3450
      %3745 = vmatpush.bf16.msra.mxu0 %v3446
      %3746 = vmatpush.bf16.msra.mxu0 %v3442
      %3747 = vmatpush.bf16.msra.mxu0 %v3438
      %3748 = vmatpush.bf16.msra.mxu0 %v3434
      %3749 = vmatpush.bf16.msra.mxu0 %v3430
      %3750 = vmatmul.bf16.gmra.mxu0 %v2943
      %v3751 = vpop.f32.mrf.mxu0
      %v3752 = vadd.f32 %v3738, %v3751
      %v3753 = vpop.f32.mrf.mxu0
      %v3754 = vadd.f32 %v3740, %v3753
      %3755 = vdwg.mxu0
      %3756 = vmatpush.bf16.msra.mxu0 %v3363
      %3757 = vmatpush.bf16.msra.mxu0 %v3359
      %3758 = vmatpush.bf16.msra.mxu0 %v3355
      %3759 = vmatpush.bf16.msra.mxu0 %v3351
      %3760 = vmatpush.bf16.msra.mxu0 %v3347
      %3761 = vmatpush.bf16.msra.mxu0 %v3343
      %3762 = vmatpush.bf16.msra.mxu0 %v3339
      %3763 = vmatpush.bf16.msra.mxu0 %v3335
      %3764 = vmatmul.bf16.gmra.mxu0 %v2934
      %v3765 = vpop.f32.mrf.mxu0
      %v3766 = vadd.f32 0.0, %v3765
      %v3767 = vpop.f32.mrf.mxu0
      %v3768 = vadd.f32 0.0, %v3767
      %3769 = vdwg.mxu0
      %3770 = vmatpush.bf16.msra.mxu0 %v3395
      %3771 = vmatpush.bf16.msra.mxu0 %v3391
      %3772 = vmatpush.bf16.msra.mxu0 %v3387
      %3773 = vmatpush.bf16.msra.mxu0 %v3383
      %3774 = vmatpush.bf16.msra.mxu0 %v3379
      %3775 = vmatpush.bf16.msra.mxu0 %v3375
      %3776 = vmatpush.bf16.msra.mxu0 %v3371
      %3777 = vmatpush.bf16.msra.mxu0 %v3367
      %3778 = vmatmul.bf16.gmra.mxu0 %v2937
      %v3779 = vpop.f32.mrf.mxu0
      %v3780 = vadd.f32 %v3766, %v3779
      %v3781 = vpop.f32.mrf.mxu0
      %v3782 = vadd.f32 %v3768, %v3781
      %3783 = vdwg.mxu0
      %3784 = vmatpush.bf16.msra.mxu0 %v3427
      %3785 = vmatpush.bf16.msra.mxu0 %v3423
      %3786 = vmatpush.bf16.msra.mxu0 %v3419
      %3787 = vmatpush.bf16.msra.mxu0 %v3415
      %3788 = vmatpush.bf16.msra.mxu0 %v3411
      %3789 = vmatpush.bf16.msra.mxu0 %v3407
      %3790 = vmatpush.bf16.msra.mxu0 %v3403
      %3791 = vmatpush.bf16.msra.mxu0 %v3399
      %3792 = vmatmul.bf16.gmra.mxu0 %v2940
      %v3793 = vpop.f32.mrf.mxu0
      %v3794 = vadd.f32 %v3780, %v3793
      %v3795 = vpop.f32.mrf.mxu0
      %v3796 = vadd.f32 %v3782, %v3795
      %3797 = vdwg.mxu0
      %3798 = vmatpush.bf16.msra.mxu0 %v3459
      %3799 = vmatpush.bf16.msra.mxu0 %v3455
      %3800 = vmatpush.bf16.msra.mxu0 %v3451
      %3801 = vmatpush.bf16.msra.mxu0 %v3447
      %3802 = vmatpush.bf16.msra.mxu0 %v3443
      %3803 = vmatpush.bf16.msra.mxu0 %v3439
      %3804 = vmatpush.bf16.msra.mxu0 %v3435
      %3805 = vmatpush.bf16.msra.mxu0 %v3431
      %3806 = vmatmul.bf16.gmra.mxu0 %v2943
      %v3807 = vpop.f32.mrf.mxu0
      %v3808 = vadd.f32 %v3794, %v3807
      %v3809 = vpop.f32.mrf.mxu0
      %v3810 = vadd.f32 %v3796, %v3809
      %3811 = vdwg.mxu0
      %v3812 = vadd.f32 %v2618, %v3640
      %v3813 = vadd.f32 %v2674, %v3696
      %v3814 = vadd.f32 %v2730, %v3752
      %v3815 = vadd.f32 %v2786, %v3808
      %v3816 = vadd.f32 %v2620, %v3642
      %v3817 = vadd.f32 %v2676, %v3698
      %v3818 = vadd.f32 %v2732, %v3754
      %v3819 = vadd.f32 %v2788, %v3810
      %v3820 = vld [vmem:[%s4] sm:$0xf]
      %v3822 = vperm.slane %v3820, 0
      %v3823 = vperm.slane %v3820, 1
      %v3824 = vperm.slane %v3820, 2
      %v3825 = vperm.slane %v3820, 3
      %v3830 = vadd.f32 %v3812, %v3822
      %v3831 = vadd.f32 %v3813, %v3823
      %v3832 = vadd.f32 %v3814, %v3824
      %v3833 = vadd.f32 %v3815, %v3825
      %v3834 = vadd.f32 %v3816, %v3822
      %v3835 = vadd.f32 %v3817, %v3823
      %v3836 = vadd.f32 %v3818, %v3824
      %v3837 = vadd.f32 %v3819, %v3825
      %v3838 = vmax.f32 %v3830, 0.0
      %v3839 = vmax.f32 %v3831, 0.0
      %v3840 = vmax.f32 %v3832, 0.0
      %v3841 = vmax.f32 %v3833, 0.0
      %v3842 = vmax.f32 %v3834, 0.0
      %v3843 = vmax.f32 %v3835, 0.0
      %v3844 = vmax.f32 %v3836, 0.0
      %v3845 = vmax.f32 %v3837, 0.0
      %v3846 = vpack.c.bf16 %v3839, %v3838
      %v3847 = vpack.c.bf16 %v3841, %v3840
      %v3848 = vpack.c.bf16 %v3843, %v3842
      %v3849 = vpack.c.bf16 %v3845, %v3844
      %3850 = vst [vmem:[%s224] sm:$0xff] %v3846
      %3851 = vst [vmem:[%s224 + $0x8] sm:$0xff] %v3847
      %3852 = vst [vmem:[%s224 + $0x10] sm:$0xff] %v3848
      %3853 = vst [vmem:[%s224 + $0x18] sm:$0xff] %v3849
      %p3854 = scmp.lt.s32.totalorder %s16, 1
      %s3855 = scalar_select %p3854, %s16, 1
      %s3856 = smul.addr %s3855, 8
      %s3857 = smul.addr %s3856, 4
      %s3858 = scalar_lea.vmem %s5, %s3857
      // Predicated region
      $region41: #{encoder_forward.4} parent=39 // pred_check
        %p3859 = pneg %p144
      $region42: #{encoder_forward.4} parent=39 // pred_check_branch
        %3861 = sbr.rel (%p3859) target = $region44
      $region43: #{encoder_forward.4} parent=39 // pred_region
        _
      $region44: #{encoder_forward.4} parent=39 // pred_fallthru
        _
    $region40: #{encoder_forward.4} parent=5 // pred_fallthru
      _
    %p3862 = scmp.le.s32.totalorder 2, %s11
    // Predicated region
    $region45: #{encoder_forward.4} parent=5 // pred_check
      %p3863 = pneg %p3862
    $region46: #{encoder_forward.4} parent=5 // pred_check_branch
      %3865 = sbr.rel (%p3863) target = $region48
    $region47: #{encoder_forward.4} parent=5 // pred_region
      %s3866 = ssub.s32 %s11, 2
      // Predicated region
      $region49: #{encoder_forward.4} parent=47 // pred_check
        %p3867 = pneg %p150
      $region50: #{encoder_forward.4} parent=47 // pred_check_branch
        %3869 = sbr.rel (%p3867) target = $region52
      $region51: #{encoder_forward.4} parent=47 // pred_region
        %p3870 = scmp.lt.s32.totalorder %s17, 1
        %s3871 = scalar_select %p3870, %s17, 1
        %s3872 = smul.addr %s3871, 8
        %s3873 = smul.addr %s3872, 4
        %s3874 = scalar_lea.vmem %s5, %s3873
      $region52: #{encoder_forward.4} parent=47 // pred_fallthru
        _
    $region48: #{encoder_forward.4} parent=5 // pred_fallthru
      _
  $region6: #{encoder_forward.4} parent=0 // loop_footer
    %s15 = sadd.s32 1, %s11
  $region7: #{encoder_forward.4} parent=0 // loop_footer_branch
    %10 = sbr.rel target = $region3
  $region8: #{encoder_forward.4} parent=0 // loop_exit
    _

// kernel: encoder_forward.7
$region0: #{encoder_forward.7}
  #allocation0 [shape = 'u32[]', space=smem, size = 0x4, offset = 0x4, fixed_abs, tag = 'smem constant byte address 0x4 - core index']
  #allocation1 [shape = 'u32[72,128]{1,0:T(1,128)}', space=vmem, size = 0x9000, scoped, tag = 'internal scratch']
  #allocation2 [shape = 'f32[16,512]{1,0:T(8,128)}', space=vmem, size = 0x8000, scoped, tag = 'scratch operand']
  %s0 = inlined_call_operand.vmem [shape: bf16[16,16,512], index: 0, kind: input, shape index: {}]
  %s1 = inlined_call_operand.vmem [shape: f32[16,1], index: 1, kind: input, shape index: {}]
  %s2 = inlined_call_operand.vmem [shape: bf16[512,32], index: 2, kind: input, shape index: {}]
  %s3 = inlined_call_operand.vmem [shape: f32[1,32], index: 3, kind: input, shape index: {}]
  %s4 = inlined_call_operand.vmem [shape: f32[16,32], index: 4, kind: output, shape index: {}]
  %s5 = sld [smem:[#allocation0]]
  $region34: #{encoder_forward.7} parent=0
    _
  %s7 = ssub.s32 1, %s5
  %s8 = scalar_select 0, %s7, %s5
  // Predicated region
  $region2: #{encoder_forward.7} parent=0 // pred_check
    _
  $region3: #{encoder_forward.7} parent=0 // pred_check_branch
    %10 = sbr.rel (0) target = $region5
  $region4: #{encoder_forward.7} parent=0 // pred_region
    _
  $region5: #{encoder_forward.7} parent=0 // pred_fallthru
    _
  // Predicated region
  $region6: #{encoder_forward.7} parent=0 // pred_check
    _
  $region7: #{encoder_forward.7} parent=0 // pred_check_branch
    %12 = sbr.rel (0) target = $region9
  $region8: #{encoder_forward.7} parent=0 // pred_region
    _
  $region9: #{encoder_forward.7} parent=0 // pred_fallthru
    _
  // Predicated region
  $region10: #{encoder_forward.7} parent=0 // pred_check
    _
  $region11: #{encoder_forward.7} parent=0 // pred_check_branch
    %14 = sbr.rel (0) target = $region13
  $region12: #{encoder_forward.7} parent=0 // pred_region
    _
  $region13: #{encoder_forward.7} parent=0 // pred_fallthru
    _
  // Predicated region
  $region14: #{encoder_forward.7} parent=0 // pred_check
    _
  $region15: #{encoder_forward.7} parent=0 // pred_check_branch
    %16 = sbr.rel (0) target = $region17
  $region16: #{encoder_forward.7} parent=0 // pred_region
    _
  $region17: #{encoder_forward.7} parent=0 // pred_fallthru
    _
  %p17 = scmp.eq.s32.totalorder 0, 0
  // Predicated region
  $region18: #{encoder_forward.7} parent=0 // pred_check
    %p18 = pneg %p17
  $region19: #{encoder_forward.7} parent=0 // pred_check_branch
    %20 = sbr.rel (%p18) target = $region21
  $region20: #{encoder_forward.7} parent=0 // pred_region
    %21 = vst [vmem:[#allocation2] sm:$0xff] 0.0
    %22 = vst [vmem:[#allocation2 + $0x8] sm:$0xff] 0.0
    %23 = vst [vmem:[#allocation2 + $0x10] sm:$0xff] 0.0
    %24 = vst [vmem:[#allocation2 + $0x18] sm:$0xff] 0.0
    %25 = vst [vmem:[#allocation2 + $0x20] sm:$0xff] 0.0
    %26 = vst [vmem:[#allocation2 + $0x28] sm:$0xff] 0.0
    %27 = vst [vmem:[#allocation2 + $0x30] sm:$0xff] 0.0
    %28 = vst [vmem:[#allocation2 + $0x38] sm:$0xff] 0.0
  $region21: #{encoder_forward.7} parent=0 // pred_fallthru
    _
  %s29 = smul.u32 0, 16
  %v30 = vstv %s29
  %v31 = vadd.s32 %v30, 1
  %v32 = vadd.s32 %v30, 2
  %v33 = vadd.s32 %v30, 3
  %v34 = vadd.s32 %v30, 4
  %v35 = vadd.s32 %v30, 5
  %v36 = vadd.s32 %v30, 6
  %v37 = vadd.s32 %v30, 7
  %v38 = vadd.s32 %v30, 8
  %v39 = vadd.s32 %v30, 9
  %v40 = vadd.s32 %v30, 10
  %v41 = vadd.s32 %v30, 11
  %v42 = vadd.s32 %v30, 12
  %v43 = vadd.s32 %v30, 13
  %v44 = vadd.s32 %v30, 14
  %v45 = vadd.s32 %v30, 15
  %v46 = vld [vmem:[%s1] sm:$0xff]
  %v47 = vld [vmem:[%s1 + $0x8] sm:$0xff]
  %v48 = vcvt.f32.s32.to.zero.pseudo %v46
  %v49 = vcvt.f32.s32.to.zero.pseudo %v47
  %vm50 = vcmp.lt.s32.totalorder %v30, %v48
  %vm51 = vcmp.lt.s32.totalorder %v30, %v49
  %vm52 = vcmp.lt.s32.totalorder %v31, %v48
  %vm53 = vcmp.lt.s32.totalorder %v31, %v49
  %vm54 = vcmp.lt.s32.totalorder %v32, %v48
  %vm55 = vcmp.lt.s32.totalorder %v32, %v49
  %vm56 = vcmp.lt.s32.totalorder %v33, %v48
  %vm57 = vcmp.lt.s32.totalorder %v33, %v49
  %vm58 = vcmp.lt.s32.totalorder %v34, %v48
  %vm59 = vcmp.lt.s32.totalorder %v34, %v49
  %vm60 = vcmp.lt.s32.totalorder %v35, %v48
  %vm61 = vcmp.lt.s32.totalorder %v35, %v49
  %vm62 = vcmp.lt.s32.totalorder %v36, %v48
  %vm63 = vcmp.lt.s32.totalorder %v36, %v49
  %vm64 = vcmp.lt.s32.totalorder %v37, %v48
  %vm65 = vcmp.lt.s32.totalorder %v37, %v49
  %vm66 = vcmp.lt.s32.totalorder %v38, %v48
  %vm67 = vcmp.lt.s32.totalorder %v38, %v49
  %vm68 = vcmp.lt.s32.totalorder %v39, %v48
  %vm69 = vcmp.lt.s32.totalorder %v39, %v49
  %vm70 = vcmp.lt.s32.totalorder %v40, %v48
  %vm71 = vcmp.lt.s32.totalorder %v40, %v49
  %vm72 = vcmp.lt.s32.totalorder %v41, %v48
  %vm73 = vcmp.lt.s32.totalorder %v41, %v49
  %vm74 = vcmp.lt.s32.totalorder %v42, %v48
  %vm75 = vcmp.lt.s32.totalorder %v42, %v49
  %vm76 = vcmp.lt.s32.totalorder %v43, %v48
  %vm77 = vcmp.lt.s32.totalorder %v43, %v49
  %vm78 = vcmp.lt.s32.totalorder %v44, %v48
  %vm79 = vcmp.lt.s32.totalorder %v44, %v49
  %vm80 = vcmp.lt.s32.totalorder %v45, %v48
  %vm81 = vcmp.lt.s32.totalorder %v45, %v49
  %v82 = vld [vmem:[#allocation2] sm:$0xff]
  %v83 = vld [vmem:[#allocation2 + $0x8] sm:$0xff]
  %v84 = vld [vmem:[#allocation2 + $0x10] sm:$0xff]
  %v85 = vld [vmem:[#allocation2 + $0x18] sm:$0xff]
  %v86 = vld [vmem:[#allocation2 + $0x20] sm:$0xff]
  %v87 = vld [vmem:[#allocation2 + $0x28] sm:$0xff]
  %v88 = vld [vmem:[#allocation2 + $0x30] sm:$0xff]
  %v89 = vld [vmem:[#allocation2 + $0x38] sm:$0xff]
  %v90 = vld [vmem:[%s0] sm:$0xff]
  %v91 = vld [vmem:[%s0 + $0x8] sm:$0xff]
  %v92 = vld [vmem:[%s0 + $0x10] sm:$0xff]
  %v93 = vld [vmem:[%s0 + $0x18] sm:$0xff]
  %v94 = vld [vmem:[%s0 + $0x20] sm:$0xff]
  %v95 = vld [vmem:[%s0 + $0x28] sm:$0xff]
  %v96 = vld [vmem:[%s0 + $0x30] sm:$0xff]
  %v97 = vld [vmem:[%s0 + $0x38] sm:$0xff]
  %v98 = vld [vmem:[%s0 + $0x40] sm:$0xff]
  %v99 = vld [vmem:[%s0 + $0x48] sm:$0xff]
  %v100 = vld [vmem:[%s0 + $0x50] sm:$0xff]
  %v101 = vld [vmem:[%s0 + $0x58] sm:$0xff]
  %v102 = vld [vmem:[%s0 + $0x60] sm:$0xff]
  %v103 = vld [vmem:[%s0 + $0x68] sm:$0xff]
  %v104 = vld [vmem:[%s0 + $0x70] sm:$0xff]
  %v105 = vld [vmem:[%s0 + $0x78] sm:$0xff]
  %v106 = vld [vmem:[%s0 + $0x80] sm:$0xff]
  %v107 = vld [vmem:[%s0 + $0x88] sm:$0xff]
  %v108 = vld [vmem:[%s0 + $0x90] sm:$0xff]
  %v109 = vld [vmem:[%s0 + $0x98] sm:$0xff]
  %v110 = vld [vmem:[%s0 + $0xa0] sm:$0xff]
  %v111 = vld [vmem:[%s0 + $0xa8] sm:$0xff]
  %v112 = vld [vmem:[%s0 + $0xb0] sm:$0xff]
  %v113 = vld [vmem:[%s0 + $0xb8] sm:$0xff]
  %v114 = vld [vmem:[%s0 + $0xc0] sm:$0xff]
  %v115 = vld [vmem:[%s0 + $0xc8] sm:$0xff]
  %v116 = vld [vmem:[%s0 + $0xd0] sm:$0xff]
  %v117 = vld [vmem:[%s0 + $0xd8] sm:$0xff]
  %v118 = vld [vmem:[%s0 + $0xe0] sm:$0xff]
  %v119 = vld [vmem:[%s0 + $0xe8] sm:$0xff]
  %v120 = vld [vmem:[%s0 + $0xf0] sm:$0xff]
  %v121 = vld [vmem:[%s0 + $0xf8] sm:$0xff]
  %v122 = vld [vmem:[%s0 + $0x100] sm:$0xff]
  %v123 = vld [vmem:[%s0 + $0x108] sm:$0xff]
  %v124 = vld [vmem:[%s0 + $0x110] sm:$0xff]
  %v125 = vld [vmem:[%s0 + $0x118] sm:$0xff]
  %v126 = vld [vmem:[%s0 + $0x120] sm:$0xff]
  %v127 = vld [vmem:[%s0 + $0x128] sm:$0xff]
  %v128 = vld [vmem:[%s0 + $0x130] sm:$0xff]
  %v129 = vld [vmem:[%s0 + $0x138] sm:$0xff]
  %v130 = vld [vmem:[%s0 + $0x140] sm:$0xff]
  %v131 = vld [vmem:[%s0 + $0x148] sm:$0xff]
  %v132 = vld [vmem:[%s0 + $0x150] sm:$0xff]
  %v133 = vld [vmem:[%s0 + $0x158] sm:$0xff]
  %v134 = vld [vmem:[%s0 + $0x160] sm:$0xff]
  %v135 = vld [vmem:[%s0 + $0x168] sm:$0xff]
  %v136 = vld [vmem:[%s0 + $0x170] sm:$0xff]
  %v137 = vld [vmem:[%s0 + $0x178] sm:$0xff]
  %v138 = vld [vmem:[%s0 + $0x180] sm:$0xff]
  %v139 = vld [vmem:[%s0 + $0x188] sm:$0xff]
  %v140 = vld [vmem:[%s0 + $0x190] sm:$0xff]
  %v141 = vld [vmem:[%s0 + $0x198] sm:$0xff]
  %v142 = vld [vmem:[%s0 + $0x1a0] sm:$0xff]
  %v143 = vld [vmem:[%s0 + $0x1a8] sm:$0xff]
  %v144 = vld [vmem:[%s0 + $0x1b0] sm:$0xff]
  %v145 = vld [vmem:[%s0 + $0x1b8] sm:$0xff]
  %v146 = vld [vmem:[%s0 + $0x1c0] sm:$0xff]
  %v147 = vld [vmem:[%s0 + $0x1c8] sm:$0xff]
  %v148 = vld [vmem:[%s0 + $0x1d0] sm:$0xff]
  %v149 = vld [vmem:[%s0 + $0x1d8] sm:$0xff]
  %v150 = vld [vmem:[%s0 + $0x1e0] sm:$0xff]
  %v151 = vld [vmem:[%s0 + $0x1e8] sm:$0xff]
  %v152 = vld [vmem:[%s0 + $0x1f0] sm:$0xff]
  %v153 = vld [vmem:[%s0 + $0x1f8] sm:$0xff]
  %v154 = vunpack.c.l.bf16 %v90
  %v155 = vunpack.c.h.bf16 %v90
  %v156 = vunpack.c.l.bf16 %v91
  %v157 = vunpack.c.h.bf16 %v91
  %v158 = vunpack.c.l.bf16 %v92
  %v159 = vunpack.c.h.bf16 %v92
  %v160 = vunpack.c.l.bf16 %v93
  %v161 = vunpack.c.h.bf16 %v93
  %v162 = vunpack.c.l.bf16 %v94
  %v163 = vunpack.c.h.bf16 %v94
  %v164 = vunpack.c.l.bf16 %v95
  %v165 = vunpack.c.h.bf16 %v95
  %v166 = vunpack.c.l.bf16 %v96
  %v167 = vunpack.c.h.bf16 %v96
  %v168 = vunpack.c.l.bf16 %v97
  %v169 = vunpack.c.h.bf16 %v97
  %v170 = vunpack.c.l.bf16 %v98
  %v171 = vunpack.c.h.bf16 %v98
  %v172 = vunpack.c.l.bf16 %v99
  %v173 = vunpack.c.h.bf16 %v99
  %v174 = vunpack.c.l.bf16 %v100
  %v175 = vunpack.c.h.bf16 %v100
  %v176 = vunpack.c.l.bf16 %v101
  %v177 = vunpack.c.h.bf16 %v101
  %v178 = vunpack.c.l.bf16 %v102
  %v179 = vunpack.c.h.bf16 %v102
  %v180 = vunpack.c.l.bf16 %v103
  %v181 = vunpack.c.h.bf16 %v103
  %v182 = vunpack.c.l.bf16 %v104
  %v183 = vunpack.c.h.bf16 %v104
  %v184 = vunpack.c.l.bf16 %v105
  %v185 = vunpack.c.h.bf16 %v105
  %v186 = vunpack.c.l.bf16 %v106
  %v187 = vunpack.c.h.bf16 %v106
  %v188 = vunpack.c.l.bf16 %v107
  %v189 = vunpack.c.h.bf16 %v107
  %v190 = vunpack.c.l.bf16 %v108
  %v191 = vunpack.c.h.bf16 %v108
  %v192 = vunpack.c.l.bf16 %v109
  %v193 = vunpack.c.h.bf16 %v109
  %v194 = vunpack.c.l.bf16 %v110
  %v195 = vunpack.c.h.bf16 %v110
  %v196 = vunpack.c.l.bf16 %v111
  %v197 = vunpack.c.h.bf16 %v111
  %v198 = vunpack.c.l.bf16 %v112
  %v199 = vunpack.c.h.bf16 %v112
  %v200 = vunpack.c.l.bf16 %v113
  %v201 = vunpack.c.h.bf16 %v113
  %v202 = vunpack.c.l.bf16 %v114
  %v203 = vunpack.c.h.bf16 %v114
  %v204 = vunpack.c.l.bf16 %v115
  %v205 = vunpack.c.h.bf16 %v115
  %v206 = vunpack.c.l.bf16 %v116
  %v207 = vunpack.c.h.bf16 %v116
  %v208 = vunpack.c.l.bf16 %v117
  %v209 = vunpack.c.h.bf16 %v117
  %v210 = vunpack.c.l.bf16 %v118
  %v211 = vunpack.c.h.bf16 %v118
  %v212 = vunpack.c.l.bf16 %v119
  %v213 = vunpack.c.h.bf16 %v119
  %v214 = vunpack.c.l.bf16 %v120
  %v215 = vunpack.c.h.bf16 %v120
  %v216 = vunpack.c.l.bf16 %v121
  %v217 = vunpack.c.h.bf16 %v121
  %v218 = vunpack.c.l.bf16 %v122
  %v219 = vunpack.c.h.bf16 %v122
  %v220 = vunpack.c.l.bf16 %v123
  %v221 = vunpack.c.h.bf16 %v123
  %v222 = vunpack.c.l.bf16 %v124
  %v223 = vunpack.c.h.bf16 %v124
  %v224 = vunpack.c.l.bf16 %v125
  %v225 = vunpack.c.h.bf16 %v125
  %v226 = vunpack.c.l.bf16 %v126
  %v227 = vunpack.c.h.bf16 %v126
  %v228 = vunpack.c.l.bf16 %v127
  %v229 = vunpack.c.h.bf16 %v127
  %v230 = vunpack.c.l.bf16 %v128
  %v231 = vunpack.c.h.bf16 %v128
  %v232 = vunpack.c.l.bf16 %v129
  %v233 = vunpack.c.h.bf16 %v129
  %v234 = vunpack.c.l.bf16 %v130
  %v235 = vunpack.c.h.bf16 %v130
  %v236 = vunpack.c.l.bf16 %v131
  %v237 = vunpack.c.h.bf16 %v131
  %v238 = vunpack.c.l.bf16 %v132
  %v239 = vunpack.c.h.bf16 %v132
  %v240 = vunpack.c.l.bf16 %v133
  %v241 = vunpack.c.h.bf16 %v133
  %v242 = vunpack.c.l.bf16 %v134
  %v243 = vunpack.c.h.bf16 %v134
  %v244 = vunpack.c.l.bf16 %v135
  %v245 = vunpack.c.h.bf16 %v135
  %v246 = vunpack.c.l.bf16 %v136
  %v247 = vunpack.c.h.bf16 %v136
  %v248 = vunpack.c.l.bf16 %v137
  %v249 = vunpack.c.h.bf16 %v137
  %v250 = vunpack.c.l.bf16 %v138
  %v251 = vunpack.c.h.bf16 %v138
  %v252 = vunpack.c.l.bf16 %v139
  %v253 = vunpack.c.h.bf16 %v139
  %v254 = vunpack.c.l.bf16 %v140
  %v255 = vunpack.c.h.bf16 %v140
  %v256 = vunpack.c.l.bf16 %v141
  %v257 = vunpack.c.h.bf16 %v141
  %v258 = vunpack.c.l.bf16 %v142
  %v259 = vunpack.c.h.bf16 %v142
  %v260 = vunpack.c.l.bf16 %v143
  %v261 = vunpack.c.h.bf16 %v143
  %v262 = vunpack.c.l.bf16 %v144
  %v263 = vunpack.c.h.bf16 %v144
  %v264 = vunpack.c.l.bf16 %v145
  %v265 = vunpack.c.h.bf16 %v145
  %v266 = vunpack.c.l.bf16 %v146
  %v267 = vunpack.c.h.bf16 %v146
  %v268 = vunpack.c.l.bf16 %v147
  %v269 = vunpack.c.h.bf16 %v147
  %v270 = vunpack.c.l.bf16 %v148
  %v271 = vunpack.c.h.bf16 %v148
  %v272 = vunpack.c.l.bf16 %v149
  %v273 = vunpack.c.h.bf16 %v149
  %v274 = vunpack.c.l.bf16 %v150
  %v275 = vunpack.c.h.bf16 %v150
  %v276 = vunpack.c.l.bf16 %v151
  %v277 = vunpack.c.h.bf16 %v151
  %v278 = vunpack.c.l.bf16 %v152
  %v279 = vunpack.c.h.bf16 %v152
  %v280 = vunpack.c.l.bf16 %v153
  %v281 = vunpack.c.h.bf16 %v153
  %v282 = vsel %vm50, 1, 0
  %v283 = vsel %vm51, 1, 0
  %v284 = vsel %vm52, 1, 0
  %v285 = vsel %vm53, 1, 0
  %v286 = vsel %vm54, 1, 0
  %v287 = vsel %vm55, 1, 0
  %v288 = vsel %vm56, 1, 0
  %v289 = vsel %vm57, 1, 0
  %v290 = vsel %vm58, 1, 0
  %v291 = vsel %vm59, 1, 0
  %v292 = vsel %vm60, 1, 0
  %v293 = vsel %vm61, 1, 0
  %v294 = vsel %vm62, 1, 0
  %v295 = vsel %vm63, 1, 0
  %v296 = vsel %vm64, 1, 0
  %v297 = vsel %vm65, 1, 0
  %v298 = vsel %vm66, 1, 0
  %v299 = vsel %vm67, 1, 0
  %v300 = vsel %vm68, 1, 0
  %v301 = vsel %vm69, 1, 0
  %v302 = vsel %vm70, 1, 0
  %v303 = vsel %vm71, 1, 0
  %v304 = vsel %vm72, 1, 0
  %v305 = vsel %vm73, 1, 0
  %v306 = vsel %vm74, 1, 0
  %v307 = vsel %vm75, 1, 0
  %v308 = vsel %vm76, 1, 0
  %v309 = vsel %vm77, 1, 0
  %v310 = vsel %vm78, 1, 0
  %v311 = vsel %vm79, 1, 0
  %v312 = vsel %vm80, 1, 0
  %v313 = vsel %vm81, 1, 0
  %314 = vset.pattern.permute.xlu0 0
  %315 = vperm.xlu0 %314, %v282
  %v316 = vpop.permute.xlu0 %315
  %317 = vset.pattern.permute.xlu0 0
  %318 = vperm.xlu0 %317, %v283
  %v319 = vpop.permute.xlu0 %318
  %320 = vset.pattern.permute.xlu0 0
  %321 = vperm.xlu0 %320, %v284
  %v322 = vpop.permute.xlu0 %321
  %323 = vset.pattern.permute.xlu0 0
  %324 = vperm.xlu0 %323, %v285
  %v325 = vpop.permute.xlu0 %324
  %326 = vset.pattern.permute.xlu0 0
  %327 = vperm.xlu0 %326, %v286
  %v328 = vpop.permute.xlu0 %327
  %329 = vset.pattern.permute.xlu0 0
  %330 = vperm.xlu0 %329, %v287
  %v331 = vpop.permute.xlu0 %330
  %332 = vset.pattern.permute.xlu0 0
  %333 = vperm.xlu0 %332, %v288
  %v334 = vpop.permute.xlu0 %333
  %335 = vset.pattern.permute.xlu0 0
  %336 = vperm.xlu0 %335, %v289
  %v337 = vpop.permute.xlu0 %336
  %338 = vset.pattern.permute.xlu0 0
  %339 = vperm.xlu0 %338, %v290
  %v340 = vpop.permute.xlu0 %339
  %341 = vset.pattern.permute.xlu0 0
  %342 = vperm.xlu0 %341, %v291
  %v343 = vpop.permute.xlu0 %342
  %344 = vset.pattern.permute.xlu0 0
  %345 = vperm.xlu0 %344, %v292
  %v346 = vpop.permute.xlu0 %345
  %347 = vset.pattern.permute.xlu0 0
  %348 = vperm.xlu0 %347, %v293
  %v349 = vpop.permute.xlu0 %348
  %350 = vset.pattern.permute.xlu0 0
  %351 = vperm.xlu0 %350, %v294
  %v352 = vpop.permute.xlu0 %351
  %353 = vset.pattern.permute.xlu0 0
  %354 = vperm.xlu0 %353, %v295
  %v355 = vpop.permute.xlu0 %354
  %356 = vset.pattern.permute.xlu0 0
  %357 = vperm.xlu0 %356, %v296
  %v358 = vpop.permute.xlu0 %357
  %359 = vset.pattern.permute.xlu0 0
  %360 = vperm.xlu0 %359, %v297
  %v361 = vpop.permute.xlu0 %360
  %362 = vset.pattern.permute.xlu0 0
  %363 = vperm.xlu0 %362, %v298
  %v364 = vpop.permute.xlu0 %363
  %365 = vset.pattern.permute.xlu0 0
  %366 = vperm.xlu0 %365, %v299
  %v367 = vpop.permute.xlu0 %366
  %368 = vset.pattern.permute.xlu0 0
  %369 = vperm.xlu0 %368, %v300
  %v370 = vpop.permute.xlu0 %369
  %371 = vset.pattern.permute.xlu0 0
  %372 = vperm.xlu0 %371, %v301
  %v373 = vpop.permute.xlu0 %372
  %374 = vset.pattern.permute.xlu0 0
  %375 = vperm.xlu0 %374, %v302
  %v376 = vpop.permute.xlu0 %375
  %377 = vset.pattern.permute.xlu0 0
  %378 = vperm.xlu0 %377, %v303
  %v379 = vpop.permute.xlu0 %378
  %380 = vset.pattern.permute.xlu0 0
  %381 = vperm.xlu0 %380, %v304
  %v382 = vpop.permute.xlu0 %381
  %383 = vset.pattern.permute.xlu0 0
  %384 = vperm.xlu0 %383, %v305
  %v385 = vpop.permute.xlu0 %384
  %386 = vset.pattern.permute.xlu0 0
  %387 = vperm.xlu0 %386, %v306
  %v388 = vpop.permute.xlu0 %387
  %389 = vset.pattern.permute.xlu0 0
  %390 = vperm.xlu0 %389, %v307
  %v391 = vpop.permute.xlu0 %390
  %392 = vset.pattern.permute.xlu0 0
  %393 = vperm.xlu0 %392, %v308
  %v394 = vpop.permute.xlu0 %393
  %395 = vset.pattern.permute.xlu0 0
  %396 = vperm.xlu0 %395, %v309
  %v397 = vpop.permute.xlu0 %396
  %398 = vset.pattern.permute.xlu0 0
  %399 = vperm.xlu0 %398, %v310
  %v400 = vpop.permute.xlu0 %399
  %401 = vset.pattern.permute.xlu0 0
  %402 = vperm.xlu0 %401, %v311
  %v403 = vpop.permute.xlu0 %402
  %404 = vset.pattern.permute.xlu0 0
  %405 = vperm.xlu0 %404, %v312
  %v406 = vpop.permute.xlu0 %405
  %407 = vset.pattern.permute.xlu0 0
  %408 = vperm.xlu0 %407, %v313
  %v409 = vpop.permute.xlu0 %408
  %vm410 = vcmp.eq.s32.totalorder %v316, 1
  %vm411 = vcmp.eq.s32.totalorder %v319, 1
  %vm412 = vcmp.eq.s32.totalorder %v322, 1
  %vm413 = vcmp.eq.s32.totalorder %v325, 1
  %vm414 = vcmp.eq.s32.totalorder %v328, 1
  %vm415 = vcmp.eq.s32.totalorder %v331, 1
  %vm416 = vcmp.eq.s32.totalorder %v334, 1
  %vm417 = vcmp.eq.s32.totalorder %v337, 1
  %vm418 = vcmp.eq.s32.totalorder %v340, 1
  %vm419 = vcmp.eq.s32.totalorder %v343, 1
  %vm420 = vcmp.eq.s32.totalorder %v346, 1
  %vm421 = vcmp.eq.s32.totalorder %v349, 1
  %vm422 = vcmp.eq.s32.totalorder %v352, 1
  %vm423 = vcmp.eq.s32.totalorder %v355, 1
  %vm424 = vcmp.eq.s32.totalorder %v358, 1
  %vm425 = vcmp.eq.s32.totalorder %v361, 1
  %vm426 = vcmp.eq.s32.totalorder %v364, 1
  %vm427 = vcmp.eq.s32.totalorder %v367, 1
  %vm428 = vcmp.eq.s32.totalorder %v370, 1
  %vm429 = vcmp.eq.s32.totalorder %v373, 1
  %vm430 = vcmp.eq.s32.totalorder %v376, 1
  %vm431 = vcmp.eq.s32.totalorder %v379, 1
  %vm432 = vcmp.eq.s32.totalorder %v382, 1
  %vm433 = vcmp.eq.s32.totalorder %v385, 1
  %vm434 = vcmp.eq.s32.totalorder %v388, 1
  %vm435 = vcmp.eq.s32.totalorder %v391, 1
  %vm436 = vcmp.eq.s32.totalorder %v394, 1
  %vm437 = vcmp.eq.s32.totalorder %v397, 1
  %vm438 = vcmp.eq.s32.totalorder %v400, 1
  %vm439 = vcmp.eq.s32.totalorder %v403, 1
  %vm440 = vcmp.eq.s32.totalorder %v406, 1
  %vm441 = vcmp.eq.s32.totalorder %v409, 1
  %v442 = vsel %vm410, %v154, 0.0
  %v443 = vsel %vm410, %v155, 0.0
  %v444 = vsel %vm410, %v156, 0.0
  %v445 = vsel %vm410, %v157, 0.0
  %v446 = vsel %vm411, %v158, 0.0
  %v447 = vsel %vm411, %v159, 0.0
  %v448 = vsel %vm411, %v160, 0.0
  %v449 = vsel %vm411, %v161, 0.0
  %v450 = vsel %vm412, %v162, 0.0
  %v451 = vsel %vm412, %v163, 0.0
  %v452 = vsel %vm412, %v164, 0.0
  %v453 = vsel %vm412, %v165, 0.0
  %v454 = vsel %vm413, %v166, 0.0
  %v455 = vsel %vm413, %v167, 0.0
  %v456 = vsel %vm413, %v168, 0.0
  %v457 = vsel %vm413, %v169, 0.0
  %v458 = vsel %vm414, %v170, 0.0
  %v459 = vsel %vm414, %v171, 0.0
  %v460 = vsel %vm414, %v172, 0.0
  %v461 = vsel %vm414, %v173, 0.0
  %v462 = vsel %vm415, %v174, 0.0
  %v463 = vsel %vm415, %v175, 0.0
  %v464 = vsel %vm415, %v176, 0.0
  %v465 = vsel %vm415, %v177, 0.0
  %v466 = vsel %vm416, %v178, 0.0
  %v467 = vsel %vm416, %v179, 0.0
  %v468 = vsel %vm416, %v180, 0.0
  %v469 = vsel %vm416, %v181, 0.0
  %v470 = vsel %vm417, %v182, 0.0
  %v471 = vsel %vm417, %v183, 0.0
  %v472 = vsel %vm417, %v184, 0.0
  %v473 = vsel %vm417, %v185, 0.0
  %v474 = vsel %vm418, %v186, 0.0
  %v475 = vsel %vm418, %v187, 0.0
  %v476 = vsel %vm418, %v188, 0.0
  %v477 = vsel %vm418, %v189, 0.0
  %v478 = vsel %vm419, %v190, 0.0
  %v479 = vsel %vm419, %v191, 0.0
  %v480 = vsel %vm419, %v192, 0.0
  %v481 = vsel %vm419, %v193, 0.0
  %v482 = vsel %vm420, %v194, 0.0
  %v483 = vsel %vm420, %v195, 0.0
  %v484 = vsel %vm420, %v196, 0.0
  %v485 = vsel %vm420, %v197, 0.0
  %v486 = vsel %vm421, %v198, 0.0
  %v487 = vsel %vm421, %v199, 0.0
  %v488 = vsel %vm421, %v200, 0.0
  %v489 = vsel %vm421, %v201, 0.0
  %v490 = vsel %vm422, %v202, 0.0
  %v491 = vsel %vm422, %v203, 0.0
  %v492 = vsel %vm422, %v204, 0.0
  %v493 = vsel %vm422, %v205, 0.0
  %v494 = vsel %vm423, %v206, 0.0
  %v495 = vsel %vm423, %v207, 0.0
  %v496 = vsel %vm423, %v208, 0.0
  %v497 = vsel %vm423, %v209, 0.0
  %v498 = vsel %vm424, %v210, 0.0
  %v499 = vsel %vm424, %v211, 0.0
  %v500 = vsel %vm424, %v212, 0.0
  %v501 = vsel %vm424, %v213, 0.0
  %v502 = vsel %vm425, %v214, 0.0
  %v503 = vsel %vm425, %v215, 0.0
  %v504 = vsel %vm425, %v216, 0.0
  %v505 = vsel %vm425, %v217, 0.0
  %v506 = vsel %vm426, %v218, 0.0
  %v507 = vsel %vm426, %v219, 0.0
  %v508 = vsel %vm426, %v220, 0.0
  %v509 = vsel %vm426, %v221, 0.0
  %v510 = vsel %vm427, %v222, 0.0
  %v511 = vsel %vm427, %v223, 0.0
  %v512 = vsel %vm427, %v224, 0.0
  %v513 = vsel %vm427, %v225, 0.0
  %v514 = vsel %vm428, %v226, 0.0
  %v515 = vsel %vm428, %v227, 0.0
  %v516 = vsel %vm428, %v228, 0.0
  %v517 = vsel %vm428, %v229, 0.0
  %v518 = vsel %vm429, %v230, 0.0
  %v519 = vsel %vm429, %v231, 0.0
  %v520 = vsel %vm429, %v232, 0.0
  %v521 = vsel %vm429, %v233, 0.0
  %v522 = vsel %vm430, %v234, 0.0
  %v523 = vsel %vm430, %v235, 0.0
  %v524 = vsel %vm430, %v236, 0.0
  %v525 = vsel %vm430, %v237, 0.0
  %v526 = vsel %vm431, %v238, 0.0
  %v527 = vsel %vm431, %v239, 0.0
  %v528 = vsel %vm431, %v240, 0.0
  %v529 = vsel %vm431, %v241, 0.0
  %v530 = vsel %vm432, %v242, 0.0
  %v531 = vsel %vm432, %v243, 0.0
  %v532 = vsel %vm432, %v244, 0.0
  %v533 = vsel %vm432, %v245, 0.0
  %v534 = vsel %vm433, %v246, 0.0
  %v535 = vsel %vm433, %v247, 0.0
  %v536 = vsel %vm433, %v248, 0.0
  %v537 = vsel %vm433, %v249, 0.0
  %v538 = vsel %vm434, %v250, 0.0
  %v539 = vsel %vm434, %v251, 0.0
  %v540 = vsel %vm434, %v252, 0.0
  %v541 = vsel %vm434, %v253, 0.0
  %v542 = vsel %vm435, %v254, 0.0
  %v543 = vsel %vm435, %v255, 0.0
  %v544 = vsel %vm435, %v256, 0.0
  %v545 = vsel %vm435, %v257, 0.0
  %v546 = vsel %vm436, %v258, 0.0
  %v547 = vsel %vm436, %v259, 0.0
  %v548 = vsel %vm436, %v260, 0.0
  %v549 = vsel %vm436, %v261, 0.0
  %v550 = vsel %vm437, %v262, 0.0
  %v551 = vsel %vm437, %v263, 0.0
  %v552 = vsel %vm437, %v264, 0.0
  %v553 = vsel %vm437, %v265, 0.0
  %v554 = vsel %vm438, %v266, 0.0
  %v555 = vsel %vm438, %v267, 0.0
  %v556 = vsel %vm438, %v268, 0.0
  %v557 = vsel %vm438, %v269, 0.0
  %v558 = vsel %vm439, %v270, 0.0
  %v559 = vsel %vm439, %v271, 0.0
  %v560 = vsel %vm439, %v272, 0.0
  %v561 = vsel %vm439, %v273, 0.0
  %v562 = vsel %vm440, %v274, 0.0
  %v563 = vsel %vm440, %v275, 0.0
  %v564 = vsel %vm440, %v276, 0.0
  %v565 = vsel %vm440, %v277, 0.0
  %v566 = vsel %vm441, %v278, 0.0
  %v567 = vsel %vm441, %v279, 0.0
  %v568 = vsel %vm441, %v280, 0.0
  %v569 = vsel %vm441, %v281, 0.0
  %v570 = vadd.f32 %v442, %v450
  %v571 = vadd.f32 %v570, %v458
  %v572 = vadd.f32 %v571, %v466
  %v573 = vadd.f32 %v572, %v474
  %v574 = vadd.f32 %v573, %v482
  %v575 = vadd.f32 %v574, %v490
  %v576 = vadd.f32 %v575, %v498
  %v577 = vadd.f32 %v576, %v506
  %v578 = vadd.f32 %v577, %v514
  %v579 = vadd.f32 %v578, %v522
  %v580 = vadd.f32 %v579, %v530
  %v581 = vadd.f32 %v580, %v538
  %v582 = vadd.f32 %v581, %v546
  %v583 = vadd.f32 %v582, %v554
  %v584 = vadd.f32 %v583, %v562
  %v585 = vadd.f32 %v443, %v451
  %v586 = vadd.f32 %v585, %v459
  %v587 = vadd.f32 %v586, %v467
  %v588 = vadd.f32 %v587, %v475
  %v589 = vadd.f32 %v588, %v483
  %v590 = vadd.f32 %v589, %v491
  %v591 = vadd.f32 %v590, %v499
  %v592 = vadd.f32 %v591, %v507
  %v593 = vadd.f32 %v592, %v515
  %v594 = vadd.f32 %v593, %v523
  %v595 = vadd.f32 %v594, %v531
  %v596 = vadd.f32 %v595, %v539
  %v597 = vadd.f32 %v596, %v547
  %v598 = vadd.f32 %v597, %v555
  %v599 = vadd.f32 %v598, %v563
  %v600 = vadd.f32 %v444, %v452
  %v601 = vadd.f32 %v600, %v460
  %v602 = vadd.f32 %v601, %v468
  %v603 = vadd.f32 %v602, %v476
  %v604 = vadd.f32 %v603, %v484
  %v605 = vadd.f32 %v604, %v492
  %v606 = vadd.f32 %v605, %v500
  %v607 = vadd.f32 %v606, %v508
  %v608 = vadd.f32 %v607, %v516
  %v609 = vadd.f32 %v608, %v524
  %v610 = vadd.f32 %v609, %v532
  %v611 = vadd.f32 %v610, %v540
  %v612 = vadd.f32 %v611, %v548
  %v613 = vadd.f32 %v612, %v556
  %v614 = vadd.f32 %v613, %v564
  %v615 = vadd.f32 %v445, %v453
  %v616 = vadd.f32 %v615, %v461
  %v617 = vadd.f32 %v616, %v469
  %v618 = vadd.f32 %v617, %v477
  %v619 = vadd.f32 %v618, %v485
  %v620 = vadd.f32 %v619, %v493
  %v621 = vadd.f32 %v620, %v501
  %v622 = vadd.f32 %v621, %v509
  %v623 = vadd.f32 %v622, %v517
  %v624 = vadd.f32 %v623, %v525
  %v625 = vadd.f32 %v624, %v533
  %v626 = vadd.f32 %v625, %v541
  %v627 = vadd.f32 %v626, %v549
  %v628 = vadd.f32 %v627, %v557
  %v629 = vadd.f32 %v628, %v565
  %v630 = vadd.f32 %v446, %v454
  %v631 = vadd.f32 %v630, %v462
  %v632 = vadd.f32 %v631, %v470
  %v633 = vadd.f32 %v632, %v478
  %v634 = vadd.f32 %v633, %v486
  %v635 = vadd.f32 %v634, %v494
  %v636 = vadd.f32 %v635, %v502
  %v637 = vadd.f32 %v636, %v510
  %v638 = vadd.f32 %v637, %v518
  %v639 = vadd.f32 %v638, %v526
  %v640 = vadd.f32 %v639, %v534
  %v641 = vadd.f32 %v640, %v542
  %v642 = vadd.f32 %v641, %v550
  %v643 = vadd.f32 %v642, %v558
  %v644 = vadd.f32 %v643, %v566
  %v645 = vadd.f32 %v447, %v455
  %v646 = vadd.f32 %v645, %v463
  %v647 = vadd.f32 %v646, %v471
  %v648 = vadd.f32 %v647, %v479
  %v649 = vadd.f32 %v648, %v487
  %v650 = vadd.f32 %v649, %v495
  %v651 = vadd.f32 %v650, %v503
  %v652 = vadd.f32 %v651, %v511
  %v653 = vadd.f32 %v652, %v519
  %v654 = vadd.f32 %v653, %v527
  %v655 = vadd.f32 %v654, %v535
  %v656 = vadd.f32 %v655, %v543
  %v657 = vadd.f32 %v656, %v551
  %v658 = vadd.f32 %v657, %v559
  %v659 = vadd.f32 %v658, %v567
  %v660 = vadd.f32 %v448, %v456
  %v661 = vadd.f32 %v660, %v464
  %v662 = vadd.f32 %v661, %v472
  %v663 = vadd.f32 %v662, %v480
  %v664 = vadd.f32 %v663, %v488
  %v665 = vadd.f32 %v664, %v496
  %v666 = vadd.f32 %v665, %v504
  %v667 = vadd.f32 %v666, %v512
  %v668 = vadd.f32 %v667, %v520
  %v669 = vadd.f32 %v668, %v528
  %v670 = vadd.f32 %v669, %v536
  %v671 = vadd.f32 %v670, %v544
  %v672 = vadd.f32 %v671, %v552
  %v673 = vadd.f32 %v672, %v560
  %v674 = vadd.f32 %v673, %v568
  %v675 = vadd.f32 %v449, %v457
  %v676 = vadd.f32 %v675, %v465
  %v677 = vadd.f32 %v676, %v473
  %v678 = vadd.f32 %v677, %v481
  %v679 = vadd.f32 %v678, %v489
  %v680 = vadd.f32 %v679, %v497
  %v681 = vadd.f32 %v680, %v505
  %v682 = vadd.f32 %v681, %v513
  %v683 = vadd.f32 %v682, %v521
  %v684 = vadd.f32 %v683, %v529
  %v685 = vadd.f32 %v684, %v537
  %v686 = vadd.f32 %v685, %v545
  %v687 = vadd.f32 %v686, %v553
  %v688 = vadd.f32 %v687, %v561
  %v689 = vadd.f32 %v688, %v569
  %v690 = vadd.f32 %v82, %v584
  %v691 = vadd.f32 %v83, %v599
  %v692 = vadd.f32 %v84, %v614
  %v693 = vadd.f32 %v85, %v629
  %v694 = vadd.f32 %v86, %v644
  %v695 = vadd.f32 %v87, %v659
  %v696 = vadd.f32 %v88, %v674
  %v697 = vadd.f32 %v89, %v689
  %698 = vst [vmem:[#allocation2] sm:$0xff] %v690
  %699 = vst [vmem:[#allocation2 + $0x8] sm:$0xff] %v691
  %700 = vst [vmem:[#allocation2 + $0x10] sm:$0xff] %v692
  %701 = vst [vmem:[#allocation2 + $0x18] sm:$0xff] %v693
  %702 = vst [vmem:[#allocation2 + $0x20] sm:$0xff] %v694
  %703 = vst [vmem:[#allocation2 + $0x28] sm:$0xff] %v695
  %704 = vst [vmem:[#allocation2 + $0x30] sm:$0xff] %v696
  %705 = vst [vmem:[#allocation2 + $0x38] sm:$0xff] %v697
  // Predicated region
  $region22: #{encoder_forward.7} parent=0 // pred_check
    %p706 = pneg %p17
  $region23: #{encoder_forward.7} parent=0 // pred_check_branch
    %708 = sbr.rel (%p706) target = $region25
  $region24: #{encoder_forward.7} parent=0 // pred_region
    %v709 = vld [vmem:[#allocation2] sm:$0xff]
    %v710 = vld [vmem:[#allocation2 + $0x8] sm:$0xff]
    %v711 = vld [vmem:[#allocation2 + $0x10] sm:$0xff]
    %v712 = vld [vmem:[#allocation2 + $0x18] sm:$0xff]
    %v713 = vld [vmem:[#allocation2 + $0x20] sm:$0xff]
    %v714 = vld [vmem:[#allocation2 + $0x28] sm:$0xff]
    %v715 = vld [vmem:[#allocation2 + $0x30] sm:$0xff]
    %v716 = vld [vmem:[#allocation2 + $0x38] sm:$0xff]
    %v717 = vld [vmem:[%s1] sm:$0xff]
    %v718 = vld [vmem:[%s1 + $0x8] sm:$0xff]
    %720 = vset.pattern.permute.xlu0 0
    %721 = vperm.xlu0 %720, %v717
    %v722 = vpop.permute.xlu0 %721
    %725 = vset.pattern.permute.xlu0 0
    %726 = vperm.xlu0 %725, %v718
    %v727 = vpop.permute.xlu0 %726
    %v729 = vrcp.pop %v722
    %v730 = vmul.f32 %v722, %v729
    %v731 = vsub.f32 1.0, %v730
    %v732 = vmul.f32 %v729, %v731
    %v733 = vadd.f32 %v729, %v732
    %vm734 = vweird.f32 %v722
    %vm735 = vweird.f32 %v729
    %vm736 = vmor %vm734, %vm735
    %v737 = vsel %vm736, %v729, %v733
    %v738 = vand.u32 2147483647, %v722
    %vm739 = vcmp.eq.f32.partialorder %v738, 8.507059e+37
    %v740 = vand.u32 %v722, 2147483648
    %v741 = vor.u32 1.1754944e-38, %v740
    %v742 = vsel %vm739, %v741, %v737
    %v743 = vmul.f32 %v709, %v742
    %v744 = vmul.f32 %v710, %v742
    %v745 = vmul.f32 %v711, %v742
    %v746 = vmul.f32 %v712, %v742
    %v747 = vrcp.pop %v727
    %v748 = vmul.f32 %v727, %v747
    %v749 = vsub.f32 1.0, %v748
    %v750 = vmul.f32 %v747, %v749
    %v751 = vadd.f32 %v747, %v750
    %vm752 = vweird.f32 %v727
    %vm753 = vweird.f32 %v747
    %vm754 = vmor %vm752, %vm753
    %v755 = vsel %vm754, %v747, %v751
    %v756 = vand.u32 2147483647, %v727
    %vm757 = vcmp.eq.f32.partialorder %v756, 8.507059e+37
    %v758 = vand.u32 %v727, 2147483648
    %v759 = vor.u32 1.1754944e-38, %v758
    %v760 = vsel %vm757, %v759, %v755
    %v761 = vmul.f32 %v713, %v760
    %v762 = vmul.f32 %v714, %v760
    %v763 = vmul.f32 %v715, %v760
    %v764 = vmul.f32 %v716, %v760
    %v765 = vpack.c.bf16 %v761, %v743
    %v766 = vpack.c.bf16 %v762, %v744
    %v767 = vpack.c.bf16 %v763, %v745
    %v768 = vpack.c.bf16 %v764, %v746
    %v769 = vld [vmem:[%s2] sm:$0xf]
    %v770 = vld [vmem:[%s2 + $0x4] sm:$0xf]
    %v771 = vld [vmem:[%s2 + $0x8] sm:$0xf]
    %v772 = vld [vmem:[%s2 + $0xc] sm:$0xf]
    %v773 = vld [vmem:[%s2 + $0x10] sm:$0xf]
    %v774 = vld [vmem:[%s2 + $0x14] sm:$0xf]
    %v775 = vld [vmem:[%s2 + $0x18] sm:$0xf]
    %v776 = vld [vmem:[%s2 + $0x1c] sm:$0xf]
    %v777 = vld [vmem:[%s2 + $0x20] sm:$0xf]
    %v778 = vld [vmem:[%s2 + $0x24] sm:$0xf]
    %v779 = vld [vmem:[%s2 + $0x28] sm:$0xf]
    %v780 = vld [vmem:[%s2 + $0x2c] sm:$0xf]
    %v781 = vld [vmem:[%s2 + $0x30] sm:$0xf]
    %v782 = vld [vmem:[%s2 + $0x34] sm:$0xf]
    %v783 = vld [vmem:[%s2 + $0x38] sm:$0xf]
    %v784 = vld [vmem:[%s2 + $0x3c] sm:$0xf]
    %v785 = vld [vmem:[%s2 + $0x40] sm:$0xf]
    %v786 = vld [vmem:[%s2 + $0x44] sm:$0xf]
    %v787 = vld [vmem:[%s2 + $0x48] sm:$0xf]
    %v788 = vld [vmem:[%s2 + $0x4c] sm:$0xf]
    %v789 = vld [vmem:[%s2 + $0x50] sm:$0xf]
    %v790 = vld [vmem:[%s2 + $0x54] sm:$0xf]
    %v791 = vld [vmem:[%s2 + $0x58] sm:$0xf]
    %v792 = vld [vmem:[%s2 + $0x5c] sm:$0xf]
    %v793 = vld [vmem:[%s2 + $0x60] sm:$0xf]
    %v794 = vld [vmem:[%s2 + $0x64] sm:$0xf]
    %v795 = vld [vmem:[%s2 + $0x68] sm:$0xf]
    %v796 = vld [vmem:[%s2 + $0x6c] sm:$0xf]
    %v797 = vld [vmem:[%s2 + $0x70] sm:$0xf]
    %v798 = vld [vmem:[%s2 + $0x74] sm:$0xf]
    %v799 = vld [vmem:[%s2 + $0x78] sm:$0xf]
    %v800 = vld [vmem:[%s2 + $0x7c] sm:$0xf]
    %v801 = vld [vmem:[%s2 + $0x80] sm:$0xf]
    %v802 = vld [vmem:[%s2 + $0x84] sm:$0xf]
    %v803 = vld [vmem:[%s2 + $0x88] sm:$0xf]
    %v804 = vld [vmem:[%s2 + $0x8c] sm:$0xf]
    %v805 = vld [vmem:[%s2 + $0x90] sm:$0xf]
    %v806 = vld [vmem:[%s2 + $0x94] sm:$0xf]
    %v807 = vld [vmem:[%s2 + $0x98] sm:$0xf]
    %v808 = vld [vmem:[%s2 + $0x9c] sm:$0xf]
    %v809 = vld [vmem:[%s2 + $0xa0] sm:$0xf]
    %v810 = vld [vmem:[%s2 + $0xa4] sm:$0xf]
    %v811 = vld [vmem:[%s2 + $0xa8] sm:$0xf]
    %v812 = vld [vmem:[%s2 + $0xac] sm:$0xf]
    %v813 = vld [vmem:[%s2 + $0xb0] sm:$0xf]
    %v814 = vld [vmem:[%s2 + $0xb4] sm:$0xf]
    %v815 = vld [vmem:[%s2 + $0xb8] sm:$0xf]
    %v816 = vld [vmem:[%s2 + $0xbc] sm:$0xf]
    %v817 = vld [vmem:[%s2 + $0xc0] sm:$0xf]
    %v818 = vld [vmem:[%s2 + $0xc4] sm:$0xf]
    %v819 = vld [vmem:[%s2 + $0xc8] sm:$0xf]
    %v820 = vld [vmem:[%s2 + $0xcc] sm:$0xf]
    %v821 = vld [vmem:[%s2 + $0xd0] sm:$0xf]
    %v822 = vld [vmem:[%s2 + $0xd4] sm:$0xf]
    %v823 = vld [vmem:[%s2 + $0xd8] sm:$0xf]
    %v824 = vld [vmem:[%s2 + $0xdc] sm:$0xf]
    %v825 = vld [vmem:[%s2 + $0xe0] sm:$0xf]
    %v826 = vld [vmem:[%s2 + $0xe4] sm:$0xf]
    %v827 = vld [vmem:[%s2 + $0xe8] sm:$0xf]
    %v828 = vld [vmem:[%s2 + $0xec] sm:$0xf]
    %v829 = vld [vmem:[%s2 + $0xf0] sm:$0xf]
    %v830 = vld [vmem:[%s2 + $0xf4] sm:$0xf]
    %v831 = vld [vmem:[%s2 + $0xf8] sm:$0xf]
    %v832 = vld [vmem:[%s2 + $0xfc] sm:$0xf]
    %v833 = vld [vmem:[%s3] sm:$0x1]
    %v835 = vperm.slane %v833, 0
    %v901 = vunpack.c.l.b16 %v769
    %v902 = vunpack.c.l.b16 %v770
    %v903 = vunpack.c.l.b16 %v771
    %v904 = vunpack.c.l.b16 %v772
    %v905 = vunpack.c.l.b16 %v773
    %v906 = vunpack.c.l.b16 %v774
    %v907 = vunpack.c.l.b16 %v775
    %v908 = vunpack.c.l.b16 %v776
    %v909 = vunpack.c.l.b16 %v777
    %v910 = vunpack.c.l.b16 %v778
    %v911 = vunpack.c.l.b16 %v779
    %v912 = vunpack.c.l.b16 %v780
    %v913 = vunpack.c.l.b16 %v781
    %v914 = vunpack.c.l.b16 %v782
    %v915 = vunpack.c.l.b16 %v783
    %v916 = vunpack.c.l.b16 %v784
    %v917 = vunpack.c.l.b16 %v785
    %v918 = vunpack.c.l.b16 %v786
    %v919 = vunpack.c.l.b16 %v787
    %v920 = vunpack.c.l.b16 %v788
    %v921 = vunpack.c.l.b16 %v789
    %v922 = vunpack.c.l.b16 %v790
    %v923 = vunpack.c.l.b16 %v791
    %v924 = vunpack.c.l.b16 %v792
    %v925 = vunpack.c.l.b16 %v793
    %v926 = vunpack.c.l.b16 %v794
    %v927 = vunpack.c.l.b16 %v795
    %v928 = vunpack.c.l.b16 %v796
    %v929 = vunpack.c.l.b16 %v797
    %v930 = vunpack.c.l.b16 %v798
    %v931 = vunpack.c.l.b16 %v799
    %v932 = vunpack.c.l.b16 %v800
    %v933 = vunpack.c.l.b16 %v801
    %v934 = vunpack.c.l.b16 %v802
    %v935 = vunpack.c.l.b16 %v803
    %v936 = vunpack.c.l.b16 %v804
    %v937 = vunpack.c.l.b16 %v805
    %v938 = vunpack.c.l.b16 %v806
    %v939 = vunpack.c.l.b16 %v807
    %v940 = vunpack.c.l.b16 %v808
    %v941 = vunpack.c.l.b16 %v809
    %v942 = vunpack.c.l.b16 %v810
    %v943 = vunpack.c.l.b16 %v811
    %v944 = vunpack.c.l.b16 %v812
    %v945 = vunpack.c.l.b16 %v813
    %v946 = vunpack.c.l.b16 %v814
    %v947 = vunpack.c.l.b16 %v815
    %v948 = vunpack.c.l.b16 %v816
    %v949 = vunpack.c.l.b16 %v817
    %v950 = vunpack.c.l.b16 %v818
    %v951 = vunpack.c.l.b16 %v819
    %v952 = vunpack.c.l.b16 %v820
    %v953 = vunpack.c.l.b16 %v821
    %v954 = vunpack.c.l.b16 %v822
    %v955 = vunpack.c.l.b16 %v823
    %v956 = vunpack.c.l.b16 %v824
    %v957 = vunpack.c.l.b16 %v825
    %v958 = vunpack.c.l.b16 %v826
    %v959 = vunpack.c.l.b16 %v827
    %v960 = vunpack.c.l.b16 %v828
    %v961 = vunpack.c.l.b16 %v829
    %v962 = vunpack.c.l.b16 %v830
    %v963 = vunpack.c.l.b16 %v831
    %v964 = vunpack.c.l.b16 %v832
    %v965 = vpack.c.b16 %v902, %v901
    %v966 = vpack.c.b16 %v904, %v903
    %v967 = vpack.c.b16 %v906, %v905
    %v968 = vpack.c.b16 %v908, %v907
    %v969 = vpack.c.b16 %v910, %v909
    %v970 = vpack.c.b16 %v912, %v911
    %v971 = vpack.c.b16 %v914, %v913
    %v972 = vpack.c.b16 %v916, %v915
    %v973 = vpack.c.b16 %v918, %v917
    %v974 = vpack.c.b16 %v920, %v919
    %v975 = vpack.c.b16 %v922, %v921
    %v976 = vpack.c.b16 %v924, %v923
    %v977 = vpack.c.b16 %v926, %v925
    %v978 = vpack.c.b16 %v928, %v927
    %v979 = vpack.c.b16 %v930, %v929
    %v980 = vpack.c.b16 %v932, %v931
    %v981 = vpack.c.b16 %v934, %v933
    %v982 = vpack.c.b16 %v936, %v935
    %v983 = vpack.c.b16 %v938, %v937
    %v984 = vpack.c.b16 %v940, %v939
    %v985 = vpack.c.b16 %v942, %v941
    %v986 = vpack.c.b16 %v944, %v943
    %v987 = vpack.c.b16 %v946, %v945
    %v988 = vpack.c.b16 %v948, %v947
    %v989 = vpack.c.b16 %v950, %v949
    %v990 = vpack.c.b16 %v952, %v951
    %v991 = vpack.c.b16 %v954, %v953
    %v992 = vpack.c.b16 %v956, %v955
    %v993 = vpack.c.b16 %v958, %v957
    %v994 = vpack.c.b16 %v960, %v959
    %v995 = vpack.c.b16 %v962, %v961
    %v996 = vpack.c.b16 %v964, %v963
    %1029 = vmatpush.bf16.msra.mxu0 %v972
    %1030 = vmatpush.bf16.msra.mxu0 %v971
    %1031 = vmatpush.bf16.msra.mxu0 %v970
    %1032 = vmatpush.bf16.msra.mxu0 %v969
    %1033 = vmatpush.bf16.msra.mxu0 %v968
    %1034 = vmatpush.bf16.msra.mxu0 %v967
    %1035 = vmatpush.bf16.msra.mxu0 %v966
    %1036 = vmatpush.bf16.msra.mxu0 %v965
    %1037 = vmatmul.bf16.gmra.mxu0 %v765
    %v1038 = vpop.f32.mrf.mxu0
    %v1039 = vadd.f32 %v835, %v1038
    %v1040 = vpop.f32.mrf.mxu0
    %v1041 = vadd.f32 %v835, %v1040
    %1042 = vdwg.mxu0
    %1043 = vmatpush.bf16.msra.mxu0 %v980
    %1044 = vmatpush.bf16.msra.mxu0 %v979
    %1045 = vmatpush.bf16.msra.mxu0 %v978
    %1046 = vmatpush.bf16.msra.mxu0 %v977
    %1047 = vmatpush.bf16.msra.mxu0 %v976
    %1048 = vmatpush.bf16.msra.mxu0 %v975
    %1049 = vmatpush.bf16.msra.mxu0 %v974
    %1050 = vmatpush.bf16.msra.mxu0 %v973
    %1051 = vmatmul.bf16.gmra.mxu0 %v766
    %v1052 = vpop.f32.mrf.mxu0
    %v1053 = vadd.f32 %v1039, %v1052
    %v1054 = vpop.f32.mrf.mxu0
    %v1055 = vadd.f32 %v1041, %v1054
    %1056 = vdwg.mxu0
    %1057 = vmatpush.bf16.msra.mxu0 %v988
    %1058 = vmatpush.bf16.msra.mxu0 %v987
    %1059 = vmatpush.bf16.msra.mxu0 %v986
    %1060 = vmatpush.bf16.msra.mxu0 %v985
    %1061 = vmatpush.bf16.msra.mxu0 %v984
    %1062 = vmatpush.bf16.msra.mxu0 %v983
    %1063 = vmatpush.bf16.msra.mxu0 %v982
    %1064 = vmatpush.bf16.msra.mxu0 %v981
    %1065 = vmatmul.bf16.gmra.mxu0 %v767
    %v1066 = vpop.f32.mrf.mxu0
    %v1067 = vadd.f32 %v1053, %v1066
    %v1068 = vpop.f32.mrf.mxu0
    %v1069 = vadd.f32 %v1055, %v1068
    %1070 = vdwg.mxu0
    %1071 = vmatpush.bf16.msra.mxu0 %v996
    %1072 = vmatpush.bf16.msra.mxu0 %v995
    %1073 = vmatpush.bf16.msra.mxu0 %v994
    %1074 = vmatpush.bf16.msra.mxu0 %v993
    %1075 = vmatpush.bf16.msra.mxu0 %v992
    %1076 = vmatpush.bf16.msra.mxu0 %v991
    %1077 = vmatpush.bf16.msra.mxu0 %v990
    %1078 = vmatpush.bf16.msra.mxu0 %v989
    %1079 = vmatmul.bf16.gmra.mxu0 %v768
    %v1080 = vpop.f32.mrf.mxu0
    %v1081 = vadd.f32 %v1067, %v1080
    %v1082 = vpop.f32.mrf.mxu0
    %v1083 = vadd.f32 %v1069, %v1082
    %1084 = vdwg.mxu0
    %vm1085 = vcmask 261120
    %1086 = vst.msk [vmem:[%s4] sm:$0xff] %vm1085, %v1081
    %1087 = vst.msk [vmem:[%s4 + $0x8] sm:$0xff] %vm1085, %v1083
  $region25: #{encoder_forward.7} parent=0 // pred_fallthru
    _
  // Predicated region
  $region26: #{encoder_forward.7} parent=0 // pred_check
    _
  $region27: #{encoder_forward.7} parent=0 // pred_check_branch
    %1089 = sbr.rel (0) target = $region29
  $region28: #{encoder_forward.7} parent=0 // pred_region
    _
  $region29: #{encoder_forward.7} parent=0 // pred_fallthru
    _
  // Predicated region
  $region30: #{encoder_forward.7} parent=0 // pred_check
    _
  $region31: #{encoder_forward.7} parent=0 // pred_check_branch
    %1091 = sbr.rel (0) target = $region33
  $region32: #{encoder_forward.7} parent=0 // pred_region
    _
  $region33: #{encoder_forward.7} parent=0 // pred_fallthru
    _

// kernel: encoder_forward.5
$region0: #{encoder_forward.5}
  #allocation0 [shape = 'u32[]', space=smem, size = 0x4, offset = 0x4, fixed_abs, tag = 'smem constant byte address 0x4 - core index']
  #allocation1 [shape = 'u32[72,128]{1,0:T(1,128)}', space=vmem, size = 0x9000, scoped, tag = 'internal scratch']
  #allocation2 [shape = 'bf16[128,1024]{1,0:T(8,128)(2,1)}', space=vmem, size = 0x40000, scoped, tag = 'scratch operand']
  #allocation3 [shape = 'bf16[16,256]{1,0:T(8,128)(2,1)}', space=vmem, size = 0x2000, scoped, tag = 'scratch operand']
  #allocation4 [shape = 'f32[16,256]{1,0:T(8,128)}', space=vmem, size = 0x4000, scoped, tag = 'scratch operand']
  %s0 = inlined_call_operand.vmem [shape: bf16[256,512], index: 0, kind: input, shape index: {}]
  %s1 = inlined_call_operand.vmem [shape: s32[16,1], index: 1, kind: input, shape index: {}]
  %s2 = inlined_call_operand.vmem [shape: bf16[2,512,1024], index: 2, kind: input, shape index: {}]
  %s3 = inlined_call_operand.vmem [shape: bf16[2,256,1024], index: 3, kind: input, shape index: {}]
  %s4 = inlined_call_operand.vmem [shape: f32[2,1,1024], index: 4, kind: input, shape index: {}]
  %s5 = inlined_call_operand.vmem [shape: bf16[256,512], index: 5, kind: output, shape index: {}]
  %s6 = sld [smem:[#allocation0]]
  $region98: #{encoder_forward.5} parent=0
    _
  %s8 = ssub.s32 1, %s6
  %s9 = scalar_select 0, %s8, %s6
  $region1: #{encoder_forward.5} parent=0
    #allocation5 [shape = 'u8[131072]{0}', space=vmem, size = 0x20000, scoped, tag = 'output window, operand 0']
    loop: start=0, step=1, limit=6
    $region2: #{encoder_forward.5} parent=1 // loop_pre_header
      _
    $region3: #{encoder_forward.5} parent=1 // loop_header
      %s11 = sphi 0, %s15
      %p12 = scmp.ge.s32.totalorder %s11, 6
      %s18 = sphi 0, %s30
      %s19 = sphi 0, %s26
      %s20 = sphi 0, %s18
      %s21 = sphi 0, %s19
      %s22 = sphi 0, %s20
      %s23 = sphi 0, %s21
      %s41 = sphi 0, %s43
      %s44 = sphi 0, %s41
      %s45 = sphi 0, %s44
      %s61 = sphi 0, %s45
      %s65 = sphi 0, %s65
      %s67 = sphi 0, %s65
      %s68 = sphi 0, %s67
      %s82 = sphi 0, %s68
      %s88 = sphi 0, %s90
      %s91 = sphi 0, %s88
      %s92 = sphi 0, %s91
      %s108 = sphi 0, %s92
      %s114 = sphi 0, %s116
      %s117 = sphi 0, %s114
      %s118 = sphi 0, %s117
      %s134 = sphi 0, %s118
      %s140 = sphi 0, %s142
      %s143 = sphi 0, %s140
      %s144 = sphi 0, %s143
      %s160 = sphi 0, %s144
      %s176 = sphi 0, %s178
      %s179 = sphi 0, %s176
      %s180 = sphi 0, %s179
      %s196 = sphi 0, %s180
    $region4: #{encoder_forward.5} parent=1 // loop_header_branch
      %14 = sbr.rel (%p12) target = $region8
    $region5: #{encoder_forward.5} parent=1 // loop_body
      %s16 = ssub.s32 %s11, 1
      %s17 = ssub.s32 %s11, 2
      %s24 = sadd.s32 1, %s19
      %p25 = scmp.ge.s32.totalorder %s24, 2
      %s26 = scalar_select %p25, 0, %s24
      %s27 = sadd.s32 1, %s18
      %s28 = scalar_select %p25, %s27, %s18
      %p29 = scmp.ge.s32.totalorder %s28, 2
      %s30 = scalar_select %p29, 0, %s28
      %s31 = smul.u32 %s19, 2
      %s32 = ssub.s32 1, %s31
      %s33 = smul.u32 %s18, %s32
      %s34 = sadd.s32 %s19, %s33
      %s35 = smul.u32 %s26, 2
      %s36 = ssub.s32 1, %s35
      %s37 = smul.u32 %s30, %s36
      %s38 = sadd.s32 %s26, %s37
      %s39 = ssub.s32 %s34, %s38
      %p40 = scmp.eq.s32.totalorder %s39, 0
      %s42 = sadd.s32 %s41, 1
      %s43 = scalar_select %p40, %s41, %s42
      %p46 = pneg %p40
      %p47 = scmp.eq.s32.totalorder %s11, 3
      %p48 = por %p46, %p47
      %p49 = scmp.ne.s32.totalorder %s41, %s44
      %p50 = scmp.eq.s32.totalorder %s11, 0
      %p51 = por %p49, %p50
      %p52 = scmp.ne.s32.totalorder %s41, %s44
      %p53 = scmp.eq.s32.totalorder %s16, 3
      %p54 = por %p52, %p53
      %p55 = scmp.ne.s32.totalorder %s44, %s45
      %p56 = scmp.eq.s32.totalorder %s16, 0
      %p57 = por %p55, %p56
      %p58 = scmp.ne.s32.totalorder %s44, %s45
      %p59 = scmp.eq.s32.totalorder %s17, 3
      %p60 = por %p58, %p59
      %p62 = scmp.ne.s32.totalorder %s45, %s61
      %p63 = scmp.eq.s32.totalorder %s17, 0
      %p64 = por %p62, %p63
      %s66 = sadd.s32 %s65, 1
      %p69 = scmp.eq.s32.totalorder %s11, 3
      %p70 = scmp.ne.s32.totalorder %s65, %s67
      %p71 = scmp.eq.s32.totalorder %s11, 0
      %p72 = por %p70, %p71
      %p73 = scmp.ne.s32.totalorder %s65, %s67
      %p74 = scmp.eq.s32.totalorder %s16, 3
      %p75 = por %p73, %p74
      %p76 = scmp.ne.s32.totalorder %s67, %s68
      %p77 = scmp.eq.s32.totalorder %s16, 0
      %p78 = por %p76, %p77
      %p79 = scmp.ne.s32.totalorder %s67, %s68
      %p80 = scmp.eq.s32.totalorder %s17, 3
      %p81 = por %p79, %p80
      %p83 = scmp.ne.s32.totalorder %s68, %s82
      %p84 = scmp.eq.s32.totalorder %s17, 0
      %p85 = por %p83, %p84
      %s86 = ssub.s32 %s18, %s30
      %p87 = scmp.eq.s32.totalorder %s86, 0
      %s89 = sadd.s32 %s88, 1
      %s90 = scalar_select %p87, %s88, %s89
      %p93 = pneg %p87
      %p94 = scmp.eq.s32.totalorder %s11, 3
      %p95 = por %p93, %p94
      %p96 = scmp.ne.s32.totalorder %s88, %s91
      %p97 = scmp.eq.s32.totalorder %s11, 0
      %p98 = por %p96, %p97
      %p99 = scmp.ne.s32.totalorder %s88, %s91
      %p100 = scmp.eq.s32.totalorder %s16, 3
      %p101 = por %p99, %p100
      %p102 = scmp.ne.s32.totalorder %s91, %s92
      %p103 = scmp.eq.s32.totalorder %s16, 0
      %p104 = por %p102, %p103
      %p105 = scmp.ne.s32.totalorder %s91, %s92
      %p106 = scmp.eq.s32.totalorder %s17, 3
      %p107 = por %p105, %p106
      %p109 = scmp.ne.s32.totalorder %s92, %s108
      %p110 = scmp.eq.s32.totalorder %s17, 0
      %p111 = por %p109, %p110
      %s112 = ssub.s32 %s18, %s30
      %p113 = scmp.eq.s32.totalorder %s112, 0
      %s115 = sadd.s32 %s114, 1
      %s116 = scalar_select %p113, %s114, %s115
      %p119 = pneg %p113
      %p120 = scmp.eq.s32.totalorder %s11, 3
      %p121 = por %p119, %p120
      %p122 = scmp.ne.s32.totalorder %s114, %s117
      %p123 = scmp.eq.s32.totalorder %s11, 0
      %p124 = por %p122, %p123
      %p125 = scmp.ne.s32.totalorder %s114, %s117
      %p126 = scmp.eq.s32.totalorder %s16, 3
      %p127 = por %p125, %p126
      %p128 = scmp.ne.s32.totalorder %s117, %s118
      %p129 = scmp.eq.s32.totalorder %s16, 0
      %p130 = por %p128, %p129
      %p131 = scmp.ne.s32.totalorder %s117, %s118
      %p132 = scmp.eq.s32.totalorder %s17, 3
      %p133 = por %p131, %p132
      %p135 = scmp.ne.s32.totalorder %s118, %s134
      %p136 = scmp.eq.s32.totalorder %s17, 0
      %p137 = por %p135, %p136
      %s138 = ssub.s32 %s18, %s30
      %p139 = scmp.eq.s32.totalorder %s138, 0
      %s141 = sadd.s32 %s140, 1
      %s142 = scalar_select %p139, %s140, %s141
      %p145 = pneg %p139
      %p146 = scmp.eq.s32.totalorder %s11, 3
      %p147 = por %p145, %p146
      %p148 = scmp.ne.s32.totalorder %s140, %s143
      %p149 = scmp.eq.s32.totalorder %s11, 0
      %p150 = por %p148, %p149
      %p151 = scmp.ne.s32.totalorder %s140, %s143
      %p152 = scmp.eq.s32.totalorder %s16, 3
      %p153 = por %p151, %p152
      %p154 = scmp.ne.s32.totalorder %s143, %s144
      %p155 = scmp.eq.s32.totalorder %s16, 0
      %p156 = por %p154, %p155
      %p157 = scmp.ne.s32.totalorder %s143, %s144
      %p158 = scmp.eq.s32.totalorder %s17, 3
      %p159 = por %p157, %p158
      %p161 = scmp.ne.s32.totalorder %s144, %s160
      %p162 = scmp.eq.s32.totalorder %s17, 0
      %p163 = por %p161, %p162
      %s164 = smul.u32 %s19, 2
      %s165 = ssub.s32 1, %s164
      %s166 = smul.u32 %s18, %s165
      %s167 = sadd.s32 %s19, %s166
      %s168 = smul.u32 %s26, 2
      %s169 = ssub.s32 1, %s168
      %s170 = smul.u32 %s30, %s169
      %s171 = sadd.s32 %s26, %s170
      %s172 = ssub.s32 %s167, %s171
      %s173 = ssub.s32 %s18, %s30
      %s174 = sor.u32 %s172, %s173
      %p175 = scmp.eq.s32.totalorder %s174, 0
      %s177 = sadd.s32 %s176, 1
      %s178 = scalar_select %p175, %s176, %s177
      %p181 = pneg %p175
      %p182 = scmp.eq.s32.totalorder %s11, 3
      %p183 = por %p181, %p182
      %p184 = scmp.ne.s32.totalorder %s176, %s179
      %p185 = scmp.eq.s32.totalorder %s11, 0
      %p186 = por %p184, %p185
      %p187 = scmp.ne.s32.totalorder %s176, %s179
      %p188 = scmp.eq.s32.totalorder %s16, 3
      %p189 = por %p187, %p188
      %p190 = scmp.ne.s32.totalorder %s179, %s180
      %p191 = scmp.eq.s32.totalorder %s16, 0
      %p192 = por %p190, %p191
      %p193 = scmp.ne.s32.totalorder %s179, %s180
      %p194 = scmp.eq.s32.totalorder %s17, 3
      %p195 = por %p193, %p194
      %p197 = scmp.ne.s32.totalorder %s180, %s196
      %p198 = scmp.eq.s32.totalorder %s17, 0
      %p199 = por %p197, %p198
      %p200 = scmp.le.s32.totalorder 1, %s11
      %p201 = scmp.lt.s32.totalorder %s11, 5
      %p202 = pnand %p200, %p201
      %p203 = pneg %p202
      // Predicated region
      $region9: #{encoder_forward.5} parent=5 // pred_check
        _
      $region10: #{encoder_forward.5} parent=5 // pred_check_branch
        %205 = sbr.rel (%p202) target = $region12
      $region11: #{encoder_forward.5} parent=5 // pred_region
        %s206 = ssub.s32 %s11, 1
        // Predicated region
        $region13: #{encoder_forward.5} parent=11 // pred_check
          %p207 = pneg %p78
        $region14: #{encoder_forward.5} parent=11 // pred_check_branch
          %209 = sbr.rel (%p207) target = $region16
        $region15: #{encoder_forward.5} parent=11 // pred_region
          _
        $region16: #{encoder_forward.5} parent=11 // pred_fallthru
          _
      $region12: #{encoder_forward.5} parent=5 // pred_fallthru
        _
      %p210 = scmp.lt.s32.totalorder %s11, 4
      // Predicated region
      $region17: #{encoder_forward.5} parent=5 // pred_check
        %p211 = pneg %p210
      $region18: #{encoder_forward.5} parent=5 // pred_check_branch
        %213 = sbr.rel (%p211) target = $region20
      $region19: #{encoder_forward.5} parent=5 // pred_region
        // Predicated region
        $region21: #{encoder_forward.5} parent=19 // pred_check
          %p214 = pneg %p51
        $region22: #{encoder_forward.5} parent=19 // pred_check_branch
          %216 = sbr.rel (%p214) target = $region24
        $region23: #{encoder_forward.5} parent=19 // pred_region
          %s217 = smul.u32 %s19, 2
          %s218 = ssub.s32 1, %s217
          %s219 = smul.u32 %s18, %s218
          %s220 = sadd.s32 %s19, %s219
          %s221 = smul.u32 16, %s220
          %p222 = scmp.lt.s32.totalorder %s221, 31
          %s223 = scalar_select %p222, %s221, 31
          %s224 = smul.addr %s223, 4
          %s225 = smul.addr %s224, 4
          %s226 = scalar_lea.vmem %s0, %s225
          %s227 = smul.u32 %s19, 2
          %s228 = ssub.s32 1, %s227
          %s229 = smul.u32 %s18, %s228
          %s230 = sadd.s32 %s19, %s229
          %s231 = smul.u32 16, %s230
        $region24: #{encoder_forward.5} parent=19 // pred_fallthru
          _
        // Predicated region
        $region25: #{encoder_forward.5} parent=19 // pred_check
          %p232 = pneg %p98
        $region26: #{encoder_forward.5} parent=19 // pred_check_branch
          %234 = sbr.rel (%p232) target = $region28
        $region27: #{encoder_forward.5} parent=19 // pred_region
          %p235 = scmp.lt.s32.totalorder %s18, 1
          %s236 = scalar_select %p235, %s18, 1
          %s237 = smul.addr %s236, 512
          %s238 = smul.addr %s237, 4
          %s239 = scalar_lea.vmem %s2, %s238
        $region28: #{encoder_forward.5} parent=19 // pred_fallthru
          _
        // Predicated region
        $region29: #{encoder_forward.5} parent=19 // pred_check
          %p240 = pneg %p124
        $region30: #{encoder_forward.5} parent=19 // pred_check_branch
          %242 = sbr.rel (%p240) target = $region32
        $region31: #{encoder_forward.5} parent=19 // pred_region
          %p243 = scmp.lt.s32.totalorder %s18, 1
          %s244 = scalar_select %p243, %s18, 1
          %s245 = smul.addr %s244, 256
          %s246 = smul.addr %s245, 4
          %s247 = scalar_lea.vmem %s3, %s246
        $region32: #{encoder_forward.5} parent=19 // pred_fallthru
          _
        // Predicated region
        $region33: #{encoder_forward.5} parent=19 // pred_check
          %p248 = pneg %p150
        $region34: #{encoder_forward.5} parent=19 // pred_check_branch
          %250 = sbr.rel (%p248) target = $region36
        $region35: #{encoder_forward.5} parent=19 // pred_region
          %p251 = scmp.lt.s32.totalorder %s18, 1
          %s252 = scalar_select %p251, %s18, 1
          %s253 = smul.addr %s252, 8
          %s254 = scalar_lea.vmem %s4, %s253
        $region36: #{encoder_forward.5} parent=19 // pred_fallthru
          _
      $region20: #{encoder_forward.5} parent=5 // pred_fallthru
        _
      %p255 = scmp.le.s32.totalorder 1, %s11
      %p256 = scmp.lt.s32.totalorder %s11, 5
      %p257 = pnand %p255, %p256
      %p258 = pneg %p257
      // Predicated region
      $region37: #{encoder_forward.5} parent=5 // pred_check
        _
      $region38: #{encoder_forward.5} parent=5 // pred_check_branch
        %260 = sbr.rel (%p257) target = $region40
      $region39: #{encoder_forward.5} parent=5 // pred_region
        %s261 = ssub.s32 %s11, 1
        %s262 = smul.u32 %s21, 2
        %s263 = ssub.s32 1, %s262
        %s264 = smul.u32 %s20, %s263
        %s265 = sadd.s32 %s21, %s264
        %s266 = smul.u32 16, %s265
        %p267 = scmp.lt.s32.totalorder %s266, 31
        %s268 = scalar_select %p267, %s266, 31
        %s269 = smul.addr %s268, 4
        %s270 = smul.addr %s269, 4
        %s271 = scalar_lea.vmem %s0, %s270
        %p272 = pneg %p57
        %p273 = pneg %p54
        %p274 = pneg %p78
        %p275 = pneg %p75
        %p276 = scmp.lt.s32.totalorder %s20, 1
        %s277 = scalar_select %p276, %s20, 1
        %s278 = smul.addr %s277, 512
        %s279 = smul.addr %s278, 4
        %s280 = scalar_lea.vmem %s2, %s279
        %p281 = pneg %p104
        %p282 = pneg %p101
        %p283 = scmp.lt.s32.totalorder %s20, 1
        %s284 = scalar_select %p283, %s20, 1
        %s285 = smul.addr %s284, 256
        %s286 = smul.addr %s285, 4
        %s287 = scalar_lea.vmem %s3, %s286
        %p288 = pneg %p130
        %p289 = pneg %p127
        %p290 = scmp.lt.s32.totalorder %s20, 1
        %s291 = scalar_select %p290, %s20, 1
        %s292 = smul.addr %s291, 8
        %s293 = scalar_lea.vmem %s4, %s292
        %p294 = pneg %p156
        %p295 = pneg %p153
        %p296 = pneg %p192
        %p297 = pneg %p189
        %s298 = sand.u32 %s179, 1
        %s299 = sand.u32 %s179, 1
        %s300 = smul.addr %s299, 128
        %s301 = scalar_lea.vmem [#allocation5], %s300
        %s302 = smul.u32 %s21, 2
        %s303 = ssub.s32 1, %s302
        %s304 = smul.u32 %s20, %s303
        %s305 = sadd.s32 %s21, %s304
        %s306 = smul.u32 16, %s305
        %p307 = scmp.lt.s32.totalorder %s306, 31
        %s308 = scalar_select %p307, %s306, 31
        %s309 = smul.addr %s308, 4
        %s310 = smul.addr %s309, 4
        %s311 = scalar_lea.vmem %s0, %s310
        %s312 = smul.u32 %s21, 2
        %s313 = ssub.s32 1, %s312
        %s314 = smul.u32 %s20, %s313
        %s315 = sadd.s32 %s21, %s314
        %s316 = smul.u32 16, %s315
        %p317 = scmp.lt.s32.totalorder %s20, 1
        %s318 = scalar_select %p317, %s20, 1
        %s319 = smul.addr %s318, 512
        %s320 = smul.addr %s319, 4
        %s321 = scalar_lea.vmem %s2, %s320
        %p322 = scmp.lt.s32.totalorder %s20, 1
        %s323 = scalar_select %p322, %s20, 1
        %s324 = smul.addr %s323, 256
        %s325 = smul.addr %s324, 4
        %s326 = scalar_lea.vmem %s3, %s325
        %p327 = scmp.lt.s32.totalorder %s20, 1
        %s328 = scalar_select %p327, %s20, 1
        %s329 = smul.addr %s328, 8
        %s330 = scalar_lea.vmem %s4, %s329
        %s331 = smul.u32 %s21, 2
        %s332 = ssub.s32 1, %s331
        %s333 = smul.u32 %s20, %s332
        %s334 = sadd.s32 %s21, %s333
        %s335 = smul.u32 16, %s334
        %s336 = smul.u32 2, %s20
        %p338 = scmp.eq.s32.totalorder %s21, 0
        // Predicated region
        $region41: #{encoder_forward.5} parent=39 // pred_check
          %p339 = pneg %p338
        $region42: #{encoder_forward.5} parent=39 // pred_check_branch
          %341 = sbr.rel (%p339) target = $region44
        $region43: #{encoder_forward.5} parent=39 // pred_region
          %342 = vst [vmem:[#allocation3] sm:$0xff] 0
          %343 = vst [vmem:[#allocation3 + $0x8] sm:$0xff] 0
          %344 = vst [vmem:[#allocation4] sm:$0xff] 0.0
          %345 = vst [vmem:[#allocation4 + $0x8] sm:$0xff] 0.0
          %346 = vst [vmem:[#allocation4 + $0x10] sm:$0xff] 0.0
          %347 = vst [vmem:[#allocation4 + $0x18] sm:$0xff] 0.0
        $region44: #{encoder_forward.5} parent=39 // pred_fallthru
          _
        %v348 = vld [vmem:[%s311] sm:$0xff]
        %v349 = vld [vmem:[%s311 + $0x8] sm:$0xff]
        %v350 = vld [vmem:[%s311 + $0x10] sm:$0xff]
        %v351 = vld [vmem:[%s311 + $0x18] sm:$0xff]
        %v352 = vld [vmem:[%s311 + $0x20] sm:$0xff]
        %v353 = vld [vmem:[%s311 + $0x28] sm:$0xff]
        %v354 = vld [vmem:[%s311 + $0x30] sm:$0xff]
        %v355 = vld [vmem:[%s311 + $0x38] sm:$0xff]
        %v356 = vld [vmem:[%s311 + $0x40] sm:$0xff]
        %v357 = vld [vmem:[%s311 + $0x48] sm:$0xff]
        %v358 = vld [vmem:[%s311 + $0x50] sm:$0xff]
        %v359 = vld [vmem:[%s311 + $0x58] sm:$0xff]
        %v360 = vld [vmem:[%s311 + $0x60] sm:$0xff]
        %v361 = vld [vmem:[%s311 + $0x68] sm:$0xff]
        %v362 = vld [vmem:[%s311 + $0x70] sm:$0xff]
        %v363 = vld [vmem:[%s311 + $0x78] sm:$0xff]
        %v364 = vld [vmem:[%s311 + $0x80] sm:$0xff]
        %v365 = vld [vmem:[%s311 + $0x88] sm:$0xff]
        %v366 = vld [vmem:[%s311 + $0x90] sm:$0xff]
        %v367 = vld [vmem:[%s311 + $0x98] sm:$0xff]
        %v368 = vld [vmem:[%s311 + $0xa0] sm:$0xff]
        %v369 = vld [vmem:[%s311 + $0xa8] sm:$0xff]
        %v370 = vld [vmem:[%s311 + $0xb0] sm:$0xff]
        %v371 = vld [vmem:[%s311 + $0xb8] sm:$0xff]
        %v372 = vld [vmem:[%s311 + $0xc0] sm:$0xff]
        %v373 = vld [vmem:[%s311 + $0xc8] sm:$0xff]
        %v374 = vld [vmem:[%s311 + $0xd0] sm:$0xff]
        %v375 = vld [vmem:[%s311 + $0xd8] sm:$0xff]
        %v376 = vld [vmem:[%s311 + $0xe0] sm:$0xff]
        %v377 = vld [vmem:[%s311 + $0xe8] sm:$0xff]
        %v378 = vld [vmem:[%s311 + $0xf0] sm:$0xff]
        %v379 = vld [vmem:[%s311 + $0xf8] sm:$0xff]
        %v380 = vld [vmem:[%s321] sm:$0xff]
        %v381 = vld [vmem:[%s321 + $0x8] sm:$0xff]
        %v382 = vld [vmem:[%s321 + $0x10] sm:$0xff]
        %v383 = vld [vmem:[%s321 + $0x18] sm:$0xff]
        %v384 = vld [vmem:[%s321 + $0x20] sm:$0xff]
        %v385 = vld [vmem:[%s321 + $0x28] sm:$0xff]
        %v386 = vld [vmem:[%s321 + $0x30] sm:$0xff]
        %v387 = vld [vmem:[%s321 + $0x38] sm:$0xff]
        %v388 = vld [vmem:[%s321 + $0x40] sm:$0xff]
        %v389 = vld [vmem:[%s321 + $0x48] sm:$0xff]
        %v390 = vld [vmem:[%s321 + $0x50] sm:$0xff]
        %v391 = vld [vmem:[%s321 + $0x58] sm:$0xff]
        %v392 = vld [vmem:[%s321 + $0x60] sm:$0xff]
        %v393 = vld [vmem:[%s321 + $0x68] sm:$0xff]
        %v394 = vld [vmem:[%s321 + $0x70] sm:$0xff]
        %v395 = vld [vmem:[%s321 + $0x78] sm:$0xff]
        %v396 = vld [vmem:[%s321 + $0x80] sm:$0xff]
        %v397 = vld [vmem:[%s321 + $0x88] sm:$0xff]
        %v398 = vld [vmem:[%s321 + $0x90] sm:$0xff]
        %v399 = vld [vmem:[%s321 + $0x98] sm:$0xff]
        %v400 = vld [vmem:[%s321 + $0xa0] sm:$0xff]
        %v401 = vld [vmem:[%s321 + $0xa8] sm:$0xff]
        %v402 = vld [vmem:[%s321 + $0xb0] sm:$0xff]
        %v403 = vld [vmem:[%s321 + $0xb8] sm:$0xff]
        %v404 = vld [vmem:[%s321 + $0xc0] sm:$0xff]
        %v405 = vld [vmem:[%s321 + $0xc8] sm:$0xff]
        %v406 = vld [vmem:[%s321 + $0xd0] sm:$0xff]
        %v407 = vld [vmem:[%s321 + $0xd8] sm:$0xff]
        %v408 = vld [vmem:[%s321 + $0xe0] sm:$0xff]
        %v409 = vld [vmem:[%s321 + $0xe8] sm:$0xff]
        %v410 = vld [vmem:[%s321 + $0xf0] sm:$0xff]
        %v411 = vld [vmem:[%s321 + $0xf8] sm:$0xff]
        %v412 = vld [vmem:[%s321 + $0x100] sm:$0xff]
        %v413 = vld [vmem:[%s321 + $0x108] sm:$0xff]
        %v414 = vld [vmem:[%s321 + $0x110] sm:$0xff]
        %v415 = vld [vmem:[%s321 + $0x118] sm:$0xff]
        %v416 = vld [vmem:[%s321 + $0x120] sm:$0xff]
        %v417 = vld [vmem:[%s321 + $0x128] sm:$0xff]
        %v418 = vld [vmem:[%s321 + $0x130] sm:$0xff]
        %v419 = vld [vmem:[%s321 + $0x138] sm:$0xff]
        %v420 = vld [vmem:[%s321 + $0x140] sm:$0xff]
        %v421 = vld [vmem:[%s321 + $0x148] sm:$0xff]
        %v422 = vld [vmem:[%s321 + $0x150] sm:$0xff]
        %v423 = vld [vmem:[%s321 + $0x158] sm:$0xff]
        %v424 = vld [vmem:[%s321 + $0x160] sm:$0xff]
        %v425 = vld [vmem:[%s321 + $0x168] sm:$0xff]
        %v426 = vld [vmem:[%s321 + $0x170] sm:$0xff]
        %v427 = vld [vmem:[%s321 + $0x178] sm:$0xff]
        %v428 = vld [vmem:[%s321 + $0x180] sm:$0xff]
        %v429 = vld [vmem:[%s321 + $0x188] sm:$0xff]
        %v430 = vld [vmem:[%s321 + $0x190] sm:$0xff]
        %v431 = vld [vmem:[%s321 + $0x198] sm:$0xff]
        %v432 = vld [vmem:[%s321 + $0x1a0] sm:$0xff]
        %v433 = vld [vmem:[%s321 + $0x1a8] sm:$0xff]
        %v434 = vld [vmem:[%s321 + $0x1b0] sm:$0xff]
        %v435 = vld [vmem:[%s321 + $0x1b8] sm:$0xff]
        %v436 = vld [vmem:[%s321 + $0x1c0] sm:$0xff]
        %v437 = vld [vmem:[%s321 + $0x1c8] sm:$0xff]
        %v438 = vld [vmem:[%s321 + $0x1d0] sm:$0xff]
        %v439 = vld [vmem:[%s321 + $0x1d8] sm:$0xff]
        %v440 = vld [vmem:[%s321 + $0x1e0] sm:$0xff]
        %v441 = vld [vmem:[%s321 + $0x1e8] sm:$0xff]
        %v442 = vld [vmem:[%s321 + $0x1f0] sm:$0xff]
        %v443 = vld [vmem:[%s321 + $0x1f8] sm:$0xff]
        %v444 = vld [vmem:[%s321 + $0x200] sm:$0xff]
        %v445 = vld [vmem:[%s321 + $0x208] sm:$0xff]
        %v446 = vld [vmem:[%s321 + $0x210] sm:$0xff]
        %v447 = vld [vmem:[%s321 + $0x218] sm:$0xff]
        %v448 = vld [vmem:[%s321 + $0x220] sm:$0xff]
        %v449 = vld [vmem:[%s321 + $0x228] sm:$0xff]
        %v450 = vld [vmem:[%s321 + $0x230] sm:$0xff]
        %v451 = vld [vmem:[%s321 + $0x238] sm:$0xff]
        %v452 = vld [vmem:[%s321 + $0x240] sm:$0xff]
        %v453 = vld [vmem:[%s321 + $0x248] sm:$0xff]
        %v454 = vld [vmem:[%s321 + $0x250] sm:$0xff]
        %v455 = vld [vmem:[%s321 + $0x258] sm:$0xff]
        %v456 = vld [vmem:[%s321 + $0x260] sm:$0xff]
        %v457 = vld [vmem:[%s321 + $0x268] sm:$0xff]
        %v458 = vld [vmem:[%s321 + $0x270] sm:$0xff]
        %v459 = vld [vmem:[%s321 + $0x278] sm:$0xff]
        %v460 = vld [vmem:[%s321 + $0x280] sm:$0xff]
        %v461 = vld [vmem:[%s321 + $0x288] sm:$0xff]
        %v462 = vld [vmem:[%s321 + $0x290] sm:$0xff]
        %v463 = vld [vmem:[%s321 + $0x298] sm:$0xff]
        %v464 = vld [vmem:[%s321 + $0x2a0] sm:$0xff]
        %v465 = vld [vmem:[%s321 + $0x2a8] sm:$0xff]
        %v466 = vld [vmem:[%s321 + $0x2b0] sm:$0xff]
        %v467 = vld [vmem:[%s321 + $0x2b8] sm:$0xff]
        %v468 = vld [vmem:[%s321 + $0x2c0] sm:$0xff]
        %v469 = vld [vmem:[%s321 + $0x2c8] sm:$0xff]
        %v470 = vld [vmem:[%s321 + $0x2d0] sm:$0xff]
        %v471 = vld [vmem:[%s321 + $0x2d8] sm:$0xff]
        %v472 = vld [vmem:[%s321 + $0x2e0] sm:$0xff]
        %v473 = vld [vmem:[%s321 + $0x2e8] sm:$0xff]
        %v474 = vld [vmem:[%s321 + $0x2f0] sm:$0xff]
        %v475 = vld [vmem:[%s321 + $0x2f8] sm:$0xff]
        %v476 = vld [vmem:[%s321 + $0x300] sm:$0xff]
        %v477 = vld [vmem:[%s321 + $0x308] sm:$0xff]
        %v478 = vld [vmem:[%s321 + $0x310] sm:$0xff]
        %v479 = vld [vmem:[%s321 + $0x318] sm:$0xff]
        %v480 = vld [vmem:[%s321 + $0x320] sm:$0xff]
        %v481 = vld [vmem:[%s321 + $0x328] sm:$0xff]
        %v482 = vld [vmem:[%s321 + $0x330] sm:$0xff]
        %v483 = vld [vmem:[%s321 + $0x338] sm:$0xff]
        %v484 = vld [vmem:[%s321 + $0x340] sm:$0xff]
        %v485 = vld [vmem:[%s321 + $0x348] sm:$0xff]
        %v486 = vld [vmem:[%s321 + $0x350] sm:$0xff]
        %v487 = vld [vmem:[%s321 + $0x358] sm:$0xff]
        %v488 = vld [vmem:[%s321 + $0x360] sm:$0xff]
        %v489 = vld [vmem:[%s321 + $0x368] sm:$0xff]
        %v490 = vld [vmem:[%s321 + $0x370] sm:$0xff]
        %v491 = vld [vmem:[%s321 + $0x378] sm:$0xff]
        %v492 = vld [vmem:[%s321 + $0x380] sm:$0xff]
        %v493 = vld [vmem:[%s321 + $0x388] sm:$0xff]
        %v494 = vld [vmem:[%s321 + $0x390] sm:$0xff]
        %v495 = vld [vmem:[%s321 + $0x398] sm:$0xff]
        %v496 = vld [vmem:[%s321 + $0x3a0] sm:$0xff]
        %v497 = vld [vmem:[%s321 + $0x3a8] sm:$0xff]
        %v498 = vld [vmem:[%s321 + $0x3b0] sm:$0xff]
        %v499 = vld [vmem:[%s321 + $0x3b8] sm:$0xff]
        %v500 = vld [vmem:[%s321 + $0x3c0] sm:$0xff]
        %v501 = vld [vmem:[%s321 + $0x3c8] sm:$0xff]
        %v502 = vld [vmem:[%s321 + $0x3d0] sm:$0xff]
        %v503 = vld [vmem:[%s321 + $0x3d8] sm:$0xff]
        %v504 = vld [vmem:[%s321 + $0x3e0] sm:$0xff]
        %v505 = vld [vmem:[%s321 + $0x3e8] sm:$0xff]
        %v506 = vld [vmem:[%s321 + $0x3f0] sm:$0xff]
        %v507 = vld [vmem:[%s321 + $0x3f8] sm:$0xff]
        %v508 = vld [vmem:[%s321 + $0x400] sm:$0xff]
        %v509 = vld [vmem:[%s321 + $0x408] sm:$0xff]
        %v510 = vld [vmem:[%s321 + $0x410] sm:$0xff]
        %v511 = vld [vmem:[%s321 + $0x418] sm:$0xff]
        %v512 = vld [vmem:[%s321 + $0x420] sm:$0xff]
        %v513 = vld [vmem:[%s321 + $0x428] sm:$0xff]
        %v514 = vld [vmem:[%s321 + $0x430] sm:$0xff]
        %v515 = vld [vmem:[%s321 + $0x438] sm:$0xff]
        %v516 = vld [vmem:[%s321 + $0x440] sm:$0xff]
        %v517 = vld [vmem:[%s321 + $0x448] sm:$0xff]
        %v518 = vld [vmem:[%s321 + $0x450] sm:$0xff]
        %v519 = vld [vmem:[%s321 + $0x458] sm:$0xff]
        %v520 = vld [vmem:[%s321 + $0x460] sm:$0xff]
        %v521 = vld [vmem:[%s321 + $0x468] sm:$0xff]
        %v522 = vld [vmem:[%s321 + $0x470] sm:$0xff]
        %v523 = vld [vmem:[%s321 + $0x478] sm:$0xff]
        %v524 = vld [vmem:[%s321 + $0x480] sm:$0xff]
        %v525 = vld [vmem:[%s321 + $0x488] sm:$0xff]
        %v526 = vld [vmem:[%s321 + $0x490] sm:$0xff]
        %v527 = vld [vmem:[%s321 + $0x498] sm:$0xff]
        %v528 = vld [vmem:[%s321 + $0x4a0] sm:$0xff]
        %v529 = vld [vmem:[%s321 + $0x4a8] sm:$0xff]
        %v530 = vld [vmem:[%s321 + $0x4b0] sm:$0xff]
        %v531 = vld [vmem:[%s321 + $0x4b8] sm:$0xff]
        %v532 = vld [vmem:[%s321 + $0x4c0] sm:$0xff]
        %v533 = vld [vmem:[%s321 + $0x4c8] sm:$0xff]
        %v534 = vld [vmem:[%s321 + $0x4d0] sm:$0xff]
        %v535 = vld [vmem:[%s321 + $0x4d8] sm:$0xff]
        %v536 = vld [vmem:[%s321 + $0x4e0] sm:$0xff]
        %v537 = vld [vmem:[%s321 + $0x4e8] sm:$0xff]
        %v538 = vld [vmem:[%s321 + $0x4f0] sm:$0xff]
        %v539 = vld [vmem:[%s321 + $0x4f8] sm:$0xff]
        %v540 = vld [vmem:[%s321 + $0x500] sm:$0xff]
        %v541 = vld [vmem:[%s321 + $0x508] sm:$0xff]
        %v542 = vld [vmem:[%s321 + $0x510] sm:$0xff]
        %v543 = vld [vmem:[%s321 + $0x518] sm:$0xff]
        %v544 = vld [vmem:[%s321 + $0x520] sm:$0xff]
        %v545 = vld [vmem:[%s321 + $0x528] sm:$0xff]
        %v546 = vld [vmem:[%s321 + $0x530] sm:$0xff]
        %v547 = vld [vmem:[%s321 + $0x538] sm:$0xff]
        %v548 = vld [vmem:[%s321 + $0x540] sm:$0xff]
        %v549 = vld [vmem:[%s321 + $0x548] sm:$0xff]
        %v550 = vld [vmem:[%s321 + $0x550] sm:$0xff]
        %v551 = vld [vmem:[%s321 + $0x558] sm:$0xff]
        %v552 = vld [vmem:[%s321 + $0x560] sm:$0xff]
        %v553 = vld [vmem:[%s321 + $0x568] sm:$0xff]
        %v554 = vld [vmem:[%s321 + $0x570] sm:$0xff]
        %v555 = vld [vmem:[%s321 + $0x578] sm:$0xff]
        %v556 = vld [vmem:[%s321 + $0x580] sm:$0xff]
        %v557 = vld [vmem:[%s321 + $0x588] sm:$0xff]
        %v558 = vld [vmem:[%s321 + $0x590] sm:$0xff]
        %v559 = vld [vmem:[%s321 + $0x598] sm:$0xff]
        %v560 = vld [vmem:[%s321 + $0x5a0] sm:$0xff]
        %v561 = vld [vmem:[%s321 + $0x5a8] sm:$0xff]
        %v562 = vld [vmem:[%s321 + $0x5b0] sm:$0xff]
        %v563 = vld [vmem:[%s321 + $0x5b8] sm:$0xff]
        %v564 = vld [vmem:[%s321 + $0x5c0] sm:$0xff]
        %v565 = vld [vmem:[%s321 + $0x5c8] sm:$0xff]
        %v566 = vld [vmem:[%s321 + $0x5d0] sm:$0xff]
        %v567 = vld [vmem:[%s321 + $0x5d8] sm:$0xff]
        %v568 = vld [vmem:[%s321 + $0x5e0] sm:$0xff]
        %v569 = vld [vmem:[%s321 + $0x5e8] sm:$0xff]
        %v570 = vld [vmem:[%s321 + $0x5f0] sm:$0xff]
        %v571 = vld [vmem:[%s321 + $0x5f8] sm:$0xff]
        %v572 = vld [vmem:[%s321 + $0x600] sm:$0xff]
        %v573 = vld [vmem:[%s321 + $0x608] sm:$0xff]
        %v574 = vld [vmem:[%s321 + $0x610] sm:$0xff]
        %v575 = vld [vmem:[%s321 + $0x618] sm:$0xff]
        %v576 = vld [vmem:[%s321 + $0x620] sm:$0xff]
        %v577 = vld [vmem:[%s321 + $0x628] sm:$0xff]
        %v578 = vld [vmem:[%s321 + $0x630] sm:$0xff]
        %v579 = vld [vmem:[%s321 + $0x638] sm:$0xff]
        %v580 = vld [vmem:[%s321 + $0x640] sm:$0xff]
        %v581 = vld [vmem:[%s321 + $0x648] sm:$0xff]
        %v582 = vld [vmem:[%s321 + $0x650] sm:$0xff]
        %v583 = vld [vmem:[%s321 + $0x658] sm:$0xff]
        %v584 = vld [vmem:[%s321 + $0x660] sm:$0xff]
        %v585 = vld [vmem:[%s321 + $0x668] sm:$0xff]
        %v586 = vld [vmem:[%s321 + $0x670] sm:$0xff]
        %v587 = vld [vmem:[%s321 + $0x678] sm:$0xff]
        %v588 = vld [vmem:[%s321 + $0x680] sm:$0xff]
        %v589 = vld [vmem:[%s321 + $0x688] sm:$0xff]
        %v590 = vld [vmem:[%s321 + $0x690] sm:$0xff]
        %v591 = vld [vmem:[%s321 + $0x698] sm:$0xff]
        %v592 = vld [vmem:[%s321 + $0x6a0] sm:$0xff]
        %v593 = vld [vmem:[%s321 + $0x6a8] sm:$0xff]
        %v594 = vld [vmem:[%s321 + $0x6b0] sm:$0xff]
        %v595 = vld [vmem:[%s321 + $0x6b8] sm:$0xff]
        %v596 = vld [vmem:[%s321 + $0x6c0] sm:$0xff]
        %v597 = vld [vmem:[%s321 + $0x6c8] sm:$0xff]
        %v598 = vld [vmem:[%s321 + $0x6d0] sm:$0xff]
        %v599 = vld [vmem:[%s321 + $0x6d8] sm:$0xff]
        %v600 = vld [vmem:[%s321 + $0x6e0] sm:$0xff]
        %v601 = vld [vmem:[%s321 + $0x6e8] sm:$0xff]
        %v602 = vld [vmem:[%s321 + $0x6f0] sm:$0xff]
        %v603 = vld [vmem:[%s321 + $0x6f8] sm:$0xff]
        %v604 = vld [vmem:[%s321 + $0x700] sm:$0xff]
        %v605 = vld [vmem:[%s321 + $0x708] sm:$0xff]
        %v606 = vld [vmem:[%s321 + $0x710] sm:$0xff]
        %v607 = vld [vmem:[%s321 + $0x718] sm:$0xff]
        %v608 = vld [vmem:[%s321 + $0x720] sm:$0xff]
        %v609 = vld [vmem:[%s321 + $0x728] sm:$0xff]
        %v610 = vld [vmem:[%s321 + $0x730] sm:$0xff]
        %v611 = vld [vmem:[%s321 + $0x738] sm:$0xff]
        %v612 = vld [vmem:[%s321 + $0x740] sm:$0xff]
        %v613 = vld [vmem:[%s321 + $0x748] sm:$0xff]
        %v614 = vld [vmem:[%s321 + $0x750] sm:$0xff]
        %v615 = vld [vmem:[%s321 + $0x758] sm:$0xff]
        %v616 = vld [vmem:[%s321 + $0x760] sm:$0xff]
        %v617 = vld [vmem:[%s321 + $0x768] sm:$0xff]
        %v618 = vld [vmem:[%s321 + $0x770] sm:$0xff]
        %v619 = vld [vmem:[%s321 + $0x778] sm:$0xff]
        %v620 = vld [vmem:[%s321 + $0x780] sm:$0xff]
        %v621 = vld [vmem:[%s321 + $0x788] sm:$0xff]
        %v622 = vld [vmem:[%s321 + $0x790] sm:$0xff]
        %v623 = vld [vmem:[%s321 + $0x798] sm:$0xff]
        %v624 = vld [vmem:[%s321 + $0x7a0] sm:$0xff]
        %v625 = vld [vmem:[%s321 + $0x7a8] sm:$0xff]
        %v626 = vld [vmem:[%s321 + $0x7b0] sm:$0xff]
        %v627 = vld [vmem:[%s321 + $0x7b8] sm:$0xff]
        %v628 = vld [vmem:[%s321 + $0x7c0] sm:$0xff]
        %v629 = vld [vmem:[%s321 + $0x7c8] sm:$0xff]
        %v630 = vld [vmem:[%s321 + $0x7d0] sm:$0xff]
        %v631 = vld [vmem:[%s321 + $0x7d8] sm:$0xff]
        %v632 = vld [vmem:[%s321 + $0x7e0] sm:$0xff]
        %v633 = vld [vmem:[%s321 + $0x7e8] sm:$0xff]
        %v634 = vld [vmem:[%s321 + $0x7f0] sm:$0xff]
        %v635 = vld [vmem:[%s321 + $0x7f8] sm:$0xff]
        %v636 = vld [vmem:[%s330] sm:$0xff]
        %v638 = vperm.slane %v636, 0
        %v639 = vperm.slane %v636, 1
        %v640 = vperm.slane %v636, 2
        %v641 = vperm.slane %v636, 3
        %v642 = vperm.slane %v636, 4
        %v643 = vperm.slane %v636, 5
        %v644 = vperm.slane %v636, 6
        %v645 = vperm.slane %v636, 7
        %v686 = vunpack.c.l.b16 %v348
        %v687 = vunpack.c.h.b16 %v348
        %v688 = vunpack.c.l.b16 %v349
        %v689 = vunpack.c.h.b16 %v349
        %v690 = vunpack.c.l.b16 %v350
        %v691 = vunpack.c.h.b16 %v350
        %v692 = vunpack.c.l.b16 %v351
        %v693 = vunpack.c.h.b16 %v351
        %v694 = vunpack.c.l.b16 %v352
        %v695 = vunpack.c.h.b16 %v352
        %v696 = vunpack.c.l.b16 %v353
        %v697 = vunpack.c.h.b16 %v353
        %v698 = vunpack.c.l.b16 %v354
        %v699 = vunpack.c.h.b16 %v354
        %v700 = vunpack.c.l.b16 %v355
        %v701 = vunpack.c.h.b16 %v355
        %v702 = vunpack.c.l.b16 %v356
        %v703 = vunpack.c.h.b16 %v356
        %v704 = vunpack.c.l.b16 %v357
        %v705 = vunpack.c.h.b16 %v357
        %v706 = vunpack.c.l.b16 %v358
        %v707 = vunpack.c.h.b16 %v358
        %v708 = vunpack.c.l.b16 %v359
        %v709 = vunpack.c.h.b16 %v359
        %v710 = vunpack.c.l.b16 %v360
        %v711 = vunpack.c.h.b16 %v360
        %v712 = vunpack.c.l.b16 %v361
        %v713 = vunpack.c.h.b16 %v361
        %v714 = vunpack.c.l.b16 %v362
        %v715 = vunpack.c.h.b16 %v362
        %v716 = vunpack.c.l.b16 %v363
        %v717 = vunpack.c.h.b16 %v363
        %v718 = vunpack.c.l.b16 %v364
        %v719 = vunpack.c.h.b16 %v364
        %v720 = vunpack.c.l.b16 %v365
        %v721 = vunpack.c.h.b16 %v365
        %v722 = vunpack.c.l.b16 %v366
        %v723 = vunpack.c.h.b16 %v366
        %v724 = vunpack.c.l.b16 %v367
        %v725 = vunpack.c.h.b16 %v367
        %v726 = vunpack.c.l.b16 %v368
        %v727 = vunpack.c.h.b16 %v368
        %v728 = vunpack.c.l.b16 %v369
        %v729 = vunpack.c.h.b16 %v369
        %v730 = vunpack.c.l.b16 %v370
        %v731 = vunpack.c.h.b16 %v370
        %v732 = vunpack.c.l.b16 %v371
        %v733 = vunpack.c.h.b16 %v371
        %v734 = vunpack.c.l.b16 %v372
        %v735 = vunpack.c.h.b16 %v372
        %v736 = vunpack.c.l.b16 %v373
        %v737 = vunpack.c.h.b16 %v373
        %v738 = vunpack.c.l.b16 %v374
        %v739 = vunpack.c.h.b16 %v374
        %v740 = vunpack.c.l.b16 %v375
        %v741 = vunpack.c.h.b16 %v375
        %v742 = vunpack.c.l.b16 %v376
        %v743 = vunpack.c.h.b16 %v376
        %v744 = vunpack.c.l.b16 %v377
        %v745 = vunpack.c.h.b16 %v377
        %v746 = vunpack.c.l.b16 %v378
        %v747 = vunpack.c.h.b16 %v378
        %v748 = vunpack.c.l.b16 %v379
        %v749 = vunpack.c.h.b16 %v379
        %v750 = vpack.c.b16 %v690, %v686
        %v751 = vpack.c.b16 %v691, %v687
        %v752 = vpack.c.b16 %v692, %v688
        %v753 = vpack.c.b16 %v693, %v689
        %v754 = vpack.c.b16 %v698, %v694
        %v755 = vpack.c.b16 %v699, %v695
        %v756 = vpack.c.b16 %v700, %v696
        %v757 = vpack.c.b16 %v701, %v697
        %v758 = vpack.c.b16 %v706, %v702
        %v759 = vpack.c.b16 %v707, %v703
        %v760 = vpack.c.b16 %v708, %v704
        %v761 = vpack.c.b16 %v709, %v705
        %v762 = vpack.c.b16 %v714, %v710
        %v763 = vpack.c.b16 %v715, %v711
        %v764 = vpack.c.b16 %v716, %v712
        %v765 = vpack.c.b16 %v717, %v713
        %v766 = vpack.c.b16 %v722, %v718
        %v767 = vpack.c.b16 %v723, %v719
        %v768 = vpack.c.b16 %v724, %v720
        %v769 = vpack.c.b16 %v725, %v721
        %v770 = vpack.c.b16 %v730, %v726
        %v771 = vpack.c.b16 %v731, %v727
        %v772 = vpack.c.b16 %v732, %v728
        %v773 = vpack.c.b16 %v733, %v729
        %v774 = vpack.c.b16 %v738, %v734
        %v775 = vpack.c.b16 %v739, %v735
        %v776 = vpack.c.b16 %v740, %v736
        %v777 = vpack.c.b16 %v741, %v737
        %v778 = vpack.c.b16 %v746, %v742
        %v779 = vpack.c.b16 %v747, %v743
        %v780 = vpack.c.b16 %v748, %v744
        %v781 = vpack.c.b16 %v749, %v745
        %v1070 = vunpack.c.l.b16 %v380
        %v1071 = vunpack.c.h.b16 %v380
        %v1072 = vunpack.c.l.b16 %v381
        %v1073 = vunpack.c.h.b16 %v381
        %v1074 = vunpack.c.l.b16 %v382
        %v1075 = vunpack.c.h.b16 %v382
        %v1076 = vunpack.c.l.b16 %v383
        %v1077 = vunpack.c.h.b16 %v383
        %v1078 = vunpack.c.l.b16 %v384
        %v1079 = vunpack.c.h.b16 %v384
        %v1080 = vunpack.c.l.b16 %v385
        %v1081 = vunpack.c.h.b16 %v385
        %v1082 = vunpack.c.l.b16 %v386
        %v1083 = vunpack.c.h.b16 %v386
        %v1084 = vunpack.c.l.b16 %v387
        %v1085 = vunpack.c.h.b16 %v387
        %v1086 = vunpack.c.l.b16 %v388
        %v1087 = vunpack.c.h.b16 %v388
        %v1088 = vunpack.c.l.b16 %v389
        %v1089 = vunpack.c.h.b16 %v389
        %v1090 = vunpack.c.l.b16 %v390
        %v1091 = vunpack.c.h.b16 %v390
        %v1092 = vunpack.c.l.b16 %v391
        %v1093 = vunpack.c.h.b16 %v391
        %v1094 = vunpack.c.l.b16 %v392
        %v1095 = vunpack.c.h.b16 %v392
        %v1096 = vunpack.c.l.b16 %v393
        %v1097 = vunpack.c.h.b16 %v393
        %v1098 = vunpack.c.l.b16 %v394
        %v1099 = vunpack.c.h.b16 %v394
        %v1100 = vunpack.c.l.b16 %v395
        %v1101 = vunpack.c.h.b16 %v395
        %v1102 = vunpack.c.l.b16 %v396
        %v1103 = vunpack.c.h.b16 %v396
        %v1104 = vunpack.c.l.b16 %v397
        %v1105 = vunpack.c.h.b16 %v397
        %v1106 = vunpack.c.l.b16 %v398
        %v1107 = vunpack.c.h.b16 %v398
        %v1108 = vunpack.c.l.b16 %v399
        %v1109 = vunpack.c.h.b16 %v399
        %v1110 = vunpack.c.l.b16 %v400
        %v1111 = vunpack.c.h.b16 %v400
        %v1112 = vunpack.c.l.b16 %v401
        %v1113 = vunpack.c.h.b16 %v401
        %v1114 = vunpack.c.l.b16 %v402
        %v1115 = vunpack.c.h.b16 %v402
        %v1116 = vunpack.c.l.b16 %v403
        %v1117 = vunpack.c.h.b16 %v403
        %v1118 = vunpack.c.l.b16 %v404
        %v1119 = vunpack.c.h.b16 %v404
        %v1120 = vunpack.c.l.b16 %v405
        %v1121 = vunpack.c.h.b16 %v405
        %v1122 = vunpack.c.l.b16 %v406
        %v1123 = vunpack.c.h.b16 %v406
        %v1124 = vunpack.c.l.b16 %v407
        %v1125 = vunpack.c.h.b16 %v407
        %v1126 = vunpack.c.l.b16 %v408
        %v1127 = vunpack.c.h.b16 %v408
        %v1128 = vunpack.c.l.b16 %v409
        %v1129 = vunpack.c.h.b16 %v409
        %v1130 = vunpack.c.l.b16 %v410
        %v1131 = vunpack.c.h.b16 %v410
        %v1132 = vunpack.c.l.b16 %v411
        %v1133 = vunpack.c.h.b16 %v411
        %v1134 = vunpack.c.l.b16 %v412
        %v1135 = vunpack.c.h.b16 %v412
        %v1136 = vunpack.c.l.b16 %v413
        %v1137 = vunpack.c.h.b16 %v413
        %v1138 = vunpack.c.l.b16 %v414
        %v1139 = vunpack.c.h.b16 %v414
        %v1140 = vunpack.c.l.b16 %v415
        %v1141 = vunpack.c.h.b16 %v415
        %v1142 = vunpack.c.l.b16 %v416
        %v1143 = vunpack.c.h.b16 %v416
        %v1144 = vunpack.c.l.b16 %v417
        %v1145 = vunpack.c.h.b16 %v417
        %v1146 = vunpack.c.l.b16 %v418
        %v1147 = vunpack.c.h.b16 %v418
        %v1148 = vunpack.c.l.b16 %v419
        %v1149 = vunpack.c.h.b16 %v419
        %v1150 = vunpack.c.l.b16 %v420
        %v1151 = vunpack.c.h.b16 %v420
        %v1152 = vunpack.c.l.b16 %v421
        %v1153 = vunpack.c.h.b16 %v421
        %v1154 = vunpack.c.l.b16 %v422
        %v1155 = vunpack.c.h.b16 %v422
        %v1156 = vunpack.c.l.b16 %v423
        %v1157 = vunpack.c.h.b16 %v423
        %v1158 = vunpack.c.l.b16 %v424
        %v1159 = vunpack.c.h.b16 %v424
        %v1160 = vunpack.c.l.b16 %v425
        %v1161 = vunpack.c.h.b16 %v425
        %v1162 = vunpack.c.l.b16 %v426
        %v1163 = vunpack.c.h.b16 %v426
        %v1164 = vunpack.c.l.b16 %v427
        %v1165 = vunpack.c.h.b16 %v427
        %v1166 = vunpack.c.l.b16 %v428
        %v1167 = vunpack.c.h.b16 %v428
        %v1168 = vunpack.c.l.b16 %v429
        %v1169 = vunpack.c.h.b16 %v429
        %v1170 = vunpack.c.l.b16 %v430
        %v1171 = vunpack.c.h.b16 %v430
        %v1172 = vunpack.c.l.b16 %v431
        %v1173 = vunpack.c.h.b16 %v431
        %v1174 = vunpack.c.l.b16 %v432
        %v1175 = vunpack.c.h.b16 %v432
        %v1176 = vunpack.c.l.b16 %v433
        %v1177 = vunpack.c.h.b16 %v433
        %v1178 = vunpack.c.l.b16 %v434
        %v1179 = vunpack.c.h.b16 %v434
        %v1180 = vunpack.c.l.b16 %v435
        %v1181 = vunpack.c.h.b16 %v435
        %v1182 = vunpack.c.l.b16 %v436
        %v1183 = vunpack.c.h.b16 %v436
        %v1184 = vunpack.c.l.b16 %v437
        %v1185 = vunpack.c.h.b16 %v437
        %v1186 = vunpack.c.l.b16 %v438
        %v1187 = vunpack.c.h.b16 %v438
        %v1188 = vunpack.c.l.b16 %v439
        %v1189 = vunpack.c.h.b16 %v439
        %v1190 = vunpack.c.l.b16 %v440
        %v1191 = vunpack.c.h.b16 %v440
        %v1192 = vunpack.c.l.b16 %v441
        %v1193 = vunpack.c.h.b16 %v441
        %v1194 = vunpack.c.l.b16 %v442
        %v1195 = vunpack.c.h.b16 %v442
        %v1196 = vunpack.c.l.b16 %v443
        %v1197 = vunpack.c.h.b16 %v443
        %v1198 = vunpack.c.l.b16 %v444
        %v1199 = vunpack.c.h.b16 %v444
        %v1200 = vunpack.c.l.b16 %v445
        %v1201 = vunpack.c.h.b16 %v445
        %v1202 = vunpack.c.l.b16 %v446
        %v1203 = vunpack.c.h.b16 %v446
        %v1204 = vunpack.c.l.b16 %v447
        %v1205 = vunpack.c.h.b16 %v447
        %v1206 = vunpack.c.l.b16 %v448
        %v1207 = vunpack.c.h.b16 %v448
        %v1208 = vunpack.c.l.b16 %v449
        %v1209 = vunpack.c.h.b16 %v449
        %v1210 = vunpack.c.l.b16 %v450
        %v1211 = vunpack.c.h.b16 %v450
        %v1212 = vunpack.c.l.b16 %v451
        %v1213 = vunpack.c.h.b16 %v451
        %v1214 = vunpack.c.l.b16 %v452
        %v1215 = vunpack.c.h.b16 %v452
        %v1216 = vunpack.c.l.b16 %v453
        %v1217 = vunpack.c.h.b16 %v453
        %v1218 = vunpack.c.l.b16 %v454
        %v1219 = vunpack.c.h.b16 %v454
        %v1220 = vunpack.c.l.b16 %v455
        %v1221 = vunpack.c.h.b16 %v455
        %v1222 = vunpack.c.l.b16 %v456
        %v1223 = vunpack.c.h.b16 %v456
        %v1224 = vunpack.c.l.b16 %v457
        %v1225 = vunpack.c.h.b16 %v457
        %v1226 = vunpack.c.l.b16 %v458
        %v1227 = vunpack.c.h.b16 %v458
        %v1228 = vunpack.c.l.b16 %v459
        %v1229 = vunpack.c.h.b16 %v459
        %v1230 = vunpack.c.l.b16 %v460
        %v1231 = vunpack.c.h.b16 %v460
        %v1232 = vunpack.c.l.b16 %v461
        %v1233 = vunpack.c.h.b16 %v461
        %v1234 = vunpack.c.l.b16 %v462
        %v1235 = vunpack.c.h.b16 %v462
        %v1236 = vunpack.c.l.b16 %v463
        %v1237 = vunpack.c.h.b16 %v463
        %v1238 = vunpack.c.l.b16 %v464
        %v1239 = vunpack.c.h.b16 %v464
        %v1240 = vunpack.c.l.b16 %v465
        %v1241 = vunpack.c.h.b16 %v465
        %v1242 = vunpack.c.l.b16 %v466
        %v1243 = vunpack.c.h.b16 %v466
        %v1244 = vunpack.c.l.b16 %v467
        %v1245 = vunpack.c.h.b16 %v467
        %v1246 = vunpack.c.l.b16 %v468
        %v1247 = vunpack.c.h.b16 %v468
        %v1248 = vunpack.c.l.b16 %v469
        %v1249 = vunpack.c.h.b16 %v469
        %v1250 = vunpack.c.l.b16 %v470
        %v1251 = vunpack.c.h.b16 %v470
        %v1252 = vunpack.c.l.b16 %v471
        %v1253 = vunpack.c.h.b16 %v471
        %v1254 = vunpack.c.l.b16 %v472
        %v1255 = vunpack.c.h.b16 %v472
        %v1256 = vunpack.c.l.b16 %v473
        %v1257 = vunpack.c.h.b16 %v473
        %v1258 = vunpack.c.l.b16 %v474
        %v1259 = vunpack.c.h.b16 %v474
        %v1260 = vunpack.c.l.b16 %v475
        %v1261 = vunpack.c.h.b16 %v475
        %v1262 = vunpack.c.l.b16 %v476
        %v1263 = vunpack.c.h.b16 %v476
        %v1264 = vunpack.c.l.b16 %v477
        %v1265 = vunpack.c.h.b16 %v477
        %v1266 = vunpack.c.l.b16 %v478
        %v1267 = vunpack.c.h.b16 %v478
        %v1268 = vunpack.c.l.b16 %v479
        %v1269 = vunpack.c.h.b16 %v479
        %v1270 = vunpack.c.l.b16 %v480
        %v1271 = vunpack.c.h.b16 %v480
        %v1272 = vunpack.c.l.b16 %v481
        %v1273 = vunpack.c.h.b16 %v481
        %v1274 = vunpack.c.l.b16 %v482
        %v1275 = vunpack.c.h.b16 %v482
        %v1276 = vunpack.c.l.b16 %v483
        %v1277 = vunpack.c.h.b16 %v483
        %v1278 = vunpack.c.l.b16 %v484
        %v1279 = vunpack.c.h.b16 %v484
        %v1280 = vunpack.c.l.b16 %v485
        %v1281 = vunpack.c.h.b16 %v485
        %v1282 = vunpack.c.l.b16 %v486
        %v1283 = vunpack.c.h.b16 %v486
        %v1284 = vunpack.c.l.b16 %v487
        %v1285 = vunpack.c.h.b16 %v487
        %v1286 = vunpack.c.l.b16 %v488
        %v1287 = vunpack.c.h.b16 %v488
        %v1288 = vunpack.c.l.b16 %v489
        %v1289 = vunpack.c.h.b16 %v489
        %v1290 = vunpack.c.l.b16 %v490
        %v1291 = vunpack.c.h.b16 %v490
        %v1292 = vunpack.c.l.b16 %v491
        %v1293 = vunpack.c.h.b16 %v491
        %v1294 = vunpack.c.l.b16 %v492
        %v1295 = vunpack.c.h.b16 %v492
        %v1296 = vunpack.c.l.b16 %v493
        %v1297 = vunpack.c.h.b16 %v493
        %v1298 = vunpack.c.l.b16 %v494
        %v1299 = vunpack.c.h.b16 %v494
        %v1300 = vunpack.c.l.b16 %v495
        %v1301 = vunpack.c.h.b16 %v495
        %v1302 = vunpack.c.l.b16 %v496
        %v1303 = vunpack.c.h.b16 %v496
        %v1304 = vunpack.c.l.b16 %v497
        %v1305 = vunpack.c.h.b16 %v497
        %v1306 = vunpack.c.l.b16 %v498
        %v1307 = vunpack.c.h.b16 %v498
        %v1308 = vunpack.c.l.b16 %v499
        %v1309 = vunpack.c.h.b16 %v499
        %v1310 = vunpack.c.l.b16 %v500
        %v1311 = vunpack.c.h.b16 %v500
        %v1312 = vunpack.c.l.b16 %v501
        %v1313 = vunpack.c.h.b16 %v501
        %v1314 = vunpack.c.l.b16 %v502
        %v1315 = vunpack.c.h.b16 %v502
        %v1316 = vunpack.c.l.b16 %v503
        %v1317 = vunpack.c.h.b16 %v503
        %v1318 = vunpack.c.l.b16 %v504
        %v1319 = vunpack.c.h.b16 %v504
        %v1320 = vunpack.c.l.b16 %v505
        %v1321 = vunpack.c.h.b16 %v505
        %v1322 = vunpack.c.l.b16 %v506
        %v1323 = vunpack.c.h.b16 %v506
        %v1324 = vunpack.c.l.b16 %v507
        %v1325 = vunpack.c.h.b16 %v507
        %v1326 = vunpack.c.l.b16 %v508
        %v1327 = vunpack.c.h.b16 %v508
        %v1328 = vunpack.c.l.b16 %v509
        %v1329 = vunpack.c.h.b16 %v509
        %v1330 = vunpack.c.l.b16 %v510
        %v1331 = vunpack.c.h.b16 %v510
        %v1332 = vunpack.c.l.b16 %v511
        %v1333 = vunpack.c.h.b16 %v511
        %v1334 = vunpack.c.l.b16 %v512
        %v1335 = vunpack.c.h.b16 %v512
        %v1336 = vunpack.c.l.b16 %v513
        %v1337 = vunpack.c.h.b16 %v513
        %v1338 = vunpack.c.l.b16 %v514
        %v1339 = vunpack.c.h.b16 %v514
        %v1340 = vunpack.c.l.b16 %v515
        %v1341 = vunpack.c.h.b16 %v515
        %v1342 = vunpack.c.l.b16 %v516
        %v1343 = vunpack.c.h.b16 %v516
        %v1344 = vunpack.c.l.b16 %v517
        %v1345 = vunpack.c.h.b16 %v517
        %v1346 = vunpack.c.l.b16 %v518
        %v1347 = vunpack.c.h.b16 %v518
        %v1348 = vunpack.c.l.b16 %v519
        %v1349 = vunpack.c.h.b16 %v519
        %v1350 = vunpack.c.l.b16 %v520
        %v1351 = vunpack.c.h.b16 %v520
        %v1352 = vunpack.c.l.b16 %v521
        %v1353 = vunpack.c.h.b16 %v521
        %v1354 = vunpack.c.l.b16 %v522
        %v1355 = vunpack.c.h.b16 %v522
        %v1356 = vunpack.c.l.b16 %v523
        %v1357 = vunpack.c.h.b16 %v523
        %v1358 = vunpack.c.l.b16 %v524
        %v1359 = vunpack.c.h.b16 %v524
        %v1360 = vunpack.c.l.b16 %v525
        %v1361 = vunpack.c.h.b16 %v525
        %v1362 = vunpack.c.l.b16 %v526
        %v1363 = vunpack.c.h.b16 %v526
        %v1364 = vunpack.c.l.b16 %v527
        %v1365 = vunpack.c.h.b16 %v527
        %v1366 = vunpack.c.l.b16 %v528
        %v1367 = vunpack.c.h.b16 %v528
        %v1368 = vunpack.c.l.b16 %v529
        %v1369 = vunpack.c.h.b16 %v529
        %v1370 = vunpack.c.l.b16 %v530
        %v1371 = vunpack.c.h.b16 %v530
        %v1372 = vunpack.c.l.b16 %v531
        %v1373 = vunpack.c.h.b16 %v531
        %v1374 = vunpack.c.l.b16 %v532
        %v1375 = vunpack.c.h.b16 %v532
        %v1376 = vunpack.c.l.b16 %v533
        %v1377 = vunpack.c.h.b16 %v533
        %v1378 = vunpack.c.l.b16 %v534
        %v1379 = vunpack.c.h.b16 %v534
        %v1380 = vunpack.c.l.b16 %v535
        %v1381 = vunpack.c.h.b16 %v535
        %v1382 = vunpack.c.l.b16 %v536
        %v1383 = vunpack.c.h.b16 %v536
        %v1384 = vunpack.c.l.b16 %v537
        %v1385 = vunpack.c.h.b16 %v537
        %v1386 = vunpack.c.l.b16 %v538
        %v1387 = vunpack.c.h.b16 %v538
        %v1388 = vunpack.c.l.b16 %v539
        %v1389 = vunpack.c.h.b16 %v539
        %v1390 = vunpack.c.l.b16 %v540
        %v1391 = vunpack.c.h.b16 %v540
        %v1392 = vunpack.c.l.b16 %v541
        %v1393 = vunpack.c.h.b16 %v541
        %v1394 = vunpack.c.l.b16 %v542
        %v1395 = vunpack.c.h.b16 %v542
        %v1396 = vunpack.c.l.b16 %v543
        %v1397 = vunpack.c.h.b16 %v543
        %v1398 = vunpack.c.l.b16 %v544
        %v1399 = vunpack.c.h.b16 %v544
        %v1400 = vunpack.c.l.b16 %v545
        %v1401 = vunpack.c.h.b16 %v545
        %v1402 = vunpack.c.l.b16 %v546
        %v1403 = vunpack.c.h.b16 %v546
        %v1404 = vunpack.c.l.b16 %v547
        %v1405 = vunpack.c.h.b16 %v547
        %v1406 = vunpack.c.l.b16 %v548
        %v1407 = vunpack.c.h.b16 %v548
        %v1408 = vunpack.c.l.b16 %v549
        %v1409 = vunpack.c.h.b16 %v549
        %v1410 = vunpack.c.l.b16 %v550
        %v1411 = vunpack.c.h.b16 %v550
        %v1412 = vunpack.c.l.b16 %v551
        %v1413 = vunpack.c.h.b16 %v551
        %v1414 = vunpack.c.l.b16 %v552
        %v1415 = vunpack.c.h.b16 %v552
        %v1416 = vunpack.c.l.b16 %v553
        %v1417 = vunpack.c.h.b16 %v553
        %v1418 = vunpack.c.l.b16 %v554
        %v1419 = vunpack.c.h.b16 %v554
        %v1420 = vunpack.c.l.b16 %v555
        %v1421 = vunpack.c.h.b16 %v555
        %v1422 = vunpack.c.l.b16 %v556
        %v1423 = vunpack.c.h.b16 %v556
        %v1424 = vunpack.c.l.b16 %v557
        %v1425 = vunpack.c.h.b16 %v557
        %v1426 = vunpack.c.l.b16 %v558
        %v1427 = vunpack.c.h.b16 %v558
        %v1428 = vunpack.c.l.b16 %v559
        %v1429 = vunpack.c.h.b16 %v559
        %v1430 = vunpack.c.l.b16 %v560
        %v1431 = vunpack.c.h.b16 %v560
        %v1432 = vunpack.c.l.b16 %v561
        %v1433 = vunpack.c.h.b16 %v561
        %v1434 = vunpack.c.l.b16 %v562
        %v1435 = vunpack.c.h.b16 %v562
        %v1436 = vunpack.c.l.b16 %v563
        %v1437 = vunpack.c.h.b16 %v563
        %v1438 = vunpack.c.l.b16 %v564
        %v1439 = vunpack.c.h.b16 %v564
        %v1440 = vunpack.c.l.b16 %v565
        %v1441 = vunpack.c.h.b16 %v565
        %v1442 = vunpack.c.l.b16 %v566
        %v1443 = vunpack.c.h.b16 %v566
        %v1444 = vunpack.c.l.b16 %v567
        %v1445 = vunpack.c.h.b16 %v567
        %v1446 = vunpack.c.l.b16 %v568
        %v1447 = vunpack.c.h.b16 %v568
        %v1448 = vunpack.c.l.b16 %v569
        %v1449 = vunpack.c.h.b16 %v569
        %v1450 = vunpack.c.l.b16 %v570
        %v1451 = vunpack.c.h.b16 %v570
        %v1452 = vunpack.c.l.b16 %v571
        %v1453 = vunpack.c.h.b16 %v571
        %v1454 = vunpack.c.l.b16 %v572
        %v1455 = vunpack.c.h.b16 %v572
        %v1456 = vunpack.c.l.b16 %v573
        %v1457 = vunpack.c.h.b16 %v573
        %v1458 = vunpack.c.l.b16 %v574
        %v1459 = vunpack.c.h.b16 %v574
        %v1460 = vunpack.c.l.b16 %v575
        %v1461 = vunpack.c.h.b16 %v575
        %v1462 = vunpack.c.l.b16 %v576
        %v1463 = vunpack.c.h.b16 %v576
        %v1464 = vunpack.c.l.b16 %v577
        %v1465 = vunpack.c.h.b16 %v577
        %v1466 = vunpack.c.l.b16 %v578
        %v1467 = vunpack.c.h.b16 %v578
        %v1468 = vunpack.c.l.b16 %v579
        %v1469 = vunpack.c.h.b16 %v579
        %v1470 = vunpack.c.l.b16 %v580
        %v1471 = vunpack.c.h.b16 %v580
        %v1472 = vunpack.c.l.b16 %v581
        %v1473 = vunpack.c.h.b16 %v581
        %v1474 = vunpack.c.l.b16 %v582
        %v1475 = vunpack.c.h.b16 %v582
        %v1476 = vunpack.c.l.b16 %v583
        %v1477 = vunpack.c.h.b16 %v583
        %v1478 = vunpack.c.l.b16 %v584
        %v1479 = vunpack.c.h.b16 %v584
        %v1480 = vunpack.c.l.b16 %v585
        %v1481 = vunpack.c.h.b16 %v585
        %v1482 = vunpack.c.l.b16 %v586
        %v1483 = vunpack.c.h.b16 %v586
        %v1484 = vunpack.c.l.b16 %v587
        %v1485 = vunpack.c.h.b16 %v587
        %v1486 = vunpack.c.l.b16 %v588
        %v1487 = vunpack.c.h.b16 %v588
        %v1488 = vunpack.c.l.b16 %v589
        %v1489 = vunpack.c.h.b16 %v589
        %v1490 = vunpack.c.l.b16 %v590
        %v1491 = vunpack.c.h.b16 %v590
        %v1492 = vunpack.c.l.b16 %v591
        %v1493 = vunpack.c.h.b16 %v591
        %v1494 = vunpack.c.l.b16 %v592
        %v1495 = vunpack.c.h.b16 %v592
        %v1496 = vunpack.c.l.b16 %v593
        %v1497 = vunpack.c.h.b16 %v593
        %v1498 = vunpack.c.l.b16 %v594
        %v1499 = vunpack.c.h.b16 %v594
        %v1500 = vunpack.c.l.b16 %v595
        %v1501 = vunpack.c.h.b16 %v595
        %v1502 = vunpack.c.l.b16 %v596
        %v1503 = vunpack.c.h.b16 %v596
        %v1504 = vunpack.c.l.b16 %v597
        %v1505 = vunpack.c.h.b16 %v597
        %v1506 = vunpack.c.l.b16 %v598
        %v1507 = vunpack.c.h.b16 %v598
        %v1508 = vunpack.c.l.b16 %v599
        %v1509 = vunpack.c.h.b16 %v599
        %v1510 = vunpack.c.l.b16 %v600
        %v1511 = vunpack.c.h.b16 %v600
        %v1512 = vunpack.c.l.b16 %v601
        %v1513 = vunpack.c.h.b16 %v601
        %v1514 = vunpack.c.l.b16 %v602
        %v1515 = vunpack.c.h.b16 %v602
        %v1516 = vunpack.c.l.b16 %v603
        %v1517 = vunpack.c.h.b16 %v603
        %v1518 = vunpack.c.l.b16 %v604
        %v1519 = vunpack.c.h.b16 %v604
        %v1520 = vunpack.c.l.b16 %v605
        %v1521 = vunpack.c.h.b16 %v605
        %v1522 = vunpack.c.l.b16 %v606
        %v1523 = vunpack.c.h.b16 %v606
        %v1524 = vunpack.c.l.b16 %v607
        %v1525 = vunpack.c.h.b16 %v607
        %v1526 = vunpack.c.l.b16 %v608
        %v1527 = vunpack.c.h.b16 %v608
        %v1528 = vunpack.c.l.b16 %v609
        %v1529 = vunpack.c.h.b16 %v609
        %v1530 = vunpack.c.l.b16 %v610
        %v1531 = vunpack.c.h.b16 %v610
        %v1532 = vunpack.c.l.b16 %v611
        %v1533 = vunpack.c.h.b16 %v611
        %v1534 = vunpack.c.l.b16 %v612
        %v1535 = vunpack.c.h.b16 %v612
        %v1536 = vunpack.c.l.b16 %v613
        %v1537 = vunpack.c.h.b16 %v613
        %v1538 = vunpack.c.l.b16 %v614
        %v1539 = vunpack.c.h.b16 %v614
        %v1540 = vunpack.c.l.b16 %v615
        %v1541 = vunpack.c.h.b16 %v615
        %v1542 = vunpack.c.l.b16 %v616
        %v1543 = vunpack.c.h.b16 %v616
        %v1544 = vunpack.c.l.b16 %v617
        %v1545 = vunpack.c.h.b16 %v617
        %v1546 = vunpack.c.l.b16 %v618
        %v1547 = vunpack.c.h.b16 %v618
        %v1548 = vunpack.c.l.b16 %v619
        %v1549 = vunpack.c.h.b16 %v619
        %v1550 = vunpack.c.l.b16 %v620
        %v1551 = vunpack.c.h.b16 %v620
        %v1552 = vunpack.c.l.b16 %v621
        %v1553 = vunpack.c.h.b16 %v621
        %v1554 = vunpack.c.l.b16 %v622
        %v1555 = vunpack.c.h.b16 %v622
        %v1556 = vunpack.c.l.b16 %v623
        %v1557 = vunpack.c.h.b16 %v623
        %v1558 = vunpack.c.l.b16 %v624
        %v1559 = vunpack.c.h.b16 %v624
        %v1560 = vunpack.c.l.b16 %v625
        %v1561 = vunpack.c.h.b16 %v625
        %v1562 = vunpack.c.l.b16 %v626
        %v1563 = vunpack.c.h.b16 %v626
        %v1564 = vunpack.c.l.b16 %v627
        %v1565 = vunpack.c.h.b16 %v627
        %v1566 = vunpack.c.l.b16 %v628
        %v1567 = vunpack.c.h.b16 %v628
        %v1568 = vunpack.c.l.b16 %v629
        %v1569 = vunpack.c.h.b16 %v629
        %v1570 = vunpack.c.l.b16 %v630
        %v1571 = vunpack.c.h.b16 %v630
        %v1572 = vunpack.c.l.b16 %v631
        %v1573 = vunpack.c.h.b16 %v631
        %v1574 = vunpack.c.l.b16 %v632
        %v1575 = vunpack.c.h.b16 %v632
        %v1576 = vunpack.c.l.b16 %v633
        %v1577 = vunpack.c.h.b16 %v633
        %v1578 = vunpack.c.l.b16 %v634
        %v1579 = vunpack.c.h.b16 %v634
        %v1580 = vunpack.c.l.b16 %v635
        %v1581 = vunpack.c.h.b16 %v635
        %v1582 = vpack.c.b16 %v1078, %v1070
        %v1583 = vpack.c.b16 %v1079, %v1071
        %v1584 = vpack.c.b16 %v1080, %v1072
        %v1585 = vpack.c.b16 %v1081, %v1073
        %v1586 = vpack.c.b16 %v1082, %v1074
        %v1587 = vpack.c.b16 %v1083, %v1075
        %v1588 = vpack.c.b16 %v1084, %v1076
        %v1589 = vpack.c.b16 %v1085, %v1077
        %v1590 = vpack.c.b16 %v1094, %v1086
        %v1591 = vpack.c.b16 %v1095, %v1087
        %v1592 = vpack.c.b16 %v1096, %v1088
        %v1593 = vpack.c.b16 %v1097, %v1089
        %v1594 = vpack.c.b16 %v1098, %v1090
        %v1595 = vpack.c.b16 %v1099, %v1091
        %v1596 = vpack.c.b16 %v1100, %v1092
        %v1597 = vpack.c.b16 %v1101, %v1093
        %v1598 = vpack.c.b16 %v1110, %v1102
        %v1599 = vpack.c.b16 %v1111, %v1103
        %v1600 = vpack.c.b16 %v1112, %v1104
        %v1601 = vpack.c.b16 %v1113, %v1105
        %v1602 = vpack.c.b16 %v1114, %v1106
        %v1603 = vpack.c.b16 %v1115, %v1107
        %v1604 = vpack.c.b16 %v1116, %v1108
        %v1605 = vpack.c.b16 %v1117, %v1109
        %v1606 = vpack.c.b16 %v1126, %v1118
        %v1607 = vpack.c.b16 %v1127, %v1119
        %v1608 = vpack.c.b16 %v1128, %v1120
        %v1609 = vpack.c.b16 %v1129, %v1121
        %v1610 = vpack.c.b16 %v1130, %v1122
        %v1611 = vpack.c.b16 %v1131, %v1123
        %v1612 = vpack.c.b16 %v1132, %v1124
        %v1613 = vpack.c.b16 %v1133, %v1125
        %v1614 = vpack.c.b16 %v1142, %v1134
        %v1615 = vpack.c.b16 %v1143, %v1135
        %v1616 = vpack.c.b16 %v1144, %v1136
        %v1617 = vpack.c.b16 %v1145, %v1137
        %v1618 = vpack.c.b16 %v1146, %v1138
        %v1619 = vpack.c.b16 %v1147, %v1139
        %v1620 = vpack.c.b16 %v1148, %v1140
        %v1621 = vpack.c.b16 %v1149, %v1141
        %v1622 = vpack.c.b16 %v1158, %v1150
        %v1623 = vpack.c.b16 %v1159, %v1151
        %v1624 = vpack.c.b16 %v1160, %v1152
        %v1625 = vpack.c.b16 %v1161, %v1153
        %v1626 = vpack.c.b16 %v1162, %v1154
        %v1627 = vpack.c.b16 %v1163, %v1155
        %v1628 = vpack.c.b16 %v1164, %v1156
        %v1629 = vpack.c.b16 %v1165, %v1157
        %v1630 = vpack.c.b16 %v1174, %v1166
        %v1631 = vpack.c.b16 %v1175, %v1167
        %v1632 = vpack.c.b16 %v1176, %v1168
        %v1633 = vpack.c.b16 %v1177, %v1169
        %v1634 = vpack.c.b16 %v1178, %v1170
        %v1635 = vpack.c.b16 %v1179, %v1171
        %v1636 = vpack.c.b16 %v1180, %v1172
        %v1637 = vpack.c.b16 %v1181, %v1173
        %v1638 = vpack.c.b16 %v1190, %v1182
        %v1639 = vpack.c.b16 %v1191, %v1183
        %v1640 = vpack.c.b16 %v1192, %v1184
        %v1641 = vpack.c.b16 %v1193, %v1185
        %v1642 = vpack.c.b16 %v1194, %v1186
        %v1643 = vpack.c.b16 %v1195, %v1187
        %v1644 = vpack.c.b16 %v1196, %v1188
        %v1645 = vpack.c.b16 %v1197, %v1189
        %v1646 = vpack.c.b16 %v1206, %v1198
        %v1647 = vpack.c.b16 %v1207, %v1199
        %v1648 = vpack.c.b16 %v1208, %v1200
        %v1649 = vpack.c.b16 %v1209, %v1201
        %v1650 = vpack.c.b16 %v1210, %v1202
        %v1651 = vpack.c.b16 %v1211, %v1203
        %v1652 = vpack.c.b16 %v1212, %v1204
        %v1653 = vpack.c.b16 %v1213, %v1205
        %v1654 = vpack.c.b16 %v1222, %v1214
        %v1655 = vpack.c.b16 %v1223, %v1215
        %v1656 = vpack.c.b16 %v1224, %v1216
        %v1657 = vpack.c.b16 %v1225, %v1217
        %v1658 = vpack.c.b16 %v1226, %v1218
        %v1659 = vpack.c.b16 %v1227, %v1219
        %v1660 = vpack.c.b16 %v1228, %v1220
        %v1661 = vpack.c.b16 %v1229, %v1221
        %v1662 = vpack.c.b16 %v1238, %v1230
        %v1663 = vpack.c.b16 %v1239, %v1231
        %v1664 = vpack.c.b16 %v1240, %v1232
        %v1665 = vpack.c.b16 %v1241, %v1233
        %v1666 = vpack.c.b16 %v1242, %v1234
        %v1667 = vpack.c.b16 %v1243, %v1235
        %v1668 = vpack.c.b16 %v1244, %v1236
        %v1669 = vpack.c.b16 %v1245, %v1237
        %v1670 = vpack.c.b16 %v1254, %v1246
        %v1671 = vpack.c.b16 %v1255, %v1247
        %v1672 = vpack.c.b16 %v1256, %v1248
        %v1673 = vpack.c.b16 %v1257, %v1249
        %v1674 = vpack.c.b16 %v1258, %v1250
        %v1675 = vpack.c.b16 %v1259, %v1251
        %v1676 = vpack.c.b16 %v1260, %v1252
        %v1677 = vpack.c.b16 %v1261, %v1253
        %v1678 = vpack.c.b16 %v1270, %v1262
        %v1679 = vpack.c.b16 %v1271, %v1263
        %v1680 = vpack.c.b16 %v1272, %v1264
        %v1681 = vpack.c.b16 %v1273, %v1265
        %v1682 = vpack.c.b16 %v1274, %v1266
        %v1683 = vpack.c.b16 %v1275, %v1267
        %v1684 = vpack.c.b16 %v1276, %v1268
        %v1685 = vpack.c.b16 %v1277, %v1269
        %v1686 = vpack.c.b16 %v1286, %v1278
        %v1687 = vpack.c.b16 %v1287, %v1279
        %v1688 = vpack.c.b16 %v1288, %v1280
        %v1689 = vpack.c.b16 %v1289, %v1281
        %v1690 = vpack.c.b16 %v1290, %v1282
        %v1691 = vpack.c.b16 %v1291, %v1283
        %v1692 = vpack.c.b16 %v1292, %v1284
        %v1693 = vpack.c.b16 %v1293, %v1285
        %v1694 = vpack.c.b16 %v1302, %v1294
        %v1695 = vpack.c.b16 %v1303, %v1295
        %v1696 = vpack.c.b16 %v1304, %v1296
        %v1697 = vpack.c.b16 %v1305, %v1297
        %v1698 = vpack.c.b16 %v1306, %v1298
        %v1699 = vpack.c.b16 %v1307, %v1299
        %v1700 = vpack.c.b16 %v1308, %v1300
        %v1701 = vpack.c.b16 %v1309, %v1301
        %v1702 = vpack.c.b16 %v1318, %v1310
        %v1703 = vpack.c.b16 %v1319, %v1311
        %v1704 = vpack.c.b16 %v1320, %v1312
        %v1705 = vpack.c.b16 %v1321, %v1313
        %v1706 = vpack.c.b16 %v1322, %v1314
        %v1707 = vpack.c.b16 %v1323, %v1315
        %v1708 = vpack.c.b16 %v1324, %v1316
        %v1709 = vpack.c.b16 %v1325, %v1317
        %v1710 = vpack.c.b16 %v1334, %v1326
        %v1711 = vpack.c.b16 %v1335, %v1327
        %v1712 = vpack.c.b16 %v1336, %v1328
        %v1713 = vpack.c.b16 %v1337, %v1329
        %v1714 = vpack.c.b16 %v1338, %v1330
        %v1715 = vpack.c.b16 %v1339, %v1331
        %v1716 = vpack.c.b16 %v1340, %v1332
        %v1717 = vpack.c.b16 %v1341, %v1333
        %v1718 = vpack.c.b16 %v1350, %v1342
        %v1719 = vpack.c.b16 %v1351, %v1343
        %v1720 = vpack.c.b16 %v1352, %v1344
        %v1721 = vpack.c.b16 %v1353, %v1345
        %v1722 = vpack.c.b16 %v1354, %v1346
        %v1723 = vpack.c.b16 %v1355, %v1347
        %v1724 = vpack.c.b16 %v1356, %v1348
        %v1725 = vpack.c.b16 %v1357, %v1349
        %v1726 = vpack.c.b16 %v1366, %v1358
        %v1727 = vpack.c.b16 %v1367, %v1359
        %v1728 = vpack.c.b16 %v1368, %v1360
        %v1729 = vpack.c.b16 %v1369, %v1361
        %v1730 = vpack.c.b16 %v1370, %v1362
        %v1731 = vpack.c.b16 %v1371, %v1363
        %v1732 = vpack.c.b16 %v1372, %v1364
        %v1733 = vpack.c.b16 %v1373, %v1365
        %v1734 = vpack.c.b16 %v1382, %v1374
        %v1735 = vpack.c.b16 %v1383, %v1375
        %v1736 = vpack.c.b16 %v1384, %v1376
        %v1737 = vpack.c.b16 %v1385, %v1377
        %v1738 = vpack.c.b16 %v1386, %v1378
        %v1739 = vpack.c.b16 %v1387, %v1379
        %v1740 = vpack.c.b16 %v1388, %v1380
        %v1741 = vpack.c.b16 %v1389, %v1381
        %v1742 = vpack.c.b16 %v1398, %v1390
        %v1743 = vpack.c.b16 %v1399, %v1391
        %v1744 = vpack.c.b16 %v1400, %v1392
        %v1745 = vpack.c.b16 %v1401, %v1393
        %v1746 = vpack.c.b16 %v1402, %v1394
        %v1747 = vpack.c.b16 %v1403, %v1395
        %v1748 = vpack.c.b16 %v1404, %v1396
        %v1749 = vpack.c.b16 %v1405, %v1397
        %v1750 = vpack.c.b16 %v1414, %v1406
        %v1751 = vpack.c.b16 %v1415, %v1407
        %v1752 = vpack.c.b16 %v1416, %v1408
        %v1753 = vpack.c.b16 %v1417, %v1409
        %v1754 = vpack.c.b16 %v1418, %v1410
        %v1755 = vpack.c.b16 %v1419, %v1411
        %v1756 = vpack.c.b16 %v1420, %v1412
        %v1757 = vpack.c.b16 %v1421, %v1413
        %v1758 = vpack.c.b16 %v1430, %v1422
        %v1759 = vpack.c.b16 %v1431, %v1423
        %v1760 = vpack.c.b16 %v1432, %v1424
        %v1761 = vpack.c.b16 %v1433, %v1425
        %v1762 = vpack.c.b16 %v1434, %v1426
        %v1763 = vpack.c.b16 %v1435, %v1427
        %v1764 = vpack.c.b16 %v1436, %v1428
        %v1765 = vpack.c.b16 %v1437, %v1429
        %v1766 = vpack.c.b16 %v1446, %v1438
        %v1767 = vpack.c.b16 %v1447, %v1439
        %v1768 = vpack.c.b16 %v1448, %v1440
        %v1769 = vpack.c.b16 %v1449, %v1441
        %v1770 = vpack.c.b16 %v1450, %v1442
        %v1771 = vpack.c.b16 %v1451, %v1443
        %v1772 = vpack.c.b16 %v1452, %v1444
        %v1773 = vpack.c.b16 %v1453, %v1445
        %v1774 = vpack.c.b16 %v1462, %v1454
        %v1775 = vpack.c.b16 %v1463, %v1455
        %v1776 = vpack.c.b16 %v1464, %v1456
        %v1777 = vpack.c.b16 %v1465, %v1457
        %v1778 = vpack.c.b16 %v1466, %v1458
        %v1779 = vpack.c.b16 %v1467, %v1459
        %v1780 = vpack.c.b16 %v1468, %v1460
        %v1781 = vpack.c.b16 %v1469, %v1461
        %v1782 = vpack.c.b16 %v1478, %v1470
        %v1783 = vpack.c.b16 %v1479, %v1471
        %v1784 = vpack.c.b16 %v1480, %v1472
        %v1785 = vpack.c.b16 %v1481, %v1473
        %v1786 = vpack.c.b16 %v1482, %v1474
        %v1787 = vpack.c.b16 %v1483, %v1475
        %v1788 = vpack.c.b16 %v1484, %v1476
        %v1789 = vpack.c.b16 %v1485, %v1477
        %v1790 = vpack.c.b16 %v1494, %v1486
        %v1791 = vpack.c.b16 %v1495, %v1487
        %v1792 = vpack.c.b16 %v1496, %v1488
        %v1793 = vpack.c.b16 %v1497, %v1489
        %v1794 = vpack.c.b16 %v1498, %v1490
        %v1795 = vpack.c.b16 %v1499, %v1491
        %v1796 = vpack.c.b16 %v1500, %v1492
        %v1797 = vpack.c.b16 %v1501, %v1493
        %v1798 = vpack.c.b16 %v1510, %v1502
        %v1799 = vpack.c.b16 %v1511, %v1503
        %v1800 = vpack.c.b16 %v1512, %v1504
        %v1801 = vpack.c.b16 %v1513, %v1505
        %v1802 = vpack.c.b16 %v1514, %v1506
        %v1803 = vpack.c.b16 %v1515, %v1507
        %v1804 = vpack.c.b16 %v1516, %v1508
        %v1805 = vpack.c.b16 %v1517, %v1509
        %v1806 = vpack.c.b16 %v1526, %v1518
        %v1807 = vpack.c.b16 %v1527, %v1519
        %v1808 = vpack.c.b16 %v1528, %v1520
        %v1809 = vpack.c.b16 %v1529, %v1521
        %v1810 = vpack.c.b16 %v1530, %v1522
        %v1811 = vpack.c.b16 %v1531, %v1523
        %v1812 = vpack.c.b16 %v1532, %v1524
        %v1813 = vpack.c.b16 %v1533, %v1525
        %v1814 = vpack.c.b16 %v1542, %v1534
        %v1815 = vpack.c.b16 %v1543, %v1535
        %v1816 = vpack.c.b16 %v1544, %v1536
        %v1817 = vpack.c.b16 %v1545, %v1537
        %v1818 = vpack.c.b16 %v1546, %v1538
        %v1819 = vpack.c.b16 %v1547, %v1539
        %v1820 = vpack.c.b16 %v1548, %v1540
        %v1821 = vpack.c.b16 %v1549, %v1541
        %v1822 = vpack.c.b16 %v1558, %v1550
        %v1823 = vpack.c.b16 %v1559, %v1551
        %v1824 = vpack.c.b16 %v1560, %v1552
        %v1825 = vpack.c.b16 %v1561, %v1553
        %v1826 = vpack.c.b16 %v1562, %v1554
        %v1827 = vpack.c.b16 %v1563, %v1555
        %v1828 = vpack.c.b16 %v1564, %v1556
        %v1829 = vpack.c.b16 %v1565, %v1557
        %v1830 = vpack.c.b16 %v1574, %v1566
        %v1831 = vpack.c.b16 %v1575, %v1567
        %v1832 = vpack.c.b16 %v1576, %v1568
        %v1833 = vpack.c.b16 %v1577, %v1569
        %v1834 = vpack.c.b16 %v1578, %v1570
        %v1835 = vpack.c.b16 %v1579, %v1571
        %v1836 = vpack.c.b16 %v1580, %v1572
        %v1837 = vpack.c.b16 %v1581, %v1573
        %2094 = vmatpush.bf16.msra.mxu0 %v1638
        %2095 = vmatpush.bf16.msra.mxu0 %v1630
        %2096 = vmatpush.bf16.msra.mxu0 %v1622
        %2097 = vmatpush.bf16.msra.mxu0 %v1614
        %2098 = vmatpush.bf16.msra.mxu0 %v1606
        %2099 = vmatpush.bf16.msra.mxu0 %v1598
        %2100 = vmatpush.bf16.msra.mxu0 %v1590
        %2101 = vmatpush.bf16.msra.mxu0 %v1582
        %2102 = vmatmul.bf16.gmra.mxu0 %v750
        %v2103 = vpop.f32.mrf.mxu0
        %v2104 = vadd.f32 %v638, %v2103
        %v2105 = vpop.f32.mrf.mxu0
        %v2106 = vadd.f32 %v638, %v2105
        %2107 = vmatmul.bf16.gmra.mxu0 %v754
        %v2108 = vpop.f32.mrf.mxu0
        %v2109 = vadd.f32 %v638, %v2108
        %v2110 = vpop.f32.mrf.mxu0
        %v2111 = vadd.f32 %v638, %v2110
        %2112 = vmatmul.bf16.gmra.mxu0 %v758
        %v2113 = vpop.f32.mrf.mxu0
        %v2114 = vadd.f32 %v638, %v2113
        %v2115 = vpop.f32.mrf.mxu0
        %v2116 = vadd.f32 %v638, %v2115
        %2117 = vmatmul.bf16.gmra.mxu0 %v762
        %v2118 = vpop.f32.mrf.mxu0
        %v2119 = vadd.f32 %v638, %v2118
        %v2120 = vpop.f32.mrf.mxu0
        %v2121 = vadd.f32 %v638, %v2120
        %2122 = vmatmul.bf16.gmra.mxu0 %v766
        %v2123 = vpop.f32.mrf.mxu0
        %v2124 = vadd.f32 %v638, %v2123
        %v2125 = vpop.f32.mrf.mxu0
        %v2126 = vadd.f32 %v638, %v2125
        %2127 = vmatmul.bf16.gmra.mxu0 %v770
        %v2128 = vpop.f32.mrf.mxu0
        %v2129 = vadd.f32 %v638, %v2128
        %v2130 = vpop.f32.mrf.mxu0
        %v2131 = vadd.f32 %v638, %v2130
        %2132 = vmatmul.bf16.gmra.mxu0 %v774
        %v2133 = vpop.f32.mrf.mxu0
        %v2134 = vadd.f32 %v638, %v2133
        %v2135 = vpop.f32.mrf.mxu0
        %v2136 = vadd.f32 %v638, %v2135
        %2137 = vmatmul.bf16.gmra.mxu0 %v778
        %v2138 = vpop.f32.mrf.mxu0
        %v2139 = vadd.f32 %v638, %v2138
        %v2140 = vpop.f32.mrf.mxu0
        %v2141 = vadd.f32 %v638, %v2140
        %2142 = vdwg.mxu0
        %2143 = vmatpush.bf16.msra.mxu0 %v1702
        %2144 = vmatpush.bf16.msra.mxu0 %v1694
        %2145 = vmatpush.bf16.msra.mxu0 %v1686
        %2146 = vmatpush.bf16.msra.mxu0 %v1678
        %2147 = vmatpush.bf16.msra.mxu0 %v1670
        %2148 = vmatpush.bf16.msra.mxu0 %v1662
        %2149 = vmatpush.bf16.msra.mxu0 %v1654
        %2150 = vmatpush.bf16.msra.mxu0 %v1646
        %2151 = vmatmul.bf16.gmra.mxu0 %v751
        %v2152 = vpop.f32.mrf.mxu0
        %v2153 = vadd.f32 %v2104, %v2152
        %v2154 = vpop.f32.mrf.mxu0
        %v2155 = vadd.f32 %v2106, %v2154
        %2156 = vmatmul.bf16.gmra.mxu0 %v755
        %v2157 = vpop.f32.mrf.mxu0
        %v2158 = vadd.f32 %v2109, %v2157
        %v2159 = vpop.f32.mrf.mxu0
        %v2160 = vadd.f32 %v2111, %v2159
        %2161 = vmatmul.bf16.gmra.mxu0 %v759
        %v2162 = vpop.f32.mrf.mxu0
        %v2163 = vadd.f32 %v2114, %v2162
        %v2164 = vpop.f32.mrf.mxu0
        %v2165 = vadd.f32 %v2116, %v2164
        %2166 = vmatmul.bf16.gmra.mxu0 %v763
        %v2167 = vpop.f32.mrf.mxu0
        %v2168 = vadd.f32 %v2119, %v2167
        %v2169 = vpop.f32.mrf.mxu0
        %v2170 = vadd.f32 %v2121, %v2169
        %2171 = vmatmul.bf16.gmra.mxu0 %v767
        %v2172 = vpop.f32.mrf.mxu0
        %v2173 = vadd.f32 %v2124, %v2172
        %v2174 = vpop.f32.mrf.mxu0
        %v2175 = vadd.f32 %v2126, %v2174
        %2176 = vmatmul.bf16.gmra.mxu0 %v771
        %v2177 = vpop.f32.mrf.mxu0
        %v2178 = vadd.f32 %v2129, %v2177
        %v2179 = vpop.f32.mrf.mxu0
        %v2180 = vadd.f32 %v2131, %v2179
        %2181 = vmatmul.bf16.gmra.mxu0 %v775
        %v2182 = vpop.f32.mrf.mxu0
        %v2183 = vadd.f32 %v2134, %v2182
        %v2184 = vpop.f32.mrf.mxu0
        %v2185 = vadd.f32 %v2136, %v2184
        %2186 = vmatmul.bf16.gmra.mxu0 %v779
        %v2187 = vpop.f32.mrf.mxu0
        %v2188 = vadd.f32 %v2139, %v2187
        %v2189 = vpop.f32.mrf.mxu0
        %v2190 = vadd.f32 %v2141, %v2189
        %2191 = vdwg.mxu0
        %2192 = vmatpush.bf16.msra.mxu0 %v1766
        %2193 = vmatpush.bf16.msra.mxu0 %v1758
        %2194 = vmatpush.bf16.msra.mxu0 %v1750
        %2195 = vmatpush.bf16.msra.mxu0 %v1742
        %2196 = vmatpush.bf16.msra.mxu0 %v1734
        %2197 = vmatpush.bf16.msra.mxu0 %v1726
        %2198 = vmatpush.bf16.msra.mxu0 %v1718
        %2199 = vmatpush.bf16.msra.mxu0 %v1710
        %2200 = vmatmul.bf16.gmra.mxu0 %v752
        %v2201 = vpop.f32.mrf.mxu0
        %v2202 = vadd.f32 %v2153, %v2201
        %v2203 = vpop.f32.mrf.mxu0
        %v2204 = vadd.f32 %v2155, %v2203
        %2205 = vmatmul.bf16.gmra.mxu0 %v756
        %v2206 = vpop.f32.mrf.mxu0
        %v2207 = vadd.f32 %v2158, %v2206
        %v2208 = vpop.f32.mrf.mxu0
        %v2209 = vadd.f32 %v2160, %v2208
        %2210 = vmatmul.bf16.gmra.mxu0 %v760
        %v2211 = vpop.f32.mrf.mxu0
        %v2212 = vadd.f32 %v2163, %v2211
        %v2213 = vpop.f32.mrf.mxu0
        %v2214 = vadd.f32 %v2165, %v2213
        %2215 = vmatmul.bf16.gmra.mxu0 %v764
        %v2216 = vpop.f32.mrf.mxu0
        %v2217 = vadd.f32 %v2168, %v2216
        %v2218 = vpop.f32.mrf.mxu0
        %v2219 = vadd.f32 %v2170, %v2218
        %2220 = vmatmul.bf16.gmra.mxu0 %v768
        %v2221 = vpop.f32.mrf.mxu0
        %v2222 = vadd.f32 %v2173, %v2221
        %v2223 = vpop.f32.mrf.mxu0
        %v2224 = vadd.f32 %v2175, %v2223
        %2225 = vmatmul.bf16.gmra.mxu0 %v772
        %v2226 = vpop.f32.mrf.mxu0
        %v2227 = vadd.f32 %v2178, %v2226
        %v2228 = vpop.f32.mrf.mxu0
        %v2229 = vadd.f32 %v2180, %v2228
        %2230 = vmatmul.bf16.gmra.mxu0 %v776
        %v2231 = vpop.f32.mrf.mxu0
        %v2232 = vadd.f32 %v2183, %v2231
        %v2233 = vpop.f32.mrf.mxu0
        %v2234 = vadd.f32 %v2185, %v2233
        %2235 = vmatmul.bf16.gmra.mxu0 %v780
        %v2236 = vpop.f32.mrf.mxu0
        %v2237 = vadd.f32 %v2188, %v2236
        %v2238 = vpop.f32.mrf.mxu0
        %v2239 = vadd.f32 %v2190, %v2238
        %2240 = vdwg.mxu0
        %2241 = vmatpush.bf16.msra.mxu0 %v1830
        %2242 = vmatpush.bf16.msra.mxu0 %v1822
        %2243 = vmatpush.bf16.msra.mxu0 %v1814
        %2244 = vmatpush.bf16.msra.mxu0 %v1806
        %2245 = vmatpush.bf16.msra.mxu0 %v1798
        %2246 = vmatpush.bf16.msra.mxu0 %v1790
        %2247 = vmatpush.bf16.msra.mxu0 %v1782
        %2248 = vmatpush.bf16.msra.mxu0 %v1774
        %2249 = vmatmul.bf16.gmra.mxu0 %v753
        %v2250 = vpop.f32.mrf.mxu0
        %v2251 = vadd.f32 %v2202, %v2250
        %v2252 = vpop.f32.mrf.mxu0
        %v2253 = vadd.f32 %v2204, %v2252
        %2254 = vmatmul.bf16.gmra.mxu0 %v757
        %v2255 = vpop.f32.mrf.mxu0
        %v2256 = vadd.f32 %v2207, %v2255
        %v2257 = vpop.f32.mrf.mxu0
        %v2258 = vadd.f32 %v2209, %v2257
        %2259 = vmatmul.bf16.gmra.mxu0 %v761
        %v2260 = vpop.f32.mrf.mxu0
        %v2261 = vadd.f32 %v2212, %v2260
        %v2262 = vpop.f32.mrf.mxu0
        %v2263 = vadd.f32 %v2214, %v2262
        %2264 = vmatmul.bf16.gmra.mxu0 %v765
        %v2265 = vpop.f32.mrf.mxu0
        %v2266 = vadd.f32 %v2217, %v2265
        %v2267 = vpop.f32.mrf.mxu0
        %v2268 = vadd.f32 %v2219, %v2267
        %2269 = vmatmul.bf16.gmra.mxu0 %v769
        %v2270 = vpop.f32.mrf.mxu0
        %v2271 = vadd.f32 %v2222, %v2270
        %v2272 = vpop.f32.mrf.mxu0
        %v2273 = vadd.f32 %v2224, %v2272
        %2274 = vmatmul.bf16.gmra.mxu0 %v773
        %v2275 = vpop.f32.mrf.mxu0
        %v2276 = vadd.f32 %v2227, %v2275
        %v2277 = vpop.f32.mrf.mxu0
        %v2278 = vadd.f32 %v2229, %v2277
        %2279 = vmatmul.bf16.gmra.mxu0 %v777
        %v2280 = vpop.f32.mrf.mxu0
        %v2281 = vadd.f32 %v2232, %v2280
        %v2282 = vpop.f32.mrf.mxu0
        %v2283 = vadd.f32 %v2234, %v2282
        %2284 = vmatmul.bf16.gmra.mxu0 %v781
        %v2285 = vpop.f32.mrf.mxu0
        %v2286 = vadd.f32 %v2237, %v2285
        %v2287 = vpop.f32.mrf.mxu0
        %v2288 = vadd.f32 %v2239, %v2287
        %2289 = vdwg.mxu0
        %2290 = vmatpush.bf16.msra.mxu0 %v1639
        %2291 = vmatpush.bf16.msra.mxu0 %v1631
        %2292 = vmatpush.bf16.msra.mxu0 %v1623
        %2293 = vmatpush.bf16.msra.mxu0 %v1615
        %2294 = vmatpush.bf16.msra.mxu0 %v1607
        %2295 = vmatpush.bf16.msra.mxu0 %v1599
        %2296 = vmatpush.bf16.msra.mxu0 %v1591
        %2297 = vmatpush.bf16.msra.mxu0 %v1583
        %2298 = vmatmul.bf16.gmra.mxu0 %v750
        %v2299 = vpop.f32.mrf.mxu0
        %v2300 = vadd.f32 %v639, %v2299
        %v2301 = vpop.f32.mrf.mxu0
        %v2302 = vadd.f32 %v639, %v2301
        %2303 = vmatmul.bf16.gmra.mxu0 %v754
        %v2304 = vpop.f32.mrf.mxu0
        %v2305 = vadd.f32 %v639, %v2304
        %v2306 = vpop.f32.mrf.mxu0
        %v2307 = vadd.f32 %v639, %v2306
        %2308 = vmatmul.bf16.gmra.mxu0 %v758
        %v2309 = vpop.f32.mrf.mxu0
        %v2310 = vadd.f32 %v639, %v2309
        %v2311 = vpop.f32.mrf.mxu0
        %v2312 = vadd.f32 %v639, %v2311
        %2313 = vmatmul.bf16.gmra.mxu0 %v762
        %v2314 = vpop.f32.mrf.mxu0
        %v2315 = vadd.f32 %v639, %v2314
        %v2316 = vpop.f32.mrf.mxu0
        %v2317 = vadd.f32 %v639, %v2316
        %2318 = vmatmul.bf16.gmra.mxu0 %v766
        %v2319 = vpop.f32.mrf.mxu0
        %v2320 = vadd.f32 %v639, %v2319
        %v2321 = vpop.f32.mrf.mxu0
        %v2322 = vadd.f32 %v639, %v2321
        %2323 = vmatmul.bf16.gmra.mxu0 %v770
        %v2324 = vpop.f32.mrf.mxu0
        %v2325 = vadd.f32 %v639, %v2324
        %v2326 = vpop.f32.mrf.mxu0
        %v2327 = vadd.f32 %v639, %v2326
        %2328 = vmatmul.bf16.gmra.mxu0 %v774
        %v2329 = vpop.f32.mrf.mxu0
        %v2330 = vadd.f32 %v639, %v2329
        %v2331 = vpop.f32.mrf.mxu0
        %v2332 = vadd.f32 %v639, %v2331
        %2333 = vmatmul.bf16.gmra.mxu0 %v778
        %v2334 = vpop.f32.mrf.mxu0
        %v2335 = vadd.f32 %v639, %v2334
        %v2336 = vpop.f32.mrf.mxu0
        %v2337 = vadd.f32 %v639, %v2336
        %2338 = vdwg.mxu0
        %2339 = vmatpush.bf16.msra.mxu0 %v1703
        %2340 = vmatpush.bf16.msra.mxu0 %v1695
        %2341 = vmatpush.bf16.msra.mxu0 %v1687
        %2342 = vmatpush.bf16.msra.mxu0 %v1679
        %2343 = vmatpush.bf16.msra.mxu0 %v1671
        %2344 = vmatpush.bf16.msra.mxu0 %v1663
        %2345 = vmatpush.bf16.msra.mxu0 %v1655
        %2346 = vmatpush.bf16.msra.mxu0 %v1647
        %2347 = vmatmul.bf16.gmra.mxu0 %v751
        %v2348 = vpop.f32.mrf.mxu0
        %v2349 = vadd.f32 %v2300, %v2348
        %v2350 = vpop.f32.mrf.mxu0
        %v2351 = vadd.f32 %v2302, %v2350
        %2352 = vmatmul.bf16.gmra.mxu0 %v755
        %v2353 = vpop.f32.mrf.mxu0
        %v2354 = vadd.f32 %v2305, %v2353
        %v2355 = vpop.f32.mrf.mxu0
        %v2356 = vadd.f32 %v2307, %v2355
        %2357 = vmatmul.bf16.gmra.mxu0 %v759
        %v2358 = vpop.f32.mrf.mxu0
        %v2359 = vadd.f32 %v2310, %v2358
        %v2360 = vpop.f32.mrf.mxu0
        %v2361 = vadd.f32 %v2312, %v2360
        %2362 = vmatmul.bf16.gmra.mxu0 %v763
        %v2363 = vpop.f32.mrf.mxu0
        %v2364 = vadd.f32 %v2315, %v2363
        %v2365 = vpop.f32.mrf.mxu0
        %v2366 = vadd.f32 %v2317, %v2365
        %2367 = vmatmul.bf16.gmra.mxu0 %v767
        %v2368 = vpop.f32.mrf.mxu0
        %v2369 = vadd.f32 %v2320, %v2368
        %v2370 = vpop.f32.mrf.mxu0
        %v2371 = vadd.f32 %v2322, %v2370
        %2372 = vmatmul.bf16.gmra.mxu0 %v771
        %v2373 = vpop.f32.mrf.mxu0
        %v2374 = vadd.f32 %v2325, %v2373
        %v2375 = vpop.f32.mrf.mxu0
        %v2376 = vadd.f32 %v2327, %v2375
        %2377 = vmatmul.bf16.gmra.mxu0 %v775
        %v2378 = vpop.f32.mrf.mxu0
        %v2379 = vadd.f32 %v2330, %v2378
        %v2380 = vpop.f32.mrf.mxu0
        %v2381 = vadd.f32 %v2332, %v2380
        %2382 = vmatmul.bf16.gmra.mxu0 %v779
        %v2383 = vpop.f32.mrf.mxu0
        %v2384 = vadd.f32 %v2335, %v2383
        %v2385 = vpop.f32.mrf.mxu0
        %v2386 = vadd.f32 %v2337, %v2385
        %2387 = vdwg.mxu0
        %2388 = vmatpush.bf16.msra.mxu0 %v1767
        %2389 = vmatpush.bf16.msra.mxu0 %v1759
        %2390 = vmatpush.bf16.msra.mxu0 %v1751
        %2391 = vmatpush.bf16.msra.mxu0 %v1743
        %2392 = vmatpush.bf16.msra.mxu0 %v1735
        %2393 = vmatpush.bf16.msra.mxu0 %v1727
        %2394 = vmatpush.bf16.msra.mxu0 %v1719
        %2395 = vmatpush.bf16.msra.mxu0 %v1711
        %2396 = vmatmul.bf16.gmra.mxu0 %v752
        %v2397 = vpop.f32.mrf.mxu0
        %v2398 = vadd.f32 %v2349, %v2397
        %v2399 = vpop.f32.mrf.mxu0
        %v2400 = vadd.f32 %v2351, %v2399
        %2401 = vmatmul.bf16.gmra.mxu0 %v756
        %v2402 = vpop.f32.mrf.mxu0
        %v2403 = vadd.f32 %v2354, %v2402
        %v2404 = vpop.f32.mrf.mxu0
        %v2405 = vadd.f32 %v2356, %v2404
        %2406 = vmatmul.bf16.gmra.mxu0 %v760
        %v2407 = vpop.f32.mrf.mxu0
        %v2408 = vadd.f32 %v2359, %v2407
        %v2409 = vpop.f32.mrf.mxu0
        %v2410 = vadd.f32 %v2361, %v2409
        %2411 = vmatmul.bf16.gmra.mxu0 %v764
        %v2412 = vpop.f32.mrf.mxu0
        %v2413 = vadd.f32 %v2364, %v2412
        %v2414 = vpop.f32.mrf.mxu0
        %v2415 = vadd.f32 %v2366, %v2414
        %2416 = vmatmul.bf16.gmra.mxu0 %v768
        %v2417 = vpop.f32.mrf.mxu0
        %v2418 = vadd.f32 %v2369, %v2417
        %v2419 = vpop.f32.mrf.mxu0
        %v2420 = vadd.f32 %v2371, %v2419
        %2421 = vmatmul.bf16.gmra.mxu0 %v772
        %v2422 = vpop.f32.mrf.mxu0
        %v2423 = vadd.f32 %v2374, %v2422
        %v2424 = vpop.f32.mrf.mxu0
        %v2425 = vadd.f32 %v2376, %v2424
        %2426 = vmatmul.bf16.gmra.mxu0 %v776
        %v2427 = vpop.f32.mrf.mxu0
        %v2428 = vadd.f32 %v2379, %v2427
        %v2429 = vpop.f32.mrf.mxu0
        %v2430 = vadd.f32 %v2381, %v2429
        %2431 = vmatmul.bf16.gmra.mxu0 %v780
        %v2432 = vpop.f32.mrf.mxu0
        %v2433 = vadd.f32 %v2384, %v2432
        %v2434 = vpop.f32.mrf.mxu0
        %v2435 = vadd.f32 %v2386, %v2434
        %2436 = vdwg.mxu0
        %2437 = vmatpush.bf16.msra.mxu0 %v1831
        %2438 = vmatpush.bf16.msra.mxu0 %v1823
        %2439 = vmatpush.bf16.msra.mxu0 %v1815
        %2440 = vmatpush.bf16.msra.mxu0 %v1807
        %2441 = vmatpush.bf16.msra.mxu0 %v1799
        %2442 = vmatpush.bf16.msra.mxu0 %v1791
        %2443 = vmatpush.bf16.msra.mxu0 %v1783
        %2444 = vmatpush.bf16.msra.mxu0 %v1775
        %2445 = vmatmul.bf16.gmra.mxu0 %v753
        %v2446 = vpop.f32.mrf.mxu0
        %v2447 = vadd.f32 %v2398, %v2446
        %v2448 = vpop.f32.mrf.mxu0
        %v2449 = vadd.f32 %v2400, %v2448
        %2450 = vmatmul.bf16.gmra.mxu0 %v757
        %v2451 = vpop.f32.mrf.mxu0
        %v2452 = vadd.f32 %v2403, %v2451
        %v2453 = vpop.f32.mrf.mxu0
        %v2454 = vadd.f32 %v2405, %v2453
        %2455 = vmatmul.bf16.gmra.mxu0 %v761
        %v2456 = vpop.f32.mrf.mxu0
        %v2457 = vadd.f32 %v2408, %v2456
        %v2458 = vpop.f32.mrf.mxu0
        %v2459 = vadd.f32 %v2410, %v2458
        %2460 = vmatmul.bf16.gmra.mxu0 %v765
        %v2461 = vpop.f32.mrf.mxu0
        %v2462 = vadd.f32 %v2413, %v2461
        %v2463 = vpop.f32.mrf.mxu0
        %v2464 = vadd.f32 %v2415, %v2463
        %2465 = vmatmul.bf16.gmra.mxu0 %v769
        %v2466 = vpop.f32.mrf.mxu0
        %v2467 = vadd.f32 %v2418, %v2466
        %v2468 = vpop.f32.mrf.mxu0
        %v2469 = vadd.f32 %v2420, %v2468
        %2470 = vmatmul.bf16.gmra.mxu0 %v773
        %v2471 = vpop.f32.mrf.mxu0
        %v2472 = vadd.f32 %v2423, %v2471
        %v2473 = vpop.f32.mrf.mxu0
        %v2474 = vadd.f32 %v2425, %v2473
        %2475 = vmatmul.bf16.gmra.mxu0 %v777
        %v2476 = vpop.f32.mrf.mxu0
        %v2477 = vadd.f32 %v2428, %v2476
        %v2478 = vpop.f32.mrf.mxu0
        %v2479 = vadd.f32 %v2430, %v2478
        %2480 = vmatmul.bf16.gmra.mxu0 %v781
        %v2481 = vpop.f32.mrf.mxu0
        %v2482 = vadd.f32 %v2433, %v2481
        %v2483 = vpop.f32.mrf.mxu0
        %v2484 = vadd.f32 %v2435, %v2483
        %2485 = vdwg.mxu0
        %2486 = vmatpush.bf16.msra.mxu0 %v1640
        %2487 = vmatpush.bf16.msra.mxu0 %v1632
        %2488 = vmatpush.bf16.msra.mxu0 %v1624
        %2489 = vmatpush.bf16.msra.mxu0 %v1616
        %2490 = vmatpush.bf16.msra.mxu0 %v1608
        %2491 = vmatpush.bf16.msra.mxu0 %v1600
        %2492 = vmatpush.bf16.msra.mxu0 %v1592
        %2493 = vmatpush.bf16.msra.mxu0 %v1584
        %2494 = vmatmul.bf16.gmra.mxu0 %v750
        %v2495 = vpop.f32.mrf.mxu0
        %v2496 = vadd.f32 %v640, %v2495
        %v2497 = vpop.f32.mrf.mxu0
        %v2498 = vadd.f32 %v640, %v2497
        %2499 = vmatmul.bf16.gmra.mxu0 %v754
        %v2500 = vpop.f32.mrf.mxu0
        %v2501 = vadd.f32 %v640, %v2500
        %v2502 = vpop.f32.mrf.mxu0
        %v2503 = vadd.f32 %v640, %v2502
        %2504 = vmatmul.bf16.gmra.mxu0 %v758
        %v2505 = vpop.f32.mrf.mxu0
        %v2506 = vadd.f32 %v640, %v2505
        %v2507 = vpop.f32.mrf.mxu0
        %v2508 = vadd.f32 %v640, %v2507
        %2509 = vmatmul.bf16.gmra.mxu0 %v762
        %v2510 = vpop.f32.mrf.mxu0
        %v2511 = vadd.f32 %v640, %v2510
        %v2512 = vpop.f32.mrf.mxu0
        %v2513 = vadd.f32 %v640, %v2512
        %2514 = vmatmul.bf16.gmra.mxu0 %v766
        %v2515 = vpop.f32.mrf.mxu0
        %v2516 = vadd.f32 %v640, %v2515
        %v2517 = vpop.f32.mrf.mxu0
        %v2518 = vadd.f32 %v640, %v2517
        %2519 = vmatmul.bf16.gmra.mxu0 %v770
        %v2520 = vpop.f32.mrf.mxu0
        %v2521 = vadd.f32 %v640, %v2520
        %v2522 = vpop.f32.mrf.mxu0
        %v2523 = vadd.f32 %v640, %v2522
        %2524 = vmatmul.bf16.gmra.mxu0 %v774
        %v2525 = vpop.f32.mrf.mxu0
        %v2526 = vadd.f32 %v640, %v2525
        %v2527 = vpop.f32.mrf.mxu0
        %v2528 = vadd.f32 %v640, %v2527
        %2529 = vmatmul.bf16.gmra.mxu0 %v778
        %v2530 = vpop.f32.mrf.mxu0
        %v2531 = vadd.f32 %v640, %v2530
        %v2532 = vpop.f32.mrf.mxu0
        %v2533 = vadd.f32 %v640, %v2532
        %2534 = vdwg.mxu0
        %2535 = vmatpush.bf16.msra.mxu0 %v1704
        %2536 = vmatpush.bf16.msra.mxu0 %v1696
        %2537 = vmatpush.bf16.msra.mxu0 %v1688
        %2538 = vmatpush.bf16.msra.mxu0 %v1680
        %2539 = vmatpush.bf16.msra.mxu0 %v1672
        %2540 = vmatpush.bf16.msra.mxu0 %v1664
        %2541 = vmatpush.bf16.msra.mxu0 %v1656
        %2542 = vmatpush.bf16.msra.mxu0 %v1648
        %2543 = vmatmul.bf16.gmra.mxu0 %v751
        %v2544 = vpop.f32.mrf.mxu0
        %v2545 = vadd.f32 %v2496, %v2544
        %v2546 = vpop.f32.mrf.mxu0
        %v2547 = vadd.f32 %v2498, %v2546
        %2548 = vmatmul.bf16.gmra.mxu0 %v755
        %v2549 = vpop.f32.mrf.mxu0
        %v2550 = vadd.f32 %v2501, %v2549
        %v2551 = vpop.f32.mrf.mxu0
        %v2552 = vadd.f32 %v2503, %v2551
        %2553 = vmatmul.bf16.gmra.mxu0 %v759
        %v2554 = vpop.f32.mrf.mxu0
        %v2555 = vadd.f32 %v2506, %v2554
        %v2556 = vpop.f32.mrf.mxu0
        %v2557 = vadd.f32 %v2508, %v2556
        %2558 = vmatmul.bf16.gmra.mxu0 %v763
        %v2559 = vpop.f32.mrf.mxu0
        %v2560 = vadd.f32 %v2511, %v2559
        %v2561 = vpop.f32.mrf.mxu0
        %v2562 = vadd.f32 %v2513, %v2561
        %2563 = vmatmul.bf16.gmra.mxu0 %v767
        %v2564 = vpop.f32.mrf.mxu0
        %v2565 = vadd.f32 %v2516, %v2564
        %v2566 = vpop.f32.mrf.mxu0
        %v2567 = vadd.f32 %v2518, %v2566
        %2568 = vmatmul.bf16.gmra.mxu0 %v771
        %v2569 = vpop.f32.mrf.mxu0
        %v2570 = vadd.f32 %v2521, %v2569
        %v2571 = vpop.f32.mrf.mxu0
        %v2572 = vadd.f32 %v2523, %v2571
        %2573 = vmatmul.bf16.gmra.mxu0 %v775
        %v2574 = vpop.f32.mrf.mxu0
        %v2575 = vadd.f32 %v2526, %v2574
        %v2576 = vpop.f32.mrf.mxu0
        %v2577 = vadd.f32 %v2528, %v2576
        %2578 = vmatmul.bf16.gmra.mxu0 %v779
        %v2579 = vpop.f32.mrf.mxu0
        %v2580 = vadd.f32 %v2531, %v2579
        %v2581 = vpop.f32.mrf.mxu0
        %v2582 = vadd.f32 %v2533, %v2581
        %2583 = vdwg.mxu0
        %2584 = vmatpush.bf16.msra.mxu0 %v1768
        %2585 = vmatpush.bf16.msra.mxu0 %v1760
        %2586 = vmatpush.bf16.msra.mxu0 %v1752
        %2587 = vmatpush.bf16.msra.mxu0 %v1744
        %2588 = vmatpush.bf16.msra.mxu0 %v1736
        %2589 = vmatpush.bf16.msra.mxu0 %v1728
        %2590 = vmatpush.bf16.msra.mxu0 %v1720
        %2591 = vmatpush.bf16.msra.mxu0 %v1712
        %2592 = vmatmul.bf16.gmra.mxu0 %v752
        %v2593 = vpop.f32.mrf.mxu0
        %v2594 = vadd.f32 %v2545, %v2593
        %v2595 = vpop.f32.mrf.mxu0
        %v2596 = vadd.f32 %v2547, %v2595
        %2597 = vmatmul.bf16.gmra.mxu0 %v756
        %v2598 = vpop.f32.mrf.mxu0
        %v2599 = vadd.f32 %v2550, %v2598
        %v2600 = vpop.f32.mrf.mxu0
        %v2601 = vadd.f32 %v2552, %v2600
        %2602 = vmatmul.bf16.gmra.mxu0 %v760
        %v2603 = vpop.f32.mrf.mxu0
        %v2604 = vadd.f32 %v2555, %v2603
        %v2605 = vpop.f32.mrf.mxu0
        %v2606 = vadd.f32 %v2557, %v2605
        %2607 = vmatmul.bf16.gmra.mxu0 %v764
        %v2608 = vpop.f32.mrf.mxu0
        %v2609 = vadd.f32 %v2560, %v2608
        %v2610 = vpop.f32.mrf.mxu0
        %v2611 = vadd.f32 %v2562, %v2610
        %2612 = vmatmul.bf16.gmra.mxu0 %v768
        %v2613 = vpop.f32.mrf.mxu0
        %v2614 = vadd.f32 %v2565, %v2613
        %v2615 = vpop.f32.mrf.mxu0
        %v2616 = vadd.f32 %v2567, %v2615
        %2617 = vmatmul.bf16.gmra.mxu0 %v772
        %v2618 = vpop.f32.mrf.mxu0
        %v2619 = vadd.f32 %v2570, %v2618
        %v2620 = vpop.f32.mrf.mxu0
        %v2621 = vadd.f32 %v2572, %v2620
        %2622 = vmatmul.bf16.gmra.mxu0 %v776
        %v2623 = vpop.f32.mrf.mxu0
        %v2624 = vadd.f32 %v2575, %v2623
        %v2625 = vpop.f32.mrf.mxu0
        %v2626 = vadd.f32 %v2577, %v2625
        %2627 = vmatmul.bf16.gmra.mxu0 %v780
        %v2628 = vpop.f32.mrf.mxu0
        %v2629 = vadd.f32 %v2580, %v2628
        %v2630 = vpop.f32.mrf.mxu0
        %v2631 = vadd.f32 %v2582, %v2630
        %2632 = vdwg.mxu0
        %2633 = vmatpush.bf16.msra.mxu0 %v1832
        %2634 = vmatpush.bf16.msra.mxu0 %v1824
        %2635 = vmatpush.bf16.msra.mxu0 %v1816
        %2636 = vmatpush.bf16.msra.mxu0 %v1808
        %2637 = vmatpush.bf16.msra.mxu0 %v1800
        %2638 = vmatpush.bf16.msra.mxu0 %v1792
        %2639 = vmatpush.bf16.msra.mxu0 %v1784
        %2640 = vmatpush.bf16.msra.mxu0 %v1776
        %2641 = vmatmul.bf16.gmra.mxu0 %v753
        %v2642 = vpop.f32.mrf.mxu0
        %v2643 = vadd.f32 %v2594, %v2642
        %v2644 = vpop.f32.mrf.mxu0
        %v2645 = vadd.f32 %v2596, %v2644
        %2646 = vmatmul.bf16.gmra.mxu0 %v757
        %v2647 = vpop.f32.mrf.mxu0
        %v2648 = vadd.f32 %v2599, %v2647
        %v2649 = vpop.f32.mrf.mxu0
        %v2650 = vadd.f32 %v2601, %v2649
        %2651 = vmatmul.bf16.gmra.mxu0 %v761
        %v2652 = vpop.f32.mrf.mxu0
        %v2653 = vadd.f32 %v2604, %v2652
        %v2654 = vpop.f32.mrf.mxu0
        %v2655 = vadd.f32 %v2606, %v2654
        %2656 = vmatmul.bf16.gmra.mxu0 %v765
        %v2657 = vpop.f32.mrf.mxu0
        %v2658 = vadd.f32 %v2609, %v2657
        %v2659 = vpop.f32.mrf.mxu0
        %v2660 = vadd.f32 %v2611, %v2659
        %2661 = vmatmul.bf16.gmra.mxu0 %v769
        %v2662 = vpop.f32.mrf.mxu0
        %v2663 = vadd.f32 %v2614, %v2662
        %v2664 = vpop.f32.mrf.mxu0
        %v2665 = vadd.f32 %v2616, %v2664
        %2666 = vmatmul.bf16.gmra.mxu0 %v773
        %v2667 = vpop.f32.mrf.mxu0
        %v2668 = vadd.f32 %v2619, %v2667
        %v2669 = vpop.f32.mrf.mxu0
        %v2670 = vadd.f32 %v2621, %v2669
        %2671 = vmatmul.bf16.gmra.mxu0 %v777
        %v2672 = vpop.f32.mrf.mxu0
        %v2673 = vadd.f32 %v2624, %v2672
        %v2674 = vpop.f32.mrf.mxu0
        %v2675 = vadd.f32 %v2626, %v2674
        %2676 = vmatmul.bf16.gmra.mxu0 %v781
        %v2677 = vpop.f32.mrf.mxu0
        %v2678 = vadd.f32 %v2629, %v2677
        %v2679 = vpop.f32.mrf.mxu0
        %v2680 = vadd.f32 %v2631, %v2679
        %2681 = vdwg.mxu0
        %2682 = vmatpush.bf16.msra.mxu0 %v1641
        %2683 = vmatpush.bf16.msra.mxu0 %v1633
        %2684 = vmatpush.bf16.msra.mxu0 %v1625
        %2685 = vmatpush.bf16.msra.mxu0 %v1617
        %2686 = vmatpush.bf16.msra.mxu0 %v1609
        %2687 = vmatpush.bf16.msra.mxu0 %v1601
        %2688 = vmatpush.bf16.msra.mxu0 %v1593
        %2689 = vmatpush.bf16.msra.mxu0 %v1585
        %2690 = vmatmul.bf16.gmra.mxu0 %v750
        %v2691 = vpop.f32.mrf.mxu0
        %v2692 = vadd.f32 %v641, %v2691
        %v2693 = vpop.f32.mrf.mxu0
        %v2694 = vadd.f32 %v641, %v2693
        %2695 = vmatmul.bf16.gmra.mxu0 %v754
        %v2696 = vpop.f32.mrf.mxu0
        %v2697 = vadd.f32 %v641, %v2696
        %v2698 = vpop.f32.mrf.mxu0
        %v2699 = vadd.f32 %v641, %v2698
        %2700 = vmatmul.bf16.gmra.mxu0 %v758
        %v2701 = vpop.f32.mrf.mxu0
        %v2702 = vadd.f32 %v641, %v2701
        %v2703 = vpop.f32.mrf.mxu0
        %v2704 = vadd.f32 %v641, %v2703
        %2705 = vmatmul.bf16.gmra.mxu0 %v762
        %v2706 = vpop.f32.mrf.mxu0
        %v2707 = vadd.f32 %v641, %v2706
        %v2708 = vpop.f32.mrf.mxu0
        %v2709 = vadd.f32 %v641, %v2708
        %2710 = vmatmul.bf16.gmra.mxu0 %v766
        %v2711 = vpop.f32.mrf.mxu0
        %v2712 = vadd.f32 %v641, %v2711
        %v2713 = vpop.f32.mrf.mxu0
        %v2714 = vadd.f32 %v641, %v2713
        %2715 = vmatmul.bf16.gmra.mxu0 %v770
        %v2716 = vpop.f32.mrf.mxu0
        %v2717 = vadd.f32 %v641, %v2716
        %v2718 = vpop.f32.mrf.mxu0
        %v2719 = vadd.f32 %v641, %v2718
        %2720 = vmatmul.bf16.gmra.mxu0 %v774
        %v2721 = vpop.f32.mrf.mxu0
        %v2722 = vadd.f32 %v641, %v2721
        %v2723 = vpop.f32.mrf.mxu0
        %v2724 = vadd.f32 %v641, %v2723
        %2725 = vmatmul.bf16.gmra.mxu0 %v778
        %v2726 = vpop.f32.mrf.mxu0
        %v2727 = vadd.f32 %v641, %v2726
        %v2728 = vpop.f32.mrf.mxu0
        %v2729 = vadd.f32 %v641, %v2728
        %2730 = vdwg.mxu0
        %2731 = vmatpush.bf16.msra.mxu0 %v1705
        %2732 = vmatpush.bf16.msra.mxu0 %v1697
        %2733 = vmatpush.bf16.msra.mxu0 %v1689
        %2734 = vmatpush.bf16.msra.mxu0 %v1681
        %2735 = vmatpush.bf16.msra.mxu0 %v1673
        %2736 = vmatpush.bf16.msra.mxu0 %v1665
        %2737 = vmatpush.bf16.msra.mxu0 %v1657
        %2738 = vmatpush.bf16.msra.mxu0 %v1649
        %2739 = vmatmul.bf16.gmra.mxu0 %v751
        %v2740 = vpop.f32.mrf.mxu0
        %v2741 = vadd.f32 %v2692, %v2740
        %v2742 = vpop.f32.mrf.mxu0
        %v2743 = vadd.f32 %v2694, %v2742
        %2744 = vmatmul.bf16.gmra.mxu0 %v755
        %v2745 = vpop.f32.mrf.mxu0
        %v2746 = vadd.f32 %v2697, %v2745
        %v2747 = vpop.f32.mrf.mxu0
        %v2748 = vadd.f32 %v2699, %v2747
        %2749 = vmatmul.bf16.gmra.mxu0 %v759
        %v2750 = vpop.f32.mrf.mxu0
        %v2751 = vadd.f32 %v2702, %v2750
        %v2752 = vpop.f32.mrf.mxu0
        %v2753 = vadd.f32 %v2704, %v2752
        %2754 = vmatmul.bf16.gmra.mxu0 %v763
        %v2755 = vpop.f32.mrf.mxu0
        %v2756 = vadd.f32 %v2707, %v2755
        %v2757 = vpop.f32.mrf.mxu0
        %v2758 = vadd.f32 %v2709, %v2757
        %2759 = vmatmul.bf16.gmra.mxu0 %v767
        %v2760 = vpop.f32.mrf.mxu0
        %v2761 = vadd.f32 %v2712, %v2760
        %v2762 = vpop.f32.mrf.mxu0
        %v2763 = vadd.f32 %v2714, %v2762
        %2764 = vmatmul.bf16.gmra.mxu0 %v771
        %v2765 = vpop.f32.mrf.mxu0
        %v2766 = vadd.f32 %v2717, %v2765
        %v2767 = vpop.f32.mrf.mxu0
        %v2768 = vadd.f32 %v2719, %v2767
        %2769 = vmatmul.bf16.gmra.mxu0 %v775
        %v2770 = vpop.f32.mrf.mxu0
        %v2771 = vadd.f32 %v2722, %v2770
        %v2772 = vpop.f32.mrf.mxu0
        %v2773 = vadd.f32 %v2724, %v2772
        %2774 = vmatmul.bf16.gmra.mxu0 %v779
        %v2775 = vpop.f32.mrf.mxu0
        %v2776 = vadd.f32 %v2727, %v2775
        %v2777 = vpop.f32.mrf.mxu0
        %v2778 = vadd.f32 %v2729, %v2777
        %2779 = vdwg.mxu0
        %2780 = vmatpush.bf16.msra.mxu0 %v1769
        %2781 = vmatpush.bf16.msra.mxu0 %v1761
        %2782 = vmatpush.bf16.msra.mxu0 %v1753
        %2783 = vmatpush.bf16.msra.mxu0 %v1745
        %2784 = vmatpush.bf16.msra.mxu0 %v1737
        %2785 = vmatpush.bf16.msra.mxu0 %v1729
        %2786 = vmatpush.bf16.msra.mxu0 %v1721
        %2787 = vmatpush.bf16.msra.mxu0 %v1713
        %2788 = vmatmul.bf16.gmra.mxu0 %v752
        %v2789 = vpop.f32.mrf.mxu0
        %v2790 = vadd.f32 %v2741, %v2789
        %v2791 = vpop.f32.mrf.mxu0
        %v2792 = vadd.f32 %v2743, %v2791
        %2793 = vmatmul.bf16.gmra.mxu0 %v756
        %v2794 = vpop.f32.mrf.mxu0
        %v2795 = vadd.f32 %v2746, %v2794
        %v2796 = vpop.f32.mrf.mxu0
        %v2797 = vadd.f32 %v2748, %v2796
        %2798 = vmatmul.bf16.gmra.mxu0 %v760
        %v2799 = vpop.f32.mrf.mxu0
        %v2800 = vadd.f32 %v2751, %v2799
        %v2801 = vpop.f32.mrf.mxu0
        %v2802 = vadd.f32 %v2753, %v2801
        %2803 = vmatmul.bf16.gmra.mxu0 %v764
        %v2804 = vpop.f32.mrf.mxu0
        %v2805 = vadd.f32 %v2756, %v2804
        %v2806 = vpop.f32.mrf.mxu0
        %v2807 = vadd.f32 %v2758, %v2806
        %2808 = vmatmul.bf16.gmra.mxu0 %v768
        %v2809 = vpop.f32.mrf.mxu0
        %v2810 = vadd.f32 %v2761, %v2809
        %v2811 = vpop.f32.mrf.mxu0
        %v2812 = vadd.f32 %v2763, %v2811
        %2813 = vmatmul.bf16.gmra.mxu0 %v772
        %v2814 = vpop.f32.mrf.mxu0
        %v2815 = vadd.f32 %v2766, %v2814
        %v2816 = vpop.f32.mrf.mxu0
        %v2817 = vadd.f32 %v2768, %v2816
        %2818 = vmatmul.bf16.gmra.mxu0 %v776
        %v2819 = vpop.f32.mrf.mxu0
        %v2820 = vadd.f32 %v2771, %v2819
        %v2821 = vpop.f32.mrf.mxu0
        %v2822 = vadd.f32 %v2773, %v2821
        %2823 = vmatmul.bf16.gmra.mxu0 %v780
        %v2824 = vpop.f32.mrf.mxu0
        %v2825 = vadd.f32 %v2776, %v2824
        %v2826 = vpop.f32.mrf.mxu0
        %v2827 = vadd.f32 %v2778, %v2826
        %2828 = vdwg.mxu0
        %2829 = vmatpush.bf16.msra.mxu0 %v1833
        %2830 = vmatpush.bf16.msra.mxu0 %v1825
        %2831 = vmatpush.bf16.msra.mxu0 %v1817
        %2832 = vmatpush.bf16.msra.mxu0 %v1809
        %2833 = vmatpush.bf16.msra.mxu0 %v1801
        %2834 = vmatpush.bf16.msra.mxu0 %v1793
        %2835 = vmatpush.bf16.msra.mxu0 %v1785
        %2836 = vmatpush.bf16.msra.mxu0 %v1777
        %2837 = vmatmul.bf16.gmra.mxu0 %v753
        %v2838 = vpop.f32.mrf.mxu0
        %v2839 = vadd.f32 %v2790, %v2838
        %v2840 = vpop.f32.mrf.mxu0
        %v2841 = vadd.f32 %v2792, %v2840
        %2842 = vmatmul.bf16.gmra.mxu0 %v757
        %v2843 = vpop.f32.mrf.mxu0
        %v2844 = vadd.f32 %v2795, %v2843
        %v2845 = vpop.f32.mrf.mxu0
        %v2846 = vadd.f32 %v2797, %v2845
        %2847 = vmatmul.bf16.gmra.mxu0 %v761
        %v2848 = vpop.f32.mrf.mxu0
        %v2849 = vadd.f32 %v2800, %v2848
        %v2850 = vpop.f32.mrf.mxu0
        %v2851 = vadd.f32 %v2802, %v2850
        %2852 = vmatmul.bf16.gmra.mxu0 %v765
        %v2853 = vpop.f32.mrf.mxu0
        %v2854 = vadd.f32 %v2805, %v2853
        %v2855 = vpop.f32.mrf.mxu0
        %v2856 = vadd.f32 %v2807, %v2855
        %2857 = vmatmul.bf16.gmra.mxu0 %v769
        %v2858 = vpop.f32.mrf.mxu0
        %v2859 = vadd.f32 %v2810, %v2858
        %v2860 = vpop.f32.mrf.mxu0
        %v2861 = vadd.f32 %v2812, %v2860
        %2862 = vmatmul.bf16.gmra.mxu0 %v773
        %v2863 = vpop.f32.mrf.mxu0
        %v2864 = vadd.f32 %v2815, %v2863
        %v2865 = vpop.f32.mrf.mxu0
        %v2866 = vadd.f32 %v2817, %v2865
        %2867 = vmatmul.bf16.gmra.mxu0 %v777
        %v2868 = vpop.f32.mrf.mxu0
        %v2869 = vadd.f32 %v2820, %v2868
        %v2870 = vpop.f32.mrf.mxu0
        %v2871 = vadd.f32 %v2822, %v2870
        %2872 = vmatmul.bf16.gmra.mxu0 %v781
        %v2873 = vpop.f32.mrf.mxu0
        %v2874 = vadd.f32 %v2825, %v2873
        %v2875 = vpop.f32.mrf.mxu0
        %v2876 = vadd.f32 %v2827, %v2875
        %2877 = vdwg.mxu0
        %2878 = vmatpush.bf16.msra.mxu0 %v1642
        %2879 = vmatpush.bf16.msra.mxu0 %v1634
        %2880 = vmatpush.bf16.msra.mxu0 %v1626
        %2881 = vmatpush.bf16.msra.mxu0 %v1618
        %2882 = vmatpush.bf16.msra.mxu0 %v1610
        %2883 = vmatpush.bf16.msra.mxu0 %v1602
        %2884 = vmatpush.bf16.msra.mxu0 %v1594
        %2885 = vmatpush.bf16.msra.mxu0 %v1586
        %2886 = vmatmul.bf16.gmra.mxu0 %v750
        %v2887 = vpop.f32.mrf.mxu0
        %v2888 = vadd.f32 %v642, %v2887
        %v2889 = vpop.f32.mrf.mxu0
        %v2890 = vadd.f32 %v642, %v2889
        %2891 = vmatmul.bf16.gmra.mxu0 %v754
        %v2892 = vpop.f32.mrf.mxu0
        %v2893 = vadd.f32 %v642, %v2892
        %v2894 = vpop.f32.mrf.mxu0
        %v2895 = vadd.f32 %v642, %v2894
        %2896 = vmatmul.bf16.gmra.mxu0 %v758
        %v2897 = vpop.f32.mrf.mxu0
        %v2898 = vadd.f32 %v642, %v2897
        %v2899 = vpop.f32.mrf.mxu0
        %v2900 = vadd.f32 %v642, %v2899
        %2901 = vmatmul.bf16.gmra.mxu0 %v762
        %v2902 = vpop.f32.mrf.mxu0
        %v2903 = vadd.f32 %v642, %v2902
        %v2904 = vpop.f32.mrf.mxu0
        %v2905 = vadd.f32 %v642, %v2904
        %2906 = vmatmul.bf16.gmra.mxu0 %v766
        %v2907 = vpop.f32.mrf.mxu0
        %v2908 = vadd.f32 %v642, %v2907
        %v2909 = vpop.f32.mrf.mxu0
        %v2910 = vadd.f32 %v642, %v2909
        %2911 = vmatmul.bf16.gmra.mxu0 %v770
        %v2912 = vpop.f32.mrf.mxu0
        %v2913 = vadd.f32 %v642, %v2912
        %v2914 = vpop.f32.mrf.mxu0
        %v2915 = vadd.f32 %v642, %v2914
        %2916 = vmatmul.bf16.gmra.mxu0 %v774
        %v2917 = vpop.f32.mrf.mxu0
        %v2918 = vadd.f32 %v642, %v2917
        %v2919 = vpop.f32.mrf.mxu0
        %v2920 = vadd.f32 %v642, %v2919
        %2921 = vmatmul.bf16.gmra.mxu0 %v778
        %v2922 = vpop.f32.mrf.mxu0
        %v2923 = vadd.f32 %v642, %v2922
        %v2924 = vpop.f32.mrf.mxu0
        %v2925 = vadd.f32 %v642, %v2924
        %2926 = vdwg.mxu0
        %2927 = vmatpush.bf16.msra.mxu0 %v1706
        %2928 = vmatpush.bf16.msra.mxu0 %v1698
        %2929 = vmatpush.bf16.msra.mxu0 %v1690
        %2930 = vmatpush.bf16.msra.mxu0 %v1682
        %2931 = vmatpush.bf16.msra.mxu0 %v1674
        %2932 = vmatpush.bf16.msra.mxu0 %v1666
        %2933 = vmatpush.bf16.msra.mxu0 %v1658
        %2934 = vmatpush.bf16.msra.mxu0 %v1650
        %2935 = vmatmul.bf16.gmra.mxu0 %v751
        %v2936 = vpop.f32.mrf.mxu0
        %v2937 = vadd.f32 %v2888, %v2936
        %v2938 = vpop.f32.mrf.mxu0
        %v2939 = vadd.f32 %v2890, %v2938
        %2940 = vmatmul.bf16.gmra.mxu0 %v755
        %v2941 = vpop.f32.mrf.mxu0
        %v2942 = vadd.f32 %v2893, %v2941
        %v2943 = vpop.f32.mrf.mxu0
        %v2944 = vadd.f32 %v2895, %v2943
        %2945 = vmatmul.bf16.gmra.mxu0 %v759
        %v2946 = vpop.f32.mrf.mxu0
        %v2947 = vadd.f32 %v2898, %v2946
        %v2948 = vpop.f32.mrf.mxu0
        %v2949 = vadd.f32 %v2900, %v2948
        %2950 = vmatmul.bf16.gmra.mxu0 %v763
        %v2951 = vpop.f32.mrf.mxu0
        %v2952 = vadd.f32 %v2903, %v2951
        %v2953 = vpop.f32.mrf.mxu0
        %v2954 = vadd.f32 %v2905, %v2953
        %2955 = vmatmul.bf16.gmra.mxu0 %v767
        %v2956 = vpop.f32.mrf.mxu0
        %v2957 = vadd.f32 %v2908, %v2956
        %v2958 = vpop.f32.mrf.mxu0
        %v2959 = vadd.f32 %v2910, %v2958
        %2960 = vmatmul.bf16.gmra.mxu0 %v771
        %v2961 = vpop.f32.mrf.mxu0
        %v2962 = vadd.f32 %v2913, %v2961
        %v2963 = vpop.f32.mrf.mxu0
        %v2964 = vadd.f32 %v2915, %v2963
        %2965 = vmatmul.bf16.gmra.mxu0 %v775
        %v2966 = vpop.f32.mrf.mxu0
        %v2967 = vadd.f32 %v2918, %v2966
        %v2968 = vpop.f32.mrf.mxu0
        %v2969 = vadd.f32 %v2920, %v2968
        %2970 = vmatmul.bf16.gmra.mxu0 %v779
        %v2971 = vpop.f32.mrf.mxu0
        %v2972 = vadd.f32 %v2923, %v2971
        %v2973 = vpop.f32.mrf.mxu0
        %v2974 = vadd.f32 %v2925, %v2973
        %2975 = vdwg.mxu0
        %2976 = vmatpush.bf16.msra.mxu0 %v1770
        %2977 = vmatpush.bf16.msra.mxu0 %v1762
        %2978 = vmatpush.bf16.msra.mxu0 %v1754
        %2979 = vmatpush.bf16.msra.mxu0 %v1746
        %2980 = vmatpush.bf16.msra.mxu0 %v1738
        %2981 = vmatpush.bf16.msra.mxu0 %v1730
        %2982 = vmatpush.bf16.msra.mxu0 %v1722
        %2983 = vmatpush.bf16.msra.mxu0 %v1714
        %2984 = vmatmul.bf16.gmra.mxu0 %v752
        %v2985 = vpop.f32.mrf.mxu0
        %v2986 = vadd.f32 %v2937, %v2985
        %v2987 = vpop.f32.mrf.mxu0
        %v2988 = vadd.f32 %v2939, %v2987
        %2989 = vmatmul.bf16.gmra.mxu0 %v756
        %v2990 = vpop.f32.mrf.mxu0
        %v2991 = vadd.f32 %v2942, %v2990
        %v2992 = vpop.f32.mrf.mxu0
        %v2993 = vadd.f32 %v2944, %v2992
        %2994 = vmatmul.bf16.gmra.mxu0 %v760
        %v2995 = vpop.f32.mrf.mxu0
        %v2996 = vadd.f32 %v2947, %v2995
        %v2997 = vpop.f32.mrf.mxu0
        %v2998 = vadd.f32 %v2949, %v2997
        %2999 = vmatmul.bf16.gmra.mxu0 %v764
        %v3000 = vpop.f32.mrf.mxu0
        %v3001 = vadd.f32 %v2952, %v3000
        %v3002 = vpop.f32.mrf.mxu0
        %v3003 = vadd.f32 %v2954, %v3002
        %3004 = vmatmul.bf16.gmra.mxu0 %v768
        %v3005 = vpop.f32.mrf.mxu0
        %v3006 = vadd.f32 %v2957, %v3005
        %v3007 = vpop.f32.mrf.mxu0
        %v3008 = vadd.f32 %v2959, %v3007
        %3009 = vmatmul.bf16.gmra.mxu0 %v772
        %v3010 = vpop.f32.mrf.mxu0
        %v3011 = vadd.f32 %v2962, %v3010
        %v3012 = vpop.f32.mrf.mxu0
        %v3013 = vadd.f32 %v2964, %v3012
        %3014 = vmatmul.bf16.gmra.mxu0 %v776
        %v3015 = vpop.f32.mrf.mxu0
        %v3016 = vadd.f32 %v2967, %v3015
        %v3017 = vpop.f32.mrf.mxu0
        %v3018 = vadd.f32 %v2969, %v3017
        %3019 = vmatmul.bf16.gmra.mxu0 %v780
        %v3020 = vpop.f32.mrf.mxu0
        %v3021 = vadd.f32 %v2972, %v3020
        %v3022 = vpop.f32.mrf.mxu0
        %v3023 = vadd.f32 %v2974, %v3022
        %3024 = vdwg.mxu0
        %3025 = vmatpush.bf16.msra.mxu0 %v1834
        %3026 = vmatpush.bf16.msra.mxu0 %v1826
        %3027 = vmatpush.bf16.msra.mxu0 %v1818
        %3028 = vmatpush.bf16.msra.mxu0 %v1810
        %3029 = vmatpush.bf16.msra.mxu0 %v1802
        %3030 = vmatpush.bf16.msra.mxu0 %v1794
        %3031 = vmatpush.bf16.msra.mxu0 %v1786
        %3032 = vmatpush.bf16.msra.mxu0 %v1778
        %3033 = vmatmul.bf16.gmra.mxu0 %v753
        %v3034 = vpop.f32.mrf.mxu0
        %v3035 = vadd.f32 %v2986, %v3034
        %v3036 = vpop.f32.mrf.mxu0
        %v3037 = vadd.f32 %v2988, %v3036
        %3038 = vmatmul.bf16.gmra.mxu0 %v757
        %v3039 = vpop.f32.mrf.mxu0
        %v3040 = vadd.f32 %v2991, %v3039
        %v3041 = vpop.f32.mrf.mxu0
        %v3042 = vadd.f32 %v2993, %v3041
        %3043 = vmatmul.bf16.gmra.mxu0 %v761
        %v3044 = vpop.f32.mrf.mxu0
        %v3045 = vadd.f32 %v2996, %v3044
        %v3046 = vpop.f32.mrf.mxu0
        %v3047 = vadd.f32 %v2998, %v3046
        %3048 = vmatmul.bf16.gmra.mxu0 %v765
        %v3049 = vpop.f32.mrf.mxu0
        %v3050 = vadd.f32 %v3001, %v3049
        %v3051 = vpop.f32.mrf.mxu0
        %v3052 = vadd.f32 %v3003, %v3051
        %3053 = vmatmul.bf16.gmra.mxu0 %v769
        %v3054 = vpop.f32.mrf.mxu0
        %v3055 = vadd.f32 %v3006, %v3054
        %v3056 = vpop.f32.mrf.mxu0
        %v3057 = vadd.f32 %v3008, %v3056
        %3058 = vmatmul.bf16.gmra.mxu0 %v773
        %v3059 = vpop.f32.mrf.mxu0
        %v3060 = vadd.f32 %v3011, %v3059
        %v3061 = vpop.f32.mrf.mxu0
        %v3062 = vadd.f32 %v3013, %v3061
        %3063 = vmatmul.bf16.gmra.mxu0 %v777
        %v3064 = vpop.f32.mrf.mxu0
        %v3065 = vadd.f32 %v3016, %v3064
        %v3066 = vpop.f32.mrf.mxu0
        %v3067 = vadd.f32 %v3018, %v3066
        %3068 = vmatmul.bf16.gmra.mxu0 %v781
        %v3069 = vpop.f32.mrf.mxu0
        %v3070 = vadd.f32 %v3021, %v3069
        %v3071 = vpop.f32.mrf.mxu0
        %v3072 = vadd.f32 %v3023, %v3071
        %3073 = vdwg.mxu0
        %3074 = vmatpush.bf16.msra.mxu0 %v1643
        %3075 = vmatpush.bf16.msra.mxu0 %v1635
        %3076 = vmatpush.bf16.msra.mxu0 %v1627
        %3077 = vmatpush.bf16.msra.mxu0 %v1619
        %3078 = vmatpush.bf16.msra.mxu0 %v1611
        %3079 = vmatpush.bf16.msra.mxu0 %v1603
        %3080 = vmatpush.bf16.msra.mxu0 %v1595
        %3081 = vmatpush.bf16.msra.mxu0 %v1587
        %3082 = vmatmul.bf16.gmra.mxu0 %v750
        %v3083 = vpop.f32.mrf.mxu0
        %v3084 = vadd.f32 %v643, %v3083
        %v3085 = vpop.f32.mrf.mxu0
        %v3086 = vadd.f32 %v643, %v3085
        %3087 = vmatmul.bf16.gmra.mxu0 %v754
        %v3088 = vpop.f32.mrf.mxu0
        %v3089 = vadd.f32 %v643, %v3088
        %v3090 = vpop.f32.mrf.mxu0
        %v3091 = vadd.f32 %v643, %v3090
        %3092 = vmatmul.bf16.gmra.mxu0 %v758
        %v3093 = vpop.f32.mrf.mxu0
        %v3094 = vadd.f32 %v643, %v3093
        %v3095 = vpop.f32.mrf.mxu0
        %v3096 = vadd.f32 %v643, %v3095
        %3097 = vmatmul.bf16.gmra.mxu0 %v762
        %v3098 = vpop.f32.mrf.mxu0
        %v3099 = vadd.f32 %v643, %v3098
        %v3100 = vpop.f32.mrf.mxu0
        %v3101 = vadd.f32 %v643, %v3100
        %3102 = vmatmul.bf16.gmra.mxu0 %v766
        %v3103 = vpop.f32.mrf.mxu0
        %v3104 = vadd.f32 %v643, %v3103
        %v3105 = vpop.f32.mrf.mxu0
        %v3106 = vadd.f32 %v643, %v3105
        %3107 = vmatmul.bf16.gmra.mxu0 %v770
        %v3108 = vpop.f32.mrf.mxu0
        %v3109 = vadd.f32 %v643, %v3108
        %v3110 = vpop.f32.mrf.mxu0
        %v3111 = vadd.f32 %v643, %v3110
        %3112 = vmatmul.bf16.gmra.mxu0 %v774
        %v3113 = vpop.f32.mrf.mxu0
        %v3114 = vadd.f32 %v643, %v3113
        %v3115 = vpop.f32.mrf.mxu0
        %v3116 = vadd.f32 %v643, %v3115
        %3117 = vmatmul.bf16.gmra.mxu0 %v778
        %v3118 = vpop.f32.mrf.mxu0
        %v3119 = vadd.f32 %v643, %v3118
        %v3120 = vpop.f32.mrf.mxu0
        %v3121 = vadd.f32 %v643, %v3120
        %3122 = vdwg.mxu0
        %3123 = vmatpush.bf16.msra.mxu0 %v1707
        %3124 = vmatpush.bf16.msra.mxu0 %v1699
        %3125 = vmatpush.bf16.msra.mxu0 %v1691
        %3126 = vmatpush.bf16.msra.mxu0 %v1683
        %3127 = vmatpush.bf16.msra.mxu0 %v1675
        %3128 = vmatpush.bf16.msra.mxu0 %v1667
        %3129 = vmatpush.bf16.msra.mxu0 %v1659
        %3130 = vmatpush.bf16.msra.mxu0 %v1651
        %3131 = vmatmul.bf16.gmra.mxu0 %v751
        %v3132 = vpop.f32.mrf.mxu0
        %v3133 = vadd.f32 %v3084, %v3132
        %v3134 = vpop.f32.mrf.mxu0
        %v3135 = vadd.f32 %v3086, %v3134
        %3136 = vmatmul.bf16.gmra.mxu0 %v755
        %v3137 = vpop.f32.mrf.mxu0
        %v3138 = vadd.f32 %v3089, %v3137
        %v3139 = vpop.f32.mrf.mxu0
        %v3140 = vadd.f32 %v3091, %v3139
        %3141 = vmatmul.bf16.gmra.mxu0 %v759
        %v3142 = vpop.f32.mrf.mxu0
        %v3143 = vadd.f32 %v3094, %v3142
        %v3144 = vpop.f32.mrf.mxu0
        %v3145 = vadd.f32 %v3096, %v3144
        %3146 = vmatmul.bf16.gmra.mxu0 %v763
        %v3147 = vpop.f32.mrf.mxu0
        %v3148 = vadd.f32 %v3099, %v3147
        %v3149 = vpop.f32.mrf.mxu0
        %v3150 = vadd.f32 %v3101, %v3149
        %3151 = vmatmul.bf16.gmra.mxu0 %v767
        %v3152 = vpop.f32.mrf.mxu0
        %v3153 = vadd.f32 %v3104, %v3152
        %v3154 = vpop.f32.mrf.mxu0
        %v3155 = vadd.f32 %v3106, %v3154
        %3156 = vmatmul.bf16.gmra.mxu0 %v771
        %v3157 = vpop.f32.mrf.mxu0
        %v3158 = vadd.f32 %v3109, %v3157
        %v3159 = vpop.f32.mrf.mxu0
        %v3160 = vadd.f32 %v3111, %v3159
        %3161 = vmatmul.bf16.gmra.mxu0 %v775
        %v3162 = vpop.f32.mrf.mxu0
        %v3163 = vadd.f32 %v3114, %v3162
        %v3164 = vpop.f32.mrf.mxu0
        %v3165 = vadd.f32 %v3116, %v3164
        %3166 = vmatmul.bf16.gmra.mxu0 %v779
        %v3167 = vpop.f32.mrf.mxu0
        %v3168 = vadd.f32 %v3119, %v3167
        %v3169 = vpop.f32.mrf.mxu0
        %v3170 = vadd.f32 %v3121, %v3169
        %3171 = vdwg.mxu0
        %3172 = vmatpush.bf16.msra.mxu0 %v1771
        %3173 = vmatpush.bf16.msra.mxu0 %v1763
        %3174 = vmatpush.bf16.msra.mxu0 %v1755
        %3175 = vmatpush.bf16.msra.mxu0 %v1747
        %3176 = vmatpush.bf16.msra.mxu0 %v1739
        %3177 = vmatpush.bf16.msra.mxu0 %v1731
        %3178 = vmatpush.bf16.msra.mxu0 %v1723
        %3179 = vmatpush.bf16.msra.mxu0 %v1715
        %3180 = vmatmul.bf16.gmra.mxu0 %v752
        %v3181 = vpop.f32.mrf.mxu0
        %v3182 = vadd.f32 %v3133, %v3181
        %v3183 = vpop.f32.mrf.mxu0
        %v3184 = vadd.f32 %v3135, %v3183
        %3185 = vmatmul.bf16.gmra.mxu0 %v756
        %v3186 = vpop.f32.mrf.mxu0
        %v3187 = vadd.f32 %v3138, %v3186
        %v3188 = vpop.f32.mrf.mxu0
        %v3189 = vadd.f32 %v3140, %v3188
        %3190 = vmatmul.bf16.gmra.mxu0 %v760
        %v3191 = vpop.f32.mrf.mxu0
        %v3192 = vadd.f32 %v3143, %v3191
        %v3193 = vpop.f32.mrf.mxu0
        %v3194 = vadd.f32 %v3145, %v3193
        %3195 = vmatmul.bf16.gmra.mxu0 %v764
        %v3196 = vpop.f32.mrf.mxu0
        %v3197 = vadd.f32 %v3148, %v3196
        %v3198 = vpop.f32.mrf.mxu0
        %v3199 = vadd.f32 %v3150, %v3198
        %3200 = vmatmul.bf16.gmra.mxu0 %v768
        %v3201 = vpop.f32.mrf.mxu0
        %v3202 = vadd.f32 %v3153, %v3201
        %v3203 = vpop.f32.mrf.mxu0
        %v3204 = vadd.f32 %v3155, %v3203
        %3205 = vmatmul.bf16.gmra.mxu0 %v772
        %v3206 = vpop.f32.mrf.mxu0
        %v3207 = vadd.f32 %v3158, %v3206
        %v3208 = vpop.f32.mrf.mxu0
        %v3209 = vadd.f32 %v3160, %v3208
        %3210 = vmatmul.bf16.gmra.mxu0 %v776
        %v3211 = vpop.f32.mrf.mxu0
        %v3212 = vadd.f32 %v3163, %v3211
        %v3213 = vpop.f32.mrf.mxu0
        %v3214 = vadd.f32 %v3165, %v3213
        %3215 = vmatmul.bf16.gmra.mxu0 %v780
        %v3216 = vpop.f32.mrf.mxu0
        %v3217 = vadd.f32 %v3168, %v3216
        %v3218 = vpop.f32.mrf.mxu0
        %v3219 = vadd.f32 %v3170, %v3218
        %3220 = vdwg.mxu0
        %3221 = vmatpush.bf16.msra.mxu0 %v1835
        %3222 = vmatpush.bf16.msra.mxu0 %v1827
        %3223 = vmatpush.bf16.msra.mxu0 %v1819
        %3224 = vmatpush.bf16.msra.mxu0 %v1811
        %3225 = vmatpush.bf16.msra.mxu0 %v1803
        %3226 = vmatpush.bf16.msra.mxu0 %v1795
        %3227 = vmatpush.bf16.msra.mxu0 %v1787
        %3228 = vmatpush.bf16.msra.mxu0 %v1779
        %3229 = vmatmul.bf16.gmra.mxu0 %v753
        %v3230 = vpop.f32.mrf.mxu0
        %v3231 = vadd.f32 %v3182, %v3230
        %v3232 = vpop.f32.mrf.mxu0
        %v3233 = vadd.f32 %v3184, %v3232
        %3234 = vmatmul.bf16.gmra.mxu0 %v757
        %v3235 = vpop.f32.mrf.mxu0
        %v3236 = vadd.f32 %v3187, %v3235
        %v3237 = vpop.f32.mrf.mxu0
        %v3238 = vadd.f32 %v3189, %v3237
        %3239 = vmatmul.bf16.gmra.mxu0 %v761
        %v3240 = vpop.f32.mrf.mxu0
        %v3241 = vadd.f32 %v3192, %v3240
        %v3242 = vpop.f32.mrf.mxu0
        %v3243 = vadd.f32 %v3194, %v3242
        %3244 = vmatmul.bf16.gmra.mxu0 %v765
        %v3245 = vpop.f32.mrf.mxu0
        %v3246 = vadd.f32 %v3197, %v3245
        %v3247 = vpop.f32.mrf.mxu0
        %v3248 = vadd.f32 %v3199, %v3247
        %3249 = vmatmul.bf16.gmra.mxu0 %v769
        %v3250 = vpop.f32.mrf.mxu0
        %v3251 = vadd.f32 %v3202, %v3250
        %v3252 = vpop.f32.mrf.mxu0
        %v3253 = vadd.f32 %v3204, %v3252
        %3254 = vmatmul.bf16.gmra.mxu0 %v773
        %v3255 = vpop.f32.mrf.mxu0
        %v3256 = vadd.f32 %v3207, %v3255
        %v3257 = vpop.f32.mrf.mxu0
        %v3258 = vadd.f32 %v3209, %v3257
        %3259 = vmatmul.bf16.gmra.mxu0 %v777
        %v3260 = vpop.f32.mrf.mxu0
        %v3261 = vadd.f32 %v3212, %v3260
        %v3262 = vpop.f32.mrf.mxu0
        %v3263 = vadd.f32 %v3214, %v3262
        %3264 = vmatmul.bf16.gmra.mxu0 %v781
        %v3265 = vpop.f32.mrf.mxu0
        %v3266 = vadd.f32 %v3217, %v3265
        %v3267 = vpop.f32.mrf.mxu0
        %v3268 = vadd.f32 %v3219, %v3267
        %3269 = vdwg.mxu0
        %3270 = vmatpush.bf16.msra.mxu0 %v1644
        %3271 = vmatpush.bf16.msra.mxu0 %v1636
        %3272 = vmatpush.bf16.msra.mxu0 %v1628
        %3273 = vmatpush.bf16.msra.mxu0 %v1620
        %3274 = vmatpush.bf16.msra.mxu0 %v1612
        %3275 = vmatpush.bf16.msra.mxu0 %v1604
        %3276 = vmatpush.bf16.msra.mxu0 %v1596
        %3277 = vmatpush.bf16.msra.mxu0 %v1588
        %3278 = vmatmul.bf16.gmra.mxu0 %v750
        %v3279 = vpop.f32.mrf.mxu0
        %v3280 = vadd.f32 %v644, %v3279
        %v3281 = vpop.f32.mrf.mxu0
        %v3282 = vadd.f32 %v644, %v3281
        %3283 = vmatmul.bf16.gmra.mxu0 %v754
        %v3284 = vpop.f32.mrf.mxu0
        %v3285 = vadd.f32 %v644, %v3284
        %v3286 = vpop.f32.mrf.mxu0
        %v3287 = vadd.f32 %v644, %v3286
        %3288 = vmatmul.bf16.gmra.mxu0 %v758
        %v3289 = vpop.f32.mrf.mxu0
        %v3290 = vadd.f32 %v644, %v3289
        %v3291 = vpop.f32.mrf.mxu0
        %v3292 = vadd.f32 %v644, %v3291
        %3293 = vmatmul.bf16.gmra.mxu0 %v762
        %v3294 = vpop.f32.mrf.mxu0
        %v3295 = vadd.f32 %v644, %v3294
        %v3296 = vpop.f32.mrf.mxu0
        %v3297 = vadd.f32 %v644, %v3296
        %3298 = vmatmul.bf16.gmra.mxu0 %v766
        %v3299 = vpop.f32.mrf.mxu0
        %v3300 = vadd.f32 %v644, %v3299
        %v3301 = vpop.f32.mrf.mxu0
        %v3302 = vadd.f32 %v644, %v3301
        %3303 = vmatmul.bf16.gmra.mxu0 %v770
        %v3304 = vpop.f32.mrf.mxu0
        %v3305 = vadd.f32 %v644, %v3304
        %v3306 = vpop.f32.mrf.mxu0
        %v3307 = vadd.f32 %v644, %v3306
        %3308 = vmatmul.bf16.gmra.mxu0 %v774
        %v3309 = vpop.f32.mrf.mxu0
        %v3310 = vadd.f32 %v644, %v3309
        %v3311 = vpop.f32.mrf.mxu0
        %v3312 = vadd.f32 %v644, %v3311
        %3313 = vmatmul.bf16.gmra.mxu0 %v778
        %v3314 = vpop.f32.mrf.mxu0
        %v3315 = vadd.f32 %v644, %v3314
        %v3316 = vpop.f32.mrf.mxu0
        %v3317 = vadd.f32 %v644, %v3316
        %3318 = vdwg.mxu0
        %3319 = vmatpush.bf16.msra.mxu0 %v1708
        %3320 = vmatpush.bf16.msra.mxu0 %v1700
        %3321 = vmatpush.bf16.msra.mxu0 %v1692
        %3322 = vmatpush.bf16.msra.mxu0 %v1684
        %3323 = vmatpush.bf16.msra.mxu0 %v1676
        %3324 = vmatpush.bf16.msra.mxu0 %v1668
        %3325 = vmatpush.bf16.msra.mxu0 %v1660
        %3326 = vmatpush.bf16.msra.mxu0 %v1652
        %3327 = vmatmul.bf16.gmra.mxu0 %v751
        %v3328 = vpop.f32.mrf.mxu0
        %v3329 = vadd.f32 %v3280, %v3328
        %v3330 = vpop.f32.mrf.mxu0
        %v3331 = vadd.f32 %v3282, %v3330
        %3332 = vmatmul.bf16.gmra.mxu0 %v755
        %v3333 = vpop.f32.mrf.mxu0
        %v3334 = vadd.f32 %v3285, %v3333
        %v3335 = vpop.f32.mrf.mxu0
        %v3336 = vadd.f32 %v3287, %v3335
        %3337 = vmatmul.bf16.gmra.mxu0 %v759
        %v3338 = vpop.f32.mrf.mxu0
        %v3339 = vadd.f32 %v3290, %v3338
        %v3340 = vpop.f32.mrf.mxu0
        %v3341 = vadd.f32 %v3292, %v3340
        %3342 = vmatmul.bf16.gmra.mxu0 %v763
        %v3343 = vpop.f32.mrf.mxu0
        %v3344 = vadd.f32 %v3295, %v3343
        %v3345 = vpop.f32.mrf.mxu0
        %v3346 = vadd.f32 %v3297, %v3345
        %3347 = vmatmul.bf16.gmra.mxu0 %v767
        %v3348 = vpop.f32.mrf.mxu0
        %v3349 = vadd.f32 %v3300, %v3348
        %v3350 = vpop.f32.mrf.mxu0
        %v3351 = vadd.f32 %v3302, %v3350
        %3352 = vmatmul.bf16.gmra.mxu0 %v771
        %v3353 = vpop.f32.mrf.mxu0
        %v3354 = vadd.f32 %v3305, %v3353
        %v3355 = vpop.f32.mrf.mxu0
        %v3356 = vadd.f32 %v3307, %v3355
        %3357 = vmatmul.bf16.gmra.mxu0 %v775
        %v3358 = vpop.f32.mrf.mxu0
        %v3359 = vadd.f32 %v3310, %v3358
        %v3360 = vpop.f32.mrf.mxu0
        %v3361 = vadd.f32 %v3312, %v3360
        %3362 = vmatmul.bf16.gmra.mxu0 %v779
        %v3363 = vpop.f32.mrf.mxu0
        %v3364 = vadd.f32 %v3315, %v3363
        %v3365 = vpop.f32.mrf.mxu0
        %v3366 = vadd.f32 %v3317, %v3365
        %3367 = vdwg.mxu0
        %3368 = vmatpush.bf16.msra.mxu0 %v1772
        %3369 = vmatpush.bf16.msra.mxu0 %v1764
        %3370 = vmatpush.bf16.msra.mxu0 %v1756
        %3371 = vmatpush.bf16.msra.mxu0 %v1748
        %3372 = vmatpush.bf16.msra.mxu0 %v1740
        %3373 = vmatpush.bf16.msra.mxu0 %v1732
        %3374 = vmatpush.bf16.msra.mxu0 %v1724
        %3375 = vmatpush.bf16.msra.mxu0 %v1716
        %3376 = vmatmul.bf16.gmra.mxu0 %v752
        %v3377 = vpop.f32.mrf.mxu0
        %v3378 = vadd.f32 %v3329, %v3377
        %v3379 = vpop.f32.mrf.mxu0
        %v3380 = vadd.f32 %v3331, %v3379
        %3381 = vmatmul.bf16.gmra.mxu0 %v756
        %v3382 = vpop.f32.mrf.mxu0
        %v3383 = vadd.f32 %v3334, %v3382
        %v3384 = vpop.f32.mrf.mxu0
        %v3385 = vadd.f32 %v3336, %v3384
        %3386 = vmatmul.bf16.gmra.mxu0 %v760
        %v3387 = vpop.f32.mrf.mxu0
        %v3388 = vadd.f32 %v3339, %v3387
        %v3389 = vpop.f32.mrf.mxu0
        %v3390 = vadd.f32 %v3341, %v3389
        %3391 = vmatmul.bf16.gmra.mxu0 %v764
        %v3392 = vpop.f32.mrf.mxu0
        %v3393 = vadd.f32 %v3344, %v3392
        %v3394 = vpop.f32.mrf.mxu0
        %v3395 = vadd.f32 %v3346, %v3394
        %3396 = vmatmul.bf16.gmra.mxu0 %v768
        %v3397 = vpop.f32.mrf.mxu0
        %v3398 = vadd.f32 %v3349, %v3397
        %v3399 = vpop.f32.mrf.mxu0
        %v3400 = vadd.f32 %v3351, %v3399
        %3401 = vmatmul.bf16.gmra.mxu0 %v772
        %v3402 = vpop.f32.mrf.mxu0
        %v3403 = vadd.f32 %v3354, %v3402
        %v3404 = vpop.f32.mrf.mxu0
        %v3405 = vadd.f32 %v3356, %v3404
        %3406 = vmatmul.bf16.gmra.mxu0 %v776
        %v3407 = vpop.f32.mrf.mxu0
        %v3408 = vadd.f32 %v3359, %v3407
        %v3409 = vpop.f32.mrf.mxu0
        %v3410 = vadd.f32 %v3361, %v3409
        %3411 = vmatmul.bf16.gmra.mxu0 %v780
        %v3412 = vpop.f32.mrf.mxu0
        %v3413 = vadd.f32 %v3364, %v3412
        %v3414 = vpop.f32.mrf.mxu0
        %v3415 = vadd.f32 %v3366, %v3414
        %3416 = vdwg.mxu0
        %3417 = vmatpush.bf16.msra.mxu0 %v1836
        %3418 = vmatpush.bf16.msra.mxu0 %v1828
        %3419 = vmatpush.bf16.msra.mxu0 %v1820
        %3420 = vmatpush.bf16.msra.mxu0 %v1812
        %3421 = vmatpush.bf16.msra.mxu0 %v1804
        %3422 = vmatpush.bf16.msra.mxu0 %v1796
        %3423 = vmatpush.bf16.msra.mxu0 %v1788
        %3424 = vmatpush.bf16.msra.mxu0 %v1780
        %3425 = vmatmul.bf16.gmra.mxu0 %v753
        %v3426 = vpop.f32.mrf.mxu0
        %v3427 = vadd.f32 %v3378, %v3426
        %v3428 = vpop.f32.mrf.mxu0
        %v3429 = vadd.f32 %v3380, %v3428
        %3430 = vmatmul.bf16.gmra.mxu0 %v757
        %v3431 = vpop.f32.mrf.mxu0
        %v3432 = vadd.f32 %v3383, %v3431
        %v3433 = vpop.f32.mrf.mxu0
        %v3434 = vadd.f32 %v3385, %v3433
        %3435 = vmatmul.bf16.gmra.mxu0 %v761
        %v3436 = vpop.f32.mrf.mxu0
        %v3437 = vadd.f32 %v3388, %v3436
        %v3438 = vpop.f32.mrf.mxu0
        %v3439 = vadd.f32 %v3390, %v3438
        %3440 = vmatmul.bf16.gmra.mxu0 %v765
        %v3441 = vpop.f32.mrf.mxu0
        %v3442 = vadd.f32 %v3393, %v3441
        %v3443 = vpop.f32.mrf.mxu0
        %v3444 = vadd.f32 %v3395, %v3443
        %3445 = vmatmul.bf16.gmra.mxu0 %v769
        %v3446 = vpop.f32.mrf.mxu0
        %v3447 = vadd.f32 %v3398, %v3446
        %v3448 = vpop.f32.mrf.mxu0
        %v3449 = vadd.f32 %v3400, %v3448
        %3450 = vmatmul.bf16.gmra.mxu0 %v773
        %v3451 = vpop.f32.mrf.mxu0
        %v3452 = vadd.f32 %v3403, %v3451
        %v3453 = vpop.f32.mrf.mxu0
        %v3454 = vadd.f32 %v3405, %v3453
        %3455 = vmatmul.bf16.gmra.mxu0 %v777
        %v3456 = vpop.f32.mrf.mxu0
        %v3457 = vadd.f32 %v3408, %v3456
        %v3458 = vpop.f32.mrf.mxu0
        %v3459 = vadd.f32 %v3410, %v3458
        %3460 = vmatmul.bf16.gmra.mxu0 %v781
        %v3461 = vpop.f32.mrf.mxu0
        %v3462 = vadd.f32 %v3413, %v3461
        %v3463 = vpop.f32.mrf.mxu0
        %v3464 = vadd.f32 %v3415, %v3463
        %3465 = vdwg.mxu0
        %3466 = vmatpush.bf16.msra.mxu0 %v1645
        %3467 = vmatpush.bf16.msra.mxu0 %v1637
        %3468 = vmatpush.bf16.msra.mxu0 %v1629
        %3469 = vmatpush.bf16.msra.mxu0 %v1621
        %3470 = vmatpush.bf16.msra.mxu0 %v1613
        %3471 = vmatpush.bf16.msra.mxu0 %v1605
        %3472 = vmatpush.bf16.msra.mxu0 %v1597
        %3473 = vmatpush.bf16.msra.mxu0 %v1589
        %3474 = vmatmul.bf16.gmra.mxu0 %v750
        %v3475 = vpop.f32.mrf.mxu0
        %v3476 = vadd.f32 %v645, %v3475
        %v3477 = vpop.f32.mrf.mxu0
        %v3478 = vadd.f32 %v645, %v3477
        %3479 = vmatmul.bf16.gmra.mxu0 %v754
        %v3480 = vpop.f32.mrf.mxu0
        %v3481 = vadd.f32 %v645, %v3480
        %v3482 = vpop.f32.mrf.mxu0
        %v3483 = vadd.f32 %v645, %v3482
        %3484 = vmatmul.bf16.gmra.mxu0 %v758
        %v3485 = vpop.f32.mrf.mxu0
        %v3486 = vadd.f32 %v645, %v3485
        %v3487 = vpop.f32.mrf.mxu0
        %v3488 = vadd.f32 %v645, %v3487
        %3489 = vmatmul.bf16.gmra.mxu0 %v762
        %v3490 = vpop.f32.mrf.mxu0
        %v3491 = vadd.f32 %v645, %v3490
        %v3492 = vpop.f32.mrf.mxu0
        %v3493 = vadd.f32 %v645, %v3492
        %3494 = vmatmul.bf16.gmra.mxu0 %v766
        %v3495 = vpop.f32.mrf.mxu0
        %v3496 = vadd.f32 %v645, %v3495
        %v3497 = vpop.f32.mrf.mxu0
        %v3498 = vadd.f32 %v645, %v3497
        %3499 = vmatmul.bf16.gmra.mxu0 %v770
        %v3500 = vpop.f32.mrf.mxu0
        %v3501 = vadd.f32 %v645, %v3500
        %v3502 = vpop.f32.mrf.mxu0
        %v3503 = vadd.f32 %v645, %v3502
        %3504 = vmatmul.bf16.gmra.mxu0 %v774
        %v3505 = vpop.f32.mrf.mxu0
        %v3506 = vadd.f32 %v645, %v3505
        %v3507 = vpop.f32.mrf.mxu0
        %v3508 = vadd.f32 %v645, %v3507
        %3509 = vmatmul.bf16.gmra.mxu0 %v778
        %v3510 = vpop.f32.mrf.mxu0
        %v3511 = vadd.f32 %v645, %v3510
        %v3512 = vpop.f32.mrf.mxu0
        %v3513 = vadd.f32 %v645, %v3512
        %3514 = vdwg.mxu0
        %3515 = vmatpush.bf16.msra.mxu0 %v1709
        %3516 = vmatpush.bf16.msra.mxu0 %v1701
        %3517 = vmatpush.bf16.msra.mxu0 %v1693
        %3518 = vmatpush.bf16.msra.mxu0 %v1685
        %3519 = vmatpush.bf16.msra.mxu0 %v1677
        %3520 = vmatpush.bf16.msra.mxu0 %v1669
        %3521 = vmatpush.bf16.msra.mxu0 %v1661
        %3522 = vmatpush.bf16.msra.mxu0 %v1653
        %3523 = vmatmul.bf16.gmra.mxu0 %v751
        %v3524 = vpop.f32.mrf.mxu0
        %v3525 = vadd.f32 %v3476, %v3524
        %v3526 = vpop.f32.mrf.mxu0
        %v3527 = vadd.f32 %v3478, %v3526
        %3528 = vmatmul.bf16.gmra.mxu0 %v755
        %v3529 = vpop.f32.mrf.mxu0
        %v3530 = vadd.f32 %v3481, %v3529
        %v3531 = vpop.f32.mrf.mxu0
        %v3532 = vadd.f32 %v3483, %v3531
        %3533 = vmatmul.bf16.gmra.mxu0 %v759
        %v3534 = vpop.f32.mrf.mxu0
        %v3535 = vadd.f32 %v3486, %v3534
        %v3536 = vpop.f32.mrf.mxu0
        %v3537 = vadd.f32 %v3488, %v3536
        %3538 = vmatmul.bf16.gmra.mxu0 %v763
        %v3539 = vpop.f32.mrf.mxu0
        %v3540 = vadd.f32 %v3491, %v3539
        %v3541 = vpop.f32.mrf.mxu0
        %v3542 = vadd.f32 %v3493, %v3541
        %3543 = vmatmul.bf16.gmra.mxu0 %v767
        %v3544 = vpop.f32.mrf.mxu0
        %v3545 = vadd.f32 %v3496, %v3544
        %v3546 = vpop.f32.mrf.mxu0
        %v3547 = vadd.f32 %v3498, %v3546
        %3548 = vmatmul.bf16.gmra.mxu0 %v771
        %v3549 = vpop.f32.mrf.mxu0
        %v3550 = vadd.f32 %v3501, %v3549
        %v3551 = vpop.f32.mrf.mxu0
        %v3552 = vadd.f32 %v3503, %v3551
        %3553 = vmatmul.bf16.gmra.mxu0 %v775
        %v3554 = vpop.f32.mrf.mxu0
        %v3555 = vadd.f32 %v3506, %v3554
        %v3556 = vpop.f32.mrf.mxu0
        %v3557 = vadd.f32 %v3508, %v3556
        %3558 = vmatmul.bf16.gmra.mxu0 %v779
        %v3559 = vpop.f32.mrf.mxu0
        %v3560 = vadd.f32 %v3511, %v3559
        %v3561 = vpop.f32.mrf.mxu0
        %v3562 = vadd.f32 %v3513, %v3561
        %3563 = vdwg.mxu0
        %3564 = vmatpush.bf16.msra.mxu0 %v1773
        %3565 = vmatpush.bf16.msra.mxu0 %v1765
        %3566 = vmatpush.bf16.msra.mxu0 %v1757
        %3567 = vmatpush.bf16.msra.mxu0 %v1749
        %3568 = vmatpush.bf16.msra.mxu0 %v1741
        %3569 = vmatpush.bf16.msra.mxu0 %v1733
        %3570 = vmatpush.bf16.msra.mxu0 %v1725
        %3571 = vmatpush.bf16.msra.mxu0 %v1717
        %3572 = vmatmul.bf16.gmra.mxu0 %v752
        %v3573 = vpop.f32.mrf.mxu0
        %v3574 = vadd.f32 %v3525, %v3573
        %v3575 = vpop.f32.mrf.mxu0
        %v3576 = vadd.f32 %v3527, %v3575
        %3577 = vmatmul.bf16.gmra.mxu0 %v756
        %v3578 = vpop.f32.mrf.mxu0
        %v3579 = vadd.f32 %v3530, %v3578
        %v3580 = vpop.f32.mrf.mxu0
        %v3581 = vadd.f32 %v3532, %v3580
        %3582 = vmatmul.bf16.gmra.mxu0 %v760
        %v3583 = vpop.f32.mrf.mxu0
        %v3584 = vadd.f32 %v3535, %v3583
        %v3585 = vpop.f32.mrf.mxu0
        %v3586 = vadd.f32 %v3537, %v3585
        %3587 = vmatmul.bf16.gmra.mxu0 %v764
        %v3588 = vpop.f32.mrf.mxu0
        %v3589 = vadd.f32 %v3540, %v3588
        %v3590 = vpop.f32.mrf.mxu0
        %v3591 = vadd.f32 %v3542, %v3590
        %3592 = vmatmul.bf16.gmra.mxu0 %v768
        %v3593 = vpop.f32.mrf.mxu0
        %v3594 = vadd.f32 %v3545, %v3593
        %v3595 = vpop.f32.mrf.mxu0
        %v3596 = vadd.f32 %v3547, %v3595
        %3597 = vmatmul.bf16.gmra.mxu0 %v772
        %v3598 = vpop.f32.mrf.mxu0
        %v3599 = vadd.f32 %v3550, %v3598
        %v3600 = vpop.f32.mrf.mxu0
        %v3601 = vadd.f32 %v3552, %v3600
        %3602 = vmatmul.bf16.gmra.mxu0 %v776
        %v3603 = vpop.f32.mrf.mxu0
        %v3604 = vadd.f32 %v3555, %v3603
        %v3605 = vpop.f32.mrf.mxu0
        %v3606 = vadd.f32 %v3557, %v3605
        %3607 = vmatmul.bf16.gmra.mxu0 %v780
        %v3608 = vpop.f32.mrf.mxu0
        %v3609 = vadd.f32 %v3560, %v3608
        %v3610 = vpop.f32.mrf.mxu0
        %v3611 = vadd.f32 %v3562, %v3610
        %3612 = vdwg.mxu0
        %3613 = vmatpush.bf16.msra.mxu0 %v1837
        %3614 = vmatpush.bf16.msra.mxu0 %v1829
        %3615 = vmatpush.bf16.msra.mxu0 %v1821
        %3616 = vmatpush.bf16.msra.mxu0 %v1813
        %3617 = vmatpush.bf16.msra.mxu0 %v1805
        %3618 = vmatpush.bf16.msra.mxu0 %v1797
        %3619 = vmatpush.bf16.msra.mxu0 %v1789
        %3620 = vmatpush.bf16.msra.mxu0 %v1781
        %3621 = vmatmul.bf16.gmra.mxu0 %v753
        %v3622 = vpop.f32.mrf.mxu0
        %v3623 = vadd.f32 %v3574, %v3622
        %v3624 = vpop.f32.mrf.mxu0
        %v3625 = vadd.f32 %v3576, %v3624
        %3626 = vmatmul.bf16.gmra.mxu0 %v757
        %v3627 = vpop.f32.mrf.mxu0
        %v3628 = vadd.f32 %v3579, %v3627
        %v3629 = vpop.f32.mrf.mxu0
        %v3630 = vadd.f32 %v3581, %v3629
        %3631 = vmatmul.bf16.gmra.mxu0 %v761
        %v3632 = vpop.f32.mrf.mxu0
        %v3633 = vadd.f32 %v3584, %v3632
        %v3634 = vpop.f32.mrf.mxu0
        %v3635 = vadd.f32 %v3586, %v3634
        %3636 = vmatmul.bf16.gmra.mxu0 %v765
        %v3637 = vpop.f32.mrf.mxu0
        %v3638 = vadd.f32 %v3589, %v3637
        %v3639 = vpop.f32.mrf.mxu0
        %v3640 = vadd.f32 %v3591, %v3639
        %3641 = vmatmul.bf16.gmra.mxu0 %v769
        %v3642 = vpop.f32.mrf.mxu0
        %v3643 = vadd.f32 %v3594, %v3642
        %v3644 = vpop.f32.mrf.mxu0
        %v3645 = vadd.f32 %v3596, %v3644
        %3646 = vmatmul.bf16.gmra.mxu0 %v773
        %v3647 = vpop.f32.mrf.mxu0
        %v3648 = vadd.f32 %v3599, %v3647
        %v3649 = vpop.f32.mrf.mxu0
        %v3650 = vadd.f32 %v3601, %v3649
        %3651 = vmatmul.bf16.gmra.mxu0 %v777
        %v3652 = vpop.f32.mrf.mxu0
        %v3653 = vadd.f32 %v3604, %v3652
        %v3654 = vpop.f32.mrf.mxu0
        %v3655 = vadd.f32 %v3606, %v3654
        %3656 = vmatmul.bf16.gmra.mxu0 %v781
        %v3657 = vpop.f32.mrf.mxu0
        %v3658 = vadd.f32 %v3609, %v3657
        %v3659 = vpop.f32.mrf.mxu0
        %v3660 = vadd.f32 %v3611, %v3659
        %3661 = vdwg.mxu0
        %v3662 = vpack.c.bf16 %v2447, %v2251
        %v3663 = vpack.c.bf16 %v2839, %v2643
        %v3664 = vpack.c.bf16 %v3231, %v3035
        %v3665 = vpack.c.bf16 %v3623, %v3427
        %v3666 = vpack.c.bf16 %v2449, %v2253
        %v3667 = vpack.c.bf16 %v2841, %v2645
        %v3668 = vpack.c.bf16 %v3233, %v3037
        %v3669 = vpack.c.bf16 %v3625, %v3429
        %v3670 = vpack.c.bf16 %v2452, %v2256
        %v3671 = vpack.c.bf16 %v2844, %v2648
        %v3672 = vpack.c.bf16 %v3236, %v3040
        %v3673 = vpack.c.bf16 %v3628, %v3432
        %v3674 = vpack.c.bf16 %v2454, %v2258
        %v3675 = vpack.c.bf16 %v2846, %v2650
        %v3676 = vpack.c.bf16 %v3238, %v3042
        %v3677 = vpack.c.bf16 %v3630, %v3434
        %v3678 = vpack.c.bf16 %v2457, %v2261
        %v3679 = vpack.c.bf16 %v2849, %v2653
        %v3680 = vpack.c.bf16 %v3241, %v3045
        %v3681 = vpack.c.bf16 %v3633, %v3437
        %v3682 = vpack.c.bf16 %v2459, %v2263
        %v3683 = vpack.c.bf16 %v2851, %v2655
        %v3684 = vpack.c.bf16 %v3243, %v3047
        %v3685 = vpack.c.bf16 %v3635, %v3439
        %v3686 = vpack.c.bf16 %v2462, %v2266
        %v3687 = vpack.c.bf16 %v2854, %v2658
        %v3688 = vpack.c.bf16 %v3246, %v3050
        %v3689 = vpack.c.bf16 %v3638, %v3442
        %v3690 = vpack.c.bf16 %v2464, %v2268
        %v3691 = vpack.c.bf16 %v2856, %v2660
        %v3692 = vpack.c.bf16 %v3248, %v3052
        %v3693 = vpack.c.bf16 %v3640, %v3444
        %v3694 = vpack.c.bf16 %v2467, %v2271
        %v3695 = vpack.c.bf16 %v2859, %v2663
        %v3696 = vpack.c.bf16 %v3251, %v3055
        %v3697 = vpack.c.bf16 %v3643, %v3447
        %v3698 = vpack.c.bf16 %v2469, %v2273
        %v3699 = vpack.c.bf16 %v2861, %v2665
        %v3700 = vpack.c.bf16 %v3253, %v3057
        %v3701 = vpack.c.bf16 %v3645, %v3449
        %v3702 = vpack.c.bf16 %v2472, %v2276
        %v3703 = vpack.c.bf16 %v2864, %v2668
        %v3704 = vpack.c.bf16 %v3256, %v3060
        %v3705 = vpack.c.bf16 %v3648, %v3452
        %v3706 = vpack.c.bf16 %v2474, %v2278
        %v3707 = vpack.c.bf16 %v2866, %v2670
        %v3708 = vpack.c.bf16 %v3258, %v3062
        %v3709 = vpack.c.bf16 %v3650, %v3454
        %v3710 = vpack.c.bf16 %v2477, %v2281
        %v3711 = vpack.c.bf16 %v2869, %v2673
        %v3712 = vpack.c.bf16 %v3261, %v3065
        %v3713 = vpack.c.bf16 %v3653, %v3457
        %v3714 = vpack.c.bf16 %v2479, %v2283
        %v3715 = vpack.c.bf16 %v2871, %v2675
        %v3716 = vpack.c.bf16 %v3263, %v3067
        %v3717 = vpack.c.bf16 %v3655, %v3459
        %v3718 = vpack.c.bf16 %v2482, %v2286
        %v3719 = vpack.c.bf16 %v2874, %v2678
        %v3720 = vpack.c.bf16 %v3266, %v3070
        %v3721 = vpack.c.bf16 %v3658, %v3462
        %v3722 = vpack.c.bf16 %v2484, %v2288
        %v3723 = vpack.c.bf16 %v2876, %v2680
        %v3724 = vpack.c.bf16 %v3268, %v3072
        %v3725 = vpack.c.bf16 %v3660, %v3464
        %3726 = vst [vmem:[#allocation2] sm:$0xff] %v3662
        %3727 = vst [vmem:[#allocation2 + $0x8] sm:$0xff] %v3663
        %3728 = vst [vmem:[#allocation2 + $0x10] sm:$0xff] %v3664
        %3729 = vst [vmem:[#allocation2 + $0x18] sm:$0xff] %v3665
        %3730 = vst [vmem:[#allocation2 + $0x20] sm:$0xff] %v3666
        %3731 = vst [vmem:[#allocation2 + $0x28] sm:$0xff] %v3667
        %3732 = vst [vmem:[#allocation2 + $0x30] sm:$0xff] %v3668
        %3733 = vst [vmem:[#allocation2 + $0x38] sm:$0xff] %v3669
        %3734 = vst [vmem:[#allocation2 + $0x40] sm:$0xff] %v3670
        %3735 = vst [vmem:[#allocation2 + $0x48] sm:$0xff] %v3671
        %3736 = vst [vmem:[#allocation2 + $0x50] sm:$0xff] %v3672
        %3737 = vst [vmem:[#allocation2 + $0x58] sm:$0xff] %v3673
        %3738 = vst [vmem:[#allocation2 + $0x60] sm:$0xff] %v3674
        %3739 = vst [vmem:[#allocation2 + $0x68] sm:$0xff] %v3675
        %3740 = vst [vmem:[#allocation2 + $0x70] sm:$0xff] %v3676
        %3741 = vst [vmem:[#allocation2 + $0x78] sm:$0xff] %v3677
        %3742 = vst [vmem:[#allocation2 + $0x80] sm:$0xff] %v3678
        %3743 = vst [vmem:[#allocation2 + $0x88] sm:$0xff] %v3679
        %3744 = vst [vmem:[#allocation2 + $0x90] sm:$0xff] %v3680
        %3745 = vst [vmem:[#allocation2 + $0x98] sm:$0xff] %v3681
        %3746 = vst [vmem:[#allocation2 + $0xa0] sm:$0xff] %v3682
        %3747 = vst [vmem:[#allocation2 + $0xa8] sm:$0xff] %v3683
        %3748 = vst [vmem:[#allocation2 + $0xb0] sm:$0xff] %v3684
        %3749 = vst [vmem:[#allocation2 + $0xb8] sm:$0xff] %v3685
        %3750 = vst [vmem:[#allocation2 + $0xc0] sm:$0xff] %v3686
        %3751 = vst [vmem:[#allocation2 + $0xc8] sm:$0xff] %v3687
        %3752 = vst [vmem:[#allocation2 + $0xd0] sm:$0xff] %v3688
        %3753 = vst [vmem:[#allocation2 + $0xd8] sm:$0xff] %v3689
        %3754 = vst [vmem:[#allocation2 + $0xe0] sm:$0xff] %v3690
        %3755 = vst [vmem:[#allocation2 + $0xe8] sm:$0xff] %v3691
        %3756 = vst [vmem:[#allocation2 + $0xf0] sm:$0xff] %v3692
        %3757 = vst [vmem:[#allocation2 + $0xf8] sm:$0xff] %v3693
        %3758 = vst [vmem:[#allocation2 + $0x100] sm:$0xff] %v3694
        %3759 = vst [vmem:[#allocation2 + $0x108] sm:$0xff] %v3695
        %3760 = vst [vmem:[#allocation2 + $0x110] sm:$0xff] %v3696
        %3761 = vst [vmem:[#allocation2 + $0x118] sm:$0xff] %v3697
        %3762 = vst [vmem:[#allocation2 + $0x120] sm:$0xff] %v3698
        %3763 = vst [vmem:[#allocation2 + $0x128] sm:$0xff] %v3699
        %3764 = vst [vmem:[#allocation2 + $0x130] sm:$0xff] %v3700
        %3765 = vst [vmem:[#allocation2 + $0x138] sm:$0xff] %v3701
        %3766 = vst [vmem:[#allocation2 + $0x140] sm:$0xff] %v3702
        %3767 = vst [vmem:[#allocation2 + $0x148] sm:$0xff] %v3703
        %3768 = vst [vmem:[#allocation2 + $0x150] sm:$0xff] %v3704
        %3769 = vst [vmem:[#allocation2 + $0x158] sm:$0xff] %v3705
        %3770 = vst [vmem:[#allocation2 + $0x160] sm:$0xff] %v3706
        %3771 = vst [vmem:[#allocation2 + $0x168] sm:$0xff] %v3707
        %3772 = vst [vmem:[#allocation2 + $0x170] sm:$0xff] %v3708
        %3773 = vst [vmem:[#allocation2 + $0x178] sm:$0xff] %v3709
        %3774 = vst [vmem:[#allocation2 + $0x180] sm:$0xff] %v3710
        %3775 = vst [vmem:[#allocation2 + $0x188] sm:$0xff] %v3711
        %3776 = vst [vmem:[#allocation2 + $0x190] sm:$0xff] %v3712
        %3777 = vst [vmem:[#allocation2 + $0x198] sm:$0xff] %v3713
        %3778 = vst [vmem:[#allocation2 + $0x1a0] sm:$0xff] %v3714
        %3779 = vst [vmem:[#allocation2 + $0x1a8] sm:$0xff] %v3715
        %3780 = vst [vmem:[#allocation2 + $0x1b0] sm:$0xff] %v3716
        %3781 = vst [vmem:[#allocation2 + $0x1b8] sm:$0xff] %v3717
        %3782 = vst [vmem:[#allocation2 + $0x1c0] sm:$0xff] %v3718
        %3783 = vst [vmem:[#allocation2 + $0x1c8] sm:$0xff] %v3719
        %3784 = vst [vmem:[#allocation2 + $0x1d0] sm:$0xff] %v3720
        %3785 = vst [vmem:[#allocation2 + $0x1d8] sm:$0xff] %v3721
        %3786 = vst [vmem:[#allocation2 + $0x1e0] sm:$0xff] %v3722
        %3787 = vst [vmem:[#allocation2 + $0x1e8] sm:$0xff] %v3723
        %3788 = vst [vmem:[#allocation2 + $0x1f0] sm:$0xff] %v3724
        %3789 = vst [vmem:[#allocation2 + $0x1f8] sm:$0xff] %v3725
        %s3790 = smul.u32 %s21, 2
        %s3791 = ssub.s32 1, %s3790
        %s3792 = smul.u32 %s20, %s3791
        %s3793 = sadd.s32 %s21, %s3792
        %s3794 = smul.u32 %s3793, 8
        %v3795 = vld [vmem:[%s1] sm:$0xff]
        %v3796 = vld [vmem:[%s1 + $0x8] sm:$0xff]
        %v3797 = vstv %s3794
        %v3798 = vsub.s32 %v3795, %v3797
        %v3799 = vsub.s32 %v3796, %v3797
        %v3800 = vld [vmem:[%s326] sm:$0xff]
        %v3801 = vld [vmem:[%s326 + $0x8] sm:$0xff]
        %v3802 = vld [vmem:[%s326 + $0x10] sm:$0xff]
        %v3803 = vld [vmem:[%s326 + $0x18] sm:$0xff]
        %v3804 = vld [vmem:[%s326 + $0x20] sm:$0xff]
        %v3805 = vld [vmem:[%s326 + $0x28] sm:$0xff]
        %v3806 = vld [vmem:[%s326 + $0x30] sm:$0xff]
        %v3807 = vld [vmem:[%s326 + $0x38] sm:$0xff]
        %v3808 = vld [vmem:[%s326 + $0x40] sm:$0xff]
        %v3809 = vld [vmem:[%s326 + $0x48] sm:$0xff]
        %v3810 = vld [vmem:[%s326 + $0x50] sm:$0xff]
        %v3811 = vld [vmem:[%s326 + $0x58] sm:$0xff]
        %v3812 = vld [vmem:[%s326 + $0x60] sm:$0xff]
        %v3813 = vld [vmem:[%s326 + $0x68] sm:$0xff]
        %v3814 = vld [vmem:[%s326 + $0x70] sm:$0xff]
        %v3815 = vld [vmem:[%s326 + $0x78] sm:$0xff]
        %v3816 = vld [vmem:[%s326 + $0x80] sm:$0xff]
        %v3817 = vld [vmem:[%s326 + $0x88] sm:$0xff]
        %v3818 = vld [vmem:[%s326 + $0x90] sm:$0xff]
        %v3819 = vld [vmem:[%s326 + $0x98] sm:$0xff]
        %v3820 = vld [vmem:[%s326 + $0xa0] sm:$0xff]
        %v3821 = vld [vmem:[%s326 + $0xa8] sm:$0xff]
        %v3822 = vld [vmem:[%s326 + $0xb0] sm:$0xff]
        %v3823 = vld [vmem:[%s326 + $0xb8] sm:$0xff]
        %v3824 = vld [vmem:[%s326 + $0xc0] sm:$0xff]
        %v3825 = vld [vmem:[%s326 + $0xc8] sm:$0xff]
        %v3826 = vld [vmem:[%s326 + $0xd0] sm:$0xff]
        %v3827 = vld [vmem:[%s326 + $0xd8] sm:$0xff]
        %v3828 = vld [vmem:[%s326 + $0xe0] sm:$0xff]
        %v3829 = vld [vmem:[%s326 + $0xe8] sm:$0xff]
        %v3830 = vld [vmem:[%s326 + $0xf0] sm:$0xff]
        %v3831 = vld [vmem:[%s326 + $0xf8] sm:$0xff]
        %v3832 = vld [vmem:[%s326 + $0x100] sm:$0xff]
        %v3833 = vld [vmem:[%s326 + $0x108] sm:$0xff]
        %v3834 = vld [vmem:[%s326 + $0x110] sm:$0xff]
        %v3835 = vld [vmem:[%s326 + $0x118] sm:$0xff]
        %v3836 = vld [vmem:[%s326 + $0x120] sm:$0xff]
        %v3837 = vld [vmem:[%s326 + $0x128] sm:$0xff]
        %v3838 = vld [vmem:[%s326 + $0x130] sm:$0xff]
        %v3839 = vld [vmem:[%s326 + $0x138] sm:$0xff]
        %v3840 = vld [vmem:[%s326 + $0x140] sm:$0xff]
        %v3841 = vld [vmem:[%s326 + $0x148] sm:$0xff]
        %v3842 = vld [vmem:[%s326 + $0x150] sm:$0xff]
        %v3843 = vld [vmem:[%s326 + $0x158] sm:$0xff]
        %v3844 = vld [vmem:[%s326 + $0x160] sm:$0xff]
        %v3845 = vld [vmem:[%s326 + $0x168] sm:$0xff]
        %v3846 = vld [vmem:[%s326 + $0x170] sm:$0xff]
        %v3847 = vld [vmem:[%s326 + $0x178] sm:$0xff]
        %v3848 = vld [vmem:[%s326 + $0x180] sm:$0xff]
        %v3849 = vld [vmem:[%s326 + $0x188] sm:$0xff]
        %v3850 = vld [vmem:[%s326 + $0x190] sm:$0xff]
        %v3851 = vld [vmem:[%s326 + $0x198] sm:$0xff]
        %v3852 = vld [vmem:[%s326 + $0x1a0] sm:$0xff]
        %v3853 = vld [vmem:[%s326 + $0x1a8] sm:$0xff]
        %v3854 = vld [vmem:[%s326 + $0x1b0] sm:$0xff]
        %v3855 = vld [vmem:[%s326 + $0x1b8] sm:$0xff]
        %v3856 = vld [vmem:[%s326 + $0x1c0] sm:$0xff]
        %v3857 = vld [vmem:[%s326 + $0x1c8] sm:$0xff]
        %v3858 = vld [vmem:[%s326 + $0x1d0] sm:$0xff]
        %v3859 = vld [vmem:[%s326 + $0x1d8] sm:$0xff]
        %v3860 = vld [vmem:[%s326 + $0x1e0] sm:$0xff]
        %v3861 = vld [vmem:[%s326 + $0x1e8] sm:$0xff]
        %v3862 = vld [vmem:[%s326 + $0x1f0] sm:$0xff]
        %v3863 = vld [vmem:[%s326 + $0x1f8] sm:$0xff]
        %v3864 = vld [vmem:[%s326 + $0x200] sm:$0xff]
        %v3865 = vld [vmem:[%s326 + $0x208] sm:$0xff]
        %v3866 = vld [vmem:[%s326 + $0x210] sm:$0xff]
        %v3867 = vld [vmem:[%s326 + $0x218] sm:$0xff]
        %v3868 = vld [vmem:[%s326 + $0x220] sm:$0xff]
        %v3869 = vld [vmem:[%s326 + $0x228] sm:$0xff]
        %v3870 = vld [vmem:[%s326 + $0x230] sm:$0xff]
        %v3871 = vld [vmem:[%s326 + $0x238] sm:$0xff]
        %v3872 = vld [vmem:[%s326 + $0x240] sm:$0xff]
        %v3873 = vld [vmem:[%s326 + $0x248] sm:$0xff]
        %v3874 = vld [vmem:[%s326 + $0x250] sm:$0xff]
        %v3875 = vld [vmem:[%s326 + $0x258] sm:$0xff]
        %v3876 = vld [vmem:[%s326 + $0x260] sm:$0xff]
        %v3877 = vld [vmem:[%s326 + $0x268] sm:$0xff]
        %v3878 = vld [vmem:[%s326 + $0x270] sm:$0xff]
        %v3879 = vld [vmem:[%s326 + $0x278] sm:$0xff]
        %v3880 = vld [vmem:[%s326 + $0x280] sm:$0xff]
        %v3881 = vld [vmem:[%s326 + $0x288] sm:$0xff]
        %v3882 = vld [vmem:[%s326 + $0x290] sm:$0xff]
        %v3883 = vld [vmem:[%s326 + $0x298] sm:$0xff]
        %v3884 = vld [vmem:[%s326 + $0x2a0] sm:$0xff]
        %v3885 = vld [vmem:[%s326 + $0x2a8] sm:$0xff]
        %v3886 = vld [vmem:[%s326 + $0x2b0] sm:$0xff]
        %v3887 = vld [vmem:[%s326 + $0x2b8] sm:$0xff]
        %v3888 = vld [vmem:[%s326 + $0x2c0] sm:$0xff]
        %v3889 = vld [vmem:[%s326 + $0x2c8] sm:$0xff]
        %v3890 = vld [vmem:[%s326 + $0x2d0] sm:$0xff]
        %v3891 = vld [vmem:[%s326 + $0x2d8] sm:$0xff]
        %v3892 = vld [vmem:[%s326 + $0x2e0] sm:$0xff]
        %v3893 = vld [vmem:[%s326 + $0x2e8] sm:$0xff]
        %v3894 = vld [vmem:[%s326 + $0x2f0] sm:$0xff]
        %v3895 = vld [vmem:[%s326 + $0x2f8] sm:$0xff]
        %v3896 = vld [vmem:[%s326 + $0x300] sm:$0xff]
        %v3897 = vld [vmem:[%s326 + $0x308] sm:$0xff]
        %v3898 = vld [vmem:[%s326 + $0x310] sm:$0xff]
        %v3899 = vld [vmem:[%s326 + $0x318] sm:$0xff]
        %v3900 = vld [vmem:[%s326 + $0x320] sm:$0xff]
        %v3901 = vld [vmem:[%s326 + $0x328] sm:$0xff]
        %v3902 = vld [vmem:[%s326 + $0x330] sm:$0xff]
        %v3903 = vld [vmem:[%s326 + $0x338] sm:$0xff]
        %v3904 = vld [vmem:[%s326 + $0x340] sm:$0xff]
        %v3905 = vld [vmem:[%s326 + $0x348] sm:$0xff]
        %v3906 = vld [vmem:[%s326 + $0x350] sm:$0xff]
        %v3907 = vld [vmem:[%s326 + $0x358] sm:$0xff]
        %v3908 = vld [vmem:[%s326 + $0x360] sm:$0xff]
        %v3909 = vld [vmem:[%s326 + $0x368] sm:$0xff]
        %v3910 = vld [vmem:[%s326 + $0x370] sm:$0xff]
        %v3911 = vld [vmem:[%s326 + $0x378] sm:$0xff]
        %v3912 = vld [vmem:[%s326 + $0x380] sm:$0xff]
        %v3913 = vld [vmem:[%s326 + $0x388] sm:$0xff]
        %v3914 = vld [vmem:[%s326 + $0x390] sm:$0xff]
        %v3915 = vld [vmem:[%s326 + $0x398] sm:$0xff]
        %v3916 = vld [vmem:[%s326 + $0x3a0] sm:$0xff]
        %v3917 = vld [vmem:[%s326 + $0x3a8] sm:$0xff]
        %v3918 = vld [vmem:[%s326 + $0x3b0] sm:$0xff]
        %v3919 = vld [vmem:[%s326 + $0x3b8] sm:$0xff]
        %v3920 = vld [vmem:[%s326 + $0x3c0] sm:$0xff]
        %v3921 = vld [vmem:[%s326 + $0x3c8] sm:$0xff]
        %v3922 = vld [vmem:[%s326 + $0x3d0] sm:$0xff]
        %v3923 = vld [vmem:[%s326 + $0x3d8] sm:$0xff]
        %v3924 = vld [vmem:[%s326 + $0x3e0] sm:$0xff]
        %v3925 = vld [vmem:[%s326 + $0x3e8] sm:$0xff]
        %v3926 = vld [vmem:[%s326 + $0x3f0] sm:$0xff]
        %v3927 = vld [vmem:[%s326 + $0x3f8] sm:$0xff]
        loop: start=0, step=1, limit=8
        $region45: #{encoder_forward.5} parent=39 // loop_pre_header
          _
        $region46: #{encoder_forward.5} parent=39 // loop_header
          %s3929 = sphi 0, %s3933
          %p3930 = scmp.ge.s32.totalorder %s3929, 8
        $region47: #{encoder_forward.5} parent=39 // loop_header_branch
          %3932 = sbr.rel (%p3930) target = $region51
        $region48: #{encoder_forward.5} parent=39 // loop_body
          %s3934 = smul.u32 %s3929, 2
          %s3935 = ssub.s32 7, %s3934
          %s3936 = smul.u32 %s20, %s3935
          %s3937 = sadd.s32 %s3929, %s3936
          %s3938 = smul.u32 %s3937, 16
          %v3939 = vld [vmem:[#allocation3] sm:$0xff]
          %v3940 = vld [vmem:[#allocation3 + $0x8] sm:$0xff]
          %v3941 = vld [vmem:[#allocation4] sm:$0xff]
          %v3942 = vld [vmem:[#allocation4 + $0x8] sm:$0xff]
          %v3943 = vld [vmem:[#allocation4 + $0x10] sm:$0xff]
          %v3944 = vld [vmem:[#allocation4 + $0x18] sm:$0xff]
          %s3945 = sshra.s32 %s3938, 3
          %s3946 = sand.u32 %s3938, 7
          %s3947 = smul.u32 %s3945, 8
          %s3948 = smul.addr %s3947, 4
          %s3949 = scalar_lea.vmem [#allocation2], %s3948
          %v3950 = vld [vmem:[%s3949] sm:$0xff]
          %v3951 = vld [vmem:[%s3949 + $0x8] sm:$0xff]
          %v3952 = vld [vmem:[%s3949 + $0x10] sm:$0xff]
          %v3953 = vld [vmem:[%s3949 + $0x18] sm:$0xff]
          %v3954 = vld [vmem:[%s3949 + $0x20] sm:$0xff]
          %v3955 = vld [vmem:[%s3949 + $0x28] sm:$0xff]
          %v3956 = vld [vmem:[%s3949 + $0x30] sm:$0xff]
          %v3957 = vld [vmem:[%s3949 + $0x38] sm:$0xff]
          %v3960 = vunpack.c.l.b16 %v3939
          %v3961 = vunpack.c.h.b16 %v3939
          %v3962 = vunpack.c.l.b16 %v3940
          %v3963 = vunpack.c.h.b16 %v3940
          %v3964 = vpack.c.b16 %v3962, %v3960
          %v3965 = vpack.c.b16 %v3963, %v3961
          %v4096 = vunpack.c.l.b16 %v3800
          %v4097 = vunpack.c.h.b16 %v3800
          %v4098 = vunpack.c.l.b16 %v3801
          %v4099 = vunpack.c.h.b16 %v3801
          %v4100 = vunpack.c.l.b16 %v3802
          %v4101 = vunpack.c.h.b16 %v3802
          %v4102 = vunpack.c.l.b16 %v3803
          %v4103 = vunpack.c.h.b16 %v3803
          %v4104 = vunpack.c.l.b16 %v3804
          %v4105 = vunpack.c.h.b16 %v3804
          %v4106 = vunpack.c.l.b16 %v3805
          %v4107 = vunpack.c.h.b16 %v3805
          %v4108 = vunpack.c.l.b16 %v3806
          %v4109 = vunpack.c.h.b16 %v3806
          %v4110 = vunpack.c.l.b16 %v3807
          %v4111 = vunpack.c.h.b16 %v3807
          %v4112 = vunpack.c.l.b16 %v3808
          %v4113 = vunpack.c.h.b16 %v3808
          %v4114 = vunpack.c.l.b16 %v3809
          %v4115 = vunpack.c.h.b16 %v3809
          %v4116 = vunpack.c.l.b16 %v3810
          %v4117 = vunpack.c.h.b16 %v3810
          %v4118 = vunpack.c.l.b16 %v3811
          %v4119 = vunpack.c.h.b16 %v3811
          %v4120 = vunpack.c.l.b16 %v3812
          %v4121 = vunpack.c.h.b16 %v3812
          %v4122 = vunpack.c.l.b16 %v3813
          %v4123 = vunpack.c.h.b16 %v3813
          %v4124 = vunpack.c.l.b16 %v3814
          %v4125 = vunpack.c.h.b16 %v3814
          %v4126 = vunpack.c.l.b16 %v3815
          %v4127 = vunpack.c.h.b16 %v3815
          %v4128 = vunpack.c.l.b16 %v3816
          %v4129 = vunpack.c.h.b16 %v3816
          %v4130 = vunpack.c.l.b16 %v3817
          %v4131 = vunpack.c.h.b16 %v3817
          %v4132 = vunpack.c.l.b16 %v3818
          %v4133 = vunpack.c.h.b16 %v3818
          %v4134 = vunpack.c.l.b16 %v3819
          %v4135 = vunpack.c.h.b16 %v3819
          %v4136 = vunpack.c.l.b16 %v3820
          %v4137 = vunpack.c.h.b16 %v3820
          %v4138 = vunpack.c.l.b16 %v3821
          %v4139 = vunpack.c.h.b16 %v3821
          %v4140 = vunpack.c.l.b16 %v3822
          %v4141 = vunpack.c.h.b16 %v3822
          %v4142 = vunpack.c.l.b16 %v3823
          %v4143 = vunpack.c.h.b16 %v3823
          %v4144 = vunpack.c.l.b16 %v3824
          %v4145 = vunpack.c.h.b16 %v3824
          %v4146 = vunpack.c.l.b16 %v3825
          %v4147 = vunpack.c.h.b16 %v3825
          %v4148 = vunpack.c.l.b16 %v3826
          %v4149 = vunpack.c.h.b16 %v3826
          %v4150 = vunpack.c.l.b16 %v3827
          %v4151 = vunpack.c.h.b16 %v3827
          %v4152 = vunpack.c.l.b16 %v3828
          %v4153 = vunpack.c.h.b16 %v3828
          %v4154 = vunpack.c.l.b16 %v3829
          %v4155 = vunpack.c.h.b16 %v3829
          %v4156 = vunpack.c.l.b16 %v3830
          %v4157 = vunpack.c.h.b16 %v3830
          %v4158 = vunpack.c.l.b16 %v3831
          %v4159 = vunpack.c.h.b16 %v3831
          %v4160 = vunpack.c.l.b16 %v3832
          %v4161 = vunpack.c.h.b16 %v3832
          %v4162 = vunpack.c.l.b16 %v3833
          %v4163 = vunpack.c.h.b16 %v3833
          %v4164 = vunpack.c.l.b16 %v3834
          %v4165 = vunpack.c.h.b16 %v3834
          %v4166 = vunpack.c.l.b16 %v3835
          %v4167 = vunpack.c.h.b16 %v3835
          %v4168 = vunpack.c.l.b16 %v3836
          %v4169 = vunpack.c.h.b16 %v3836
          %v4170 = vunpack.c.l.b16 %v3837
          %v4171 = vunpack.c.h.b16 %v3837
          %v4172 = vunpack.c.l.b16 %v3838
          %v4173 = vunpack.c.h.b16 %v3838
          %v4174 = vunpack.c.l.b16 %v3839
          %v4175 = vunpack.c.h.b16 %v3839
          %v4176 = vunpack.c.l.b16 %v3840
          %v4177 = vunpack.c.h.b16 %v3840
          %v4178 = vunpack.c.l.b16 %v3841
          %v4179 = vunpack.c.h.b16 %v3841
          %v4180 = vunpack.c.l.b16 %v3842
          %v4181 = vunpack.c.h.b16 %v3842
          %v4182 = vunpack.c.l.b16 %v3843
          %v4183 = vunpack.c.h.b16 %v3843
          %v4184 = vunpack.c.l.b16 %v3844
          %v4185 = vunpack.c.h.b16 %v3844
          %v4186 = vunpack.c.l.b16 %v3845
          %v4187 = vunpack.c.h.b16 %v3845
          %v4188 = vunpack.c.l.b16 %v3846
          %v4189 = vunpack.c.h.b16 %v3846
          %v4190 = vunpack.c.l.b16 %v3847
          %v4191 = vunpack.c.h.b16 %v3847
          %v4192 = vunpack.c.l.b16 %v3848
          %v4193 = vunpack.c.h.b16 %v3848
          %v4194 = vunpack.c.l.b16 %v3849
          %v4195 = vunpack.c.h.b16 %v3849
          %v4196 = vunpack.c.l.b16 %v3850
          %v4197 = vunpack.c.h.b16 %v3850
          %v4198 = vunpack.c.l.b16 %v3851
          %v4199 = vunpack.c.h.b16 %v3851
          %v4200 = vunpack.c.l.b16 %v3852
          %v4201 = vunpack.c.h.b16 %v3852
          %v4202 = vunpack.c.l.b16 %v3853
          %v4203 = vunpack.c.h.b16 %v3853
          %v4204 = vunpack.c.l.b16 %v3854
          %v4205 = vunpack.c.h.b16 %v3854
          %v4206 = vunpack.c.l.b16 %v3855
          %v4207 = vunpack.c.h.b16 %v3855
          %v4208 = vunpack.c.l.b16 %v3856
          %v4209 = vunpack.c.h.b16 %v3856
          %v4210 = vunpack.c.l.b16 %v3857
          %v4211 = vunpack.c.h.b16 %v3857
          %v4212 = vunpack.c.l.b16 %v3858
          %v4213 = vunpack.c.h.b16 %v3858
          %v4214 = vunpack.c.l.b16 %v3859
          %v4215 = vunpack.c.h.b16 %v3859
          %v4216 = vunpack.c.l.b16 %v3860
          %v4217 = vunpack.c.h.b16 %v3860
          %v4218 = vunpack.c.l.b16 %v3861
          %v4219 = vunpack.c.h.b16 %v3861
          %v4220 = vunpack.c.l.b16 %v3862
          %v4221 = vunpack.c.h.b16 %v3862
          %v4222 = vunpack.c.l.b16 %v3863
          %v4223 = vunpack.c.h.b16 %v3863
          %v4224 = vunpack.c.l.b16 %v3864
          %v4225 = vunpack.c.h.b16 %v3864
          %v4226 = vunpack.c.l.b16 %v3865
          %v4227 = vunpack.c.h.b16 %v3865
          %v4228 = vunpack.c.l.b16 %v3866
          %v4229 = vunpack.c.h.b16 %v3866
          %v4230 = vunpack.c.l.b16 %v3867
          %v4231 = vunpack.c.h.b16 %v3867
          %v4232 = vunpack.c.l.b16 %v3868
          %v4233 = vunpack.c.h.b16 %v3868
          %v4234 = vunpack.c.l.b16 %v3869
          %v4235 = vunpack.c.h.b16 %v3869
          %v4236 = vunpack.c.l.b16 %v3870
          %v4237 = vunpack.c.h.b16 %v3870
          %v4238 = vunpack.c.l.b16 %v3871
          %v4239 = vunpack.c.h.b16 %v3871
          %v4240 = vunpack.c.l.b16 %v3872
          %v4241 = vunpack.c.h.b16 %v3872
          %v4242 = vunpack.c.l.b16 %v3873
          %v4243 = vunpack.c.h.b16 %v3873
          %v4244 = vunpack.c.l.b16 %v3874
          %v4245 = vunpack.c.h.b16 %v3874
          %v4246 = vunpack.c.l.b16 %v3875
          %v4247 = vunpack.c.h.b16 %v3875
          %v4248 = vunpack.c.l.b16 %v3876
          %v4249 = vunpack.c.h.b16 %v3876
          %v4250 = vunpack.c.l.b16 %v3877
          %v4251 = vunpack.c.h.b16 %v3877
          %v4252 = vunpack.c.l.b16 %v3878
          %v4253 = vunpack.c.h.b16 %v3878
          %v4254 = vunpack.c.l.b16 %v3879
          %v4255 = vunpack.c.h.b16 %v3879
          %v4256 = vunpack.c.l.b16 %v3880
          %v4257 = vunpack.c.h.b16 %v3880
          %v4258 = vunpack.c.l.b16 %v3881
          %v4259 = vunpack.c.h.b16 %v3881
          %v4260 = vunpack.c.l.b16 %v3882
          %v4261 = vunpack.c.h.b16 %v3882
          %v4262 = vunpack.c.l.b16 %v3883
          %v4263 = vunpack.c.h.b16 %v3883
          %v4264 = vunpack.c.l.b16 %v3884
          %v4265 = vunpack.c.h.b16 %v3884
          %v4266 = vunpack.c.l.b16 %v3885
          %v4267 = vunpack.c.h.b16 %v3885
          %v4268 = vunpack.c.l.b16 %v3886
          %v4269 = vunpack.c.h.b16 %v3886
          %v4270 = vunpack.c.l.b16 %v3887
          %v4271 = vunpack.c.h.b16 %v3887
          %v4272 = vunpack.c.l.b16 %v3888
          %v4273 = vunpack.c.h.b16 %v3888
          %v4274 = vunpack.c.l.b16 %v3889
          %v4275 = vunpack.c.h.b16 %v3889
          %v4276 = vunpack.c.l.b16 %v3890
          %v4277 = vunpack.c.h.b16 %v3890
          %v4278 = vunpack.c.l.b16 %v3891
          %v4279 = vunpack.c.h.b16 %v3891
          %v4280 = vunpack.c.l.b16 %v3892
          %v4281 = vunpack.c.h.b16 %v3892
          %v4282 = vunpack.c.l.b16 %v3893
          %v4283 = vunpack.c.h.b16 %v3893
          %v4284 = vunpack.c.l.b16 %v3894
          %v4285 = vunpack.c.h.b16 %v3894
          %v4286 = vunpack.c.l.b16 %v3895
          %v4287 = vunpack.c.h.b16 %v3895
          %v4288 = vunpack.c.l.b16 %v3896
          %v4289 = vunpack.c.h.b16 %v3896
          %v4290 = vunpack.c.l.b16 %v3897
          %v4291 = vunpack.c.h.b16 %v3897
          %v4292 = vunpack.c.l.b16 %v3898
          %v4293 = vunpack.c.h.b16 %v3898
          %v4294 = vunpack.c.l.b16 %v3899
          %v4295 = vunpack.c.h.b16 %v3899
          %v4296 = vunpack.c.l.b16 %v3900
          %v4297 = vunpack.c.h.b16 %v3900
          %v4298 = vunpack.c.l.b16 %v3901
          %v4299 = vunpack.c.h.b16 %v3901
          %v4300 = vunpack.c.l.b16 %v3902
          %v4301 = vunpack.c.h.b16 %v3902
          %v4302 = vunpack.c.l.b16 %v3903
          %v4303 = vunpack.c.h.b16 %v3903
          %v4304 = vunpack.c.l.b16 %v3904
          %v4305 = vunpack.c.h.b16 %v3904
          %v4306 = vunpack.c.l.b16 %v3905
          %v4307 = vunpack.c.h.b16 %v3905
          %v4308 = vunpack.c.l.b16 %v3906
          %v4309 = vunpack.c.h.b16 %v3906
          %v4310 = vunpack.c.l.b16 %v3907
          %v4311 = vunpack.c.h.b16 %v3907
          %v4312 = vunpack.c.l.b16 %v3908
          %v4313 = vunpack.c.h.b16 %v3908
          %v4314 = vunpack.c.l.b16 %v3909
          %v4315 = vunpack.c.h.b16 %v3909
          %v4316 = vunpack.c.l.b16 %v3910
          %v4317 = vunpack.c.h.b16 %v3910
          %v4318 = vunpack.c.l.b16 %v3911
          %v4319 = vunpack.c.h.b16 %v3911
          %v4320 = vunpack.c.l.b16 %v3912
          %v4321 = vunpack.c.h.b16 %v3912
          %v4322 = vunpack.c.l.b16 %v3913
          %v4323 = vunpack.c.h.b16 %v3913
          %v4324 = vunpack.c.l.b16 %v3914
          %v4325 = vunpack.c.h.b16 %v3914
          %v4326 = vunpack.c.l.b16 %v3915
          %v4327 = vunpack.c.h.b16 %v3915
          %v4328 = vunpack.c.l.b16 %v3916
          %v4329 = vunpack.c.h.b16 %v3916
          %v4330 = vunpack.c.l.b16 %v3917
          %v4331 = vunpack.c.h.b16 %v3917
          %v4332 = vunpack.c.l.b16 %v3918
          %v4333 = vunpack.c.h.b16 %v3918
          %v4334 = vunpack.c.l.b16 %v3919
          %v4335 = vunpack.c.h.b16 %v3919
          %v4336 = vunpack.c.l.b16 %v3920
          %v4337 = vunpack.c.h.b16 %v3920
          %v4338 = vunpack.c.l.b16 %v3921
          %v4339 = vunpack.c.h.b16 %v3921
          %v4340 = vunpack.c.l.b16 %v3922
          %v4341 = vunpack.c.h.b16 %v3922
          %v4342 = vunpack.c.l.b16 %v3923
          %v4343 = vunpack.c.h.b16 %v3923
          %v4344 = vunpack.c.l.b16 %v3924
          %v4345 = vunpack.c.h.b16 %v3924
          %v4346 = vunpack.c.l.b16 %v3925
          %v4347 = vunpack.c.h.b16 %v3925
          %v4348 = vunpack.c.l.b16 %v3926
          %v4349 = vunpack.c.h.b16 %v3926
          %v4350 = vunpack.c.l.b16 %v3927
          %v4351 = vunpack.c.h.b16 %v3927
          %v4352 = vpack.c.b16 %v4104, %v4096
          %v4353 = vpack.c.b16 %v4105, %v4097
          %v4354 = vpack.c.b16 %v4106, %v4098
          %v4355 = vpack.c.b16 %v4107, %v4099
          %v4356 = vpack.c.b16 %v4108, %v4100
          %v4357 = vpack.c.b16 %v4109, %v4101
          %v4358 = vpack.c.b16 %v4110, %v4102
          %v4359 = vpack.c.b16 %v4111, %v4103
          %v4360 = vpack.c.b16 %v4120, %v4112
          %v4361 = vpack.c.b16 %v4121, %v4113
          %v4362 = vpack.c.b16 %v4122, %v4114
          %v4363 = vpack.c.b16 %v4123, %v4115
          %v4364 = vpack.c.b16 %v4124, %v4116
          %v4365 = vpack.c.b16 %v4125, %v4117
          %v4366 = vpack.c.b16 %v4126, %v4118
          %v4367 = vpack.c.b16 %v4127, %v4119
          %v4368 = vpack.c.b16 %v4136, %v4128
          %v4369 = vpack.c.b16 %v4137, %v4129
          %v4370 = vpack.c.b16 %v4138, %v4130
          %v4371 = vpack.c.b16 %v4139, %v4131
          %v4372 = vpack.c.b16 %v4140, %v4132
          %v4373 = vpack.c.b16 %v4141, %v4133
          %v4374 = vpack.c.b16 %v4142, %v4134
          %v4375 = vpack.c.b16 %v4143, %v4135
          %v4376 = vpack.c.b16 %v4152, %v4144
          %v4377 = vpack.c.b16 %v4153, %v4145
          %v4378 = vpack.c.b16 %v4154, %v4146
          %v4379 = vpack.c.b16 %v4155, %v4147
          %v4380 = vpack.c.b16 %v4156, %v4148
          %v4381 = vpack.c.b16 %v4157, %v4149
          %v4382 = vpack.c.b16 %v4158, %v4150
          %v4383 = vpack.c.b16 %v4159, %v4151
          %v4384 = vpack.c.b16 %v4168, %v4160
          %v4385 = vpack.c.b16 %v4169, %v4161
          %v4386 = vpack.c.b16 %v4170, %v4162
          %v4387 = vpack.c.b16 %v4171, %v4163
          %v4388 = vpack.c.b16 %v4172, %v4164
          %v4389 = vpack.c.b16 %v4173, %v4165
          %v4390 = vpack.c.b16 %v4174, %v4166
          %v4391 = vpack.c.b16 %v4175, %v4167
          %v4392 = vpack.c.b16 %v4184, %v4176
          %v4393 = vpack.c.b16 %v4185, %v4177
          %v4394 = vpack.c.b16 %v4186, %v4178
          %v4395 = vpack.c.b16 %v4187, %v4179
          %v4396 = vpack.c.b16 %v4188, %v4180
          %v4397 = vpack.c.b16 %v4189, %v4181
          %v4398 = vpack.c.b16 %v4190, %v4182
          %v4399 = vpack.c.b16 %v4191, %v4183
          %v4400 = vpack.c.b16 %v4200, %v4192
          %v4401 = vpack.c.b16 %v4201, %v4193
          %v4402 = vpack.c.b16 %v4202, %v4194
          %v4403 = vpack.c.b16 %v4203, %v4195
          %v4404 = vpack.c.b16 %v4204, %v4196
          %v4405 = vpack.c.b16 %v4205, %v4197
          %v4406 = vpack.c.b16 %v4206, %v4198
          %v4407 = vpack.c.b16 %v4207, %v4199
          %v4408 = vpack.c.b16 %v4216, %v4208
          %v4409 = vpack.c.b16 %v4217, %v4209
          %v4410 = vpack.c.b16 %v4218, %v4210
          %v4411 = vpack.c.b16 %v4219, %v4211
          %v4412 = vpack.c.b16 %v4220, %v4212
          %v4413 = vpack.c.b16 %v4221, %v4213
          %v4414 = vpack.c.b16 %v4222, %v4214
          %v4415 = vpack.c.b16 %v4223, %v4215
          %v4416 = vpack.c.b16 %v4232, %v4224
          %v4417 = vpack.c.b16 %v4233, %v4225
          %v4418 = vpack.c.b16 %v4234, %v4226
          %v4419 = vpack.c.b16 %v4235, %v4227
          %v4420 = vpack.c.b16 %v4236, %v4228
          %v4421 = vpack.c.b16 %v4237, %v4229
          %v4422 = vpack.c.b16 %v4238, %v4230
          %v4423 = vpack.c.b16 %v4239, %v4231
          %v4424 = vpack.c.b16 %v4248, %v4240
          %v4425 = vpack.c.b16 %v4249, %v4241
          %v4426 = vpack.c.b16 %v4250, %v4242
          %v4427 = vpack.c.b16 %v4251, %v4243
          %v4428 = vpack.c.b16 %v4252, %v4244
          %v4429 = vpack.c.b16 %v4253, %v4245
          %v4430 = vpack.c.b16 %v4254, %v4246
          %v4431 = vpack.c.b16 %v4255, %v4247
          %v4432 = vpack.c.b16 %v4264, %v4256
          %v4433 = vpack.c.b16 %v4265, %v4257
          %v4434 = vpack.c.b16 %v4266, %v4258
          %v4435 = vpack.c.b16 %v4267, %v4259
          %v4436 = vpack.c.b16 %v4268, %v4260
          %v4437 = vpack.c.b16 %v4269, %v4261
          %v4438 = vpack.c.b16 %v4270, %v4262
          %v4439 = vpack.c.b16 %v4271, %v4263
          %v4440 = vpack.c.b16 %v4280, %v4272
          %v4441 = vpack.c.b16 %v4281, %v4273
          %v4442 = vpack.c.b16 %v4282, %v4274
          %v4443 = vpack.c.b16 %v4283, %v4275
          %v4444 = vpack.c.b16 %v4284, %v4276
          %v4445 = vpack.c.b16 %v4285, %v4277
          %v4446 = vpack.c.b16 %v4286, %v4278
          %v4447 = vpack.c.b16 %v4287, %v4279
          %v4448 = vpack.c.b16 %v4296, %v4288
          %v4449 = vpack.c.b16 %v4297, %v4289
          %v4450 = vpack.c.b16 %v4298, %v4290
          %v4451 = vpack.c.b16 %v4299, %v4291
          %v4452 = vpack.c.b16 %v4300, %v4292
          %v4453 = vpack.c.b16 %v4301, %v4293
          %v4454 = vpack.c.b16 %v4302, %v4294
          %v4455 = vpack.c.b16 %v4303, %v4295
          %v4456 = vpack.c.b16 %v4312, %v4304
          %v4457 = vpack.c.b16 %v4313, %v4305
          %v4458 = vpack.c.b16 %v4314, %v4306
          %v4459 = vpack.c.b16 %v4315, %v4307
          %v4460 = vpack.c.b16 %v4316, %v4308
          %v4461 = vpack.c.b16 %v4317, %v4309
          %v4462 = vpack.c.b16 %v4318, %v4310
          %v4463 = vpack.c.b16 %v4319, %v4311
          %v4464 = vpack.c.b16 %v4328, %v4320
          %v4465 = vpack.c.b16 %v4329, %v4321
          %v4466 = vpack.c.b16 %v4330, %v4322
          %v4467 = vpack.c.b16 %v4331, %v4323
          %v4468 = vpack.c.b16 %v4332, %v4324
          %v4469 = vpack.c.b16 %v4333, %v4325
          %v4470 = vpack.c.b16 %v4334, %v4326
          %v4471 = vpack.c.b16 %v4335, %v4327
          %v4472 = vpack.c.b16 %v4344, %v4336
          %v4473 = vpack.c.b16 %v4345, %v4337
          %v4474 = vpack.c.b16 %v4346, %v4338
          %v4475 = vpack.c.b16 %v4347, %v4339
          %v4476 = vpack.c.b16 %v4348, %v4340
          %v4477 = vpack.c.b16 %v4349, %v4341
          %v4478 = vpack.c.b16 %v4350, %v4342
          %v4479 = vpack.c.b16 %v4351, %v4343
          %4608 = vmatpush.bf16.msra.mxu0 %v4408
          %4609 = vmatpush.bf16.msra.mxu0 %v4400
          %4610 = vmatpush.bf16.msra.mxu0 %v4392
          %4611 = vmatpush.bf16.msra.mxu0 %v4384
          %4612 = vmatpush.bf16.msra.mxu0 %v4376
          %4613 = vmatpush.bf16.msra.mxu0 %v4368
          %4614 = vmatpush.bf16.msra.mxu0 %v4360
          %4615 = vmatpush.bf16.msra.mxu0 %v4352
          %4616 = vmatmul.bf16.gmra.mxu0 %v3964
          %v4617 = vpop.f32.mrf.mxu0
          %v4618 = vadd.f32 0.0, %v4617
          %v4619 = vpop.f32.mrf.mxu0
          %v4620 = vadd.f32 0.0, %v4619
          %4621 = vdwg.mxu0
          %4622 = vmatpush.bf16.msra.mxu0 %v4472
          %4623 = vmatpush.bf16.msra.mxu0 %v4464
          %4624 = vmatpush.bf16.msra.mxu0 %v4456
          %4625 = vmatpush.bf16.msra.mxu0 %v4448
          %4626 = vmatpush.bf16.msra.mxu0 %v4440
          %4627 = vmatpush.bf16.msra.mxu0 %v4432
          %4628 = vmatpush.bf16.msra.mxu0 %v4424
          %4629 = vmatpush.bf16.msra.mxu0 %v4416
          %4630 = vmatmul.bf16.gmra.mxu0 %v3965
          %v4631 = vpop.f32.mrf.mxu0
          %v4632 = vadd.f32 %v4618, %v4631
          %v4633 = vpop.f32.mrf.mxu0
          %v4634 = vadd.f32 %v4620, %v4633
          %4635 = vdwg.mxu0
          %4636 = vmatpush.bf16.msra.mxu0 %v4409
          %4637 = vmatpush.bf16.msra.mxu0 %v4401
          %4638 = vmatpush.bf16.msra.mxu0 %v4393
          %4639 = vmatpush.bf16.msra.mxu0 %v4385
          %4640 = vmatpush.bf16.msra.mxu0 %v4377
          %4641 = vmatpush.bf16.msra.mxu0 %v4369
          %4642 = vmatpush.bf16.msra.mxu0 %v4361
          %4643 = vmatpush.bf16.msra.mxu0 %v4353
          %4644 = vmatmul.bf16.gmra.mxu0 %v3964
          %v4645 = vpop.f32.mrf.mxu0
          %v4646 = vadd.f32 0.0, %v4645
          %v4647 = vpop.f32.mrf.mxu0
          %v4648 = vadd.f32 0.0, %v4647
          %4649 = vdwg.mxu0
          %4650 = vmatpush.bf16.msra.mxu0 %v4473
          %4651 = vmatpush.bf16.msra.mxu0 %v4465
          %4652 = vmatpush.bf16.msra.mxu0 %v4457
          %4653 = vmatpush.bf16.msra.mxu0 %v4449
          %4654 = vmatpush.bf16.msra.mxu0 %v4441
          %4655 = vmatpush.bf16.msra.mxu0 %v4433
          %4656 = vmatpush.bf16.msra.mxu0 %v4425
          %4657 = vmatpush.bf16.msra.mxu0 %v4417
          %4658 = vmatmul.bf16.gmra.mxu0 %v3965
          %v4659 = vpop.f32.mrf.mxu0
          %v4660 = vadd.f32 %v4646, %v4659
          %v4661 = vpop.f32.mrf.mxu0
          %v4662 = vadd.f32 %v4648, %v4661
          %4663 = vdwg.mxu0
          %4664 = vmatpush.bf16.msra.mxu0 %v4410
          %4665 = vmatpush.bf16.msra.mxu0 %v4402
          %4666 = vmatpush.bf16.msra.mxu0 %v4394
          %4667 = vmatpush.bf16.msra.mxu0 %v4386
          %4668 = vmatpush.bf16.msra.mxu0 %v4378
          %4669 = vmatpush.bf16.msra.mxu0 %v4370
          %4670 = vmatpush.bf16.msra.mxu0 %v4362
          %4671 = vmatpush.bf16.msra.mxu0 %v4354
          %4672 = vmatmul.bf16.gmra.mxu0 %v3964
          %v4673 = vpop.f32.mrf.mxu0
          %v4674 = vadd.f32 0.0, %v4673
          %v4675 = vpop.f32.mrf.mxu0
          %v4676 = vadd.f32 0.0, %v4675
          %4677 = vdwg.mxu0
          %4678 = vmatpush.bf16.msra.mxu0 %v4474
          %4679 = vmatpush.bf16.msra.mxu0 %v4466
          %4680 = vmatpush.bf16.msra.mxu0 %v4458
          %4681 = vmatpush.bf16.msra.mxu0 %v4450
          %4682 = vmatpush.bf16.msra.mxu0 %v4442
          %4683 = vmatpush.bf16.msra.mxu0 %v4434
          %4684 = vmatpush.bf16.msra.mxu0 %v4426
          %4685 = vmatpush.bf16.msra.mxu0 %v4418
          %4686 = vmatmul.bf16.gmra.mxu0 %v3965
          %v4687 = vpop.f32.mrf.mxu0
          %v4688 = vadd.f32 %v4674, %v4687
          %v4689 = vpop.f32.mrf.mxu0
          %v4690 = vadd.f32 %v4676, %v4689
          %4691 = vdwg.mxu0
          %4692 = vmatpush.bf16.msra.mxu0 %v4411
          %4693 = vmatpush.bf16.msra.mxu0 %v4403
          %4694 = vmatpush.bf16.msra.mxu0 %v4395
          %4695 = vmatpush.bf16.msra.mxu0 %v4387
          %4696 = vmatpush.bf16.msra.mxu0 %v4379
          %4697 = vmatpush.bf16.msra.mxu0 %v4371
          %4698 = vmatpush.bf16.msra.mxu0 %v4363
          %4699 = vmatpush.bf16.msra.mxu0 %v4355
          %4700 = vmatmul.bf16.gmra.mxu0 %v3964
          %v4701 = vpop.f32.mrf.mxu0
          %v4702 = vadd.f32 0.0, %v4701
          %v4703 = vpop.f32.mrf.mxu0
          %v4704 = vadd.f32 0.0, %v4703
          %4705 = vdwg.mxu0
          %4706 = vmatpush.bf16.msra.mxu0 %v4475
          %4707 = vmatpush.bf16.msra.mxu0 %v4467
          %4708 = vmatpush.bf16.msra.mxu0 %v4459
          %4709 = vmatpush.bf16.msra.mxu0 %v4451
          %4710 = vmatpush.bf16.msra.mxu0 %v4443
          %4711 = vmatpush.bf16.msra.mxu0 %v4435
          %4712 = vmatpush.bf16.msra.mxu0 %v4427
          %4713 = vmatpush.bf16.msra.mxu0 %v4419
          %4714 = vmatmul.bf16.gmra.mxu0 %v3965
          %v4715 = vpop.f32.mrf.mxu0
          %v4716 = vadd.f32 %v4702, %v4715
          %v4717 = vpop.f32.mrf.mxu0
          %v4718 = vadd.f32 %v4704, %v4717
          %4719 = vdwg.mxu0
          %4720 = vmatpush.bf16.msra.mxu0 %v4412
          %4721 = vmatpush.bf16.msra.mxu0 %v4404
          %4722 = vmatpush.bf16.msra.mxu0 %v4396
          %4723 = vmatpush.bf16.msra.mxu0 %v4388
          %4724 = vmatpush.bf16.msra.mxu0 %v4380
          %4725 = vmatpush.bf16.msra.mxu0 %v4372
          %4726 = vmatpush.bf16.msra.mxu0 %v4364
          %4727 = vmatpush.bf16.msra.mxu0 %v4356
          %4728 = vmatmul.bf16.gmra.mxu0 %v3964
          %v4729 = vpop.f32.mrf.mxu0
          %v4730 = vadd.f32 0.0, %v4729
          %v4731 = vpop.f32.mrf.mxu0
          %v4732 = vadd.f32 0.0, %v4731
          %4733 = vdwg.mxu0
          %4734 = vmatpush.bf16.msra.mxu0 %v4476
          %4735 = vmatpush.bf16.msra.mxu0 %v4468
          %4736 = vmatpush.bf16.msra.mxu0 %v4460
          %4737 = vmatpush.bf16.msra.mxu0 %v4452
          %4738 = vmatpush.bf16.msra.mxu0 %v4444
          %4739 = vmatpush.bf16.msra.mxu0 %v4436
          %4740 = vmatpush.bf16.msra.mxu0 %v4428
          %4741 = vmatpush.bf16.msra.mxu0 %v4420
          %4742 = vmatmul.bf16.gmra.mxu0 %v3965
          %v4743 = vpop.f32.mrf.mxu0
          %v4744 = vadd.f32 %v4730, %v4743
          %v4745 = vpop.f32.mrf.mxu0
          %v4746 = vadd.f32 %v4732, %v4745
          %4747 = vdwg.mxu0
          %4748 = vmatpush.bf16.msra.mxu0 %v4413
          %4749 = vmatpush.bf16.msra.mxu0 %v4405
          %4750 = vmatpush.bf16.msra.mxu0 %v4397
          %4751 = vmatpush.bf16.msra.mxu0 %v4389
          %4752 = vmatpush.bf16.msra.mxu0 %v4381
          %4753 = vmatpush.bf16.msra.mxu0 %v4373
          %4754 = vmatpush.bf16.msra.mxu0 %v4365
          %4755 = vmatpush.bf16.msra.mxu0 %v4357
          %4756 = vmatmul.bf16.gmra.mxu0 %v3964
          %v4757 = vpop.f32.mrf.mxu0
          %v4758 = vadd.f32 0.0, %v4757
          %v4759 = vpop.f32.mrf.mxu0
          %v4760 = vadd.f32 0.0, %v4759
          %4761 = vdwg.mxu0
          %4762 = vmatpush.bf16.msra.mxu0 %v4477
          %4763 = vmatpush.bf16.msra.mxu0 %v4469
          %4764 = vmatpush.bf16.msra.mxu0 %v4461
          %4765 = vmatpush.bf16.msra.mxu0 %v4453
          %4766 = vmatpush.bf16.msra.mxu0 %v4445
          %4767 = vmatpush.bf16.msra.mxu0 %v4437
          %4768 = vmatpush.bf16.msra.mxu0 %v4429
          %4769 = vmatpush.bf16.msra.mxu0 %v4421
          %4770 = vmatmul.bf16.gmra.mxu0 %v3965
          %v4771 = vpop.f32.mrf.mxu0
          %v4772 = vadd.f32 %v4758, %v4771
          %v4773 = vpop.f32.mrf.mxu0
          %v4774 = vadd.f32 %v4760, %v4773
          %4775 = vdwg.mxu0
          %4776 = vmatpush.bf16.msra.mxu0 %v4414
          %4777 = vmatpush.bf16.msra.mxu0 %v4406
          %4778 = vmatpush.bf16.msra.mxu0 %v4398
          %4779 = vmatpush.bf16.msra.mxu0 %v4390
          %4780 = vmatpush.bf16.msra.mxu0 %v4382
          %4781 = vmatpush.bf16.msra.mxu0 %v4374
          %4782 = vmatpush.bf16.msra.mxu0 %v4366
          %4783 = vmatpush.bf16.msra.mxu0 %v4358
          %4784 = vmatmul.bf16.gmra.mxu0 %v3964
          %v4785 = vpop.f32.mrf.mxu0
          %v4786 = vadd.f32 0.0, %v4785
          %v4787 = vpop.f32.mrf.mxu0
          %v4788 = vadd.f32 0.0, %v4787
          %4789 = vdwg.mxu0
          %4790 = vmatpush.bf16.msra.mxu0 %v4478
          %4791 = vmatpush.bf16.msra.mxu0 %v4470
          %4792 = vmatpush.bf16.msra.mxu0 %v4462
          %4793 = vmatpush.bf16.msra.mxu0 %v4454
          %4794 = vmatpush.bf16.msra.mxu0 %v4446
          %4795 = vmatpush.bf16.msra.mxu0 %v4438
          %4796 = vmatpush.bf16.msra.mxu0 %v4430
          %4797 = vmatpush.bf16.msra.mxu0 %v4422
          %4798 = vmatmul.bf16.gmra.mxu0 %v3965
          %v4799 = vpop.f32.mrf.mxu0
          %v4800 = vadd.f32 %v4786, %v4799
          %v4801 = vpop.f32.mrf.mxu0
          %v4802 = vadd.f32 %v4788, %v4801
          %4803 = vdwg.mxu0
          %4804 = vmatpush.bf16.msra.mxu0 %v4415
          %4805 = vmatpush.bf16.msra.mxu0 %v4407
          %4806 = vmatpush.bf16.msra.mxu0 %v4399
          %4807 = vmatpush.bf16.msra.mxu0 %v4391
          %4808 = vmatpush.bf16.msra.mxu0 %v4383
          %4809 = vmatpush.bf16.msra.mxu0 %v4375
          %4810 = vmatpush.bf16.msra.mxu0 %v4367
          %4811 = vmatpush.bf16.msra.mxu0 %v4359
          %4812 = vmatmul.bf16.gmra.mxu0 %v3964
          %v4813 = vpop.f32.mrf.mxu0
          %v4814 = vadd.f32 0.0, %v4813
          %v4815 = vpop.f32.mrf.mxu0
          %v4816 = vadd.f32 0.0, %v4815
          %4817 = vdwg.mxu0
          %4818 = vmatpush.bf16.msra.mxu0 %v4479
          %4819 = vmatpush.bf16.msra.mxu0 %v4471
          %4820 = vmatpush.bf16.msra.mxu0 %v4463
          %4821 = vmatpush.bf16.msra.mxu0 %v4455
          %4822 = vmatpush.bf16.msra.mxu0 %v4447
          %4823 = vmatpush.bf16.msra.mxu0 %v4439
          %4824 = vmatpush.bf16.msra.mxu0 %v4431
          %4825 = vmatpush.bf16.msra.mxu0 %v4423
          %4826 = vmatmul.bf16.gmra.mxu0 %v3965
          %v4827 = vpop.f32.mrf.mxu0
          %v4828 = vadd.f32 %v4814, %v4827
          %v4829 = vpop.f32.mrf.mxu0
          %v4830 = vadd.f32 %v4816, %v4829
          %4831 = vdwg.mxu0
          %v4832 = vunpack.c.l.bf16 %v3950
          %v4833 = vunpack.c.h.bf16 %v3950
          %v4834 = vunpack.c.l.bf16 %v3951
          %v4835 = vunpack.c.h.bf16 %v3951
          %v4836 = vunpack.c.l.bf16 %v3952
          %v4837 = vunpack.c.h.bf16 %v3952
          %v4838 = vunpack.c.l.bf16 %v3953
          %v4839 = vunpack.c.h.bf16 %v3953
          %v4840 = vunpack.c.l.bf16 %v3954
          %v4841 = vunpack.c.h.bf16 %v3954
          %v4842 = vunpack.c.l.bf16 %v3955
          %v4843 = vunpack.c.h.bf16 %v3955
          %v4844 = vunpack.c.l.bf16 %v3956
          %v4845 = vunpack.c.h.bf16 %v3956
          %v4846 = vunpack.c.l.bf16 %v3957
          %v4847 = vunpack.c.h.bf16 %v3957
          %v4848 = vadd.f32 %v4832, %v4632
          %v4849 = vadd.f32 %v4833, %v4660
          %v4850 = vadd.f32 %v4834, %v4688
          %v4851 = vadd.f32 %v4835, %v4716
          %v4852 = vadd.f32 %v4836, %v4744
          %v4853 = vadd.f32 %v4837, %v4772
          %v4854 = vadd.f32 %v4838, %v4800
          %v4855 = vadd.f32 %v4839, %v4828
          %v4856 = vadd.f32 %v4840, %v4634
          %v4857 = vadd.f32 %v4841, %v4662
          %v4858 = vadd.f32 %v4842, %v4690
          %v4859 = vadd.f32 %v4843, %v4718
          %v4860 = vadd.f32 %v4844, %v4746
          %v4861 = vadd.f32 %v4845, %v4774
          %v4862 = vadd.f32 %v4846, %v4802
          %v4863 = vadd.f32 %v4847, %v4830
          %v4864 = vxor.u32 %v4848, 2147483648
          %v4865 = vxor.u32 %v4849, 2147483648
          %v4866 = vxor.u32 %v4856, 2147483648
          %v4867 = vxor.u32 %v4857, 2147483648
          %v4868 = vmul.f32 %v4864, 1.442695
          %v4869 = vpow.pop %v4868
          %v4870 = vmul.f32 %v4865, 1.442695
          %v4871 = vpow.pop %v4870
          %v4872 = vmul.f32 %v4866, 1.442695
          %v4873 = vpow.pop %v4872
          %v4874 = vmul.f32 %v4867, 1.442695
          %v4875 = vpow.pop %v4874
          %v4876 = vadd.f32 %v4869, 1.0
          %v4877 = vadd.f32 %v4871, 1.0
          %v4878 = vadd.f32 %v4873, 1.0
          %v4879 = vadd.f32 %v4875, 1.0
          %v4880 = vrcp.pop %v4876
          %v4881 = vmul.f32 %v4876, %v4880
          %v4882 = vsub.f32 1.0, %v4881
          %v4883 = vmul.f32 %v4880, %v4882
          %v4884 = vadd.f32 %v4880, %v4883
          %vm4885 = vweird.f32 %v4876
          %vm4886 = vweird.f32 %v4880
          %vm4887 = vmor %vm4885, %vm4886
          %v4888 = vsel %vm4887, %v4880, %v4884
          %v4889 = vand.u32 2147483647, %v4876
          %vm4890 = vcmp.eq.f32.partialorder %v4889, 8.507059e+37
          %v4891 = vand.u32 %v4876, 2147483648
          %v4892 = vor.u32 1.1754944e-38, %v4891
          %v4893 = vsel %vm4890, %v4892, %v4888
          %v4894 = vmul.f32 1.0, %v4893
          %v4895 = vrcp.pop %v4877
          %v4896 = vmul.f32 %v4877, %v4895
          %v4897 = vsub.f32 1.0, %v4896
          %v4898 = vmul.f32 %v4895, %v4897
          %v4899 = vadd.f32 %v4895, %v4898
          %vm4900 = vweird.f32 %v4877
          %vm4901 = vweird.f32 %v4895
          %vm4902 = vmor %vm4900, %vm4901
          %v4903 = vsel %vm4902, %v4895, %v4899
          %v4904 = vand.u32 2147483647, %v4877
          %vm4905 = vcmp.eq.f32.partialorder %v4904, 8.507059e+37
          %v4906 = vand.u32 %v4877, 2147483648
          %v4907 = vor.u32 1.1754944e-38, %v4906
          %v4908 = vsel %vm4905, %v4907, %v4903
          %v4909 = vmul.f32 1.0, %v4908
          %v4910 = vrcp.pop %v4878
          %v4911 = vmul.f32 %v4878, %v4910
          %v4912 = vsub.f32 1.0, %v4911
          %v4913 = vmul.f32 %v4910, %v4912
          %v4914 = vadd.f32 %v4910, %v4913
          %vm4915 = vweird.f32 %v4878
          %vm4916 = vweird.f32 %v4910
          %vm4917 = vmor %vm4915, %vm4916
          %v4918 = vsel %vm4917, %v4910, %v4914
          %v4919 = vand.u32 2147483647, %v4878
          %vm4920 = vcmp.eq.f32.partialorder %v4919, 8.507059e+37
          %v4921 = vand.u32 %v4878, 2147483648
          %v4922 = vor.u32 1.1754944e-38, %v4921
          %v4923 = vsel %vm4920, %v4922, %v4918
          %v4924 = vmul.f32 1.0, %v4923
          %v4925 = vrcp.pop %v4879
          %v4926 = vmul.f32 %v4879, %v4925
          %v4927 = vsub.f32 1.0, %v4926
          %v4928 = vmul.f32 %v4925, %v4927
          %v4929 = vadd.f32 %v4925, %v4928
          %vm4930 = vweird.f32 %v4879
          %vm4931 = vweird.f32 %v4925
          %vm4932 = vmor %vm4930, %vm4931
          %v4933 = vsel %vm4932, %v4925, %v4929
          %v4934 = vand.u32 2147483647, %v4879
          %vm4935 = vcmp.eq.f32.partialorder %v4934, 8.507059e+37
          %v4936 = vand.u32 %v4879, 2147483648
          %v4937 = vor.u32 1.1754944e-38, %v4936
          %v4938 = vsel %vm4935, %v4937, %v4933
          %v4939 = vmul.f32 1.0, %v4938
          %v4940 = vxor.u32 %v4850, 2147483648
          %v4941 = vxor.u32 %v4851, 2147483648
          %v4942 = vxor.u32 %v4858, 2147483648
          %v4943 = vxor.u32 %v4859, 2147483648
          %v4944 = vmul.f32 %v4940, 1.442695
          %v4945 = vpow.pop %v4944
          %v4946 = vmul.f32 %v4941, 1.442695
          %v4947 = vpow.pop %v4946
          %v4948 = vmul.f32 %v4942, 1.442695
          %v4949 = vpow.pop %v4948
          %v4950 = vmul.f32 %v4943, 1.442695
          %v4951 = vpow.pop %v4950
          %v4952 = vadd.f32 %v4945, 1.0
          %v4953 = vadd.f32 %v4947, 1.0
          %v4954 = vadd.f32 %v4949, 1.0
          %v4955 = vadd.f32 %v4951, 1.0
          %v4956 = vrcp.pop %v4952
          %v4957 = vmul.f32 %v4952, %v4956
          %v4958 = vsub.f32 1.0, %v4957
          %v4959 = vmul.f32 %v4956, %v4958
          %v4960 = vadd.f32 %v4956, %v4959
          %vm4961 = vweird.f32 %v4952
          %vm4962 = vweird.f32 %v4956
          %vm4963 = vmor %vm4961, %vm4962
          %v4964 = vsel %vm4963, %v4956, %v4960
          %v4965 = vand.u32 2147483647, %v4952
          %vm4966 = vcmp.eq.f32.partialorder %v4965, 8.507059e+37
          %v4967 = vand.u32 %v4952, 2147483648
          %v4968 = vor.u32 1.1754944e-38, %v4967
          %v4969 = vsel %vm4966, %v4968, %v4964
          %v4970 = vmul.f32 1.0, %v4969
          %v4971 = vrcp.pop %v4953
          %v4972 = vmul.f32 %v4953, %v4971
          %v4973 = vsub.f32 1.0, %v4972
          %v4974 = vmul.f32 %v4971, %v4973
          %v4975 = vadd.f32 %v4971, %v4974
          %vm4976 = vweird.f32 %v4953
          %vm4977 = vweird.f32 %v4971
          %vm4978 = vmor %vm4976, %vm4977
          %v4979 = vsel %vm4978, %v4971, %v4975
          %v4980 = vand.u32 2147483647, %v4953
          %vm4981 = vcmp.eq.f32.partialorder %v4980, 8.507059e+37
          %v4982 = vand.u32 %v4953, 2147483648
          %v4983 = vor.u32 1.1754944e-38, %v4982
          %v4984 = vsel %vm4981, %v4983, %v4979
          %v4985 = vmul.f32 1.0, %v4984
          %v4986 = vrcp.pop %v4954
          %v4987 = vmul.f32 %v4954, %v4986
          %v4988 = vsub.f32 1.0, %v4987
          %v4989 = vmul.f32 %v4986, %v4988
          %v4990 = vadd.f32 %v4986, %v4989
          %vm4991 = vweird.f32 %v4954
          %vm4992 = vweird.f32 %v4986
          %vm4993 = vmor %vm4991, %vm4992
          %v4994 = vsel %vm4993, %v4986, %v4990
          %v4995 = vand.u32 2147483647, %v4954
          %vm4996 = vcmp.eq.f32.partialorder %v4995, 8.507059e+37
          %v4997 = vand.u32 %v4954, 2147483648
          %v4998 = vor.u32 1.1754944e-38, %v4997
          %v4999 = vsel %vm4996, %v4998, %v4994
          %v5000 = vmul.f32 1.0, %v4999
          %v5001 = vrcp.pop %v4955
          %v5002 = vmul.f32 %v4955, %v5001
          %v5003 = vsub.f32 1.0, %v5002
          %v5004 = vmul.f32 %v5001, %v5003
          %v5005 = vadd.f32 %v5001, %v5004
          %vm5006 = vweird.f32 %v4955
          %vm5007 = vweird.f32 %v5001
          %vm5008 = vmor %vm5006, %vm5007
          %v5009 = vsel %vm5008, %v5001, %v5005
          %v5010 = vand.u32 2147483647, %v4955
          %vm5011 = vcmp.eq.f32.partialorder %v5010, 8.507059e+37
          %v5012 = vand.u32 %v4955, 2147483648
          %v5013 = vor.u32 1.1754944e-38, %v5012
          %v5014 = vsel %vm5011, %v5013, %v5009
          %v5015 = vmul.f32 1.0, %v5014
          %v5016 = vtanh.pop %v4852
          %v5017 = vtanh.pop %v4853
          %v5018 = vtanh.pop %v4860
          %v5019 = vtanh.pop %v4861
          %v5020 = vxor.u32 %v4854, 2147483648
          %v5021 = vxor.u32 %v4855, 2147483648
          %v5022 = vxor.u32 %v4862, 2147483648
          %v5023 = vxor.u32 %v4863, 2147483648
          %v5024 = vmul.f32 %v5020, 1.442695
          %v5025 = vpow.pop %v5024
          %v5026 = vmul.f32 %v5021, 1.442695
          %v5027 = vpow.pop %v5026
          %v5028 = vmul.f32 %v5022, 1.442695
          %v5029 = vpow.pop %v5028
          %v5030 = vmul.f32 %v5023, 1.442695
          %v5031 = vpow.pop %v5030
          %v5032 = vadd.f32 %v5025, 1.0
          %v5033 = vadd.f32 %v5027, 1.0
          %v5034 = vadd.f32 %v5029, 1.0
          %v5035 = vadd.f32 %v5031, 1.0
          %v5036 = vrcp.pop %v5032
          %v5037 = vmul.f32 %v5032, %v5036
          %v5038 = vsub.f32 1.0, %v5037
          %v5039 = vmul.f32 %v5036, %v5038
          %v5040 = vadd.f32 %v5036, %v5039
          %vm5041 = vweird.f32 %v5032
          %vm5042 = vweird.f32 %v5036
          %vm5043 = vmor %vm5041, %vm5042
          %v5044 = vsel %vm5043, %v5036, %v5040
          %v5045 = vand.u32 2147483647, %v5032
          %vm5046 = vcmp.eq.f32.partialorder %v5045, 8.507059e+37
          %v5047 = vand.u32 %v5032, 2147483648
          %v5048 = vor.u32 1.1754944e-38, %v5047
          %v5049 = vsel %vm5046, %v5048, %v5044
          %v5050 = vmul.f32 1.0, %v5049
          %v5051 = vrcp.pop %v5033
          %v5052 = vmul.f32 %v5033, %v5051
          %v5053 = vsub.f32 1.0, %v5052
          %v5054 = vmul.f32 %v5051, %v5053
          %v5055 = vadd.f32 %v5051, %v5054
          %vm5056 = vweird.f32 %v5033
          %vm5057 = vweird.f32 %v5051
          %vm5058 = vmor %vm5056, %vm5057
          %v5059 = vsel %vm5058, %v5051, %v5055
          %v5060 = vand.u32 2147483647, %v5033
          %vm5061 = vcmp.eq.f32.partialorder %v5060, 8.507059e+37
          %v5062 = vand.u32 %v5033, 2147483648
          %v5063 = vor.u32 1.1754944e-38, %v5062
          %v5064 = vsel %vm5061, %v5063, %v5059
          %v5065 = vmul.f32 1.0, %v5064
          %v5066 = vrcp.pop %v5034
          %v5067 = vmul.f32 %v5034, %v5066
          %v5068 = vsub.f32 1.0, %v5067
          %v5069 = vmul.f32 %v5066, %v5068
          %v5070 = vadd.f32 %v5066, %v5069
          %vm5071 = vweird.f32 %v5034
          %vm5072 = vweird.f32 %v5066
          %vm5073 = vmor %vm5071, %vm5072
          %v5074 = vsel %vm5073, %v5066, %v5070
          %v5075 = vand.u32 2147483647, %v5034
          %vm5076 = vcmp.eq.f32.partialorder %v5075, 8.507059e+37
          %v5077 = vand.u32 %v5034, 2147483648
          %v5078 = vor.u32 1.1754944e-38, %v5077
          %v5079 = vsel %vm5076, %v5078, %v5074
          %v5080 = vmul.f32 1.0, %v5079
          %v5081 = vrcp.pop %v5035
          %v5082 = vmul.f32 %v5035, %v5081
          %v5083 = vsub.f32 1.0, %v5082
          %v5084 = vmul.f32 %v5081, %v5083
          %v5085 = vadd.f32 %v5081, %v5084
          %vm5086 = vweird.f32 %v5035
          %vm5087 = vweird.f32 %v5081
          %vm5088 = vmor %vm5086, %vm5087
          %v5089 = vsel %vm5088, %v5081, %v5085
          %v5090 = vand.u32 2147483647, %v5035
          %vm5091 = vcmp.eq.f32.partialorder %v5090, 8.507059e+37
          %v5092 = vand.u32 %v5035, 2147483648
          %v5093 = vor.u32 1.1754944e-38, %v5092
          %v5094 = vsel %vm5091, %v5093, %v5089
          %v5095 = vmul.f32 1.0, %v5094
          %v5096 = vmul.f32 %v4970, %v3941
          %v5097 = vmul.f32 %v4985, %v3942
          %v5098 = vmul.f32 %v5000, %v3943
          %v5099 = vmul.f32 %v5015, %v3944
          %v5100 = vmul.f32 %v4894, %v5016
          %v5101 = vmul.f32 %v4909, %v5017
          %v5102 = vmul.f32 %v4924, %v5018
          %v5103 = vmul.f32 %v4939, %v5019
          %v5104 = vadd.f32 %v5096, %v5100
          %v5105 = vadd.f32 %v5097, %v5101
          %v5106 = vadd.f32 %v5098, %v5102
          %v5107 = vadd.f32 %v5099, %v5103
          %v5108 = vtanh.pop %v5104
          %v5109 = vtanh.pop %v5105
          %v5110 = vtanh.pop %v5106
          %v5111 = vtanh.pop %v5107
          %v5112 = vmul.f32 %v5050, %v5108
          %v5113 = vmul.f32 %v5065, %v5109
          %v5114 = vmul.f32 %v5080, %v5110
          %v5115 = vmul.f32 %v5095, %v5111
          %v5116 = vpack.c.bf16 %v5113, %v5112
          %v5117 = vpack.c.bf16 %v5115, %v5114
          %v5118 = vstv %s3937
          %vm5119 = vcmp.lt.s32.totalorder %v5118, %v3798
          %vm5120 = vcmp.lt.s32.totalorder %v5118, %v3799
          %v5121 = vsel %vm5119, 1, 0
          %v5122 = vsel %vm5120, 1, 0
          %5123 = vset.pattern.permute.xlu0 0
          %5124 = vperm.xlu0 %5123, %v5121
          %v5125 = vpop.permute.xlu0 %5124
          %5126 = vset.pattern.permute.xlu0 0
          %5127 = vperm.xlu0 %5126, %v5122
          %v5128 = vpop.permute.xlu0 %5127
          %vm5129 = vcmp.eq.s32.totalorder %v5125, 1
          %vm5130 = vcmp.eq.s32.totalorder %v5128, 1
          %vm5131 = vmpackc.low %vm5129, %vm5129
          %vm5132 = vmpackc.low %vm5130, %vm5130
          %v5133 = vsel %vm5131, %v5116, %v3939
          %v5134 = vsel %vm5132, %v5117, %v3940
          %5135 = vst [vmem:[#allocation3] sm:$0xff] %v5133
          %5136 = vst [vmem:[#allocation3 + $0x8] sm:$0xff] %v5134
          %v5137 = vsel %vm5129, %v5104, %v3941
          %v5138 = vsel %vm5129, %v5105, %v3942
          %v5139 = vsel %vm5130, %v5106, %v3943
          %v5140 = vsel %vm5130, %v5107, %v3944
          %5141 = vst [vmem:[#allocation4] sm:$0xff] %v5137
          %5142 = vst [vmem:[#allocation4 + $0x8] sm:$0xff] %v5138
          %5143 = vst [vmem:[#allocation4 + $0x10] sm:$0xff] %v5139
          %5144 = vst [vmem:[#allocation4 + $0x18] sm:$0xff] %v5140
          %v5145 = vsel %vm5131, %v5116, 0
          %v5146 = vsel %vm5132, %v5117, 0
          %s5147 = smul.u32 %s3945, 2
          %s5148 = smul.addr %s5147, 4
          %s5149 = scalar_lea.vmem %s301, %s5148 [#allocation5]
          %5150 = vst [vmem:[%s5149] sm:$0xff] %v5145
          %5151 = vst [vmem:[%s5149 + $0x8] sm:$0xff] %v5146
        $region49: #{encoder_forward.5} parent=39 // loop_footer
          %s3933 = sadd.s32 1, %s3929
        $region50: #{encoder_forward.5} parent=39 // loop_footer_branch
          %3928 = sbr.rel target = $region46
        $region51: #{encoder_forward.5} parent=39 // loop_exit
          _
        %s5152 = sand.u32 %s179, 1
        %s5153 = sand.u32 %s179, 1
        %s5154 = smul.addr %s5153, 128
        %s5155 = scalar_lea.vmem [#allocation5], %s5154
        // Predicated region
        $region52: #{encoder_forward.5} parent=39 // pred_check
          %p5156 = pneg %p189
        $region53: #{encoder_forward.5} parent=39 // pred_check_branch
          %5158 = sbr.rel (%p5156) target = $region55
        $region54: #{encoder_forward.5} parent=39 // pred_region
          %s5159 = smul.u32 %s21, 2
          %s5160 = ssub.s32 1, %s5159
          %s5161 = smul.u32 %s20, %s5160
          %s5162 = sadd.s32 %s21, %s5161
          %s5163 = smul.u32 16, %s5162
          %s5164 = smul.u32 2, %s20
          %s5165 = smul.addr %s5163, 4
          %s5166 = sadd.s32 %s5164, %s5165
          %s5167 = smul.addr %s5166, 4
          %s5168 = scalar_lea.vmem %s5, %s5167
          // Predicated region
          $region56: #{encoder_forward.5} parent=54 // pred_check
            _
          $region57: #{encoder_forward.5} parent=54 // pred_check_branch
            %5170 = sbr.rel (0) target = $region59
          $region58: #{encoder_forward.5} parent=54 // pred_region
            // Predicated region
            $region60: #{encoder_forward.5} parent=58 // pred_check
              _
            $region61: #{encoder_forward.5} parent=58 // pred_check_branch
              %5172 = sbr.rel (0) target = $region63
            $region62: #{encoder_forward.5} parent=58 // pred_region
              // Predicated region
              $region75: #{encoder_forward.5} parent=62 // pred_check
                _
              $region76: #{encoder_forward.5} parent=62 // pred_check_branch
                %5218 = sbr.rel (0) target = $region78
              $region77: #{encoder_forward.5} parent=62 // pred_region
                loop: start=0, step=1, limit=1
                $region79: #{encoder_forward.5} parent=77 // loop_pre_header
                  _
                $region80: #{encoder_forward.5} parent=77 // loop_header
                  %s5220 = sphi 0, %s5224
                  %p5221 = scmp.ge.s32.totalorder %s5220, 1
                  %s5225 = sphi %s5155, %s5155
                  %s5226 = sphi %s5168, %s5168
                $region81: #{encoder_forward.5} parent=77 // loop_header_branch
                  %5223 = sbr.rel (%p5221) target = $region85
                $region82: #{encoder_forward.5} parent=77 // loop_body
                  %v5227 = vld [vmem:[%s5225] sm:$0xff]
                  %5228 = vst [vmem:[%s5226] sm:$0xff] %v5227
                  %v5229 = vld [vmem:[%s5225 + $0x8] sm:$0xff]
                  %5230 = vst [vmem:[%s5226 + $0x10] sm:$0xff] %v5229
                  %v5231 = vld [vmem:[%s5225 + $0x10] sm:$0xff]
                  %5232 = vst [vmem:[%s5226 + $0x20] sm:$0xff] %v5231
                  %v5233 = vld [vmem:[%s5225 + $0x18] sm:$0xff]
                  %5234 = vst [vmem:[%s5226 + $0x30] sm:$0xff] %v5233
                  %v5235 = vld [vmem:[%s5225 + $0x20] sm:$0xff]
                  %5236 = vst [vmem:[%s5226 + $0x40] sm:$0xff] %v5235
                  %v5237 = vld [vmem:[%s5225 + $0x28] sm:$0xff]
                  %5238 = vst [vmem:[%s5226 + $0x50] sm:$0xff] %v5237
                  %v5239 = vld [vmem:[%s5225 + $0x30] sm:$0xff]
                  %5240 = vst [vmem:[%s5226 + $0x60] sm:$0xff] %v5239
                  %v5241 = vld [vmem:[%s5225 + $0x38] sm:$0xff]
                  %5242 = vst [vmem:[%s5226 + $0x70] sm:$0xff] %v5241
                  %v5243 = vld [vmem:[%s5225 + $0x40] sm:$0xff]
                  %5244 = vst [vmem:[%s5226 + $0x80] sm:$0xff] %v5243
                  %v5245 = vld [vmem:[%s5225 + $0x48] sm:$0xff]
                  %5246 = vst [vmem:[%s5226 + $0x90] sm:$0xff] %v5245
                  %v5247 = vld [vmem:[%s5225 + $0x50] sm:$0xff]
                  %5248 = vst [vmem:[%s5226 + $0xa0] sm:$0xff] %v5247
                  %v5249 = vld [vmem:[%s5225 + $0x58] sm:$0xff]
                  %5250 = vst [vmem:[%s5226 + $0xb0] sm:$0xff] %v5249
                  %v5251 = vld [vmem:[%s5225 + $0x60] sm:$0xff]
                  %5252 = vst [vmem:[%s5226 + $0xc0] sm:$0xff] %v5251
                  %v5253 = vld [vmem:[%s5225 + $0x68] sm:$0xff]
                  %5254 = vst [vmem:[%s5226 + $0xd0] sm:$0xff] %v5253
                  %v5255 = vld [vmem:[%s5225 + $0x70] sm:$0xff]
                  %5256 = vst [vmem:[%s5226 + $0xe0] sm:$0xff] %v5255
                  %v5257 = vld [vmem:[%s5225 + $0x78] sm:$0xff]
                  %5258 = vst [vmem:[%s5226 + $0xf0] sm:$0xff] %v5257
                $region83: #{encoder_forward.5} parent=77 // loop_footer
                  %s5224 = sadd.s32 1, %s5220
                $region84: #{encoder_forward.5} parent=77 // loop_footer_branch
                  %5219 = sbr.rel target = $region80
                $region85: #{encoder_forward.5} parent=77 // loop_exit
                  _
              $region78: #{encoder_forward.5} parent=62 // pred_fallthru
                _
              // Predicated region
              $region86: #{encoder_forward.5} parent=62 // pred_check
                _
              $region87: #{encoder_forward.5} parent=62 // pred_check_branch
                %5260 = sbr.rel target = $region89
              $region88: #{encoder_forward.5} parent=62 // pred_region
                _
              $region89: #{encoder_forward.5} parent=62 // pred_fallthru
                _
            $region63: #{encoder_forward.5} parent=58 // pred_fallthru
              _
            // Predicated region
            $region64: #{encoder_forward.5} parent=58 // pred_check
              _
            $region65: #{encoder_forward.5} parent=58 // pred_check_branch
              %5174 = sbr.rel target = $region67
            $region66: #{encoder_forward.5} parent=58 // pred_region
              %s5176 = ssub.s32 256, 1
              loop: start=0, step=1, limit=1
              $region68: #{encoder_forward.5} parent=66 // loop_pre_header
                _
              $region69: #{encoder_forward.5} parent=66 // loop_header
                %s5178 = sphi 0, %s5182
                %p5179 = scmp.ge.s32.totalorder %s5178, 1
                %s5183 = sphi %s5155, %s5155
                %s5184 = sphi %s5168, %s5168
              $region70: #{encoder_forward.5} parent=66 // loop_header_branch
                %5181 = sbr.rel (%p5179) target = $region74
              $region71: #{encoder_forward.5} parent=66 // loop_body
                %v5185 = vld [vmem:[%s5183] sm:%s5176]
                %5186 = vst [vmem:[%s5184] sm:%s5176] %v5185
                %v5187 = vld [vmem:[%s5183 + $0x8] sm:%s5176]
                %5188 = vst [vmem:[%s5184 + $0x10] sm:%s5176] %v5187
                %v5189 = vld [vmem:[%s5183 + $0x10] sm:%s5176]
                %5190 = vst [vmem:[%s5184 + $0x20] sm:%s5176] %v5189
                %v5191 = vld [vmem:[%s5183 + $0x18] sm:%s5176]
                %5192 = vst [vmem:[%s5184 + $0x30] sm:%s5176] %v5191
                %v5193 = vld [vmem:[%s5183 + $0x20] sm:%s5176]
                %5194 = vst [vmem:[%s5184 + $0x40] sm:%s5176] %v5193
                %v5195 = vld [vmem:[%s5183 + $0x28] sm:%s5176]
                %5196 = vst [vmem:[%s5184 + $0x50] sm:%s5176] %v5195
                %v5197 = vld [vmem:[%s5183 + $0x30] sm:%s5176]
                %5198 = vst [vmem:[%s5184 + $0x60] sm:%s5176] %v5197
                %v5199 = vld [vmem:[%s5183 + $0x38] sm:%s5176]
                %5200 = vst [vmem:[%s5184 + $0x70] sm:%s5176] %v5199
                %v5201 = vld [vmem:[%s5183 + $0x40] sm:%s5176]
                %5202 = vst [vmem:[%s5184 + $0x80] sm:%s5176] %v5201
                %v5203 = vld [vmem:[%s5183 + $0x48] sm:%s5176]
                %5204 = vst [vmem:[%s5184 + $0x90] sm:%s5176] %v5203
                %v5205 = vld [vmem:[%s5183 + $0x50] sm:%s5176]
                %5206 = vst [vmem:[%s5184 + $0xa0] sm:%s5176] %v5205
                %v5207 = vld [vmem:[%s5183 + $0x58] sm:%s5176]
                %5208 = vst [vmem:[%s5184 + $0xb0] sm:%s5176] %v5207
                %v5209 = vld [vmem:[%s5183 + $0x60] sm:%s5176]
                %5210 = vst [vmem:[%s5184 + $0xc0] sm:%s5176] %v5209
                %v5211 = vld [vmem:[%s5183 + $0x68] sm:%s5176]
                %5212 = vst [vmem:[%s5184 + $0xd0] sm:%s5176] %v5211
                %v5213 = vld [vmem:[%s5183 + $0x70] sm:%s5176]
                %5214 = vst [vmem:[%s5184 + $0xe0] sm:%s5176] %v5213
                %v5215 = vld [vmem:[%s5183 + $0x78] sm:%s5176]
                %5216 = vst [vmem:[%s5184 + $0xf0] sm:%s5176] %v5215
              $region72: #{encoder_forward.5} parent=66 // loop_footer
                %s5182 = sadd.s32 1, %s5178
              $region73: #{encoder_forward.5} parent=66 // loop_footer_branch
                %5177 = sbr.rel target = $region69
              $region74: #{encoder_forward.5} parent=66 // loop_exit
                _
            $region67: #{encoder_forward.5} parent=58 // pred_fallthru
              _
          $region59: #{encoder_forward.5} parent=54 // pred_fallthru
            _
          %5261 = vnop
        $region55: #{encoder_forward.5} parent=39 // pred_fallthru
          _
      $region40: #{encoder_forward.5} parent=5 // pred_fallthru
        _
      %p5262 = scmp.le.s32.totalorder 2, %s11
      // Predicated region
      $region90: #{encoder_forward.5} parent=5 // pred_check
        %p5263 = pneg %p5262
      $region91: #{encoder_forward.5} parent=5 // pred_check_branch
        %5265 = sbr.rel (%p5263) target = $region93
      $region92: #{encoder_forward.5} parent=5 // pred_region
        %s5266 = ssub.s32 %s11, 2
        // Predicated region
        $region94: #{encoder_forward.5} parent=92 // pred_check
          %p5267 = pneg %p195
        $region95: #{encoder_forward.5} parent=92 // pred_check_branch
          %5269 = sbr.rel (%p5267) target = $region97
        $region96: #{encoder_forward.5} parent=92 // pred_region
          %s5270 = sand.u32 %s180, 1
          %s5271 = sand.u32 %s180, 1
          %s5272 = smul.addr %s5271, 128
          %s5273 = scalar_lea.vmem [#allocation5], %s5272
        $region97: #{encoder_forward.5} parent=92 // pred_fallthru
          _
      $region93: #{encoder_forward.5} parent=5 // pred_fallthru
        _
    $region6: #{encoder_forward.5} parent=1 // loop_footer
      %s15 = sadd.s32 1, %s11
    $region7: #{encoder_forward.5} parent=1 // loop_footer_branch
      %10 = sbr.rel target = $region3
    $region8: #{encoder_forward.5} parent=1 // loop_exit
      _

</llo_original>
